<compile_context>
chip_gen: v7x
topology: tpu7x:2x2x1
jax: 0.10.0
libtpu: 0.0.40
codegen_flags: <defaults>
</compile_context>

<pallas_src>
import math
import functools

import numpy as np
import jax
import jax.numpy as jnp
from jax.experimental import pallas as pl
from jax.experimental.pallas import tpu as pltpu


# ------------------------------------------------------------------ fused kernel


def _fused_transformer_kernel(
    x_tok_ref, y_tok_ref, pe_ref, in_emb_ref, out_emb_ref,
    wqkvo_ref, fc1w_ref, fc2w_ref, bvec_ref, fc1b_ref,
    wf_ref, bf_ref,
    o_ref,
    *, num_enc, num_dec, key_dim, eps):
    S, D = pe_ref.shape
    V = in_emb_ref.shape[0]
    Bb = o_ref.shape[0]            # full batch (grid-less) or 1 (per-core block on v7x)
    N = Bb * S
    scale = 1.0 / math.sqrt(key_dim)

    def linear(x, w, b):
        # Weights are pre-transposed to [in, out]: plain x @ W, no RHS relayout.
        return jnp.dot(x, w, preferred_element_type=jnp.float32) + b

    def layernorm(z, g, b):
        mu = jnp.mean(z, axis=-1, keepdims=True)
        zc = z - mu
        var = jnp.mean(zc * zc, axis=-1, keepdims=True)
        return zc * jax.lax.rsqrt(var + eps) * g + b

    def attention(q, k, v):
        # Reference semantics (batch <= key_dim): per batch  att = (K @ Q) * scale,
        # softmax over dim 1 of the [B,S,S] tensor, then score @ V.  Batched MXU ops,
        # no per-batch loops / concatenates. Reshapes are free sublane regroups (S%8==0).
        q3 = q.reshape(Bb, S, D)
        k3 = k.reshape(Bb, S, D)
        v3 = v.reshape(Bb, S, D)
        att = jnp.einsum('bim,bmj->bij', k3, q3,
                         preferred_element_type=jnp.float32) * scale
        m = jnp.max(att, axis=1, keepdims=True)
        e = jnp.exp(att - m)
        s = jnp.sum(e, axis=1, keepdims=True)
        score = e * pl.reciprocal(s, approx=True)        # EUP reciprocal (free slot)
        out = jnp.einsum('bij,bjd->bid', score, v3,
                         preferred_element_type=jnp.float32)
        return out.reshape(N, D)

    def mha(q_in, kv_in, wq, wk, wv, wo, bq, bk, bv, bo):
        q = linear(q_in, wq, bq)
        k = linear(kv_in, wk, bk)
        v = linear(kv_in, wv, bv)
        return linear(attention(q, k, v), wo, bo)

    def fc_block(x, w1, b1, w2, b2):
        h = jnp.maximum(linear(x, w1, b1), 0.0)
        return linear(h, w2, b2)

    # ---- embeddings + positional encodings, in-kernel (one-hot gather on the MXU) ----
    pe_rep = jnp.tile(pe_ref[...], (Bb, 1))              # [N, D], hoisted (shared x/y)
    col = jax.lax.broadcasted_iota(jnp.int32, (N, V), 1)

    def embed(tok_ref, emb_ref):
        tok = tok_ref[...].reshape(N, 1)                 # [N, 1] int32
        onehot = (tok == col).astype(jnp.float32)        # [N, V]
        emb = jnp.dot(onehot, emb_ref[...], preferred_element_type=jnp.float32)
        return emb + pe_rep

    x = embed(x_tok_ref, in_emb_ref)                     # [N, D]
    y = embed(y_tok_ref, out_emb_ref)                    # [N, D]

    def layer_weights(li):
        wq, wk, wv, wo = (wqkvo_ref[li, 0], wqkvo_ref[li, 1],
                          wqkvo_ref[li, 2], wqkvo_ref[li, 3])
        bl = bvec_ref[li]                                # [7, D]
        bq, bk, bv, bo = bl[0:1], bl[1:2], bl[2:3], bl[3:4]
        fc2b, g, beta = bl[4:5], bl[5:6], bl[6:7]        # one LayerNorm per block
        return (wq, wk, wv, wo, bq, bk, bv, bo,
                fc1w_ref[li], fc1b_ref[li], fc2w_ref[li], fc2b, g, beta)

    # ---------------- encoder stack (static unroll; fine at this depth) -------------
    for l in range(num_enc):
        (wq, wk, wv, wo, bq, bk, bv, bo,
         fc1w, fc1b, fc2w, fc2b, g, beta) = layer_weights(l)
        h1 = mha(x, x, wq, wk, wv, wo, bq, bk, bv, bo)
        out1 = layernorm(x + h1, g, beta)
        h2 = fc_block(out1, fc1w, fc1b, fc2w, fc2b)
        x = layernorm(out1 + h2, g, beta)

    # ---------------- decoder stack --------------------------------------------------
    for l in range(num_dec):
        li = num_enc + l
        (wq, wk, wv, wo, bq, bk, bv, bo,
         fc1w, fc1b, fc2w, fc2b, g, beta) = layer_weights(li)
        h1 = mha(y, y, wq, wk, wv, wo, bq, bk, bv, bo)   # is_masked ignored (reference)
        out1 = layernorm(y + h1, g, beta)
        h2 = mha(y, x, wq, wk, wv, wo, bq, bk, bv, bo)   # quirk: query = y, not out1
        out2 = layernorm(out1 + h2, g, beta)
        h3 = fc_block(out2, fc1w, fc1b, fc2w, fc2b)
        y = layernorm(out2 + h3, g, beta)

    # ---------------- final linear + softmax over dim=1 (sequence axis) --------------
    final = linear(y, wf_ref[...], bf_ref[...]).reshape(Bb, S, D)
    m = jnp.max(final, axis=1, keepdims=True)
    e = jnp.exp(final - m)
    s = jnp.sum(e, axis=1, keepdims=True)
    o_ref[...] = (e / s).astype(o_ref.dtype)             # exact divide for final output


# ------------------------------------------------------------------ model wrapper


def make_positional_encodings(seq_len, d_model):
    pe = np.array(
        [[pos / np.power(10000.0, 2 * (h // 2) / d_model) for h in range(d_model)]
         for pos in range(seq_len)],
        dtype=np.float64,
    )
    pe[0::2] = np.sin(pe[0::2])   # quirk: even/odd SEQUENCE positions, as in reference
    pe[1::2] = np.cos(pe[1::2])
    return jnp.asarray(pe, dtype=jnp.float32)            # [S, D]; broadcast over batch


def _has_multiple_tensorcores():
    # Only v7x-class chips have 2 TensorCores/chip; v5e/v6e are single-TC.
    try:
        kind = jax.devices()[0].device_kind.lower()
    except Exception:
        return False
    return ("v7" in kind) or ("7x" in kind)


def transformer_forward(params, x_tokens, y_tokens, *, batch_grid=None):
    D, H, FC = params["D"], params["H"], params["FC"]
    key_dim = D // H
    B, S = x_tokens.shape
    assert B <= key_dim, "batch must be <= key_dim (D//H) for reference semantics"
    assert S == D, "reference attention math requires seq_len == model_dimension"

    num_enc, num_dec = params["num_enc"], params["num_dec"]
    L2 = params["wqkvo"].shape[0]
    V = params["in_emb"].shape[0]

    pe = make_positional_encodings(S, D)                          # [S, D] constant
    x_tok = x_tokens.astype(jnp.int32).reshape(B, S, 1)
    y_tok = y_tokens.astype(jnp.int32).reshape(B, S, 1)

    kernel = functools.partial(
        _fused_transformer_kernel,
        num_enc=num_enc, num_dec=num_dec, key_dim=key_dim, eps=1e-5)

    operands = (x_tok, y_tok, pe, params["in_emb"], params["out_emb"],
                params["wqkvo"], params["fc1w"], params["fc2w"],
                params["bvec"], params["fc1b"],
                params["w_final"], params["b_final"])

    if batch_grid is None:
        batch_grid = _has_multiple_tensorcores()

    if not batch_grid:
        # Single-TC generations (v5e/v6e): one grid-less call, everything VMEM-resident.
        return pl.pallas_call(
            kernel,
            out_shape=jax.ShapeDtypeStruct((B, S, D), jnp.float32),
        )(*operands)

    # Multi-TC (v7x): shard the fully independent batch elements across TensorCores.
    def rep(*shape):
        return pl.BlockSpec(shape, lambda b, _s=shape: (0,) * len(_s))

    in_specs = [
        pl.BlockSpec((1, S, 1), lambda b: (b, 0, 0)),             # x_tok
        pl.BlockSpec((1, S, 1), lambda b: (b, 0, 0)),             # y_tok
        rep(S, D), rep(V, D), rep(V, D),                          # pe, in_emb, out_emb
        rep(L2, 4, D, D), rep(L2, D, FC), rep(L2, FC, D),         # packed weight slabs
        rep(L2, 7, D), rep(L2, 1, FC),
        rep(D, D), rep(1, D),                                     # final linear
    ]
    return pl.pallas_call(
        kernel,
        out_shape=jax.ShapeDtypeStruct((B, S, D), jnp.float32),
        grid=(B,),
        in_specs=in_specs,
        out_specs=pl.BlockSpec((1, S, D), lambda b: (b, 0, 0)),
        compiler_params=pltpu.CompilerParams(dimension_semantics=("parallel",)),
    )(*operands)


# ------------------------------------------------------------------ param init


def init_linear(key, in_dim, out_dim):
    # PyTorch nn.Linear init; weight stored PRE-TRANSPOSED as [in, out] so the kernel
    # computes plain x @ W (no MXU-side transpose).
    k1, k2 = jax.random.split(key)
    bound = 1.0 / math.sqrt(in_dim)
    w = jax.random.uniform(k1, (in_dim, out_dim), jnp.float32, -bound, bound)
    b = jax.random.uniform(k2, (out_dim,), jnp.float32, -bound, bound)
    return w, b


def init_block(key, D, FC):
    ks = jax.random.split(key, 6)
    wq, bq = init_linear(ks[0], D, D)
    wk, bk = init_linear(ks[1], D, D)
    wv, bv = init_linear(ks[2], D, D)
    wo, bo = init_linear(ks[3], D, D)
    fc1w, fc1b = init_linear(ks[4], D, FC)
    fc2w, fc2b = init_linear(ks[5], FC, D)
    return dict(
        qkvo=jnp.stack([wq, wk, wv, wo], axis=0),                 # [4, D, D]
        fc1w=fc1w, fc2w=fc2w,                                     # [D, FC], [FC, D]
        # Order: bq, bk, bv, bo, fc2b, ln_gamma, ln_beta (one LayerNorm per block).
        bvec=jnp.stack([bq, bk, bv, bo, fc2b,
                        jnp.ones((D,), jnp.float32),
                        jnp.zeros((D,), jnp.float32)], axis=0),   # [7, D]
        fc1b=fc1b[None, :],                                       # [1, FC]
    )


def init_params(key, D, H, FC, num_encoder, vocab_size):
    ks = jax.random.split(key, 5)
    enc_keys = jax.random.split(ks[0], num_encoder)
    dec_keys = jax.random.split(ks[1], num_encoder)   # reference builds num_encoder decoders
    blocks = [init_block(k, D, FC) for k in list(enc_keys) + list(dec_keys)]
    in_emb = 0.05 * jax.random.normal(ks[2], (vocab_size, D), jnp.float32)
    in_emb = in_emb.at[0].set(0.0)                    # padding_idx=0
    out_emb = 0.05 * jax.random.normal(ks[3], (vocab_size, D), jnp.float32)
    out_emb = out_emb.at[0].set(0.0)
    w_final, b_final = init_linear(ks[4], D, D)
    return dict(
        D=D, H=H, FC=FC, num_enc=num_encoder, num_dec=num_encoder,
        # One DMA per slab (encoder layers first, then decoder layers).
        wqkvo=jnp.stack([b["qkvo"] for b in blocks], axis=0),     # [2L, 4, D, D]
        fc1w=jnp.stack([b["fc1w"] for b in blocks], axis=0),      # [2L, D, FC]
        fc2w=jnp.stack([b["fc2w"] for b in blocks], axis=0),      # [2L, FC, D]
        bvec=jnp.stack([b["bvec"] for b in blocks], axis=0),      # [2L, 7, D]
        fc1b=jnp.stack([b["fc1b"] for b in blocks], axis=0),      # [2L, 1, FC]
        in_emb=in_emb, out_emb=out_emb,
        w_final=w_final, b_final=b_final[None, :],
    )


# ------------------------------------------------------------------------- main


if __name__ == "__main__":
    # Small, self-consistent shapes implied by the forward pass:
    # attention only type-checks when seq_len == model_dimension, and the batch-axis
    # head slicing needs batch <= key_dim, so: D = S = 32, H = 8 (key_dim 4), B = 2.
    D, H, FC = 32, 8, 64
    S, B = D, 2
    NUM_ENC = 2
    VOCAB = 100

    root = jax.random.PRNGKey(0)
    k_params, k_x, k_y = jax.random.split(root, 3)

    params = init_params(k_params, D, H, FC, NUM_ENC, VOCAB)
    x_tokens = jax.random.randint(k_x, (B, S), 0, VOCAB, dtype=jnp.int32)
    y_tokens = jax.random.randint(k_y, (B, S), 0, VOCAB, dtype=jnp.int32)

    fwd = jax.jit(lambda xt, yt: transformer_forward(params, xt, yt))
    out = jax.block_until_ready(fwd(x_tokens, y_tokens))

    assert out.shape == (B, S, D)
    assert bool(jnp.all(jnp.isfinite(out)))
    # softmax over dim=1 => for fixed (b, d), the sequence axis sums to 1
    assert bool(jnp.allclose(jnp.sum(out, axis=1), 1.0, atol=1e-4))
    print("KERNEL_OK")
</pallas_src>

<mosaic_0001>
module attributes {stable_mosaic.version = 11 : i64} {
  func.func @_fused_transformer_kernel(%arg0: memref<2x32x1xi32, #tpu.memory_space<vmem>>, %arg1: memref<2x32x1xi32, #tpu.memory_space<vmem>>, %arg2: memref<32x32xf32, #tpu.memory_space<vmem>>, %arg3: memref<100x32xf32, #tpu.memory_space<vmem>>, %arg4: memref<100x32xf32, #tpu.memory_space<vmem>>, %arg5: memref<4x4x32x32xf32, #tpu.memory_space<vmem>>, %arg6: memref<4x32x64xf32, #tpu.memory_space<vmem>>, %arg7: memref<4x64x32xf32, #tpu.memory_space<vmem>>, %arg8: memref<4x7x32xf32, #tpu.memory_space<vmem>>, %arg9: memref<4x1x64xf32, #tpu.memory_space<vmem>>, %arg10: memref<32x32xf32, #tpu.memory_space<vmem>>, %arg11: memref<1x32xf32, #tpu.memory_space<vmem>>, %arg12: memref<2x32x32xf32, #tpu.memory_space<vmem>>) attributes {dimension_semantics = [], scalar_prefetch = 0 : i64, scratch_operands = 0 : i64, tpu.core_type = #tpu.core_type<tc>} {
    %c0 = arith.constant 0 : index
    %c0_0 = arith.constant 0 : index
    %0 = vector.load %arg2[%c0, %c0_0] : memref<32x32xf32, #tpu.memory_space<vmem>>, vector<32x32xf32>
    %1 = tpu.concatenate %0, %0 in 0 : vector<32x32xf32>, vector<32x32xf32> -> vector<64x32xf32>
    %2 = tpu.iota {dimensions = array<i32: 1>} : vector<64x100xi32>
    %c0_1 = arith.constant 0 : index
    %c0_2 = arith.constant 0 : index
    %c0_3 = arith.constant 0 : index
    %3 = vector.load %arg0[%c0_1, %c0_2, %c0_3] : memref<2x32x1xi32, #tpu.memory_space<vmem>>, vector<2x32x1xi32>
    %4 = vector.shape_cast %3 : vector<2x32x1xi32> to vector<64x1xi32>
    %5 = vector.broadcast %4 : vector<64x1xi32> to vector<64x100xi32>
    %6 = arith.cmpi eq, %5, %2 : vector<64x100xi32>
    %7 = arith.extui %6 : vector<64x100xi1> to vector<64x100xi32>
    %8 = arith.sitofp %7 : vector<64x100xi32> to vector<64x100xf32>
    %c0_4 = arith.constant 0 : index
    %c0_5 = arith.constant 0 : index
    %9 = vector.load %arg3[%c0_4, %c0_5] : memref<100x32xf32, #tpu.memory_space<vmem>>, vector<100x32xf32>
    %cst = arith.constant dense<0.000000e+00> : vector<64x32xf32>
    %10 = tpu.matmul %8, %9, %cst {dimension_numbers = #tpu.dot_dimension_numbers<[1], [0], [0], [1], [0, 0, 1, 1], [], []>} : vector<64x100xf32>, vector<100x32xf32>, vector<64x32xf32> -> vector<64x32xf32>
    %11 = arith.addf %10, %1 : vector<64x32xf32>
    %c0_6 = arith.constant 0 : index
    %c0_7 = arith.constant 0 : index
    %c0_8 = arith.constant 0 : index
    %12 = vector.load %arg1[%c0_6, %c0_7, %c0_8] : memref<2x32x1xi32, #tpu.memory_space<vmem>>, vector<2x32x1xi32>
    %13 = vector.shape_cast %12 : vector<2x32x1xi32> to vector<64x1xi32>
    %14 = vector.broadcast %13 : vector<64x1xi32> to vector<64x100xi32>
    %15 = arith.cmpi eq, %14, %2 : vector<64x100xi32>
    %16 = arith.extui %15 : vector<64x100xi1> to vector<64x100xi32>
    %17 = arith.sitofp %16 : vector<64x100xi32> to vector<64x100xf32>
    %c0_9 = arith.constant 0 : index
    %c0_10 = arith.constant 0 : index
    %18 = vector.load %arg4[%c0_9, %c0_10] : memref<100x32xf32, #tpu.memory_space<vmem>>, vector<100x32xf32>
    %cst_11 = arith.constant dense<0.000000e+00> : vector<64x32xf32>
    %19 = tpu.matmul %17, %18, %cst_11 {dimension_numbers = #tpu.dot_dimension_numbers<[1], [0], [0], [1], [0, 0, 1, 1], [], []>} : vector<64x100xf32>, vector<100x32xf32>, vector<64x32xf32> -> vector<64x32xf32>
    %20 = arith.addf %19, %1 : vector<64x32xf32>
    %c0_12 = arith.constant 0 : index
    %c0_13 = arith.constant 0 : index
    %c0_14 = arith.constant 0 : index
    %c0_15 = arith.constant 0 : index
    %21 = vector.load %arg5[%c0_12, %c0_13, %c0_14, %c0_15] : memref<4x4x32x32xf32, #tpu.memory_space<vmem>>, vector<1x1x32x32xf32>
    %22 = vector.shape_cast %21 : vector<1x1x32x32xf32> to vector<32x32xf32>
    %c0_16 = arith.constant 0 : index
    %c1 = arith.constant 1 : index
    %c0_17 = arith.constant 0 : index
    %c0_18 = arith.constant 0 : index
    %23 = vector.load %arg5[%c0_16, %c1, %c0_17, %c0_18] : memref<4x4x32x32xf32, #tpu.memory_space<vmem>>, vector<1x1x32x32xf32>
    %24 = vector.shape_cast %23 : vector<1x1x32x32xf32> to vector<32x32xf32>
    %c0_19 = arith.constant 0 : index
    %c2 = arith.constant 2 : index
    %c0_20 = arith.constant 0 : index
    %c0_21 = arith.constant 0 : index
    %25 = vector.load %arg5[%c0_19, %c2, %c0_20, %c0_21] : memref<4x4x32x32xf32, #tpu.memory_space<vmem>>, vector<1x1x32x32xf32>
    %26 = vector.shape_cast %25 : vector<1x1x32x32xf32> to vector<32x32xf32>
    %c0_22 = arith.constant 0 : index
    %c3 = arith.constant 3 : index
    %c0_23 = arith.constant 0 : index
    %c0_24 = arith.constant 0 : index
    %27 = vector.load %arg5[%c0_22, %c3, %c0_23, %c0_24] : memref<4x4x32x32xf32, #tpu.memory_space<vmem>>, vector<1x1x32x32xf32>
    %28 = vector.shape_cast %27 : vector<1x1x32x32xf32> to vector<32x32xf32>
    %c0_25 = arith.constant 0 : index
    %c0_26 = arith.constant 0 : index
    %c0_27 = arith.constant 0 : index
    %29 = vector.load %arg8[%c0_25, %c0_26, %c0_27] : memref<4x7x32xf32, #tpu.memory_space<vmem>>, vector<1x7x32xf32>
    %30 = vector.shape_cast %29 : vector<1x7x32xf32> to vector<7x32xf32>
    %31 = vector.extract_strided_slice %30 {offsets = [0, 0], sizes = [1, 32], strides = [1, 1]} : vector<7x32xf32> to vector<1x32xf32>
    %32 = vector.extract_strided_slice %30 {offsets = [1, 0], sizes = [1, 32], strides = [1, 1]} : vector<7x32xf32> to vector<1x32xf32>
    %33 = vector.extract_strided_slice %30 {offsets = [2, 0], sizes = [1, 32], strides = [1, 1]} : vector<7x32xf32> to vector<1x32xf32>
    %34 = vector.extract_strided_slice %30 {offsets = [3, 0], sizes = [1, 32], strides = [1, 1]} : vector<7x32xf32> to vector<1x32xf32>
    %35 = vector.extract_strided_slice %30 {offsets = [4, 0], sizes = [1, 32], strides = [1, 1]} : vector<7x32xf32> to vector<1x32xf32>
    %36 = vector.extract_strided_slice %30 {offsets = [5, 0], sizes = [1, 32], strides = [1, 1]} : vector<7x32xf32> to vector<1x32xf32>
    %37 = vector.extract_strided_slice %30 {offsets = [6, 0], sizes = [1, 32], strides = [1, 1]} : vector<7x32xf32> to vector<1x32xf32>
    %c0_28 = arith.constant 0 : index
    %c0_29 = arith.constant 0 : index
    %c0_30 = arith.constant 0 : index
    %38 = vector.load %arg6[%c0_28, %c0_29, %c0_30] : memref<4x32x64xf32, #tpu.memory_space<vmem>>, vector<1x32x64xf32>
    %39 = vector.shape_cast %38 : vector<1x32x64xf32> to vector<32x64xf32>
    %c0_31 = arith.constant 0 : index
    %c0_32 = arith.constant 0 : index
    %c0_33 = arith.constant 0 : index
    %40 = vector.load %arg9[%c0_31, %c0_32, %c0_33] : memref<4x1x64xf32, #tpu.memory_space<vmem>>, vector<1x1x64xf32>
    %41 = vector.shape_cast %40 : vector<1x1x64xf32> to vector<1x64xf32>
    %c0_34 = arith.constant 0 : index
    %c0_35 = arith.constant 0 : index
    %c0_36 = arith.constant 0 : index
    %42 = vector.load %arg7[%c0_34, %c0_35, %c0_36] : memref<4x64x32xf32, #tpu.memory_space<vmem>>, vector<1x64x32xf32>
    %43 = vector.shape_cast %42 : vector<1x64x32xf32> to vector<64x32xf32>
    %cst_37 = arith.constant dense<0.000000e+00> : vector<64x32xf32>
    %44 = tpu.matmul %11, %22, %cst_37 {dimension_numbers = #tpu.dot_dimension_numbers<[1], [0], [0], [1], [0, 0, 1, 1], [], []>} : vector<64x32xf32>, vector<32x32xf32>, vector<64x32xf32> -> vector<64x32xf32>
    %45 = vector.broadcast %31 : vector<1x32xf32> to vector<64x32xf32>
    %46 = arith.addf %44, %45 : vector<64x32xf32>
    %cst_38 = arith.constant dense<0.000000e+00> : vector<64x32xf32>
    %47 = tpu.matmul %11, %24, %cst_38 {dimension_numbers = #tpu.dot_dimension_numbers<[1], [0], [0], [1], [0, 0, 1, 1], [], []>} : vector<64x32xf32>, vector<32x32xf32>, vector<64x32xf32> -> vector<64x32xf32>
    %48 = vector.broadcast %32 : vector<1x32xf32> to vector<64x32xf32>
    %49 = arith.addf %47, %48 : vector<64x32xf32>
    %cst_39 = arith.constant dense<0.000000e+00> : vector<64x32xf32>
    %50 = tpu.matmul %11, %26, %cst_39 {dimension_numbers = #tpu.dot_dimension_numbers<[1], [0], [0], [1], [0, 0, 1, 1], [], []>} : vector<64x32xf32>, vector<32x32xf32>, vector<64x32xf32> -> vector<64x32xf32>
    %51 = vector.broadcast %33 : vector<1x32xf32> to vector<64x32xf32>
    %52 = arith.addf %50, %51 : vector<64x32xf32>
    %53 = vector.shape_cast %46 : vector<64x32xf32> to vector<2x32x32xf32>
    %54 = vector.shape_cast %49 : vector<64x32xf32> to vector<2x32x32xf32>
    %55 = vector.shape_cast %52 : vector<64x32xf32> to vector<2x32x32xf32>
    "tpu.trace_start"() <{level = 10 : i32, message = "bim,bmj->bij"}> : () -> ()
    %cst_40 = arith.constant dense<0.000000e+00> : vector<2x32x32xf32>
    %56 = tpu.matmul %54, %53, %cst_40 {dimension_numbers = #tpu.dot_dimension_numbers<[2], [1], [1], [2], [0, 0, 0, 1, 1, 2], [0], [0]>} : vector<2x32x32xf32>, vector<2x32x32xf32>, vector<2x32x32xf32> -> vector<2x32x32xf32>
    "tpu.trace_stop"() : () -> ()
    %cst_41 = arith.constant 5.000000e-01 : f32
    %57 = vector.broadcast %cst_41 : f32 to vector<2x32x32xf32>
    %58 = arith.mulf %56, %57 : vector<2x32x32xf32>
    %cst_42 = arith.constant dense<0xFF800000> : vector<2x32xf32>
    %59 = vector.multi_reduction <maximumf>, %58, %cst_42 [1] : vector<2x32x32xf32> to vector<2x32xf32>
    %60 = vector.shape_cast %59 : vector<2x32xf32> to vector<2x1x32xf32>
    %61 = vector.broadcast %60 : vector<2x1x32xf32> to vector<2x32x32xf32>
    %62 = arith.subf %58, %61 : vector<2x32x32xf32>
    %63 = math.exp %62 : vector<2x32x32xf32>
    %cst_43 = arith.constant dense<0.000000e+00> : vector<2x32xf32>
    %64 = vector.multi_reduction <add>, %63, %cst_43 [1] : vector<2x32x32xf32> to vector<2x32xf32>
    %65 = vector.shape_cast %64 : vector<2x32xf32> to vector<2x1x32xf32>
    %66 = tpu.reciprocal %65 {approx = true} : vector<2x1x32xf32> -> vector<2x1x32xf32>
    %67 = vector.broadcast %66 : vector<2x1x32xf32> to vector<2x32x32xf32>
    %68 = arith.mulf %63, %67 : vector<2x32x32xf32>
    "tpu.trace_start"() <{level = 10 : i32, message = "bij,bjd->bid"}> : () -> ()
    %cst_44 = arith.constant dense<0.000000e+00> : vector<2x32x32xf32>
    %69 = tpu.matmul %68, %55, %cst_44 {dimension_numbers = #tpu.dot_dimension_numbers<[2], [1], [1], [2], [0, 0, 0, 1, 1, 2], [0], [0]>} : vector<2x32x32xf32>, vector<2x32x32xf32>, vector<2x32x32xf32> -> vector<2x32x32xf32>
    "tpu.trace_stop"() : () -> ()
    %70 = vector.shape_cast %69 : vector<2x32x32xf32> to vector<64x32xf32>
    %cst_45 = arith.constant dense<0.000000e+00> : vector<64x32xf32>
    %71 = tpu.matmul %70, %28, %cst_45 {dimension_numbers = #tpu.dot_dimension_numbers<[1], [0], [0], [1], [0, 0, 1, 1], [], []>} : vector<64x32xf32>, vector<32x32xf32>, vector<64x32xf32> -> vector<64x32xf32>
    %72 = vector.broadcast %34 : vector<1x32xf32> to vector<64x32xf32>
    %73 = arith.addf %71, %72 : vector<64x32xf32>
    %74 = arith.addf %11, %73 : vector<64x32xf32>
    %cst_46 = arith.constant dense<0.000000e+00> : vector<64xf32>
    %75 = vector.multi_reduction <add>, %74, %cst_46 [1] : vector<64x32xf32> to vector<64xf32>
    %76 = vector.shape_cast %75 : vector<64xf32> to vector<64x1xf32>
    %cst_47 = arith.constant 3.200000e+01 : f32
    %77 = vector.broadcast %cst_47 : f32 to vector<64x1xf32>
    %78 = arith.divf %76, %77 : vector<64x1xf32>
    %79 = vector.broadcast %78 : vector<64x1xf32> to vector<64x32xf32>
    %80 = arith.subf %74, %79 : vector<64x32xf32>
    %81 = arith.mulf %80, %80 : vector<64x32xf32>
    %cst_48 = arith.constant dense<0.000000e+00> : vector<64xf32>
    %82 = vector.multi_reduction <add>, %81, %cst_48 [1] : vector<64x32xf32> to vector<64xf32>
    %83 = vector.shape_cast %82 : vector<64xf32> to vector<64x1xf32>
    %cst_49 = arith.constant 3.200000e+01 : f32
    %84 = vector.broadcast %cst_49 : f32 to vector<64x1xf32>
    %85 = arith.divf %83, %84 : vector<64x1xf32>
    %cst_50 = arith.constant 9.99999974E-6 : f32
    %86 = vector.broadcast %cst_50 : f32 to vector<64x1xf32>
    %87 = arith.addf %85, %86 : vector<64x1xf32>
    %88 = math.rsqrt %87 : vector<64x1xf32>
    %89 = vector.broadcast %88 : vector<64x1xf32> to vector<64x32xf32>
    %90 = arith.mulf %80, %89 : vector<64x32xf32>
    %91 = vector.broadcast %36 : vector<1x32xf32> to vector<64x32xf32>
    %92 = arith.mulf %90, %91 : vector<64x32xf32>
    %93 = vector.broadcast %37 : vector<1x32xf32> to vector<64x32xf32>
    %94 = arith.addf %92, %93 : vector<64x32xf32>
    %cst_51 = arith.constant dense<0.000000e+00> : vector<64x64xf32>
    %95 = tpu.matmul %94, %39, %cst_51 {dimension_numbers = #tpu.dot_dimension_numbers<[1], [0], [0], [1], [0, 0, 1, 1], [], []>} : vector<64x32xf32>, vector<32x64xf32>, vector<64x64xf32> -> vector<64x64xf32>
    %96 = vector.broadcast %41 : vector<1x64xf32> to vector<64x64xf32>
    %97 = arith.addf %95, %96 : vector<64x64xf32>
    %cst_52 = arith.constant 0.000000e+00 : f32
    %98 = vector.broadcast %cst_52 : f32 to vector<64x64xf32>
    %99 = arith.maximumf %97, %98 : vector<64x64xf32>
    %cst_53 = arith.constant dense<0.000000e+00> : vector<64x32xf32>
    %100 = tpu.matmul %99, %43, %cst_53 {dimension_numbers = #tpu.dot_dimension_numbers<[1], [0], [0], [1], [0, 0, 1, 1], [], []>} : vector<64x64xf32>, vector<64x32xf32>, vector<64x32xf32> -> vector<64x32xf32>
    %101 = vector.broadcast %35 : vector<1x32xf32> to vector<64x32xf32>
    %102 = arith.addf %100, %101 : vector<64x32xf32>
    %103 = arith.addf %94, %102 : vector<64x32xf32>
    %cst_54 = arith.constant dense<0.000000e+00> : vector<64xf32>
    %104 = vector.multi_reduction <add>, %103, %cst_54 [1] : vector<64x32xf32> to vector<64xf32>
    %105 = vector.shape_cast %104 : vector<64xf32> to vector<64x1xf32>
    %cst_55 = arith.constant 3.200000e+01 : f32
    %106 = vector.broadcast %cst_55 : f32 to vector<64x1xf32>
    %107 = arith.divf %105, %106 : vector<64x1xf32>
    %108 = vector.broadcast %107 : vector<64x1xf32> to vector<64x32xf32>
    %109 = arith.subf %103, %108 : vector<64x32xf32>
    %110 = arith.mulf %109, %109 : vector<64x32xf32>
    %cst_56 = arith.constant dense<0.000000e+00> : vector<64xf32>
    %111 = vector.multi_reduction <add>, %110, %cst_56 [1] : vector<64x32xf32> to vector<64xf32>
    %112 = vector.shape_cast %111 : vector<64xf32> to vector<64x1xf32>
    %cst_57 = arith.constant 3.200000e+01 : f32
    %113 = vector.broadcast %cst_57 : f32 to vector<64x1xf32>
    %114 = arith.divf %112, %113 : vector<64x1xf32>
    %cst_58 = arith.constant 9.99999974E-6 : f32
    %115 = vector.broadcast %cst_58 : f32 to vector<64x1xf32>
    %116 = arith.addf %114, %115 : vector<64x1xf32>
    %117 = math.rsqrt %116 : vector<64x1xf32>
    %118 = vector.broadcast %117 : vector<64x1xf32> to vector<64x32xf32>
    %119 = arith.mulf %109, %118 : vector<64x32xf32>
    %120 = vector.broadcast %36 : vector<1x32xf32> to vector<64x32xf32>
    %121 = arith.mulf %119, %120 : vector<64x32xf32>
    %122 = vector.broadcast %37 : vector<1x32xf32> to vector<64x32xf32>
    %123 = arith.addf %121, %122 : vector<64x32xf32>
    %c1_59 = arith.constant 1 : index
    %c0_60 = arith.constant 0 : index
    %c0_61 = arith.constant 0 : index
    %c0_62 = arith.constant 0 : index
    %124 = vector.load %arg5[%c1_59, %c0_60, %c0_61, %c0_62] : memref<4x4x32x32xf32, #tpu.memory_space<vmem>>, vector<1x1x32x32xf32>
    %125 = vector.shape_cast %124 : vector<1x1x32x32xf32> to vector<32x32xf32>
    %c1_63 = arith.constant 1 : index
    %c1_64 = arith.constant 1 : index
    %c0_65 = arith.constant 0 : index
    %c0_66 = arith.constant 0 : index
    %126 = vector.load %arg5[%c1_63, %c1_64, %c0_65, %c0_66] : memref<4x4x32x32xf32, #tpu.memory_space<vmem>>, vector<1x1x32x32xf32>
    %127 = vector.shape_cast %126 : vector<1x1x32x32xf32> to vector<32x32xf32>
    %c1_67 = arith.constant 1 : index
    %c2_68 = arith.constant 2 : index
    %c0_69 = arith.constant 0 : index
    %c0_70 = arith.constant 0 : index
    %128 = vector.load %arg5[%c1_67, %c2_68, %c0_69, %c0_70] : memref<4x4x32x32xf32, #tpu.memory_space<vmem>>, vector<1x1x32x32xf32>
    %129 = vector.shape_cast %128 : vector<1x1x32x32xf32> to vector<32x32xf32>
    %c1_71 = arith.constant 1 : index
    %c3_72 = arith.constant 3 : index
    %c0_73 = arith.constant 0 : index
    %c0_74 = arith.constant 0 : index
    %130 = vector.load %arg5[%c1_71, %c3_72, %c0_73, %c0_74] : memref<4x4x32x32xf32, #tpu.memory_space<vmem>>, vector<1x1x32x32xf32>
    %131 = vector.shape_cast %130 : vector<1x1x32x32xf32> to vector<32x32xf32>
    %c1_75 = arith.constant 1 : index
    %c0_76 = arith.constant 0 : index
    %c0_77 = arith.constant 0 : index
    %132 = vector.load %arg8[%c1_75, %c0_76, %c0_77] : memref<4x7x32xf32, #tpu.memory_space<vmem>>, vector<1x7x32xf32>
    %133 = vector.shape_cast %132 : vector<1x7x32xf32> to vector<7x32xf32>
    %134 = vector.extract_strided_slice %133 {offsets = [0, 0], sizes = [1, 32], strides = [1, 1]} : vector<7x32xf32> to vector<1x32xf32>
    %135 = vector.extract_strided_slice %133 {offsets = [1, 0], sizes = [1, 32], strides = [1, 1]} : vector<7x32xf32> to vector<1x32xf32>
    %136 = vector.extract_strided_slice %133 {offsets = [2, 0], sizes = [1, 32], strides = [1, 1]} : vector<7x32xf32> to vector<1x32xf32>
    %137 = vector.extract_strided_slice %133 {offsets = [3, 0], sizes = [1, 32], strides = [1, 1]} : vector<7x32xf32> to vector<1x32xf32>
    %138 = vector.extract_strided_slice %133 {offsets = [4, 0], sizes = [1, 32], strides = [1, 1]} : vector<7x32xf32> to vector<1x32xf32>
    %139 = vector.extract_strided_slice %133 {offsets = [5, 0], sizes = [1, 32], strides = [1, 1]} : vector<7x32xf32> to vector<1x32xf32>
    %140 = vector.extract_strided_slice %133 {offsets = [6, 0], sizes = [1, 32], strides = [1, 1]} : vector<7x32xf32> to vector<1x32xf32>
    %c1_78 = arith.constant 1 : index
    %c0_79 = arith.constant 0 : index
    %c0_80 = arith.constant 0 : index
    %141 = vector.load %arg6[%c1_78, %c0_79, %c0_80] : memref<4x32x64xf32, #tpu.memory_space<vmem>>, vector<1x32x64xf32>
    %142 = vector.shape_cast %141 : vector<1x32x64xf32> to vector<32x64xf32>
    %c1_81 = arith.constant 1 : index
    %c0_82 = arith.constant 0 : index
    %c0_83 = arith.constant 0 : index
    %143 = vector.load %arg9[%c1_81, %c0_82, %c0_83] : memref<4x1x64xf32, #tpu.memory_space<vmem>>, vector<1x1x64xf32>
    %144 = vector.shape_cast %143 : vector<1x1x64xf32> to vector<1x64xf32>
    %c1_84 = arith.constant 1 : index
    %c0_85 = arith.constant 0 : index
    %c0_86 = arith.constant 0 : index
    %145 = vector.load %arg7[%c1_84, %c0_85, %c0_86] : memref<4x64x32xf32, #tpu.memory_space<vmem>>, vector<1x64x32xf32>
    %146 = vector.shape_cast %145 : vector<1x64x32xf32> to vector<64x32xf32>
    %cst_87 = arith.constant dense<0.000000e+00> : vector<64x32xf32>
    %147 = tpu.matmul %123, %125, %cst_87 {dimension_numbers = #tpu.dot_dimension_numbers<[1], [0], [0], [1], [0, 0, 1, 1], [], []>} : vector<64x32xf32>, vector<32x32xf32>, vector<64x32xf32> -> vector<64x32xf32>
    %148 = vector.broadcast %134 : vector<1x32xf32> to vector<64x32xf32>
    %149 = arith.addf %147, %148 : vector<64x32xf32>
    %cst_88 = arith.constant dense<0.000000e+00> : vector<64x32xf32>
    %150 = tpu.matmul %123, %127, %cst_88 {dimension_numbers = #tpu.dot_dimension_numbers<[1], [0], [0], [1], [0, 0, 1, 1], [], []>} : vector<64x32xf32>, vector<32x32xf32>, vector<64x32xf32> -> vector<64x32xf32>
    %151 = vector.broadcast %135 : vector<1x32xf32> to vector<64x32xf32>
    %152 = arith.addf %150, %151 : vector<64x32xf32>
    %cst_89 = arith.constant dense<0.000000e+00> : vector<64x32xf32>
    %153 = tpu.matmul %123, %129, %cst_89 {dimension_numbers = #tpu.dot_dimension_numbers<[1], [0], [0], [1], [0, 0, 1, 1], [], []>} : vector<64x32xf32>, vector<32x32xf32>, vector<64x32xf32> -> vector<64x32xf32>
    %154 = vector.broadcast %136 : vector<1x32xf32> to vector<64x32xf32>
    %155 = arith.addf %153, %154 : vector<64x32xf32>
    %156 = vector.shape_cast %149 : vector<64x32xf32> to vector<2x32x32xf32>
    %157 = vector.shape_cast %152 : vector<64x32xf32> to vector<2x32x32xf32>
    %158 = vector.shape_cast %155 : vector<64x32xf32> to vector<2x32x32xf32>
    "tpu.trace_start"() <{level = 10 : i32, message = "bim,bmj->bij"}> : () -> ()
    %cst_90 = arith.constant dense<0.000000e+00> : vector<2x32x32xf32>
    %159 = tpu.matmul %157, %156, %cst_90 {dimension_numbers = #tpu.dot_dimension_numbers<[2], [1], [1], [2], [0, 0, 0, 1, 1, 2], [0], [0]>} : vector<2x32x32xf32>, vector<2x32x32xf32>, vector<2x32x32xf32> -> vector<2x32x32xf32>
    "tpu.trace_stop"() : () -> ()
    %cst_91 = arith.constant 5.000000e-01 : f32
    %160 = vector.broadcast %cst_91 : f32 to vector<2x32x32xf32>
    %161 = arith.mulf %159, %160 : vector<2x32x32xf32>
    %cst_92 = arith.constant dense<0xFF800000> : vector<2x32xf32>
    %162 = vector.multi_reduction <maximumf>, %161, %cst_92 [1] : vector<2x32x32xf32> to vector<2x32xf32>
    %163 = vector.shape_cast %162 : vector<2x32xf32> to vector<2x1x32xf32>
    %164 = vector.broadcast %163 : vector<2x1x32xf32> to vector<2x32x32xf32>
    %165 = arith.subf %161, %164 : vector<2x32x32xf32>
    %166 = math.exp %165 : vector<2x32x32xf32>
    %cst_93 = arith.constant dense<0.000000e+00> : vector<2x32xf32>
    %167 = vector.multi_reduction <add>, %166, %cst_93 [1] : vector<2x32x32xf32> to vector<2x32xf32>
    %168 = vector.shape_cast %167 : vector<2x32xf32> to vector<2x1x32xf32>
    %169 = tpu.reciprocal %168 {approx = true} : vector<2x1x32xf32> -> vector<2x1x32xf32>
    %170 = vector.broadcast %169 : vector<2x1x32xf32> to vector<2x32x32xf32>
    %171 = arith.mulf %166, %170 : vector<2x32x32xf32>
    "tpu.trace_start"() <{level = 10 : i32, message = "bij,bjd->bid"}> : () -> ()
    %cst_94 = arith.constant dense<0.000000e+00> : vector<2x32x32xf32>
    %172 = tpu.matmul %171, %158, %cst_94 {dimension_numbers = #tpu.dot_dimension_numbers<[2], [1], [1], [2], [0, 0, 0, 1, 1, 2], [0], [0]>} : vector<2x32x32xf32>, vector<2x32x32xf32>, vector<2x32x32xf32> -> vector<2x32x32xf32>
    "tpu.trace_stop"() : () -> ()
    %173 = vector.shape_cast %172 : vector<2x32x32xf32> to vector<64x32xf32>
    %cst_95 = arith.constant dense<0.000000e+00> : vector<64x32xf32>
    %174 = tpu.matmul %173, %131, %cst_95 {dimension_numbers = #tpu.dot_dimension_numbers<[1], [0], [0], [1], [0, 0, 1, 1], [], []>} : vector<64x32xf32>, vector<32x32xf32>, vector<64x32xf32> -> vector<64x32xf32>
    %175 = vector.broadcast %137 : vector<1x32xf32> to vector<64x32xf32>
    %176 = arith.addf %174, %175 : vector<64x32xf32>
    %177 = arith.addf %123, %176 : vector<64x32xf32>
    %cst_96 = arith.constant dense<0.000000e+00> : vector<64xf32>
    %178 = vector.multi_reduction <add>, %177, %cst_96 [1] : vector<64x32xf32> to vector<64xf32>
    %179 = vector.shape_cast %178 : vector<64xf32> to vector<64x1xf32>
    %cst_97 = arith.constant 3.200000e+01 : f32
    %180 = vector.broadcast %cst_97 : f32 to vector<64x1xf32>
    %181 = arith.divf %179, %180 : vector<64x1xf32>
    %182 = vector.broadcast %181 : vector<64x1xf32> to vector<64x32xf32>
    %183 = arith.subf %177, %182 : vector<64x32xf32>
    %184 = arith.mulf %183, %183 : vector<64x32xf32>
    %cst_98 = arith.constant dense<0.000000e+00> : vector<64xf32>
    %185 = vector.multi_reduction <add>, %184, %cst_98 [1] : vector<64x32xf32> to vector<64xf32>
    %186 = vector.shape_cast %185 : vector<64xf32> to vector<64x1xf32>
    %cst_99 = arith.constant 3.200000e+01 : f32
    %187 = vector.broadcast %cst_99 : f32 to vector<64x1xf32>
    %188 = arith.divf %186, %187 : vector<64x1xf32>
    %cst_100 = arith.constant 9.99999974E-6 : f32
    %189 = vector.broadcast %cst_100 : f32 to vector<64x1xf32>
    %190 = arith.addf %188, %189 : vector<64x1xf32>
    %191 = math.rsqrt %190 : vector<64x1xf32>
    %192 = vector.broadcast %191 : vector<64x1xf32> to vector<64x32xf32>
    %193 = arith.mulf %183, %192 : vector<64x32xf32>
    %194 = vector.broadcast %139 : vector<1x32xf32> to vector<64x32xf32>
    %195 = arith.mulf %193, %194 : vector<64x32xf32>
    %196 = vector.broadcast %140 : vector<1x32xf32> to vector<64x32xf32>
    %197 = arith.addf %195, %196 : vector<64x32xf32>
    %cst_101 = arith.constant dense<0.000000e+00> : vector<64x64xf32>
    %198 = tpu.matmul %197, %142, %cst_101 {dimension_numbers = #tpu.dot_dimension_numbers<[1], [0], [0], [1], [0, 0, 1, 1], [], []>} : vector<64x32xf32>, vector<32x64xf32>, vector<64x64xf32> -> vector<64x64xf32>
    %199 = vector.broadcast %144 : vector<1x64xf32> to vector<64x64xf32>
    %200 = arith.addf %198, %199 : vector<64x64xf32>
    %cst_102 = arith.constant 0.000000e+00 : f32
    %201 = vector.broadcast %cst_102 : f32 to vector<64x64xf32>
    %202 = arith.maximumf %200, %201 : vector<64x64xf32>
    %cst_103 = arith.constant dense<0.000000e+00> : vector<64x32xf32>
    %203 = tpu.matmul %202, %146, %cst_103 {dimension_numbers = #tpu.dot_dimension_numbers<[1], [0], [0], [1], [0, 0, 1, 1], [], []>} : vector<64x64xf32>, vector<64x32xf32>, vector<64x32xf32> -> vector<64x32xf32>
    %204 = vector.broadcast %138 : vector<1x32xf32> to vector<64x32xf32>
    %205 = arith.addf %203, %204 : vector<64x32xf32>
    %206 = arith.addf %197, %205 : vector<64x32xf32>
    %cst_104 = arith.constant dense<0.000000e+00> : vector<64xf32>
    %207 = vector.multi_reduction <add>, %206, %cst_104 [1] : vector<64x32xf32> to vector<64xf32>
    %208 = vector.shape_cast %207 : vector<64xf32> to vector<64x1xf32>
    %cst_105 = arith.constant 3.200000e+01 : f32
    %209 = vector.broadcast %cst_105 : f32 to vector<64x1xf32>
    %210 = arith.divf %208, %209 : vector<64x1xf32>
    %211 = vector.broadcast %210 : vector<64x1xf32> to vector<64x32xf32>
    %212 = arith.subf %206, %211 : vector<64x32xf32>
    %213 = arith.mulf %212, %212 : vector<64x32xf32>
    %cst_106 = arith.constant dense<0.000000e+00> : vector<64xf32>
    %214 = vector.multi_reduction <add>, %213, %cst_106 [1] : vector<64x32xf32> to vector<64xf32>
    %215 = vector.shape_cast %214 : vector<64xf32> to vector<64x1xf32>
    %cst_107 = arith.constant 3.200000e+01 : f32
    %216 = vector.broadcast %cst_107 : f32 to vector<64x1xf32>
    %217 = arith.divf %215, %216 : vector<64x1xf32>
    %cst_108 = arith.constant 9.99999974E-6 : f32
    %218 = vector.broadcast %cst_108 : f32 to vector<64x1xf32>
    %219 = arith.addf %217, %218 : vector<64x1xf32>
    %220 = math.rsqrt %219 : vector<64x1xf32>
    %221 = vector.broadcast %220 : vector<64x1xf32> to vector<64x32xf32>
    %222 = arith.mulf %212, %221 : vector<64x32xf32>
    %223 = vector.broadcast %139 : vector<1x32xf32> to vector<64x32xf32>
    %224 = arith.mulf %222, %223 : vector<64x32xf32>
    %225 = vector.broadcast %140 : vector<1x32xf32> to vector<64x32xf32>
    %226 = arith.addf %224, %225 : vector<64x32xf32>
    %c2_109 = arith.constant 2 : index
    %c0_110 = arith.constant 0 : index
    %c0_111 = arith.constant 0 : index
    %c0_112 = arith.constant 0 : index
    %227 = vector.load %arg5[%c2_109, %c0_110, %c0_111, %c0_112] : memref<4x4x32x32xf32, #tpu.memory_space<vmem>>, vector<1x1x32x32xf32>
    %228 = vector.shape_cast %227 : vector<1x1x32x32xf32> to vector<32x32xf32>
    %c2_113 = arith.constant 2 : index
    %c1_114 = arith.constant 1 : index
    %c0_115 = arith.constant 0 : index
    %c0_116 = arith.constant 0 : index
    %229 = vector.load %arg5[%c2_113, %c1_114, %c0_115, %c0_116] : memref<4x4x32x32xf32, #tpu.memory_space<vmem>>, vector<1x1x32x32xf32>
    %230 = vector.shape_cast %229 : vector<1x1x32x32xf32> to vector<32x32xf32>
    %c2_117 = arith.constant 2 : index
    %c2_118 = arith.constant 2 : index
    %c0_119 = arith.constant 0 : index
    %c0_120 = arith.constant 0 : index
    %231 = vector.load %arg5[%c2_117, %c2_118, %c0_119, %c0_120] : memref<4x4x32x32xf32, #tpu.memory_space<vmem>>, vector<1x1x32x32xf32>
    %232 = vector.shape_cast %231 : vector<1x1x32x32xf32> to vector<32x32xf32>
    %c2_121 = arith.constant 2 : index
    %c3_122 = arith.constant 3 : index
    %c0_123 = arith.constant 0 : index
    %c0_124 = arith.constant 0 : index
    %233 = vector.load %arg5[%c2_121, %c3_122, %c0_123, %c0_124] : memref<4x4x32x32xf32, #tpu.memory_space<vmem>>, vector<1x1x32x32xf32>
    %234 = vector.shape_cast %233 : vector<1x1x32x32xf32> to vector<32x32xf32>
    %c2_125 = arith.constant 2 : index
    %c0_126 = arith.constant 0 : index
    %c0_127 = arith.constant 0 : index
    %235 = vector.load %arg8[%c2_125, %c0_126, %c0_127] : memref<4x7x32xf32, #tpu.memory_space<vmem>>, vector<1x7x32xf32>
    %236 = vector.shape_cast %235 : vector<1x7x32xf32> to vector<7x32xf32>
    %237 = vector.extract_strided_slice %236 {offsets = [0, 0], sizes = [1, 32], strides = [1, 1]} : vector<7x32xf32> to vector<1x32xf32>
    %238 = vector.extract_strided_slice %236 {offsets = [1, 0], sizes = [1, 32], strides = [1, 1]} : vector<7x32xf32> to vector<1x32xf32>
    %239 = vector.extract_strided_slice %236 {offsets = [2, 0], sizes = [1, 32], strides = [1, 1]} : vector<7x32xf32> to vector<1x32xf32>
    %240 = vector.extract_strided_slice %236 {offsets = [3, 0], sizes = [1, 32], strides = [1, 1]} : vector<7x32xf32> to vector<1x32xf32>
    %241 = vector.extract_strided_slice %236 {offsets = [4, 0], sizes = [1, 32], strides = [1, 1]} : vector<7x32xf32> to vector<1x32xf32>
    %242 = vector.extract_strided_slice %236 {offsets = [5, 0], sizes = [1, 32], strides = [1, 1]} : vector<7x32xf32> to vector<1x32xf32>
    %243 = vector.extract_strided_slice %236 {offsets = [6, 0], sizes = [1, 32], strides = [1, 1]} : vector<7x32xf32> to vector<1x32xf32>
    %c2_128 = arith.constant 2 : index
    %c0_129 = arith.constant 0 : index
    %c0_130 = arith.constant 0 : index
    %244 = vector.load %arg6[%c2_128, %c0_129, %c0_130] : memref<4x32x64xf32, #tpu.memory_space<vmem>>, vector<1x32x64xf32>
    %245 = vector.shape_cast %244 : vector<1x32x64xf32> to vector<32x64xf32>
    %c2_131 = arith.constant 2 : index
    %c0_132 = arith.constant 0 : index
    %c0_133 = arith.constant 0 : index
    %246 = vector.load %arg9[%c2_131, %c0_132, %c0_133] : memref<4x1x64xf32, #tpu.memory_space<vmem>>, vector<1x1x64xf32>
    %247 = vector.shape_cast %246 : vector<1x1x64xf32> to vector<1x64xf32>
    %c2_134 = arith.constant 2 : index
    %c0_135 = arith.constant 0 : index
    %c0_136 = arith.constant 0 : index
    %248 = vector.load %arg7[%c2_134, %c0_135, %c0_136] : memref<4x64x32xf32, #tpu.memory_space<vmem>>, vector<1x64x32xf32>
    %249 = vector.shape_cast %248 : vector<1x64x32xf32> to vector<64x32xf32>
    %cst_137 = arith.constant dense<0.000000e+00> : vector<64x32xf32>
    %250 = tpu.matmul %20, %228, %cst_137 {dimension_numbers = #tpu.dot_dimension_numbers<[1], [0], [0], [1], [0, 0, 1, 1], [], []>} : vector<64x32xf32>, vector<32x32xf32>, vector<64x32xf32> -> vector<64x32xf32>
    %251 = vector.broadcast %237 : vector<1x32xf32> to vector<64x32xf32>
    %252 = arith.addf %250, %251 : vector<64x32xf32>
    %cst_138 = arith.constant dense<0.000000e+00> : vector<64x32xf32>
    %253 = tpu.matmul %20, %230, %cst_138 {dimension_numbers = #tpu.dot_dimension_numbers<[1], [0], [0], [1], [0, 0, 1, 1], [], []>} : vector<64x32xf32>, vector<32x32xf32>, vector<64x32xf32> -> vector<64x32xf32>
    %254 = vector.broadcast %238 : vector<1x32xf32> to vector<64x32xf32>
    %255 = arith.addf %253, %254 : vector<64x32xf32>
    %cst_139 = arith.constant dense<0.000000e+00> : vector<64x32xf32>
    %256 = tpu.matmul %20, %232, %cst_139 {dimension_numbers = #tpu.dot_dimension_numbers<[1], [0], [0], [1], [0, 0, 1, 1], [], []>} : vector<64x32xf32>, vector<32x32xf32>, vector<64x32xf32> -> vector<64x32xf32>
    %257 = vector.broadcast %239 : vector<1x32xf32> to vector<64x32xf32>
    %258 = arith.addf %256, %257 : vector<64x32xf32>
    %259 = vector.shape_cast %252 : vector<64x32xf32> to vector<2x32x32xf32>
    %260 = vector.shape_cast %255 : vector<64x32xf32> to vector<2x32x32xf32>
    %261 = vector.shape_cast %258 : vector<64x32xf32> to vector<2x32x32xf32>
    "tpu.trace_start"() <{level = 10 : i32, message = "bim,bmj->bij"}> : () -> ()
    %cst_140 = arith.constant dense<0.000000e+00> : vector<2x32x32xf32>
    %262 = tpu.matmul %260, %259, %cst_140 {dimension_numbers = #tpu.dot_dimension_numbers<[2], [1], [1], [2], [0, 0, 0, 1, 1, 2], [0], [0]>} : vector<2x32x32xf32>, vector<2x32x32xf32>, vector<2x32x32xf32> -> vector<2x32x32xf32>
    "tpu.trace_stop"() : () -> ()
    %cst_141 = arith.constant 5.000000e-01 : f32
    %263 = vector.broadcast %cst_141 : f32 to vector<2x32x32xf32>
    %264 = arith.mulf %262, %263 : vector<2x32x32xf32>
    %cst_142 = arith.constant dense<0xFF800000> : vector<2x32xf32>
    %265 = vector.multi_reduction <maximumf>, %264, %cst_142 [1] : vector<2x32x32xf32> to vector<2x32xf32>
    %266 = vector.shape_cast %265 : vector<2x32xf32> to vector<2x1x32xf32>
    %267 = vector.broadcast %266 : vector<2x1x32xf32> to vector<2x32x32xf32>
    %268 = arith.subf %264, %267 : vector<2x32x32xf32>
    %269 = math.exp %268 : vector<2x32x32xf32>
    %cst_143 = arith.constant dense<0.000000e+00> : vector<2x32xf32>
    %270 = vector.multi_reduction <add>, %269, %cst_143 [1] : vector<2x32x32xf32> to vector<2x32xf32>
    %271 = vector.shape_cast %270 : vector<2x32xf32> to vector<2x1x32xf32>
    %272 = tpu.reciprocal %271 {approx = true} : vector<2x1x32xf32> -> vector<2x1x32xf32>
    %273 = vector.broadcast %272 : vector<2x1x32xf32> to vector<2x32x32xf32>
    %274 = arith.mulf %269, %273 : vector<2x32x32xf32>
    "tpu.trace_start"() <{level = 10 : i32, message = "bij,bjd->bid"}> : () -> ()
    %cst_144 = arith.constant dense<0.000000e+00> : vector<2x32x32xf32>
    %275 = tpu.matmul %274, %261, %cst_144 {dimension_numbers = #tpu.dot_dimension_numbers<[2], [1], [1], [2], [0, 0, 0, 1, 1, 2], [0], [0]>} : vector<2x32x32xf32>, vector<2x32x32xf32>, vector<2x32x32xf32> -> vector<2x32x32xf32>
    "tpu.trace_stop"() : () -> ()
    %276 = vector.shape_cast %275 : vector<2x32x32xf32> to vector<64x32xf32>
    %cst_145 = arith.constant dense<0.000000e+00> : vector<64x32xf32>
    %277 = tpu.matmul %276, %234, %cst_145 {dimension_numbers = #tpu.dot_dimension_numbers<[1], [0], [0], [1], [0, 0, 1, 1], [], []>} : vector<64x32xf32>, vector<32x32xf32>, vector<64x32xf32> -> vector<64x32xf32>
    %278 = vector.broadcast %240 : vector<1x32xf32> to vector<64x32xf32>
    %279 = arith.addf %277, %278 : vector<64x32xf32>
    %280 = arith.addf %20, %279 : vector<64x32xf32>
    %cst_146 = arith.constant dense<0.000000e+00> : vector<64xf32>
    %281 = vector.multi_reduction <add>, %280, %cst_146 [1] : vector<64x32xf32> to vector<64xf32>
    %282 = vector.shape_cast %281 : vector<64xf32> to vector<64x1xf32>
    %cst_147 = arith.constant 3.200000e+01 : f32
    %283 = vector.broadcast %cst_147 : f32 to vector<64x1xf32>
    %284 = arith.divf %282, %283 : vector<64x1xf32>
    %285 = vector.broadcast %284 : vector<64x1xf32> to vector<64x32xf32>
    %286 = arith.subf %280, %285 : vector<64x32xf32>
    %287 = arith.mulf %286, %286 : vector<64x32xf32>
    %cst_148 = arith.constant dense<0.000000e+00> : vector<64xf32>
    %288 = vector.multi_reduction <add>, %287, %cst_148 [1] : vector<64x32xf32> to vector<64xf32>
    %289 = vector.shape_cast %288 : vector<64xf32> to vector<64x1xf32>
    %cst_149 = arith.constant 3.200000e+01 : f32
    %290 = vector.broadcast %cst_149 : f32 to vector<64x1xf32>
    %291 = arith.divf %289, %290 : vector<64x1xf32>
    %cst_150 = arith.constant 9.99999974E-6 : f32
    %292 = vector.broadcast %cst_150 : f32 to vector<64x1xf32>
    %293 = arith.addf %291, %292 : vector<64x1xf32>
    %294 = math.rsqrt %293 : vector<64x1xf32>
    %295 = vector.broadcast %294 : vector<64x1xf32> to vector<64x32xf32>
    %296 = arith.mulf %286, %295 : vector<64x32xf32>
    %297 = vector.broadcast %242 : vector<1x32xf32> to vector<64x32xf32>
    %298 = arith.mulf %296, %297 : vector<64x32xf32>
    %299 = vector.broadcast %243 : vector<1x32xf32> to vector<64x32xf32>
    %300 = arith.addf %298, %299 : vector<64x32xf32>
    %cst_151 = arith.constant dense<0.000000e+00> : vector<64x32xf32>
    %301 = tpu.matmul %20, %228, %cst_151 {dimension_numbers = #tpu.dot_dimension_numbers<[1], [0], [0], [1], [0, 0, 1, 1], [], []>} : vector<64x32xf32>, vector<32x32xf32>, vector<64x32xf32> -> vector<64x32xf32>
    %302 = vector.broadcast %237 : vector<1x32xf32> to vector<64x32xf32>
    %303 = arith.addf %301, %302 : vector<64x32xf32>
    %cst_152 = arith.constant dense<0.000000e+00> : vector<64x32xf32>
    %304 = tpu.matmul %226, %230, %cst_152 {dimension_numbers = #tpu.dot_dimension_numbers<[1], [0], [0], [1], [0, 0, 1, 1], [], []>} : vector<64x32xf32>, vector<32x32xf32>, vector<64x32xf32> -> vector<64x32xf32>
    %305 = vector.broadcast %238 : vector<1x32xf32> to vector<64x32xf32>
    %306 = arith.addf %304, %305 : vector<64x32xf32>
    %cst_153 = arith.constant dense<0.000000e+00> : vector<64x32xf32>
    %307 = tpu.matmul %226, %232, %cst_153 {dimension_numbers = #tpu.dot_dimension_numbers<[1], [0], [0], [1], [0, 0, 1, 1], [], []>} : vector<64x32xf32>, vector<32x32xf32>, vector<64x32xf32> -> vector<64x32xf32>
    %308 = vector.broadcast %239 : vector<1x32xf32> to vector<64x32xf32>
    %309 = arith.addf %307, %308 : vector<64x32xf32>
    %310 = vector.shape_cast %303 : vector<64x32xf32> to vector<2x32x32xf32>
    %311 = vector.shape_cast %306 : vector<64x32xf32> to vector<2x32x32xf32>
    %312 = vector.shape_cast %309 : vector<64x32xf32> to vector<2x32x32xf32>
    "tpu.trace_start"() <{level = 10 : i32, message = "bim,bmj->bij"}> : () -> ()
    %cst_154 = arith.constant dense<0.000000e+00> : vector<2x32x32xf32>
    %313 = tpu.matmul %311, %310, %cst_154 {dimension_numbers = #tpu.dot_dimension_numbers<[2], [1], [1], [2], [0, 0, 0, 1, 1, 2], [0], [0]>} : vector<2x32x32xf32>, vector<2x32x32xf32>, vector<2x32x32xf32> -> vector<2x32x32xf32>
    "tpu.trace_stop"() : () -> ()
    %cst_155 = arith.constant 5.000000e-01 : f32
    %314 = vector.broadcast %cst_155 : f32 to vector<2x32x32xf32>
    %315 = arith.mulf %313, %314 : vector<2x32x32xf32>
    %cst_156 = arith.constant dense<0xFF800000> : vector<2x32xf32>
    %316 = vector.multi_reduction <maximumf>, %315, %cst_156 [1] : vector<2x32x32xf32> to vector<2x32xf32>
    %317 = vector.shape_cast %316 : vector<2x32xf32> to vector<2x1x32xf32>
    %318 = vector.broadcast %317 : vector<2x1x32xf32> to vector<2x32x32xf32>
    %319 = arith.subf %315, %318 : vector<2x32x32xf32>
    %320 = math.exp %319 : vector<2x32x32xf32>
    %cst_157 = arith.constant dense<0.000000e+00> : vector<2x32xf32>
    %321 = vector.multi_reduction <add>, %320, %cst_157 [1] : vector<2x32x32xf32> to vector<2x32xf32>
    %322 = vector.shape_cast %321 : vector<2x32xf32> to vector<2x1x32xf32>
    %323 = tpu.reciprocal %322 {approx = true} : vector<2x1x32xf32> -> vector<2x1x32xf32>
    %324 = vector.broadcast %323 : vector<2x1x32xf32> to vector<2x32x32xf32>
    %325 = arith.mulf %320, %324 : vector<2x32x32xf32>
    "tpu.trace_start"() <{level = 10 : i32, message = "bij,bjd->bid"}> : () -> ()
    %cst_158 = arith.constant dense<0.000000e+00> : vector<2x32x32xf32>
    %326 = tpu.matmul %325, %312, %cst_158 {dimension_numbers = #tpu.dot_dimension_numbers<[2], [1], [1], [2], [0, 0, 0, 1, 1, 2], [0], [0]>} : vector<2x32x32xf32>, vector<2x32x32xf32>, vector<2x32x32xf32> -> vector<2x32x32xf32>
    "tpu.trace_stop"() : () -> ()
    %327 = vector.shape_cast %326 : vector<2x32x32xf32> to vector<64x32xf32>
    %cst_159 = arith.constant dense<0.000000e+00> : vector<64x32xf32>
    %328 = tpu.matmul %327, %234, %cst_159 {dimension_numbers = #tpu.dot_dimension_numbers<[1], [0], [0], [1], [0, 0, 1, 1], [], []>} : vector<64x32xf32>, vector<32x32xf32>, vector<64x32xf32> -> vector<64x32xf32>
    %329 = vector.broadcast %240 : vector<1x32xf32> to vector<64x32xf32>
    %330 = arith.addf %328, %329 : vector<64x32xf32>
    %331 = arith.addf %300, %330 : vector<64x32xf32>
    %cst_160 = arith.constant dense<0.000000e+00> : vector<64xf32>
    %332 = vector.multi_reduction <add>, %331, %cst_160 [1] : vector<64x32xf32> to vector<64xf32>
    %333 = vector.shape_cast %332 : vector<64xf32> to vector<64x1xf32>
    %cst_161 = arith.constant 3.200000e+01 : f32
    %334 = vector.broadcast %cst_161 : f32 to vector<64x1xf32>
    %335 = arith.divf %333, %334 : vector<64x1xf32>
    %336 = vector.broadcast %335 : vector<64x1xf32> to vector<64x32xf32>
    %337 = arith.subf %331, %336 : vector<64x32xf32>
    %338 = arith.mulf %337, %337 : vector<64x32xf32>
    %cst_162 = arith.constant dense<0.000000e+00> : vector<64xf32>
    %339 = vector.multi_reduction <add>, %338, %cst_162 [1] : vector<64x32xf32> to vector<64xf32>
    %340 = vector.shape_cast %339 : vector<64xf32> to vector<64x1xf32>
    %cst_163 = arith.constant 3.200000e+01 : f32
    %341 = vector.broadcast %cst_163 : f32 to vector<64x1xf32>
    %342 = arith.divf %340, %341 : vector<64x1xf32>
    %cst_164 = arith.constant 9.99999974E-6 : f32
    %343 = vector.broadcast %cst_164 : f32 to vector<64x1xf32>
    %344 = arith.addf %342, %343 : vector<64x1xf32>
    %345 = math.rsqrt %344 : vector<64x1xf32>
    %346 = vector.broadcast %345 : vector<64x1xf32> to vector<64x32xf32>
    %347 = arith.mulf %337, %346 : vector<64x32xf32>
    %348 = vector.broadcast %242 : vector<1x32xf32> to vector<64x32xf32>
    %349 = arith.mulf %347, %348 : vector<64x32xf32>
    %350 = vector.broadcast %243 : vector<1x32xf32> to vector<64x32xf32>
    %351 = arith.addf %349, %350 : vector<64x32xf32>
    %cst_165 = arith.constant dense<0.000000e+00> : vector<64x64xf32>
    %352 = tpu.matmul %351, %245, %cst_165 {dimension_numbers = #tpu.dot_dimension_numbers<[1], [0], [0], [1], [0, 0, 1, 1], [], []>} : vector<64x32xf32>, vector<32x64xf32>, vector<64x64xf32> -> vector<64x64xf32>
    %353 = vector.broadcast %247 : vector<1x64xf32> to vector<64x64xf32>
    %354 = arith.addf %352, %353 : vector<64x64xf32>
    %cst_166 = arith.constant 0.000000e+00 : f32
    %355 = vector.broadcast %cst_166 : f32 to vector<64x64xf32>
    %356 = arith.maximumf %354, %355 : vector<64x64xf32>
    %cst_167 = arith.constant dense<0.000000e+00> : vector<64x32xf32>
    %357 = tpu.matmul %356, %249, %cst_167 {dimension_numbers = #tpu.dot_dimension_numbers<[1], [0], [0], [1], [0, 0, 1, 1], [], []>} : vector<64x64xf32>, vector<64x32xf32>, vector<64x32xf32> -> vector<64x32xf32>
    %358 = vector.broadcast %241 : vector<1x32xf32> to vector<64x32xf32>
    %359 = arith.addf %357, %358 : vector<64x32xf32>
    %360 = arith.addf %351, %359 : vector<64x32xf32>
    %cst_168 = arith.constant dense<0.000000e+00> : vector<64xf32>
    %361 = vector.multi_reduction <add>, %360, %cst_168 [1] : vector<64x32xf32> to vector<64xf32>
    %362 = vector.shape_cast %361 : vector<64xf32> to vector<64x1xf32>
    %cst_169 = arith.constant 3.200000e+01 : f32
    %363 = vector.broadcast %cst_169 : f32 to vector<64x1xf32>
    %364 = arith.divf %362, %363 : vector<64x1xf32>
    %365 = vector.broadcast %364 : vector<64x1xf32> to vector<64x32xf32>
    %366 = arith.subf %360, %365 : vector<64x32xf32>
    %367 = arith.mulf %366, %366 : vector<64x32xf32>
    %cst_170 = arith.constant dense<0.000000e+00> : vector<64xf32>
    %368 = vector.multi_reduction <add>, %367, %cst_170 [1] : vector<64x32xf32> to vector<64xf32>
    %369 = vector.shape_cast %368 : vector<64xf32> to vector<64x1xf32>
    %cst_171 = arith.constant 3.200000e+01 : f32
    %370 = vector.broadcast %cst_171 : f32 to vector<64x1xf32>
    %371 = arith.divf %369, %370 : vector<64x1xf32>
    %cst_172 = arith.constant 9.99999974E-6 : f32
    %372 = vector.broadcast %cst_172 : f32 to vector<64x1xf32>
    %373 = arith.addf %371, %372 : vector<64x1xf32>
    %374 = math.rsqrt %373 : vector<64x1xf32>
    %375 = vector.broadcast %374 : vector<64x1xf32> to vector<64x32xf32>
    %376 = arith.mulf %366, %375 : vector<64x32xf32>
    %377 = vector.broadcast %242 : vector<1x32xf32> to vector<64x32xf32>
    %378 = arith.mulf %376, %377 : vector<64x32xf32>
    %379 = vector.broadcast %243 : vector<1x32xf32> to vector<64x32xf32>
    %380 = arith.addf %378, %379 : vector<64x32xf32>
    %c3_173 = arith.constant 3 : index
    %c0_174 = arith.constant 0 : index
    %c0_175 = arith.constant 0 : index
    %c0_176 = arith.constant 0 : index
    %381 = vector.load %arg5[%c3_173, %c0_174, %c0_175, %c0_176] : memref<4x4x32x32xf32, #tpu.memory_space<vmem>>, vector<1x1x32x32xf32>
    %382 = vector.shape_cast %381 : vector<1x1x32x32xf32> to vector<32x32xf32>
    %c3_177 = arith.constant 3 : index
    %c1_178 = arith.constant 1 : index
    %c0_179 = arith.constant 0 : index
    %c0_180 = arith.constant 0 : index
    %383 = vector.load %arg5[%c3_177, %c1_178, %c0_179, %c0_180] : memref<4x4x32x32xf32, #tpu.memory_space<vmem>>, vector<1x1x32x32xf32>
    %384 = vector.shape_cast %383 : vector<1x1x32x32xf32> to vector<32x32xf32>
    %c3_181 = arith.constant 3 : index
    %c2_182 = arith.constant 2 : index
    %c0_183 = arith.constant 0 : index
    %c0_184 = arith.constant 0 : index
    %385 = vector.load %arg5[%c3_181, %c2_182, %c0_183, %c0_184] : memref<4x4x32x32xf32, #tpu.memory_space<vmem>>, vector<1x1x32x32xf32>
    %386 = vector.shape_cast %385 : vector<1x1x32x32xf32> to vector<32x32xf32>
    %c3_185 = arith.constant 3 : index
    %c3_186 = arith.constant 3 : index
    %c0_187 = arith.constant 0 : index
    %c0_188 = arith.constant 0 : index
    %387 = vector.load %arg5[%c3_185, %c3_186, %c0_187, %c0_188] : memref<4x4x32x32xf32, #tpu.memory_space<vmem>>, vector<1x1x32x32xf32>
    %388 = vector.shape_cast %387 : vector<1x1x32x32xf32> to vector<32x32xf32>
    %c3_189 = arith.constant 3 : index
    %c0_190 = arith.constant 0 : index
    %c0_191 = arith.constant 0 : index
    %389 = vector.load %arg8[%c3_189, %c0_190, %c0_191] : memref<4x7x32xf32, #tpu.memory_space<vmem>>, vector<1x7x32xf32>
    %390 = vector.shape_cast %389 : vector<1x7x32xf32> to vector<7x32xf32>
    %391 = vector.extract_strided_slice %390 {offsets = [0, 0], sizes = [1, 32], strides = [1, 1]} : vector<7x32xf32> to vector<1x32xf32>
    %392 = vector.extract_strided_slice %390 {offsets = [1, 0], sizes = [1, 32], strides = [1, 1]} : vector<7x32xf32> to vector<1x32xf32>
    %393 = vector.extract_strided_slice %390 {offsets = [2, 0], sizes = [1, 32], strides = [1, 1]} : vector<7x32xf32> to vector<1x32xf32>
    %394 = vector.extract_strided_slice %390 {offsets = [3, 0], sizes = [1, 32], strides = [1, 1]} : vector<7x32xf32> to vector<1x32xf32>
    %395 = vector.extract_strided_slice %390 {offsets = [4, 0], sizes = [1, 32], strides = [1, 1]} : vector<7x32xf32> to vector<1x32xf32>
    %396 = vector.extract_strided_slice %390 {offsets = [5, 0], sizes = [1, 32], strides = [1, 1]} : vector<7x32xf32> to vector<1x32xf32>
    %397 = vector.extract_strided_slice %390 {offsets = [6, 0], sizes = [1, 32], strides = [1, 1]} : vector<7x32xf32> to vector<1x32xf32>
    %c3_192 = arith.constant 3 : index
    %c0_193 = arith.constant 0 : index
    %c0_194 = arith.constant 0 : index
    %398 = vector.load %arg6[%c3_192, %c0_193, %c0_194] : memref<4x32x64xf32, #tpu.memory_space<vmem>>, vector<1x32x64xf32>
    %399 = vector.shape_cast %398 : vector<1x32x64xf32> to vector<32x64xf32>
    %c3_195 = arith.constant 3 : index
    %c0_196 = arith.constant 0 : index
    %c0_197 = arith.constant 0 : index
    %400 = vector.load %arg9[%c3_195, %c0_196, %c0_197] : memref<4x1x64xf32, #tpu.memory_space<vmem>>, vector<1x1x64xf32>
    %401 = vector.shape_cast %400 : vector<1x1x64xf32> to vector<1x64xf32>
    %c3_198 = arith.constant 3 : index
    %c0_199 = arith.constant 0 : index
    %c0_200 = arith.constant 0 : index
    %402 = vector.load %arg7[%c3_198, %c0_199, %c0_200] : memref<4x64x32xf32, #tpu.memory_space<vmem>>, vector<1x64x32xf32>
    %403 = vector.shape_cast %402 : vector<1x64x32xf32> to vector<64x32xf32>
    %cst_201 = arith.constant dense<0.000000e+00> : vector<64x32xf32>
    %404 = tpu.matmul %380, %382, %cst_201 {dimension_numbers = #tpu.dot_dimension_numbers<[1], [0], [0], [1], [0, 0, 1, 1], [], []>} : vector<64x32xf32>, vector<32x32xf32>, vector<64x32xf32> -> vector<64x32xf32>
    %405 = vector.broadcast %391 : vector<1x32xf32> to vector<64x32xf32>
    %406 = arith.addf %404, %405 : vector<64x32xf32>
    %cst_202 = arith.constant dense<0.000000e+00> : vector<64x32xf32>
    %407 = tpu.matmul %380, %384, %cst_202 {dimension_numbers = #tpu.dot_dimension_numbers<[1], [0], [0], [1], [0, 0, 1, 1], [], []>} : vector<64x32xf32>, vector<32x32xf32>, vector<64x32xf32> -> vector<64x32xf32>
    %408 = vector.broadcast %392 : vector<1x32xf32> to vector<64x32xf32>
    %409 = arith.addf %407, %408 : vector<64x32xf32>
    %cst_203 = arith.constant dense<0.000000e+00> : vector<64x32xf32>
    %410 = tpu.matmul %380, %386, %cst_203 {dimension_numbers = #tpu.dot_dimension_numbers<[1], [0], [0], [1], [0, 0, 1, 1], [], []>} : vector<64x32xf32>, vector<32x32xf32>, vector<64x32xf32> -> vector<64x32xf32>
    %411 = vector.broadcast %393 : vector<1x32xf32> to vector<64x32xf32>
    %412 = arith.addf %410, %411 : vector<64x32xf32>
    %413 = vector.shape_cast %406 : vector<64x32xf32> to vector<2x32x32xf32>
    %414 = vector.shape_cast %409 : vector<64x32xf32> to vector<2x32x32xf32>
    %415 = vector.shape_cast %412 : vector<64x32xf32> to vector<2x32x32xf32>
    "tpu.trace_start"() <{level = 10 : i32, message = "bim,bmj->bij"}> : () -> ()
    %cst_204 = arith.constant dense<0.000000e+00> : vector<2x32x32xf32>
    %416 = tpu.matmul %414, %413, %cst_204 {dimension_numbers = #tpu.dot_dimension_numbers<[2], [1], [1], [2], [0, 0, 0, 1, 1, 2], [0], [0]>} : vector<2x32x32xf32>, vector<2x32x32xf32>, vector<2x32x32xf32> -> vector<2x32x32xf32>
    "tpu.trace_stop"() : () -> ()
    %cst_205 = arith.constant 5.000000e-01 : f32
    %417 = vector.broadcast %cst_205 : f32 to vector<2x32x32xf32>
    %418 = arith.mulf %416, %417 : vector<2x32x32xf32>
    %cst_206 = arith.constant dense<0xFF800000> : vector<2x32xf32>
    %419 = vector.multi_reduction <maximumf>, %418, %cst_206 [1] : vector<2x32x32xf32> to vector<2x32xf32>
    %420 = vector.shape_cast %419 : vector<2x32xf32> to vector<2x1x32xf32>
    %421 = vector.broadcast %420 : vector<2x1x32xf32> to vector<2x32x32xf32>
    %422 = arith.subf %418, %421 : vector<2x32x32xf32>
    %423 = math.exp %422 : vector<2x32x32xf32>
    %cst_207 = arith.constant dense<0.000000e+00> : vector<2x32xf32>
    %424 = vector.multi_reduction <add>, %423, %cst_207 [1] : vector<2x32x32xf32> to vector<2x32xf32>
    %425 = vector.shape_cast %424 : vector<2x32xf32> to vector<2x1x32xf32>
    %426 = tpu.reciprocal %425 {approx = true} : vector<2x1x32xf32> -> vector<2x1x32xf32>
    %427 = vector.broadcast %426 : vector<2x1x32xf32> to vector<2x32x32xf32>
    %428 = arith.mulf %423, %427 : vector<2x32x32xf32>
    "tpu.trace_start"() <{level = 10 : i32, message = "bij,bjd->bid"}> : () -> ()
    %cst_208 = arith.constant dense<0.000000e+00> : vector<2x32x32xf32>
    %429 = tpu.matmul %428, %415, %cst_208 {dimension_numbers = #tpu.dot_dimension_numbers<[2], [1], [1], [2], [0, 0, 0, 1, 1, 2], [0], [0]>} : vector<2x32x32xf32>, vector<2x32x32xf32>, vector<2x32x32xf32> -> vector<2x32x32xf32>
    "tpu.trace_stop"() : () -> ()
    %430 = vector.shape_cast %429 : vector<2x32x32xf32> to vector<64x32xf32>
    %cst_209 = arith.constant dense<0.000000e+00> : vector<64x32xf32>
    %431 = tpu.matmul %430, %388, %cst_209 {dimension_numbers = #tpu.dot_dimension_numbers<[1], [0], [0], [1], [0, 0, 1, 1], [], []>} : vector<64x32xf32>, vector<32x32xf32>, vector<64x32xf32> -> vector<64x32xf32>
    %432 = vector.broadcast %394 : vector<1x32xf32> to vector<64x32xf32>
    %433 = arith.addf %431, %432 : vector<64x32xf32>
    %434 = arith.addf %380, %433 : vector<64x32xf32>
    %cst_210 = arith.constant dense<0.000000e+00> : vector<64xf32>
    %435 = vector.multi_reduction <add>, %434, %cst_210 [1] : vector<64x32xf32> to vector<64xf32>
    %436 = vector.shape_cast %435 : vector<64xf32> to vector<64x1xf32>
    %cst_211 = arith.constant 3.200000e+01 : f32
    %437 = vector.broadcast %cst_211 : f32 to vector<64x1xf32>
    %438 = arith.divf %436, %437 : vector<64x1xf32>
    %439 = vector.broadcast %438 : vector<64x1xf32> to vector<64x32xf32>
    %440 = arith.subf %434, %439 : vector<64x32xf32>
    %441 = arith.mulf %440, %440 : vector<64x32xf32>
    %cst_212 = arith.constant dense<0.000000e+00> : vector<64xf32>
    %442 = vector.multi_reduction <add>, %441, %cst_212 [1] : vector<64x32xf32> to vector<64xf32>
    %443 = vector.shape_cast %442 : vector<64xf32> to vector<64x1xf32>
    %cst_213 = arith.constant 3.200000e+01 : f32
    %444 = vector.broadcast %cst_213 : f32 to vector<64x1xf32>
    %445 = arith.divf %443, %444 : vector<64x1xf32>
    %cst_214 = arith.constant 9.99999974E-6 : f32
    %446 = vector.broadcast %cst_214 : f32 to vector<64x1xf32>
    %447 = arith.addf %445, %446 : vector<64x1xf32>
    %448 = math.rsqrt %447 : vector<64x1xf32>
    %449 = vector.broadcast %448 : vector<64x1xf32> to vector<64x32xf32>
    %450 = arith.mulf %440, %449 : vector<64x32xf32>
    %451 = vector.broadcast %396 : vector<1x32xf32> to vector<64x32xf32>
    %452 = arith.mulf %450, %451 : vector<64x32xf32>
    %453 = vector.broadcast %397 : vector<1x32xf32> to vector<64x32xf32>
    %454 = arith.addf %452, %453 : vector<64x32xf32>
    %cst_215 = arith.constant dense<0.000000e+00> : vector<64x32xf32>
    %455 = tpu.matmul %380, %382, %cst_215 {dimension_numbers = #tpu.dot_dimension_numbers<[1], [0], [0], [1], [0, 0, 1, 1], [], []>} : vector<64x32xf32>, vector<32x32xf32>, vector<64x32xf32> -> vector<64x32xf32>
    %456 = vector.broadcast %391 : vector<1x32xf32> to vector<64x32xf32>
    %457 = arith.addf %455, %456 : vector<64x32xf32>
    %cst_216 = arith.constant dense<0.000000e+00> : vector<64x32xf32>
    %458 = tpu.matmul %226, %384, %cst_216 {dimension_numbers = #tpu.dot_dimension_numbers<[1], [0], [0], [1], [0, 0, 1, 1], [], []>} : vector<64x32xf32>, vector<32x32xf32>, vector<64x32xf32> -> vector<64x32xf32>
    %459 = vector.broadcast %392 : vector<1x32xf32> to vector<64x32xf32>
    %460 = arith.addf %458, %459 : vector<64x32xf32>
    %cst_217 = arith.constant dense<0.000000e+00> : vector<64x32xf32>
    %461 = tpu.matmul %226, %386, %cst_217 {dimension_numbers = #tpu.dot_dimension_numbers<[1], [0], [0], [1], [0, 0, 1, 1], [], []>} : vector<64x32xf32>, vector<32x32xf32>, vector<64x32xf32> -> vector<64x32xf32>
    %462 = vector.broadcast %393 : vector<1x32xf32> to vector<64x32xf32>
    %463 = arith.addf %461, %462 : vector<64x32xf32>
    %464 = vector.shape_cast %457 : vector<64x32xf32> to vector<2x32x32xf32>
    %465 = vector.shape_cast %460 : vector<64x32xf32> to vector<2x32x32xf32>
    %466 = vector.shape_cast %463 : vector<64x32xf32> to vector<2x32x32xf32>
    "tpu.trace_start"() <{level = 10 : i32, message = "bim,bmj->bij"}> : () -> ()
    %cst_218 = arith.constant dense<0.000000e+00> : vector<2x32x32xf32>
    %467 = tpu.matmul %465, %464, %cst_218 {dimension_numbers = #tpu.dot_dimension_numbers<[2], [1], [1], [2], [0, 0, 0, 1, 1, 2], [0], [0]>} : vector<2x32x32xf32>, vector<2x32x32xf32>, vector<2x32x32xf32> -> vector<2x32x32xf32>
    "tpu.trace_stop"() : () -> ()
    %cst_219 = arith.constant 5.000000e-01 : f32
    %468 = vector.broadcast %cst_219 : f32 to vector<2x32x32xf32>
    %469 = arith.mulf %467, %468 : vector<2x32x32xf32>
    %cst_220 = arith.constant dense<0xFF800000> : vector<2x32xf32>
    %470 = vector.multi_reduction <maximumf>, %469, %cst_220 [1] : vector<2x32x32xf32> to vector<2x32xf32>
    %471 = vector.shape_cast %470 : vector<2x32xf32> to vector<2x1x32xf32>
    %472 = vector.broadcast %471 : vector<2x1x32xf32> to vector<2x32x32xf32>
    %473 = arith.subf %469, %472 : vector<2x32x32xf32>
    %474 = math.exp %473 : vector<2x32x32xf32>
    %cst_221 = arith.constant dense<0.000000e+00> : vector<2x32xf32>
    %475 = vector.multi_reduction <add>, %474, %cst_221 [1] : vector<2x32x32xf32> to vector<2x32xf32>
    %476 = vector.shape_cast %475 : vector<2x32xf32> to vector<2x1x32xf32>
    %477 = tpu.reciprocal %476 {approx = true} : vector<2x1x32xf32> -> vector<2x1x32xf32>
    %478 = vector.broadcast %477 : vector<2x1x32xf32> to vector<2x32x32xf32>
    %479 = arith.mulf %474, %478 : vector<2x32x32xf32>
    "tpu.trace_start"() <{level = 10 : i32, message = "bij,bjd->bid"}> : () -> ()
    %cst_222 = arith.constant dense<0.000000e+00> : vector<2x32x32xf32>
    %480 = tpu.matmul %479, %466, %cst_222 {dimension_numbers = #tpu.dot_dimension_numbers<[2], [1], [1], [2], [0, 0, 0, 1, 1, 2], [0], [0]>} : vector<2x32x32xf32>, vector<2x32x32xf32>, vector<2x32x32xf32> -> vector<2x32x32xf32>
    "tpu.trace_stop"() : () -> ()
    %481 = vector.shape_cast %480 : vector<2x32x32xf32> to vector<64x32xf32>
    %cst_223 = arith.constant dense<0.000000e+00> : vector<64x32xf32>
    %482 = tpu.matmul %481, %388, %cst_223 {dimension_numbers = #tpu.dot_dimension_numbers<[1], [0], [0], [1], [0, 0, 1, 1], [], []>} : vector<64x32xf32>, vector<32x32xf32>, vector<64x32xf32> -> vector<64x32xf32>
    %483 = vector.broadcast %394 : vector<1x32xf32> to vector<64x32xf32>
    %484 = arith.addf %482, %483 : vector<64x32xf32>
    %485 = arith.addf %454, %484 : vector<64x32xf32>
    %cst_224 = arith.constant dense<0.000000e+00> : vector<64xf32>
    %486 = vector.multi_reduction <add>, %485, %cst_224 [1] : vector<64x32xf32> to vector<64xf32>
    %487 = vector.shape_cast %486 : vector<64xf32> to vector<64x1xf32>
    %cst_225 = arith.constant 3.200000e+01 : f32
    %488 = vector.broadcast %cst_225 : f32 to vector<64x1xf32>
    %489 = arith.divf %487, %488 : vector<64x1xf32>
    %490 = vector.broadcast %489 : vector<64x1xf32> to vector<64x32xf32>
    %491 = arith.subf %485, %490 : vector<64x32xf32>
    %492 = arith.mulf %491, %491 : vector<64x32xf32>
    %cst_226 = arith.constant dense<0.000000e+00> : vector<64xf32>
    %493 = vector.multi_reduction <add>, %492, %cst_226 [1] : vector<64x32xf32> to vector<64xf32>
    %494 = vector.shape_cast %493 : vector<64xf32> to vector<64x1xf32>
    %cst_227 = arith.constant 3.200000e+01 : f32
    %495 = vector.broadcast %cst_227 : f32 to vector<64x1xf32>
    %496 = arith.divf %494, %495 : vector<64x1xf32>
    %cst_228 = arith.constant 9.99999974E-6 : f32
    %497 = vector.broadcast %cst_228 : f32 to vector<64x1xf32>
    %498 = arith.addf %496, %497 : vector<64x1xf32>
    %499 = math.rsqrt %498 : vector<64x1xf32>
    %500 = vector.broadcast %499 : vector<64x1xf32> to vector<64x32xf32>
    %501 = arith.mulf %491, %500 : vector<64x32xf32>
    %502 = vector.broadcast %396 : vector<1x32xf32> to vector<64x32xf32>
    %503 = arith.mulf %501, %502 : vector<64x32xf32>
    %504 = vector.broadcast %397 : vector<1x32xf32> to vector<64x32xf32>
    %505 = arith.addf %503, %504 : vector<64x32xf32>
    %cst_229 = arith.constant dense<0.000000e+00> : vector<64x64xf32>
    %506 = tpu.matmul %505, %399, %cst_229 {dimension_numbers = #tpu.dot_dimension_numbers<[1], [0], [0], [1], [0, 0, 1, 1], [], []>} : vector<64x32xf32>, vector<32x64xf32>, vector<64x64xf32> -> vector<64x64xf32>
    %507 = vector.broadcast %401 : vector<1x64xf32> to vector<64x64xf32>
    %508 = arith.addf %506, %507 : vector<64x64xf32>
    %cst_230 = arith.constant 0.000000e+00 : f32
    %509 = vector.broadcast %cst_230 : f32 to vector<64x64xf32>
    %510 = arith.maximumf %508, %509 : vector<64x64xf32>
    %cst_231 = arith.constant dense<0.000000e+00> : vector<64x32xf32>
    %511 = tpu.matmul %510, %403, %cst_231 {dimension_numbers = #tpu.dot_dimension_numbers<[1], [0], [0], [1], [0, 0, 1, 1], [], []>} : vector<64x64xf32>, vector<64x32xf32>, vector<64x32xf32> -> vector<64x32xf32>
    %512 = vector.broadcast %395 : vector<1x32xf32> to vector<64x32xf32>
    %513 = arith.addf %511, %512 : vector<64x32xf32>
    %514 = arith.addf %505, %513 : vector<64x32xf32>
    %cst_232 = arith.constant dense<0.000000e+00> : vector<64xf32>
    %515 = vector.multi_reduction <add>, %514, %cst_232 [1] : vector<64x32xf32> to vector<64xf32>
    %516 = vector.shape_cast %515 : vector<64xf32> to vector<64x1xf32>
    %cst_233 = arith.constant 3.200000e+01 : f32
    %517 = vector.broadcast %cst_233 : f32 to vector<64x1xf32>
    %518 = arith.divf %516, %517 : vector<64x1xf32>
    %519 = vector.broadcast %518 : vector<64x1xf32> to vector<64x32xf32>
    %520 = arith.subf %514, %519 : vector<64x32xf32>
    %521 = arith.mulf %520, %520 : vector<64x32xf32>
    %cst_234 = arith.constant dense<0.000000e+00> : vector<64xf32>
    %522 = vector.multi_reduction <add>, %521, %cst_234 [1] : vector<64x32xf32> to vector<64xf32>
    %523 = vector.shape_cast %522 : vector<64xf32> to vector<64x1xf32>
    %cst_235 = arith.constant 3.200000e+01 : f32
    %524 = vector.broadcast %cst_235 : f32 to vector<64x1xf32>
    %525 = arith.divf %523, %524 : vector<64x1xf32>
    %cst_236 = arith.constant 9.99999974E-6 : f32
    %526 = vector.broadcast %cst_236 : f32 to vector<64x1xf32>
    %527 = arith.addf %525, %526 : vector<64x1xf32>
    %528 = math.rsqrt %527 : vector<64x1xf32>
    %529 = vector.broadcast %528 : vector<64x1xf32> to vector<64x32xf32>
    %530 = arith.mulf %520, %529 : vector<64x32xf32>
    %531 = vector.broadcast %396 : vector<1x32xf32> to vector<64x32xf32>
    %532 = arith.mulf %530, %531 : vector<64x32xf32>
    %533 = vector.broadcast %397 : vector<1x32xf32> to vector<64x32xf32>
    %534 = arith.addf %532, %533 : vector<64x32xf32>
    %c0_237 = arith.constant 0 : index
    %c0_238 = arith.constant 0 : index
    %535 = vector.load %arg10[%c0_237, %c0_238] : memref<32x32xf32, #tpu.memory_space<vmem>>, vector<32x32xf32>
    %c0_239 = arith.constant 0 : index
    %c0_240 = arith.constant 0 : index
    %536 = vector.load %arg11[%c0_239, %c0_240] : memref<1x32xf32, #tpu.memory_space<vmem>>, vector<1x32xf32>
    %cst_241 = arith.constant dense<0.000000e+00> : vector<64x32xf32>
    %537 = tpu.matmul %534, %535, %cst_241 {dimension_numbers = #tpu.dot_dimension_numbers<[1], [0], [0], [1], [0, 0, 1, 1], [], []>} : vector<64x32xf32>, vector<32x32xf32>, vector<64x32xf32> -> vector<64x32xf32>
    %538 = vector.broadcast %536 : vector<1x32xf32> to vector<64x32xf32>
    %539 = arith.addf %537, %538 : vector<64x32xf32>
    %540 = vector.shape_cast %539 : vector<64x32xf32> to vector<2x32x32xf32>
    %cst_242 = arith.constant dense<0xFF800000> : vector<2x32xf32>
    %541 = vector.multi_reduction <maximumf>, %540, %cst_242 [1] : vector<2x32x32xf32> to vector<2x32xf32>
    %542 = vector.shape_cast %541 : vector<2x32xf32> to vector<2x1x32xf32>
    %543 = vector.broadcast %542 : vector<2x1x32xf32> to vector<2x32x32xf32>
    %544 = arith.subf %540, %543 : vector<2x32x32xf32>
    %545 = math.exp %544 : vector<2x32x32xf32>
    %cst_243 = arith.constant dense<0.000000e+00> : vector<2x32xf32>
    %546 = vector.multi_reduction <add>, %545, %cst_243 [1] : vector<2x32x32xf32> to vector<2x32xf32>
    %547 = vector.shape_cast %546 : vector<2x32xf32> to vector<2x1x32xf32>
    %548 = vector.broadcast %547 : vector<2x1x32xf32> to vector<2x32x32xf32>
    %549 = arith.divf %545, %548 : vector<2x32x32xf32>
    %c0_244 = arith.constant 0 : index
    %c0_245 = arith.constant 0 : index
    %c0_246 = arith.constant 0 : index
    %550 = vector.load %arg12[%c0_244, %c0_245, %c0_246] : memref<2x32x32xf32, #tpu.memory_space<vmem>>, vector<2x32x32xf32>
    tpu.vector_store %arg12[%c0_244, %c0_245, %c0_246], %549 {strides = array<i32>} : memref<2x32x32xf32, #tpu.memory_space<vmem>>, vector<2x32x32xf32>,
    return
  }
}

</mosaic_0001>

<llo_original>
// kernel: _lambda_.1
$region0: #{_lambda_.1}
  #allocation0 [shape = 'u32[]', space=smem, size = 0x4, offset = 0x4, fixed_abs, tag = 'smem constant byte address 0x4 - core index']
  #allocation1 [shape = 'u32[144,128]{1,0:T(1,128)}', space=vmem, size = 0x12000, scoped, tag = 'internal scratch']
  %s0 = inlined_call_operand.vmem [shape: s32[2,32,1], index: 0, kind: input, shape index: {}]
  %s1 = inlined_call_operand.vmem [shape: s32[2,32,1], index: 1, kind: input, shape index: {}]
  %s2 = inlined_call_operand.hbm [shape: f32[32,32], index: 2, kind: input, shape index: {}]
  %s3 = inlined_call_operand.hbm [shape: f32[100,32], index: 3, kind: input, shape index: {}]
  %s4 = inlined_call_operand.hbm [shape: f32[100,32], index: 4, kind: input, shape index: {}]
  %s5 = inlined_call_operand.hbm [shape: f32[4,4,32,32], index: 5, kind: input, shape index: {}]
  %s6 = inlined_call_operand.vmem [shape: f32[4,32,64], index: 6, kind: input, shape index: {}]
  %s7 = inlined_call_operand.hbm [shape: f32[4,64,32], index: 7, kind: input, shape index: {}]
  %s8 = inlined_call_operand.hbm [shape: f32[4,7,32], index: 8, kind: input, shape index: {}]
  %s9 = inlined_call_operand.vmem [shape: f32[4,1,64], index: 9, kind: input, shape index: {}]
  %s10 = inlined_call_operand.vmem [shape: f32[32,32], index: 10, kind: input, shape index: {}]
  %s11 = inlined_call_operand.vmem [shape: f32[1,32], index: 11, kind: input, shape index: {}]
  %s12 = inlined_call_operand.hbm [shape: f32[2,32,32], index: 12, kind: output, shape index: {}]
  %s13 = sld [smem:[#allocation0]]
  $region82: #{_lambda_.1} parent=0
    _
  %s15 = ssub.s32 1, %s13
  %s16 = scalar_select 0, %s15, %s13
  $region1: #{_lambda_.1} parent=0
    #allocation2 [shape = 'u8[16384]{0}', space=vmem, size = 0x4000, scoped, tag = 'input window, operand 2, single buffered']
    #allocation3 [shape = 's32[1]{0}', space=sflag, size = 0x4, scoped, tag = 'scoped memory for _lambda_.1']
    #allocation4 [shape = 's32[1]{0}', space=sflag, size = 0x4, scoped, tag = 'scoped memory for _lambda_.1']
    #allocation5 [shape = 'u8[53248]{0}', space=vmem, size = 0xd000, scoped, tag = 'input window, operand 3, single buffered']
    #allocation6 [shape = 's32[1]{0}', space=sflag, size = 0x4, scoped, tag = 'scoped memory for _lambda_.1']
    #allocation7 [shape = 'u8[53248]{0}', space=vmem, size = 0xd000, scoped, tag = 'input window, operand 4, single buffered']
    #allocation8 [shape = 'u8[262144]{0}', space=vmem, size = 0x40000, scoped, tag = 'input window, operand 5, single buffered']
    #allocation9 [shape = 's32[1]{0}', space=sflag, size = 0x4, scoped, tag = 'scoped memory for _lambda_.1']
    #allocation10 [shape = 'u8[131072]{0}', space=vmem, size = 0x20000, scoped, tag = 'input window, operand 7, single buffered']
    #allocation11 [shape = 'u8[16384]{0}', space=vmem, size = 0x4000, scoped, tag = 'input window, operand 8, single buffered']
    #allocation12 [shape = 's32[1]{0}', space=sflag, size = 0x4, scoped, tag = 'scoped memory for _lambda_.1']
    #allocation13 [shape = 'u8[32768]{0}', space=vmem, size = 0x8000, scoped, tag = 'output window, operand 0, single buffered']
    %17 = vsyncpa [#allocation3], 0
    %18 = vsyncpa [#allocation6], 0
    %19 = vsyncpa [#allocation9], 0
    %20 = vsyncpa [#allocation12], 0
    %21 = vsyncpa [#allocation4], 0
    // Predicated region
    $region2: #{_lambda_.1} parent=1 // pred_check
      _
    $region3: #{_lambda_.1} parent=1 // pred_check_branch
      %23 = sbr.rel (0) target = $region5
    $region4: #{_lambda_.1} parent=1 // pred_region
      _
    $region5: #{_lambda_.1} parent=1 // pred_fallthru
      _
    // Predicated region
    $region6: #{_lambda_.1} parent=1 // pred_check
      _
    $region7: #{_lambda_.1} parent=1 // pred_check_branch
      %25 = sbr.rel (0) target = $region9
    $region8: #{_lambda_.1} parent=1 // pred_region
      _
    $region9: #{_lambda_.1} parent=1 // pred_fallthru
      _
    // Predicated region
    $region10: #{_lambda_.1} parent=1 // pred_check
      _
    $region11: #{_lambda_.1} parent=1 // pred_check_branch
      %27 = sbr.rel (0) target = $region13
    $region12: #{_lambda_.1} parent=1 // pred_region
      %s29 = ssub.s32 512, 512
      %30 = vsyncadd [#allocation3], %s29
      %s31 = sshll.u32 [#allocation2], 4
      %s32 = int_to_ptr.vmem [resolvable:$true] %s31
      %37 = dma.hbm_to_vmem [thread:$0]  %s2, 512, %s32, [#allocation3], 128, 128, 8
    $region13: #{_lambda_.1} parent=1 // pred_fallthru
      _
    // Predicated region
    $region14: #{_lambda_.1} parent=1 // pred_check
      _
    $region15: #{_lambda_.1} parent=1 // pred_check_branch
      %39 = sbr.rel (0) target = $region17
    $region16: #{_lambda_.1} parent=1 // pred_region
      %s41 = ssub.s32 1664, 1664
      %42 = vsyncadd [#allocation6], %s41
      %s43 = sshll.u32 [#allocation5], 4
      %s44 = int_to_ptr.vmem [resolvable:$true] %s43
      %49 = dma.hbm_to_vmem [thread:$0]  %s3, 1664, %s44, [#allocation6], 128, 128, 8
    $region17: #{_lambda_.1} parent=1 // pred_fallthru
      _
    // Predicated region
    $region18: #{_lambda_.1} parent=1 // pred_check
      _
    $region19: #{_lambda_.1} parent=1 // pred_check_branch
      %51 = sbr.rel (0) target = $region21
    $region20: #{_lambda_.1} parent=1 // pred_region
      %s53 = ssub.s32 1664, 1664
      %54 = vsyncadd [#allocation6], %s53
      %s55 = sshll.u32 [#allocation7], 4
      %s56 = int_to_ptr.vmem [resolvable:$true] %s55
      %61 = dma.hbm_to_vmem [thread:$0]  %s4, 1664, %s56, [#allocation6], 128, 128, 8
    $region21: #{_lambda_.1} parent=1 // pred_fallthru
      _
    // Predicated region
    $region22: #{_lambda_.1} parent=1 // pred_check
      _
    $region23: #{_lambda_.1} parent=1 // pred_check_branch
      %63 = sbr.rel (0) target = $region25
    $region24: #{_lambda_.1} parent=1 // pred_region
      %s65 = ssub.s32 8192, 8192
      %66 = vsyncadd [#allocation9], %s65
      %s67 = sshll.u32 [#allocation8], 4
      %s68 = int_to_ptr.vmem [resolvable:$true] %s67
      %73 = dma.hbm_to_vmem [thread:$0]  %s5, 8192, %s68, [#allocation9], 128, 128, 8
    $region25: #{_lambda_.1} parent=1 // pred_fallthru
      _
    // Predicated region
    $region26: #{_lambda_.1} parent=1 // pred_check
      _
    $region27: #{_lambda_.1} parent=1 // pred_check_branch
      %75 = sbr.rel (0) target = $region29
    $region28: #{_lambda_.1} parent=1 // pred_region
      _
    $region29: #{_lambda_.1} parent=1 // pred_fallthru
      _
    // Predicated region
    $region30: #{_lambda_.1} parent=1 // pred_check
      _
    $region31: #{_lambda_.1} parent=1 // pred_check_branch
      %77 = sbr.rel (0) target = $region33
    $region32: #{_lambda_.1} parent=1 // pred_region
      %s79 = ssub.s32 4096, 4096
      %80 = vsyncadd [#allocation9], %s79
      %s81 = sshll.u32 [#allocation10], 4
      %s82 = int_to_ptr.vmem [resolvable:$true] %s81
      %87 = dma.hbm_to_vmem [thread:$0]  %s7, 4096, %s82, [#allocation9], 128, 128, 8
    $region33: #{_lambda_.1} parent=1 // pred_fallthru
      _
    // Predicated region
    $region34: #{_lambda_.1} parent=1 // pred_check
      _
    $region35: #{_lambda_.1} parent=1 // pred_check_branch
      %89 = sbr.rel (0) target = $region37
    $region36: #{_lambda_.1} parent=1 // pred_region
      %s91 = ssub.s32 512, 512
      %92 = vsyncadd [#allocation12], %s91
      %s93 = sshll.u32 [#allocation11], 4
      %s94 = int_to_ptr.vmem [resolvable:$true] %s93
      %99 = dma.hbm_to_vmem [thread:$0]  %s8, 512, %s94, [#allocation12], 128, 128, 8
    $region37: #{_lambda_.1} parent=1 // pred_fallthru
      _
    // Predicated region
    $region38: #{_lambda_.1} parent=1 // pred_check
      _
    $region39: #{_lambda_.1} parent=1 // pred_check_branch
      %101 = sbr.rel (0) target = $region41
    $region40: #{_lambda_.1} parent=1 // pred_region
      _
    $region41: #{_lambda_.1} parent=1 // pred_fallthru
      _
    // Predicated region
    $region42: #{_lambda_.1} parent=1 // pred_check
      _
    $region43: #{_lambda_.1} parent=1 // pred_check_branch
      %103 = sbr.rel (0) target = $region45
    $region44: #{_lambda_.1} parent=1 // pred_region
      _
    $region45: #{_lambda_.1} parent=1 // pred_fallthru
      _
    // Predicated region
    $region46: #{_lambda_.1} parent=1 // pred_check
      _
    $region47: #{_lambda_.1} parent=1 // pred_check_branch
      %105 = sbr.rel (0) target = $region49
    $region48: #{_lambda_.1} parent=1 // pred_region
      _
    $region49: #{_lambda_.1} parent=1 // pred_fallthru
      _
    // Predicated region
    $region50: #{_lambda_.1} parent=1 // pred_check
      _
    $region51: #{_lambda_.1} parent=1 // pred_check_branch
      %107 = sbr.rel (0) target = $region53
    $region52: #{_lambda_.1} parent=1 // pred_region
      %108 = dma.done [#allocation3], 512
    $region53: #{_lambda_.1} parent=1 // pred_fallthru
      _
    // Predicated region
    $region54: #{_lambda_.1} parent=1 // pred_check
      _
    $region55: #{_lambda_.1} parent=1 // pred_check_branch
      %110 = sbr.rel (0) target = $region57
    $region56: #{_lambda_.1} parent=1 // pred_region
      %111 = dma.done [#allocation6], 1664
    $region57: #{_lambda_.1} parent=1 // pred_fallthru
      _
    // Predicated region
    $region58: #{_lambda_.1} parent=1 // pred_check
      _
    $region59: #{_lambda_.1} parent=1 // pred_check_branch
      %113 = sbr.rel (0) target = $region61
    $region60: #{_lambda_.1} parent=1 // pred_region
      %114 = dma.done [#allocation6], 1664
    $region61: #{_lambda_.1} parent=1 // pred_fallthru
      _
    // Predicated region
    $region62: #{_lambda_.1} parent=1 // pred_check
      _
    $region63: #{_lambda_.1} parent=1 // pred_check_branch
      %116 = sbr.rel (0) target = $region65
    $region64: #{_lambda_.1} parent=1 // pred_region
      %117 = dma.done [#allocation9], 8192
    $region65: #{_lambda_.1} parent=1 // pred_fallthru
      _
    // Predicated region
    $region66: #{_lambda_.1} parent=1 // pred_check
      _
    $region67: #{_lambda_.1} parent=1 // pred_check_branch
      %119 = sbr.rel (0) target = $region69
    $region68: #{_lambda_.1} parent=1 // pred_region
      %120 = dma.done [#allocation9], 4096
    $region69: #{_lambda_.1} parent=1 // pred_fallthru
      _
    // Predicated region
    $region70: #{_lambda_.1} parent=1 // pred_check
      _
    $region71: #{_lambda_.1} parent=1 // pred_check_branch
      %122 = sbr.rel (0) target = $region73
    $region72: #{_lambda_.1} parent=1 // pred_region
      %123 = dma.done [#allocation12], 512
    $region73: #{_lambda_.1} parent=1 // pred_fallthru
      _
    %v124 = vld [vmem:[#allocation2] sm:$0xff]
    %v125 = vld [vmem:[#allocation2 + $0x8] sm:$0xff]
    %v126 = vld [vmem:[#allocation2 + $0x10] sm:$0xff]
    %v127 = vld [vmem:[#allocation2 + $0x18] sm:$0xff]
    %v128 = vlaneseq
    %v129 = vand.u32 %v128, 127
    %v130 = vld [vmem:[%s0] sm:$0xff]
    %v131 = vld [vmem:[%s0 + $0x8] sm:$0xff]
    %v132 = vld [vmem:[%s0 + $0x10] sm:$0xff]
    %v133 = vld [vmem:[%s0 + $0x18] sm:$0xff]
    %v134 = vld [vmem:[%s0 + $0x20] sm:$0xff]
    %v135 = vld [vmem:[%s0 + $0x28] sm:$0xff]
    %v136 = vld [vmem:[%s0 + $0x30] sm:$0xff]
    %v137 = vld [vmem:[%s0 + $0x38] sm:$0xff]
    %138 = vset.pattern.permute.xlu0 0
    %139 = vperm.xlu0 %138, %v130
    %v140 = vpop.permute.xlu0 %139
    %141 = vset.pattern.permute.xlu0 0
    %142 = vperm.xlu0 %141, %v131
    %v143 = vpop.permute.xlu0 %142
    %144 = vset.pattern.permute.xlu0 0
    %145 = vperm.xlu0 %144, %v132
    %v146 = vpop.permute.xlu0 %145
    %147 = vset.pattern.permute.xlu0 0
    %148 = vperm.xlu0 %147, %v133
    %v149 = vpop.permute.xlu0 %148
    %150 = vset.pattern.permute.xlu0 0
    %151 = vperm.xlu0 %150, %v134
    %v152 = vpop.permute.xlu0 %151
    %153 = vset.pattern.permute.xlu0 0
    %154 = vperm.xlu0 %153, %v135
    %v155 = vpop.permute.xlu0 %154
    %156 = vset.pattern.permute.xlu0 0
    %157 = vperm.xlu0 %156, %v136
    %v158 = vpop.permute.xlu0 %157
    %159 = vset.pattern.permute.xlu0 0
    %160 = vperm.xlu0 %159, %v137
    %v161 = vpop.permute.xlu0 %160
    %vm162 = vcmp.eq.s32.totalorder %v140, %v129
    %vm163 = vcmp.eq.s32.totalorder %v143, %v129
    %vm164 = vcmp.eq.s32.totalorder %v146, %v129
    %vm165 = vcmp.eq.s32.totalorder %v149, %v129
    %vm166 = vcmp.eq.s32.totalorder %v152, %v129
    %vm167 = vcmp.eq.s32.totalorder %v155, %v129
    %vm168 = vcmp.eq.s32.totalorder %v158, %v129
    %vm169 = vcmp.eq.s32.totalorder %v161, %v129
    %v170 = vsel %vm162, 1, 0
    %v171 = vsel %vm163, 1, 0
    %v172 = vsel %vm164, 1, 0
    %v173 = vsel %vm165, 1, 0
    %v174 = vsel %vm166, 1, 0
    %v175 = vsel %vm167, 1, 0
    %v176 = vsel %vm168, 1, 0
    %v177 = vsel %vm169, 1, 0
    %v178 = vcvt.s32.f32 %v170
    %v179 = vcvt.s32.f32 %v171
    %v180 = vcvt.s32.f32 %v172
    %v181 = vcvt.s32.f32 %v173
    %v182 = vcvt.s32.f32 %v174
    %v183 = vcvt.s32.f32 %v175
    %v184 = vcvt.s32.f32 %v176
    %v185 = vcvt.s32.f32 %v177
    %v186 = vld [vmem:[#allocation5] sm:$0xff]
    %v187 = vld [vmem:[#allocation5 + $0x8] sm:$0xff]
    %v188 = vld [vmem:[#allocation5 + $0x10] sm:$0xff]
    %v189 = vld [vmem:[#allocation5 + $0x18] sm:$0xff]
    %v190 = vld [vmem:[#allocation5 + $0x20] sm:$0xff]
    %v191 = vld [vmem:[#allocation5 + $0x28] sm:$0xff]
    %v192 = vld [vmem:[#allocation5 + $0x30] sm:$0xff]
    %v193 = vld [vmem:[#allocation5 + $0x38] sm:$0xff]
    %v194 = vld [vmem:[#allocation5 + $0x40] sm:$0xff]
    %v195 = vld [vmem:[#allocation5 + $0x48] sm:$0xff]
    %v196 = vld [vmem:[#allocation5 + $0x50] sm:$0xff]
    %v197 = vld [vmem:[#allocation5 + $0x58] sm:$0xff]
    %v198 = vld [vmem:[#allocation5 + $0x60] sm:$0xf]
    %vm199 = vcmask 818176
    %v201 = vsel %vm199, %v178, 0
    %v204 = vsel %vm199, %v179, 0
    %v207 = vsel %vm199, %v180, 0
    %v210 = vsel %vm199, %v181, 0
    %v213 = vsel %vm199, %v182, 0
    %v216 = vsel %vm199, %v183, 0
    %v219 = vsel %vm199, %v184, 0
    %v222 = vsel %vm199, %v185, 0
    %vm224 = vcmask 1043456
    %v226 = vsel %vm224, %v198, 0
    %228 = vmatprep.subr.mxu0 0.0
    %229 = vmatpush1.msra.mxu0 %v186
    %230 = vmatprep.subr.mxu0 0.0
    %231 = vmatpush1.msra.mxu0 %v187
    %232 = vmatprep.subr.mxu0 0.0
    %233 = vmatpush1.msra.mxu0 %v188
    %234 = vmatprep.subr.mxu0 0.0
    %235 = vmatpush1.msra.mxu0 %v189
    %236 = vmatprep.subr.mxu0 0.0
    %237 = vmatpush1.msra.mxu0 %v190
    %238 = vmatprep.subr.mxu0 0.0
    %239 = vmatpush1.msra.mxu0 %v191
    %240 = vmatprep.subr.mxu0 0.0
    %241 = vmatpush1.msra.mxu0 %v192
    %242 = vmatprep.subr.mxu0 0.0
    %243 = vmatpush1.msra.mxu0 %v193
    %244 = vmatprep.subr.mxu0 0.0
    %245 = vmatpush1.msra.mxu0 %v194
    %246 = vmatprep.subr.mxu0 0.0
    %247 = vmatpush1.msra.mxu0 %v195
    %248 = vmatprep.subr.mxu0 0.0
    %249 = vmatpush1.msra.mxu0 %v196
    %250 = vmatprep.subr.mxu0 0.0
    %251 = vmatpush1.msra.mxu0 %v197
    %252 = vmatprep.subr.mxu0 0.0
    %253 = vmatpush1.msra.mxu0 %v226
    %254 = vmatprep.subr.mxu0 0.0
    %255 = vmatpush1.msra.mxu0 0.0
    %256 = vmatprep.subr.mxu0 0.0
    %257 = vmatpush1.msra.mxu0 0.0
    %258 = vmatprep.subr.mxu0 0.0
    %259 = vmatpush1.msra.mxu0 0.0
    %260 = vmatprep.subr.mxu0 0.0
    %261 = vmatpush1.msra.mxu0 0.0
    %262 = vmatprep.subr.mxu0 0.0
    %263 = vmatpush1.msra.mxu0 0.0
    %264 = vmatprep.subr.mxu0 0.0
    %265 = vmatpush1.msra.mxu0 0.0
    %266 = vmatprep.subr.mxu0 0.0
    %267 = vmatpush1.msra.mxu0 0.0
    %268 = vmatprep.subr.mxu0 0.0
    %269 = vmatpush1.msra.mxu0 0.0
    %270 = vmatprep.subr.mxu0 0.0
    %271 = vmatpush1.msra.mxu0 0.0
    %272 = vmatprep.subr.mxu0 0.0
    %273 = vmatpush1.msra.mxu0 0.0
    %274 = vmatprep.subr.mxu0 0.0
    %275 = vmatpush1.msra.mxu0 0.0
    %276 = vmatprep.subr.mxu0 0.0
    %277 = vmatpush1.msra.mxu0 0.0
    %278 = vmatprep.subr.mxu0 0.0
    %279 = vmatpush1.msra.mxu0 0.0
    %280 = vmatprep.subr.mxu0 0.0
    %281 = vmatpush1.msra.mxu0 0.0
    %282 = vmatprep.subr.mxu0 0.0
    %283 = vmatpush1.msra.mxu0 0.0
    %284 = vmatprep.subr.mxu0 0.0
    %285 = vmatpush1.msra.mxu0 0.0
    %286 = vmatprep.subr.mxu0 0.0
    %287 = vmatpush1.msra.mxu0 0.0
    %288 = vmatprep.subr.mxu0 0.0
    %289 = vmatpush1.msra.mxu0 0.0
    %290 = vmatprep.subr.mxu0 0.0
    %291 = vmatpush1.msra.mxu0 0.0
    %292 = vmatprep.mubr.f32.mxu0 0.0
    %293 = vmatmul.mubr.f32.gmra.mrb[0].mxu0 %v201
    %v294 = vpop.f32.mrb[0].mxu0
    %v295 = vadd.f32 %v124, %v294
    %v296 = vpop.f32.mrb[0].mxu0
    %297 = vmatprep.mubr.f32.mxu0 0.0
    %298 = vmatmul.mubr.f32.gmra.mrb[0].mxu0 %v204
    %v299 = vpop.f32.mrb[0].mxu0
    %v300 = vadd.f32 %v125, %v299
    %v301 = vpop.f32.mrb[0].mxu0
    %302 = vmatprep.mubr.f32.mxu0 0.0
    %303 = vmatmul.mubr.f32.gmra.mrb[0].mxu0 %v207
    %v304 = vpop.f32.mrb[0].mxu0
    %v305 = vadd.f32 %v126, %v304
    %v306 = vpop.f32.mrb[0].mxu0
    %307 = vmatprep.mubr.f32.mxu0 0.0
    %308 = vmatmul.mubr.f32.gmra.mrb[0].mxu0 %v210
    %v309 = vpop.f32.mrb[0].mxu0
    %v310 = vadd.f32 %v127, %v309
    %v311 = vpop.f32.mrb[0].mxu0
    %312 = vmatprep.mubr.f32.mxu0 0.0
    %313 = vmatmul.mubr.f32.gmra.mrb[0].mxu0 %v213
    %v314 = vpop.f32.mrb[0].mxu0
    %v315 = vadd.f32 %v124, %v314
    %v316 = vpop.f32.mrb[0].mxu0
    %317 = vmatprep.mubr.f32.mxu0 0.0
    %318 = vmatmul.mubr.f32.gmra.mrb[0].mxu0 %v216
    %v319 = vpop.f32.mrb[0].mxu0
    %v320 = vadd.f32 %v125, %v319
    %v321 = vpop.f32.mrb[0].mxu0
    %322 = vmatprep.mubr.f32.mxu0 0.0
    %323 = vmatmul.mubr.f32.gmra.mrb[0].mxu0 %v219
    %v324 = vpop.f32.mrb[0].mxu0
    %v325 = vadd.f32 %v126, %v324
    %v326 = vpop.f32.mrb[0].mxu0
    %327 = vmatprep.mubr.f32.mxu0 0.0
    %328 = vmatmul.mubr.f32.gmra.mrb[0].mxu0 %v222
    %v329 = vpop.f32.mrb[0].mxu0
    %v330 = vadd.f32 %v127, %v329
    %v331 = vpop.f32.mrb[0].mxu0
    %332 = vdwg.mxu0
    %v333 = vld [vmem:[%s1] sm:$0xff]
    %v334 = vld [vmem:[%s1 + $0x8] sm:$0xff]
    %v335 = vld [vmem:[%s1 + $0x10] sm:$0xff]
    %v336 = vld [vmem:[%s1 + $0x18] sm:$0xff]
    %v337 = vld [vmem:[%s1 + $0x20] sm:$0xff]
    %v338 = vld [vmem:[%s1 + $0x28] sm:$0xff]
    %v339 = vld [vmem:[%s1 + $0x30] sm:$0xff]
    %v340 = vld [vmem:[%s1 + $0x38] sm:$0xff]
    %341 = vset.pattern.permute.xlu0 0
    %342 = vperm.xlu0 %341, %v333
    %v343 = vpop.permute.xlu0 %342
    %344 = vset.pattern.permute.xlu0 0
    %345 = vperm.xlu0 %344, %v334
    %v346 = vpop.permute.xlu0 %345
    %347 = vset.pattern.permute.xlu0 0
    %348 = vperm.xlu0 %347, %v335
    %v349 = vpop.permute.xlu0 %348
    %350 = vset.pattern.permute.xlu0 0
    %351 = vperm.xlu0 %350, %v336
    %v352 = vpop.permute.xlu0 %351
    %353 = vset.pattern.permute.xlu0 0
    %354 = vperm.xlu0 %353, %v337
    %v355 = vpop.permute.xlu0 %354
    %356 = vset.pattern.permute.xlu0 0
    %357 = vperm.xlu0 %356, %v338
    %v358 = vpop.permute.xlu0 %357
    %359 = vset.pattern.permute.xlu0 0
    %360 = vperm.xlu0 %359, %v339
    %v361 = vpop.permute.xlu0 %360
    %362 = vset.pattern.permute.xlu0 0
    %363 = vperm.xlu0 %362, %v340
    %v364 = vpop.permute.xlu0 %363
    %vm365 = vcmp.eq.s32.totalorder %v343, %v129
    %vm366 = vcmp.eq.s32.totalorder %v346, %v129
    %vm367 = vcmp.eq.s32.totalorder %v349, %v129
    %vm368 = vcmp.eq.s32.totalorder %v352, %v129
    %vm369 = vcmp.eq.s32.totalorder %v355, %v129
    %vm370 = vcmp.eq.s32.totalorder %v358, %v129
    %vm371 = vcmp.eq.s32.totalorder %v361, %v129
    %vm372 = vcmp.eq.s32.totalorder %v364, %v129
    %v373 = vsel %vm365, 1, 0
    %v374 = vsel %vm366, 1, 0
    %v375 = vsel %vm367, 1, 0
    %v376 = vsel %vm368, 1, 0
    %v377 = vsel %vm369, 1, 0
    %v378 = vsel %vm370, 1, 0
    %v379 = vsel %vm371, 1, 0
    %v380 = vsel %vm372, 1, 0
    %v381 = vcvt.s32.f32 %v373
    %v382 = vcvt.s32.f32 %v374
    %v383 = vcvt.s32.f32 %v375
    %v384 = vcvt.s32.f32 %v376
    %v385 = vcvt.s32.f32 %v377
    %v386 = vcvt.s32.f32 %v378
    %v387 = vcvt.s32.f32 %v379
    %v388 = vcvt.s32.f32 %v380
    %v389 = vld [vmem:[#allocation7] sm:$0xff]
    %v390 = vld [vmem:[#allocation7 + $0x8] sm:$0xff]
    %v391 = vld [vmem:[#allocation7 + $0x10] sm:$0xff]
    %v392 = vld [vmem:[#allocation7 + $0x18] sm:$0xff]
    %v393 = vld [vmem:[#allocation7 + $0x20] sm:$0xff]
    %v394 = vld [vmem:[#allocation7 + $0x28] sm:$0xff]
    %v395 = vld [vmem:[#allocation7 + $0x30] sm:$0xff]
    %v396 = vld [vmem:[#allocation7 + $0x38] sm:$0xff]
    %v397 = vld [vmem:[#allocation7 + $0x40] sm:$0xff]
    %v398 = vld [vmem:[#allocation7 + $0x48] sm:$0xff]
    %v399 = vld [vmem:[#allocation7 + $0x50] sm:$0xff]
    %v400 = vld [vmem:[#allocation7 + $0x58] sm:$0xff]
    %v401 = vld [vmem:[#allocation7 + $0x60] sm:$0xf]
    %v403 = vsel %vm199, %v381, 0
    %v406 = vsel %vm199, %v382, 0
    %v409 = vsel %vm199, %v383, 0
    %v412 = vsel %vm199, %v384, 0
    %v415 = vsel %vm199, %v385, 0
    %v418 = vsel %vm199, %v386, 0
    %v421 = vsel %vm199, %v387, 0
    %v424 = vsel %vm199, %v388, 0
    %v427 = vsel %vm224, %v401, 0
    %429 = vmatprep.subr.mxu0 0.0
    %430 = vmatpush1.msra.mxu0 %v389
    %431 = vmatprep.subr.mxu0 0.0
    %432 = vmatpush1.msra.mxu0 %v390
    %433 = vmatprep.subr.mxu0 0.0
    %434 = vmatpush1.msra.mxu0 %v391
    %435 = vmatprep.subr.mxu0 0.0
    %436 = vmatpush1.msra.mxu0 %v392
    %437 = vmatprep.subr.mxu0 0.0
    %438 = vmatpush1.msra.mxu0 %v393
    %439 = vmatprep.subr.mxu0 0.0
    %440 = vmatpush1.msra.mxu0 %v394
    %441 = vmatprep.subr.mxu0 0.0
    %442 = vmatpush1.msra.mxu0 %v395
    %443 = vmatprep.subr.mxu0 0.0
    %444 = vmatpush1.msra.mxu0 %v396
    %445 = vmatprep.subr.mxu0 0.0
    %446 = vmatpush1.msra.mxu0 %v397
    %447 = vmatprep.subr.mxu0 0.0
    %448 = vmatpush1.msra.mxu0 %v398
    %449 = vmatprep.subr.mxu0 0.0
    %450 = vmatpush1.msra.mxu0 %v399
    %451 = vmatprep.subr.mxu0 0.0
    %452 = vmatpush1.msra.mxu0 %v400
    %453 = vmatprep.subr.mxu0 0.0
    %454 = vmatpush1.msra.mxu0 %v427
    %455 = vmatprep.subr.mxu0 0.0
    %456 = vmatpush1.msra.mxu0 0.0
    %457 = vmatprep.subr.mxu0 0.0
    %458 = vmatpush1.msra.mxu0 0.0
    %459 = vmatprep.subr.mxu0 0.0
    %460 = vmatpush1.msra.mxu0 0.0
    %461 = vmatprep.subr.mxu0 0.0
    %462 = vmatpush1.msra.mxu0 0.0
    %463 = vmatprep.subr.mxu0 0.0
    %464 = vmatpush1.msra.mxu0 0.0
    %465 = vmatprep.subr.mxu0 0.0
    %466 = vmatpush1.msra.mxu0 0.0
    %467 = vmatprep.subr.mxu0 0.0
    %468 = vmatpush1.msra.mxu0 0.0
    %469 = vmatprep.subr.mxu0 0.0
    %470 = vmatpush1.msra.mxu0 0.0
    %471 = vmatprep.subr.mxu0 0.0
    %472 = vmatpush1.msra.mxu0 0.0
    %473 = vmatprep.subr.mxu0 0.0
    %474 = vmatpush1.msra.mxu0 0.0
    %475 = vmatprep.subr.mxu0 0.0
    %476 = vmatpush1.msra.mxu0 0.0
    %477 = vmatprep.subr.mxu0 0.0
    %478 = vmatpush1.msra.mxu0 0.0
    %479 = vmatprep.subr.mxu0 0.0
    %480 = vmatpush1.msra.mxu0 0.0
    %481 = vmatprep.subr.mxu0 0.0
    %482 = vmatpush1.msra.mxu0 0.0
    %483 = vmatprep.subr.mxu0 0.0
    %484 = vmatpush1.msra.mxu0 0.0
    %485 = vmatprep.subr.mxu0 0.0
    %486 = vmatpush1.msra.mxu0 0.0
    %487 = vmatprep.subr.mxu0 0.0
    %488 = vmatpush1.msra.mxu0 0.0
    %489 = vmatprep.subr.mxu0 0.0
    %490 = vmatpush1.msra.mxu0 0.0
    %491 = vmatprep.subr.mxu0 0.0
    %492 = vmatpush1.msra.mxu0 0.0
    %493 = vmatprep.mubr.f32.mxu0 0.0
    %494 = vmatmul.mubr.f32.gmra.mrb[0].mxu0 %v403
    %v495 = vpop.f32.mrb[0].mxu0
    %v496 = vadd.f32 %v124, %v495
    %v497 = vpop.f32.mrb[0].mxu0
    %498 = vmatprep.mubr.f32.mxu0 0.0
    %499 = vmatmul.mubr.f32.gmra.mrb[0].mxu0 %v406
    %v500 = vpop.f32.mrb[0].mxu0
    %v501 = vadd.f32 %v125, %v500
    %v502 = vpop.f32.mrb[0].mxu0
    %503 = vmatprep.mubr.f32.mxu0 0.0
    %504 = vmatmul.mubr.f32.gmra.mrb[0].mxu0 %v409
    %v505 = vpop.f32.mrb[0].mxu0
    %v506 = vadd.f32 %v126, %v505
    %v507 = vpop.f32.mrb[0].mxu0
    %508 = vmatprep.mubr.f32.mxu0 0.0
    %509 = vmatmul.mubr.f32.gmra.mrb[0].mxu0 %v412
    %v510 = vpop.f32.mrb[0].mxu0
    %v511 = vadd.f32 %v127, %v510
    %v512 = vpop.f32.mrb[0].mxu0
    %513 = vmatprep.mubr.f32.mxu0 0.0
    %514 = vmatmul.mubr.f32.gmra.mrb[0].mxu0 %v415
    %v515 = vpop.f32.mrb[0].mxu0
    %v516 = vadd.f32 %v124, %v515
    %v517 = vpop.f32.mrb[0].mxu0
    %518 = vmatprep.mubr.f32.mxu0 0.0
    %519 = vmatmul.mubr.f32.gmra.mrb[0].mxu0 %v418
    %v520 = vpop.f32.mrb[0].mxu0
    %v521 = vadd.f32 %v125, %v520
    %v522 = vpop.f32.mrb[0].mxu0
    %523 = vmatprep.mubr.f32.mxu0 0.0
    %524 = vmatmul.mubr.f32.gmra.mrb[0].mxu0 %v421
    %v525 = vpop.f32.mrb[0].mxu0
    %v526 = vadd.f32 %v126, %v525
    %v527 = vpop.f32.mrb[0].mxu0
    %528 = vmatprep.mubr.f32.mxu0 0.0
    %529 = vmatmul.mubr.f32.gmra.mrb[0].mxu0 %v424
    %v530 = vpop.f32.mrb[0].mxu0
    %v531 = vadd.f32 %v127, %v530
    %v532 = vpop.f32.mrb[0].mxu0
    %533 = vdwg.mxu0
    %v534 = vld [vmem:[#allocation8] sm:$0xff]
    %v535 = vld [vmem:[#allocation8 + $0x8] sm:$0xff]
    %v536 = vld [vmem:[#allocation8 + $0x10] sm:$0xff]
    %v537 = vld [vmem:[#allocation8 + $0x18] sm:$0xff]
    %s538 = scalar_lea.vmem [#allocation8], 32
    %v539 = vld [vmem:[%s538] sm:$0xff]
    %v540 = vld [vmem:[%s538 + $0x8] sm:$0xff]
    %v541 = vld [vmem:[%s538 + $0x10] sm:$0xff]
    %v542 = vld [vmem:[%s538 + $0x18] sm:$0xff]
    %s543 = scalar_lea.vmem [#allocation8], 64
    %v544 = vld [vmem:[%s543] sm:$0xff]
    %v545 = vld [vmem:[%s543 + $0x8] sm:$0xff]
    %v546 = vld [vmem:[%s543 + $0x10] sm:$0xff]
    %v547 = vld [vmem:[%s543 + $0x18] sm:$0xff]
    %s548 = scalar_lea.vmem [#allocation8], 96
    %v549 = vld [vmem:[%s548] sm:$0xff]
    %v550 = vld [vmem:[%s548 + $0x8] sm:$0xff]
    %v551 = vld [vmem:[%s548 + $0x10] sm:$0xff]
    %v552 = vld [vmem:[%s548 + $0x18] sm:$0xff]
    %v553 = vld [vmem:[#allocation11] sm:$0x7f]
    %v554 = vld [vmem:[%s6] sm:$0xff]
    %v555 = vld [vmem:[%s6 + $0x8] sm:$0xff]
    %v556 = vld [vmem:[%s6 + $0x10] sm:$0xff]
    %v557 = vld [vmem:[%s6 + $0x18] sm:$0xff]
    %v558 = vld [vmem:[%s9] sm:$0x1]
    %v559 = vld [vmem:[#allocation10] sm:$0xff]
    %v560 = vld [vmem:[#allocation10 + $0x8] sm:$0xff]
    %v561 = vld [vmem:[#allocation10 + $0x10] sm:$0xff]
    %v562 = vld [vmem:[#allocation10 + $0x18] sm:$0xff]
    %v563 = vld [vmem:[#allocation10 + $0x20] sm:$0xff]
    %v564 = vld [vmem:[#allocation10 + $0x28] sm:$0xff]
    %v565 = vld [vmem:[#allocation10 + $0x30] sm:$0xff]
    %v566 = vld [vmem:[#allocation10 + $0x38] sm:$0xff]
    %v567 = vlaneseq
    %v568 = vshrl.u32 %v567, 7
    %v569 = vsub.s32 0, %v568
    %v570 = vrot.slane %v553, %v569
    %vm571 = vcmask 261120
    %v573 = vsel %vm571, %v295, 0
    %v576 = vsel %vm571, %v300, 0
    %v579 = vsel %vm571, %v305, 0
    %v582 = vsel %vm571, %v310, 0
    %v585 = vsel %vm571, %v315, 0
    %v588 = vsel %vm571, %v320, 0
    %v591 = vsel %vm571, %v325, 0
    %v594 = vsel %vm571, %v330, 0
    %596 = vmatprep.subr.mxu0 0.0
    %597 = vmatpush1.msra.mxu0 %v534
    %598 = vmatprep.subr.mxu0 0.0
    %599 = vmatpush1.msra.mxu0 %v535
    %600 = vmatprep.subr.mxu0 0.0
    %601 = vmatpush1.msra.mxu0 %v536
    %602 = vmatprep.subr.mxu0 0.0
    %603 = vmatpush1.msra.mxu0 %v537
    %604 = vmatprep.subr.mxu0 0.0
    %605 = vmatpush1.msra.mxu0 0.0
    %606 = vmatprep.subr.mxu0 0.0
    %607 = vmatpush1.msra.mxu0 0.0
    %608 = vmatprep.subr.mxu0 0.0
    %609 = vmatpush1.msra.mxu0 0.0
    %610 = vmatprep.subr.mxu0 0.0
    %611 = vmatpush1.msra.mxu0 0.0
    %612 = vmatprep.subr.mxu0 0.0
    %613 = vmatpush1.msra.mxu0 0.0
    %614 = vmatprep.subr.mxu0 0.0
    %615 = vmatpush1.msra.mxu0 0.0
    %616 = vmatprep.subr.mxu0 0.0
    %617 = vmatpush1.msra.mxu0 0.0
    %618 = vmatprep.subr.mxu0 0.0
    %619 = vmatpush1.msra.mxu0 0.0
    %620 = vmatprep.subr.mxu0 0.0
    %621 = vmatpush1.msra.mxu0 0.0
    %622 = vmatprep.subr.mxu0 0.0
    %623 = vmatpush1.msra.mxu0 0.0
    %624 = vmatprep.subr.mxu0 0.0
    %625 = vmatpush1.msra.mxu0 0.0
    %626 = vmatprep.subr.mxu0 0.0
    %627 = vmatpush1.msra.mxu0 0.0
    %628 = vmatprep.subr.mxu0 0.0
    %629 = vmatpush1.msra.mxu0 0.0
    %630 = vmatprep.subr.mxu0 0.0
    %631 = vmatpush1.msra.mxu0 0.0
    %632 = vmatprep.subr.mxu0 0.0
    %633 = vmatpush1.msra.mxu0 0.0
    %634 = vmatprep.subr.mxu0 0.0
    %635 = vmatpush1.msra.mxu0 0.0
    %636 = vmatprep.subr.mxu0 0.0
    %637 = vmatpush1.msra.mxu0 0.0
    %638 = vmatprep.subr.mxu0 0.0
    %639 = vmatpush1.msra.mxu0 0.0
    %640 = vmatprep.subr.mxu0 0.0
    %641 = vmatpush1.msra.mxu0 0.0
    %642 = vmatprep.subr.mxu0 0.0
    %643 = vmatpush1.msra.mxu0 0.0
    %644 = vmatprep.subr.mxu0 0.0
    %645 = vmatpush1.msra.mxu0 0.0
    %646 = vmatprep.subr.mxu0 0.0
    %647 = vmatpush1.msra.mxu0 0.0
    %648 = vmatprep.subr.mxu0 0.0
    %649 = vmatpush1.msra.mxu0 0.0
    %650 = vmatprep.subr.mxu0 0.0
    %651 = vmatpush1.msra.mxu0 0.0
    %652 = vmatprep.subr.mxu0 0.0
    %653 = vmatpush1.msra.mxu0 0.0
    %654 = vmatprep.subr.mxu0 0.0
    %655 = vmatpush1.msra.mxu0 0.0
    %656 = vmatprep.subr.mxu0 0.0
    %657 = vmatpush1.msra.mxu0 0.0
    %658 = vmatprep.subr.mxu0 0.0
    %659 = vmatpush1.msra.mxu0 0.0
    %660 = vmatprep.mubr.f32.mxu0 0.0
    %661 = vmatmul.mubr.f32.gmra.mrb[0].mxu0 %v573
    %v662 = vpop.f32.mrb[0].mxu0
    %v663 = vadd.f32 %v570, %v662
    %v664 = vpop.f32.mrb[0].mxu0
    %665 = vmatprep.mubr.f32.mxu0 0.0
    %666 = vmatmul.mubr.f32.gmra.mrb[0].mxu0 %v576
    %v667 = vpop.f32.mrb[0].mxu0
    %v668 = vadd.f32 %v570, %v667
    %v669 = vpop.f32.mrb[0].mxu0
    %670 = vmatprep.mubr.f32.mxu0 0.0
    %671 = vmatmul.mubr.f32.gmra.mrb[0].mxu0 %v579
    %v672 = vpop.f32.mrb[0].mxu0
    %v673 = vadd.f32 %v570, %v672
    %v674 = vpop.f32.mrb[0].mxu0
    %675 = vmatprep.mubr.f32.mxu0 0.0
    %676 = vmatmul.mubr.f32.gmra.mrb[0].mxu0 %v582
    %v677 = vpop.f32.mrb[0].mxu0
    %v678 = vadd.f32 %v570, %v677
    %v679 = vpop.f32.mrb[0].mxu0
    %680 = vmatprep.mubr.f32.mxu0 0.0
    %681 = vmatmul.mubr.f32.gmra.mrb[0].mxu0 %v585
    %v682 = vpop.f32.mrb[0].mxu0
    %v683 = vadd.f32 %v570, %v682
    %v684 = vpop.f32.mrb[0].mxu0
    %685 = vmatprep.mubr.f32.mxu0 0.0
    %686 = vmatmul.mubr.f32.gmra.mrb[0].mxu0 %v588
    %v687 = vpop.f32.mrb[0].mxu0
    %v688 = vadd.f32 %v570, %v687
    %v689 = vpop.f32.mrb[0].mxu0
    %690 = vmatprep.mubr.f32.mxu0 0.0
    %691 = vmatmul.mubr.f32.gmra.mrb[0].mxu0 %v591
    %v692 = vpop.f32.mrb[0].mxu0
    %v693 = vadd.f32 %v570, %v692
    %v694 = vpop.f32.mrb[0].mxu0
    %695 = vmatprep.mubr.f32.mxu0 0.0
    %696 = vmatmul.mubr.f32.gmra.mrb[0].mxu0 %v594
    %v697 = vpop.f32.mrb[0].mxu0
    %v698 = vadd.f32 %v570, %v697
    %v699 = vpop.f32.mrb[0].mxu0
    %700 = vdwg.mxu0
    %v701 = vlaneseq
    %v702 = vshrl.u32 %v701, 7
    %v703 = vsub.s32 1, %v702
    %v704 = vrot.slane %v553, %v703
    %705 = vmatprep.subr.mxu0 0.0
    %706 = vmatpush1.msra.mxu0 %v539
    %707 = vmatprep.subr.mxu0 0.0
    %708 = vmatpush1.msra.mxu0 %v540
    %709 = vmatprep.subr.mxu0 0.0
    %710 = vmatpush1.msra.mxu0 %v541
    %711 = vmatprep.subr.mxu0 0.0
    %712 = vmatpush1.msra.mxu0 %v542
    %713 = vmatprep.subr.mxu0 0.0
    %714 = vmatpush1.msra.mxu0 0.0
    %715 = vmatprep.subr.mxu0 0.0
    %716 = vmatpush1.msra.mxu0 0.0
    %717 = vmatprep.subr.mxu0 0.0
    %718 = vmatpush1.msra.mxu0 0.0
    %719 = vmatprep.subr.mxu0 0.0
    %720 = vmatpush1.msra.mxu0 0.0
    %721 = vmatprep.subr.mxu0 0.0
    %722 = vmatpush1.msra.mxu0 0.0
    %723 = vmatprep.subr.mxu0 0.0
    %724 = vmatpush1.msra.mxu0 0.0
    %725 = vmatprep.subr.mxu0 0.0
    %726 = vmatpush1.msra.mxu0 0.0
    %727 = vmatprep.subr.mxu0 0.0
    %728 = vmatpush1.msra.mxu0 0.0
    %729 = vmatprep.subr.mxu0 0.0
    %730 = vmatpush1.msra.mxu0 0.0
    %731 = vmatprep.subr.mxu0 0.0
    %732 = vmatpush1.msra.mxu0 0.0
    %733 = vmatprep.subr.mxu0 0.0
    %734 = vmatpush1.msra.mxu0 0.0
    %735 = vmatprep.subr.mxu0 0.0
    %736 = vmatpush1.msra.mxu0 0.0
    %737 = vmatprep.subr.mxu0 0.0
    %738 = vmatpush1.msra.mxu0 0.0
    %739 = vmatprep.subr.mxu0 0.0
    %740 = vmatpush1.msra.mxu0 0.0
    %741 = vmatprep.subr.mxu0 0.0
    %742 = vmatpush1.msra.mxu0 0.0
    %743 = vmatprep.subr.mxu0 0.0
    %744 = vmatpush1.msra.mxu0 0.0
    %745 = vmatprep.subr.mxu0 0.0
    %746 = vmatpush1.msra.mxu0 0.0
    %747 = vmatprep.subr.mxu0 0.0
    %748 = vmatpush1.msra.mxu0 0.0
    %749 = vmatprep.subr.mxu0 0.0
    %750 = vmatpush1.msra.mxu0 0.0
    %751 = vmatprep.subr.mxu0 0.0
    %752 = vmatpush1.msra.mxu0 0.0
    %753 = vmatprep.subr.mxu0 0.0
    %754 = vmatpush1.msra.mxu0 0.0
    %755 = vmatprep.subr.mxu0 0.0
    %756 = vmatpush1.msra.mxu0 0.0
    %757 = vmatprep.subr.mxu0 0.0
    %758 = vmatpush1.msra.mxu0 0.0
    %759 = vmatprep.subr.mxu0 0.0
    %760 = vmatpush1.msra.mxu0 0.0
    %761 = vmatprep.subr.mxu0 0.0
    %762 = vmatpush1.msra.mxu0 0.0
    %763 = vmatprep.subr.mxu0 0.0
    %764 = vmatpush1.msra.mxu0 0.0
    %765 = vmatprep.subr.mxu0 0.0
    %766 = vmatpush1.msra.mxu0 0.0
    %767 = vmatprep.subr.mxu0 0.0
    %768 = vmatpush1.msra.mxu0 0.0
    %769 = vmatprep.mubr.f32.mxu0 0.0
    %770 = vmatmul.mubr.f32.gmra.mrb[0].mxu0 %v573
    %v771 = vpop.f32.mrb[0].mxu0
    %v772 = vadd.f32 %v704, %v771
    %v773 = vpop.f32.mrb[0].mxu0
    %774 = vmatprep.mubr.f32.mxu0 0.0
    %775 = vmatmul.mubr.f32.gmra.mrb[0].mxu0 %v576
    %v776 = vpop.f32.mrb[0].mxu0
    %v777 = vadd.f32 %v704, %v776
    %v778 = vpop.f32.mrb[0].mxu0
    %779 = vmatprep.mubr.f32.mxu0 0.0
    %780 = vmatmul.mubr.f32.gmra.mrb[0].mxu0 %v579
    %v781 = vpop.f32.mrb[0].mxu0
    %v782 = vadd.f32 %v704, %v781
    %v783 = vpop.f32.mrb[0].mxu0
    %784 = vmatprep.mubr.f32.mxu0 0.0
    %785 = vmatmul.mubr.f32.gmra.mrb[0].mxu0 %v582
    %v786 = vpop.f32.mrb[0].mxu0
    %v787 = vadd.f32 %v704, %v786
    %v788 = vpop.f32.mrb[0].mxu0
    %789 = vmatprep.mubr.f32.mxu0 0.0
    %790 = vmatmul.mubr.f32.gmra.mrb[0].mxu0 %v585
    %v791 = vpop.f32.mrb[0].mxu0
    %v792 = vadd.f32 %v704, %v791
    %v793 = vpop.f32.mrb[0].mxu0
    %794 = vmatprep.mubr.f32.mxu0 0.0
    %795 = vmatmul.mubr.f32.gmra.mrb[0].mxu0 %v588
    %v796 = vpop.f32.mrb[0].mxu0
    %v797 = vadd.f32 %v704, %v796
    %v798 = vpop.f32.mrb[0].mxu0
    %799 = vmatprep.mubr.f32.mxu0 0.0
    %800 = vmatmul.mubr.f32.gmra.mrb[0].mxu0 %v591
    %v801 = vpop.f32.mrb[0].mxu0
    %v802 = vadd.f32 %v704, %v801
    %v803 = vpop.f32.mrb[0].mxu0
    %804 = vmatprep.mubr.f32.mxu0 0.0
    %805 = vmatmul.mubr.f32.gmra.mrb[0].mxu0 %v594
    %v806 = vpop.f32.mrb[0].mxu0
    %v807 = vadd.f32 %v704, %v806
    %v808 = vpop.f32.mrb[0].mxu0
    %809 = vdwg.mxu0
    %v810 = vlaneseq
    %v811 = vshrl.u32 %v810, 7
    %v812 = vsub.s32 2, %v811
    %v813 = vrot.slane %v553, %v812
    %814 = vmatprep.subr.mxu0 0.0
    %815 = vmatpush1.msra.mxu0 %v544
    %816 = vmatprep.subr.mxu0 0.0
    %817 = vmatpush1.msra.mxu0 %v545
    %818 = vmatprep.subr.mxu0 0.0
    %819 = vmatpush1.msra.mxu0 %v546
    %820 = vmatprep.subr.mxu0 0.0
    %821 = vmatpush1.msra.mxu0 %v547
    %822 = vmatprep.subr.mxu0 0.0
    %823 = vmatpush1.msra.mxu0 0.0
    %824 = vmatprep.subr.mxu0 0.0
    %825 = vmatpush1.msra.mxu0 0.0
    %826 = vmatprep.subr.mxu0 0.0
    %827 = vmatpush1.msra.mxu0 0.0
    %828 = vmatprep.subr.mxu0 0.0
    %829 = vmatpush1.msra.mxu0 0.0
    %830 = vmatprep.subr.mxu0 0.0
    %831 = vmatpush1.msra.mxu0 0.0
    %832 = vmatprep.subr.mxu0 0.0
    %833 = vmatpush1.msra.mxu0 0.0
    %834 = vmatprep.subr.mxu0 0.0
    %835 = vmatpush1.msra.mxu0 0.0
    %836 = vmatprep.subr.mxu0 0.0
    %837 = vmatpush1.msra.mxu0 0.0
    %838 = vmatprep.subr.mxu0 0.0
    %839 = vmatpush1.msra.mxu0 0.0
    %840 = vmatprep.subr.mxu0 0.0
    %841 = vmatpush1.msra.mxu0 0.0
    %842 = vmatprep.subr.mxu0 0.0
    %843 = vmatpush1.msra.mxu0 0.0
    %844 = vmatprep.subr.mxu0 0.0
    %845 = vmatpush1.msra.mxu0 0.0
    %846 = vmatprep.subr.mxu0 0.0
    %847 = vmatpush1.msra.mxu0 0.0
    %848 = vmatprep.subr.mxu0 0.0
    %849 = vmatpush1.msra.mxu0 0.0
    %850 = vmatprep.subr.mxu0 0.0
    %851 = vmatpush1.msra.mxu0 0.0
    %852 = vmatprep.subr.mxu0 0.0
    %853 = vmatpush1.msra.mxu0 0.0
    %854 = vmatprep.subr.mxu0 0.0
    %855 = vmatpush1.msra.mxu0 0.0
    %856 = vmatprep.subr.mxu0 0.0
    %857 = vmatpush1.msra.mxu0 0.0
    %858 = vmatprep.subr.mxu0 0.0
    %859 = vmatpush1.msra.mxu0 0.0
    %860 = vmatprep.subr.mxu0 0.0
    %861 = vmatpush1.msra.mxu0 0.0
    %862 = vmatprep.subr.mxu0 0.0
    %863 = vmatpush1.msra.mxu0 0.0
    %864 = vmatprep.subr.mxu0 0.0
    %865 = vmatpush1.msra.mxu0 0.0
    %866 = vmatprep.subr.mxu0 0.0
    %867 = vmatpush1.msra.mxu0 0.0
    %868 = vmatprep.subr.mxu0 0.0
    %869 = vmatpush1.msra.mxu0 0.0
    %870 = vmatprep.subr.mxu0 0.0
    %871 = vmatpush1.msra.mxu0 0.0
    %872 = vmatprep.subr.mxu0 0.0
    %873 = vmatpush1.msra.mxu0 0.0
    %874 = vmatprep.subr.mxu0 0.0
    %875 = vmatpush1.msra.mxu0 0.0
    %876 = vmatprep.subr.mxu0 0.0
    %877 = vmatpush1.msra.mxu0 0.0
    %878 = vmatprep.mubr.f32.mxu0 0.0
    %879 = vmatmul.mubr.f32.gmra.mrb[0].mxu0 %v573
    %v880 = vpop.f32.mrb[0].mxu0
    %v881 = vadd.f32 %v813, %v880
    %v882 = vpop.f32.mrb[0].mxu0
    %883 = vmatprep.mubr.f32.mxu0 0.0
    %884 = vmatmul.mubr.f32.gmra.mrb[0].mxu0 %v576
    %v885 = vpop.f32.mrb[0].mxu0
    %v886 = vadd.f32 %v813, %v885
    %v887 = vpop.f32.mrb[0].mxu0
    %888 = vmatprep.mubr.f32.mxu0 0.0
    %889 = vmatmul.mubr.f32.gmra.mrb[0].mxu0 %v579
    %v890 = vpop.f32.mrb[0].mxu0
    %v891 = vadd.f32 %v813, %v890
    %v892 = vpop.f32.mrb[0].mxu0
    %893 = vmatprep.mubr.f32.mxu0 0.0
    %894 = vmatmul.mubr.f32.gmra.mrb[0].mxu0 %v582
    %v895 = vpop.f32.mrb[0].mxu0
    %v896 = vadd.f32 %v813, %v895
    %v897 = vpop.f32.mrb[0].mxu0
    %898 = vmatprep.mubr.f32.mxu0 0.0
    %899 = vmatmul.mubr.f32.gmra.mrb[0].mxu0 %v585
    %v900 = vpop.f32.mrb[0].mxu0
    %v901 = vadd.f32 %v813, %v900
    %v902 = vpop.f32.mrb[0].mxu0
    %903 = vmatprep.mubr.f32.mxu0 0.0
    %904 = vmatmul.mubr.f32.gmra.mrb[0].mxu0 %v588
    %v905 = vpop.f32.mrb[0].mxu0
    %v906 = vadd.f32 %v813, %v905
    %v907 = vpop.f32.mrb[0].mxu0
    %908 = vmatprep.mubr.f32.mxu0 0.0
    %909 = vmatmul.mubr.f32.gmra.mrb[0].mxu0 %v591
    %v910 = vpop.f32.mrb[0].mxu0
    %v911 = vadd.f32 %v813, %v910
    %v912 = vpop.f32.mrb[0].mxu0
    %913 = vmatprep.mubr.f32.mxu0 0.0
    %914 = vmatmul.mubr.f32.gmra.mrb[0].mxu0 %v594
    %v915 = vpop.f32.mrb[0].mxu0
    %v916 = vadd.f32 %v813, %v915
    %v917 = vpop.f32.mrb[0].mxu0
    %918 = vdwg.mxu0
    %v920 = vsel %vm571, %v772, 0
    %v923 = vsel %vm571, %v777, 0
    %v926 = vsel %vm571, %v782, 0
    %v929 = vsel %vm571, %v787, 0
    %931 = vmatprep.subr.mxu0 0.0
    %932 = vmatpush1.msra.mxu0 %v663
    %933 = vmatprep.subr.mxu0 0.0
    %934 = vmatpush1.msra.mxu0 %v668
    %935 = vmatprep.subr.mxu0 0.0
    %936 = vmatpush1.msra.mxu0 %v673
    %937 = vmatprep.subr.mxu0 0.0
    %938 = vmatpush1.msra.mxu0 %v678
    %939 = vmatprep.subr.mxu0 0.0
    %940 = vmatpush1.msra.mxu0 0.0
    %941 = vmatprep.subr.mxu0 0.0
    %942 = vmatpush1.msra.mxu0 0.0
    %943 = vmatprep.subr.mxu0 0.0
    %944 = vmatpush1.msra.mxu0 0.0
    %945 = vmatprep.subr.mxu0 0.0
    %946 = vmatpush1.msra.mxu0 0.0
    %947 = vmatprep.subr.mxu0 0.0
    %948 = vmatpush1.msra.mxu0 0.0
    %949 = vmatprep.subr.mxu0 0.0
    %950 = vmatpush1.msra.mxu0 0.0
    %951 = vmatprep.subr.mxu0 0.0
    %952 = vmatpush1.msra.mxu0 0.0
    %953 = vmatprep.subr.mxu0 0.0
    %954 = vmatpush1.msra.mxu0 0.0
    %955 = vmatprep.subr.mxu0 0.0
    %956 = vmatpush1.msra.mxu0 0.0
    %957 = vmatprep.subr.mxu0 0.0
    %958 = vmatpush1.msra.mxu0 0.0
    %959 = vmatprep.subr.mxu0 0.0
    %960 = vmatpush1.msra.mxu0 0.0
    %961 = vmatprep.subr.mxu0 0.0
    %962 = vmatpush1.msra.mxu0 0.0
    %963 = vmatprep.subr.mxu0 0.0
    %964 = vmatpush1.msra.mxu0 0.0
    %965 = vmatprep.subr.mxu0 0.0
    %966 = vmatpush1.msra.mxu0 0.0
    %967 = vmatprep.subr.mxu0 0.0
    %968 = vmatpush1.msra.mxu0 0.0
    %969 = vmatprep.subr.mxu0 0.0
    %970 = vmatpush1.msra.mxu0 0.0
    %971 = vmatprep.subr.mxu0 0.0
    %972 = vmatpush1.msra.mxu0 0.0
    %973 = vmatprep.subr.mxu0 0.0
    %974 = vmatpush1.msra.mxu0 0.0
    %975 = vmatprep.subr.mxu0 0.0
    %976 = vmatpush1.msra.mxu0 0.0
    %977 = vmatprep.subr.mxu0 0.0
    %978 = vmatpush1.msra.mxu0 0.0
    %979 = vmatprep.subr.mxu0 0.0
    %980 = vmatpush1.msra.mxu0 0.0
    %981 = vmatprep.subr.mxu0 0.0
    %982 = vmatpush1.msra.mxu0 0.0
    %983 = vmatprep.subr.mxu0 0.0
    %984 = vmatpush1.msra.mxu0 0.0
    %985 = vmatprep.subr.mxu0 0.0
    %986 = vmatpush1.msra.mxu0 0.0
    %987 = vmatprep.subr.mxu0 0.0
    %988 = vmatpush1.msra.mxu0 0.0
    %989 = vmatprep.subr.mxu0 0.0
    %990 = vmatpush1.msra.mxu0 0.0
    %991 = vmatprep.subr.mxu0 0.0
    %992 = vmatpush1.msra.mxu0 0.0
    %993 = vmatprep.subr.mxu0 0.0
    %994 = vmatpush1.msra.mxu0 0.0
    %995 = vmatprep.mubr.f32.mxu0 0.0
    %996 = vmatmul.mubr.f32.gmra.mrb[0].mxu0 %v920
    %v997 = vpop.f32.mrb[0].mxu0
    %v998 = vadd.f32 0.0, %v997
    %v999 = vpop.f32.mrb[0].mxu0
    %1000 = vmatprep.mubr.f32.mxu0 0.0
    %1001 = vmatmul.mubr.f32.gmra.mrb[0].mxu0 %v923
    %v1002 = vpop.f32.mrb[0].mxu0
    %v1003 = vadd.f32 0.0, %v1002
    %v1004 = vpop.f32.mrb[0].mxu0
    %1005 = vmatprep.mubr.f32.mxu0 0.0
    %1006 = vmatmul.mubr.f32.gmra.mrb[0].mxu0 %v926
    %v1007 = vpop.f32.mrb[0].mxu0
    %v1008 = vadd.f32 0.0, %v1007
    %v1009 = vpop.f32.mrb[0].mxu0
    %1010 = vmatprep.mubr.f32.mxu0 0.0
    %1011 = vmatmul.mubr.f32.gmra.mrb[0].mxu0 %v929
    %v1012 = vpop.f32.mrb[0].mxu0
    %v1013 = vadd.f32 0.0, %v1012
    %v1014 = vpop.f32.mrb[0].mxu0
    %1015 = vdwg.mxu0
    %v1017 = vsel %vm571, %v792, 0
    %v1020 = vsel %vm571, %v797, 0
    %v1023 = vsel %vm571, %v802, 0
    %v1026 = vsel %vm571, %v807, 0
    %1028 = vmatprep.subr.mxu0 0.0
    %1029 = vmatpush1.msra.mxu0 %v683
    %1030 = vmatprep.subr.mxu0 0.0
    %1031 = vmatpush1.msra.mxu0 %v688
    %1032 = vmatprep.subr.mxu0 0.0
    %1033 = vmatpush1.msra.mxu0 %v693
    %1034 = vmatprep.subr.mxu0 0.0
    %1035 = vmatpush1.msra.mxu0 %v698
    %1036 = vmatprep.subr.mxu0 0.0
    %1037 = vmatpush1.msra.mxu0 0.0
    %1038 = vmatprep.subr.mxu0 0.0
    %1039 = vmatpush1.msra.mxu0 0.0
    %1040 = vmatprep.subr.mxu0 0.0
    %1041 = vmatpush1.msra.mxu0 0.0
    %1042 = vmatprep.subr.mxu0 0.0
    %1043 = vmatpush1.msra.mxu0 0.0
    %1044 = vmatprep.subr.mxu0 0.0
    %1045 = vmatpush1.msra.mxu0 0.0
    %1046 = vmatprep.subr.mxu0 0.0
    %1047 = vmatpush1.msra.mxu0 0.0
    %1048 = vmatprep.subr.mxu0 0.0
    %1049 = vmatpush1.msra.mxu0 0.0
    %1050 = vmatprep.subr.mxu0 0.0
    %1051 = vmatpush1.msra.mxu0 0.0
    %1052 = vmatprep.subr.mxu0 0.0
    %1053 = vmatpush1.msra.mxu0 0.0
    %1054 = vmatprep.subr.mxu0 0.0
    %1055 = vmatpush1.msra.mxu0 0.0
    %1056 = vmatprep.subr.mxu0 0.0
    %1057 = vmatpush1.msra.mxu0 0.0
    %1058 = vmatprep.subr.mxu0 0.0
    %1059 = vmatpush1.msra.mxu0 0.0
    %1060 = vmatprep.subr.mxu0 0.0
    %1061 = vmatpush1.msra.mxu0 0.0
    %1062 = vmatprep.subr.mxu0 0.0
    %1063 = vmatpush1.msra.mxu0 0.0
    %1064 = vmatprep.subr.mxu0 0.0
    %1065 = vmatpush1.msra.mxu0 0.0
    %1066 = vmatprep.subr.mxu0 0.0
    %1067 = vmatpush1.msra.mxu0 0.0
    %1068 = vmatprep.subr.mxu0 0.0
    %1069 = vmatpush1.msra.mxu0 0.0
    %1070 = vmatprep.subr.mxu0 0.0
    %1071 = vmatpush1.msra.mxu0 0.0
    %1072 = vmatprep.subr.mxu0 0.0
    %1073 = vmatpush1.msra.mxu0 0.0
    %1074 = vmatprep.subr.mxu0 0.0
    %1075 = vmatpush1.msra.mxu0 0.0
    %1076 = vmatprep.subr.mxu0 0.0
    %1077 = vmatpush1.msra.mxu0 0.0
    %1078 = vmatprep.subr.mxu0 0.0
    %1079 = vmatpush1.msra.mxu0 0.0
    %1080 = vmatprep.subr.mxu0 0.0
    %1081 = vmatpush1.msra.mxu0 0.0
    %1082 = vmatprep.subr.mxu0 0.0
    %1083 = vmatpush1.msra.mxu0 0.0
    %1084 = vmatprep.subr.mxu0 0.0
    %1085 = vmatpush1.msra.mxu0 0.0
    %1086 = vmatprep.subr.mxu0 0.0
    %1087 = vmatpush1.msra.mxu0 0.0
    %1088 = vmatprep.subr.mxu0 0.0
    %1089 = vmatpush1.msra.mxu0 0.0
    %1090 = vmatprep.subr.mxu0 0.0
    %1091 = vmatpush1.msra.mxu0 0.0
    %1092 = vmatprep.mubr.f32.mxu0 0.0
    %1093 = vmatmul.mubr.f32.gmra.mrb[0].mxu0 %v1017
    %v1094 = vpop.f32.mrb[0].mxu0
    %v1095 = vadd.f32 0.0, %v1094
    %v1096 = vpop.f32.mrb[0].mxu0
    %1097 = vmatprep.mubr.f32.mxu0 0.0
    %1098 = vmatmul.mubr.f32.gmra.mrb[0].mxu0 %v1020
    %v1099 = vpop.f32.mrb[0].mxu0
    %v1100 = vadd.f32 0.0, %v1099
    %v1101 = vpop.f32.mrb[0].mxu0
    %1102 = vmatprep.mubr.f32.mxu0 0.0
    %1103 = vmatmul.mubr.f32.gmra.mrb[0].mxu0 %v1023
    %v1104 = vpop.f32.mrb[0].mxu0
    %v1105 = vadd.f32 0.0, %v1104
    %v1106 = vpop.f32.mrb[0].mxu0
    %1107 = vmatprep.mubr.f32.mxu0 0.0
    %1108 = vmatmul.mubr.f32.gmra.mrb[0].mxu0 %v1026
    %v1109 = vpop.f32.mrb[0].mxu0
    %v1110 = vadd.f32 0.0, %v1109
    %v1111 = vpop.f32.mrb[0].mxu0
    %1112 = vdwg.mxu0
    %v1113 = vmul.f32 %v998, 0.5
    %v1114 = vmul.f32 %v1003, 0.5
    %v1115 = vmul.f32 %v1008, 0.5
    %v1116 = vmul.f32 %v1013, 0.5
    %v1117 = vmul.f32 %v1095, 0.5
    %v1118 = vmul.f32 %v1100, 0.5
    %v1119 = vmul.f32 %v1105, 0.5
    %v1120 = vmul.f32 %v1110, 0.5
    %v1121 = vsel %vm571, %v1113, -inf
    %v1122 = vsel %vm571, %v1114, -inf
    %v1123 = vsel %vm571, %v1115, -inf
    %v1124 = vmax.f32 %v1121, %v1123
    %v1125 = vsel %vm571, %v1116, -inf
    %v1126 = vmax.f32 %v1122, %v1125
    %v1127 = vmax.f32 %v1124, %v1126
    %v1128 = vrot.slane %v1127, 4
    %v1129 = vmax.f32 %v1127, %v1128
    %v1130 = vrot.slane %v1129, 2
    %v1131 = vmax.f32 %v1129, %v1130
    %v1132 = vrot.slane %v1131, 1
    %v1133 = vmax.f32 %v1131, %v1132
    %v1134 = vsel %vm571, %v1117, -inf
    %v1135 = vsel %vm571, %v1118, -inf
    %v1136 = vsel %vm571, %v1119, -inf
    %v1137 = vmax.f32 %v1134, %v1136
    %v1138 = vsel %vm571, %v1120, -inf
    %v1139 = vmax.f32 %v1135, %v1138
    %v1140 = vmax.f32 %v1137, %v1139
    %v1141 = vrot.slane %v1140, 4
    %v1142 = vmax.f32 %v1140, %v1141
    %v1143 = vrot.slane %v1142, 2
    %v1144 = vmax.f32 %v1142, %v1143
    %v1145 = vrot.slane %v1144, 1
    %v1146 = vmax.f32 %v1144, %v1145
    %v1147 = vsub.f32 %v1113, %v1133
    %v1148 = vsub.f32 %v1114, %v1133
    %v1149 = vsub.f32 %v1115, %v1133
    %v1150 = vsub.f32 %v1116, %v1133
    %v1151 = vsub.f32 %v1117, %v1146
    %v1152 = vsub.f32 %v1118, %v1146
    %v1153 = vsub.f32 %v1119, %v1146
    %v1154 = vsub.f32 %v1120, %v1146
    %v1155 = vmul.f32 %v1147, 1.442695
    %v1156 = vpow.pop %v1155
    %v1157 = vmul.f32 %v1148, 1.442695
    %v1158 = vpow.pop %v1157
    %v1159 = vmul.f32 %v1149, 1.442695
    %v1160 = vpow.pop %v1159
    %v1161 = vmul.f32 %v1150, 1.442695
    %v1162 = vpow.pop %v1161
    %v1163 = vmul.f32 %v1151, 1.442695
    %v1164 = vpow.pop %v1163
    %v1165 = vmul.f32 %v1152, 1.442695
    %v1166 = vpow.pop %v1165
    %v1167 = vmul.f32 %v1153, 1.442695
    %v1168 = vpow.pop %v1167
    %v1169 = vmul.f32 %v1154, 1.442695
    %v1170 = vpow.pop %v1169
    %v1171 = vsel %vm571, %v1156, 0.0
    %v1172 = vsel %vm571, %v1158, 0.0
    %v1173 = vadd.f32 %v1171, %v1172
    %v1174 = vsel %vm571, %v1160, 0.0
    %v1175 = vadd.f32 %v1173, %v1174
    %v1176 = vsel %vm571, %v1162, 0.0
    %v1177 = vadd.f32 %v1175, %v1176
    %v1178 = vrot.slane %v1177, 4
    %v1179 = vadd.f32 %v1177, %v1178
    %v1180 = vrot.slane %v1179, 2
    %v1181 = vadd.f32 %v1179, %v1180
    %v1182 = vrot.slane %v1181, 1
    %v1183 = vadd.f32 %v1181, %v1182
    %v1184 = vsel %vm571, %v1164, 0.0
    %v1185 = vsel %vm571, %v1166, 0.0
    %v1186 = vadd.f32 %v1184, %v1185
    %v1187 = vsel %vm571, %v1168, 0.0
    %v1188 = vadd.f32 %v1186, %v1187
    %v1189 = vsel %vm571, %v1170, 0.0
    %v1190 = vadd.f32 %v1188, %v1189
    %v1191 = vrot.slane %v1190, 4
    %v1192 = vadd.f32 %v1190, %v1191
    %v1193 = vrot.slane %v1192, 2
    %v1194 = vadd.f32 %v1192, %v1193
    %v1195 = vrot.slane %v1194, 1
    %v1196 = vadd.f32 %v1194, %v1195
    %v1197 = vrcp.pop %v1183
    %v1198 = vrcp.pop %v1196
    %v1199 = vmul.f32 %v1156, %v1197
    %v1200 = vmul.f32 %v1158, %v1197
    %v1201 = vmul.f32 %v1160, %v1197
    %v1202 = vmul.f32 %v1162, %v1197
    %v1203 = vmul.f32 %v1164, %v1198
    %v1204 = vmul.f32 %v1166, %v1198
    %v1205 = vmul.f32 %v1168, %v1198
    %v1206 = vmul.f32 %v1170, %v1198
    %v1208 = vsel %vm571, %v1199, 0
    %v1211 = vsel %vm571, %v1200, 0
    %v1214 = vsel %vm571, %v1201, 0
    %v1217 = vsel %vm571, %v1202, 0
    %1219 = vmatprep.subr.mxu0 0.0
    %1220 = vmatpush1.msra.mxu0 %v881
    %1221 = vmatprep.subr.mxu0 0.0
    %1222 = vmatpush1.msra.mxu0 %v886
    %1223 = vmatprep.subr.mxu0 0.0
    %1224 = vmatpush1.msra.mxu0 %v891
    %1225 = vmatprep.subr.mxu0 0.0
    %1226 = vmatpush1.msra.mxu0 %v896
    %1227 = vmatprep.subr.mxu0 0.0
    %1228 = vmatpush1.msra.mxu0 0.0
    %1229 = vmatprep.subr.mxu0 0.0
    %1230 = vmatpush1.msra.mxu0 0.0
    %1231 = vmatprep.subr.mxu0 0.0
    %1232 = vmatpush1.msra.mxu0 0.0
    %1233 = vmatprep.subr.mxu0 0.0
    %1234 = vmatpush1.msra.mxu0 0.0
    %1235 = vmatprep.subr.mxu0 0.0
    %1236 = vmatpush1.msra.mxu0 0.0
    %1237 = vmatprep.subr.mxu0 0.0
    %1238 = vmatpush1.msra.mxu0 0.0
    %1239 = vmatprep.subr.mxu0 0.0
    %1240 = vmatpush1.msra.mxu0 0.0
    %1241 = vmatprep.subr.mxu0 0.0
    %1242 = vmatpush1.msra.mxu0 0.0
    %1243 = vmatprep.subr.mxu0 0.0
    %1244 = vmatpush1.msra.mxu0 0.0
    %1245 = vmatprep.subr.mxu0 0.0
    %1246 = vmatpush1.msra.mxu0 0.0
    %1247 = vmatprep.subr.mxu0 0.0
    %1248 = vmatpush1.msra.mxu0 0.0
    %1249 = vmatprep.subr.mxu0 0.0
    %1250 = vmatpush1.msra.mxu0 0.0
    %1251 = vmatprep.subr.mxu0 0.0
    %1252 = vmatpush1.msra.mxu0 0.0
    %1253 = vmatprep.subr.mxu0 0.0
    %1254 = vmatpush1.msra.mxu0 0.0
    %1255 = vmatprep.subr.mxu0 0.0
    %1256 = vmatpush1.msra.mxu0 0.0
    %1257 = vmatprep.subr.mxu0 0.0
    %1258 = vmatpush1.msra.mxu0 0.0
    %1259 = vmatprep.subr.mxu0 0.0
    %1260 = vmatpush1.msra.mxu0 0.0
    %1261 = vmatprep.subr.mxu0 0.0
    %1262 = vmatpush1.msra.mxu0 0.0
    %1263 = vmatprep.subr.mxu0 0.0
    %1264 = vmatpush1.msra.mxu0 0.0
    %1265 = vmatprep.subr.mxu0 0.0
    %1266 = vmatpush1.msra.mxu0 0.0
    %1267 = vmatprep.subr.mxu0 0.0
    %1268 = vmatpush1.msra.mxu0 0.0
    %1269 = vmatprep.subr.mxu0 0.0
    %1270 = vmatpush1.msra.mxu0 0.0
    %1271 = vmatprep.subr.mxu0 0.0
    %1272 = vmatpush1.msra.mxu0 0.0
    %1273 = vmatprep.subr.mxu0 0.0
    %1274 = vmatpush1.msra.mxu0 0.0
    %1275 = vmatprep.subr.mxu0 0.0
    %1276 = vmatpush1.msra.mxu0 0.0
    %1277 = vmatprep.subr.mxu0 0.0
    %1278 = vmatpush1.msra.mxu0 0.0
    %1279 = vmatprep.subr.mxu0 0.0
    %1280 = vmatpush1.msra.mxu0 0.0
    %1281 = vmatprep.subr.mxu0 0.0
    %1282 = vmatpush1.msra.mxu0 0.0
    %1283 = vmatprep.mubr.f32.mxu0 0.0
    %1284 = vmatmul.mubr.f32.gmra.mrb[0].mxu0 %v1208
    %v1285 = vpop.f32.mrb[0].mxu0
    %v1286 = vadd.f32 0.0, %v1285
    %v1287 = vpop.f32.mrb[0].mxu0
    %1288 = vmatprep.mubr.f32.mxu0 0.0
    %1289 = vmatmul.mubr.f32.gmra.mrb[0].mxu0 %v1211
    %v1290 = vpop.f32.mrb[0].mxu0
    %v1291 = vadd.f32 0.0, %v1290
    %v1292 = vpop.f32.mrb[0].mxu0
    %1293 = vmatprep.mubr.f32.mxu0 0.0
    %1294 = vmatmul.mubr.f32.gmra.mrb[0].mxu0 %v1214
    %v1295 = vpop.f32.mrb[0].mxu0
    %v1296 = vadd.f32 0.0, %v1295
    %v1297 = vpop.f32.mrb[0].mxu0
    %1298 = vmatprep.mubr.f32.mxu0 0.0
    %1299 = vmatmul.mubr.f32.gmra.mrb[0].mxu0 %v1217
    %v1300 = vpop.f32.mrb[0].mxu0
    %v1301 = vadd.f32 0.0, %v1300
    %v1302 = vpop.f32.mrb[0].mxu0
    %1303 = vdwg.mxu0
    %v1305 = vsel %vm571, %v1203, 0
    %v1308 = vsel %vm571, %v1204, 0
    %v1311 = vsel %vm571, %v1205, 0
    %v1314 = vsel %vm571, %v1206, 0
    %1316 = vmatprep.subr.mxu0 0.0
    %1317 = vmatpush1.msra.mxu0 %v901
    %1318 = vmatprep.subr.mxu0 0.0
    %1319 = vmatpush1.msra.mxu0 %v906
    %1320 = vmatprep.subr.mxu0 0.0
    %1321 = vmatpush1.msra.mxu0 %v911
    %1322 = vmatprep.subr.mxu0 0.0
    %1323 = vmatpush1.msra.mxu0 %v916
    %1324 = vmatprep.subr.mxu0 0.0
    %1325 = vmatpush1.msra.mxu0 0.0
    %1326 = vmatprep.subr.mxu0 0.0
    %1327 = vmatpush1.msra.mxu0 0.0
    %1328 = vmatprep.subr.mxu0 0.0
    %1329 = vmatpush1.msra.mxu0 0.0
    %1330 = vmatprep.subr.mxu0 0.0
    %1331 = vmatpush1.msra.mxu0 0.0
    %1332 = vmatprep.subr.mxu0 0.0
    %1333 = vmatpush1.msra.mxu0 0.0
    %1334 = vmatprep.subr.mxu0 0.0
    %1335 = vmatpush1.msra.mxu0 0.0
    %1336 = vmatprep.subr.mxu0 0.0
    %1337 = vmatpush1.msra.mxu0 0.0
    %1338 = vmatprep.subr.mxu0 0.0
    %1339 = vmatpush1.msra.mxu0 0.0
    %1340 = vmatprep.subr.mxu0 0.0
    %1341 = vmatpush1.msra.mxu0 0.0
    %1342 = vmatprep.subr.mxu0 0.0
    %1343 = vmatpush1.msra.mxu0 0.0
    %1344 = vmatprep.subr.mxu0 0.0
    %1345 = vmatpush1.msra.mxu0 0.0
    %1346 = vmatprep.subr.mxu0 0.0
    %1347 = vmatpush1.msra.mxu0 0.0
    %1348 = vmatprep.subr.mxu0 0.0
    %1349 = vmatpush1.msra.mxu0 0.0
    %1350 = vmatprep.subr.mxu0 0.0
    %1351 = vmatpush1.msra.mxu0 0.0
    %1352 = vmatprep.subr.mxu0 0.0
    %1353 = vmatpush1.msra.mxu0 0.0
    %1354 = vmatprep.subr.mxu0 0.0
    %1355 = vmatpush1.msra.mxu0 0.0
    %1356 = vmatprep.subr.mxu0 0.0
    %1357 = vmatpush1.msra.mxu0 0.0
    %1358 = vmatprep.subr.mxu0 0.0
    %1359 = vmatpush1.msra.mxu0 0.0
    %1360 = vmatprep.subr.mxu0 0.0
    %1361 = vmatpush1.msra.mxu0 0.0
    %1362 = vmatprep.subr.mxu0 0.0
    %1363 = vmatpush1.msra.mxu0 0.0
    %1364 = vmatprep.subr.mxu0 0.0
    %1365 = vmatpush1.msra.mxu0 0.0
    %1366 = vmatprep.subr.mxu0 0.0
    %1367 = vmatpush1.msra.mxu0 0.0
    %1368 = vmatprep.subr.mxu0 0.0
    %1369 = vmatpush1.msra.mxu0 0.0
    %1370 = vmatprep.subr.mxu0 0.0
    %1371 = vmatpush1.msra.mxu0 0.0
    %1372 = vmatprep.subr.mxu0 0.0
    %1373 = vmatpush1.msra.mxu0 0.0
    %1374 = vmatprep.subr.mxu0 0.0
    %1375 = vmatpush1.msra.mxu0 0.0
    %1376 = vmatprep.subr.mxu0 0.0
    %1377 = vmatpush1.msra.mxu0 0.0
    %1378 = vmatprep.subr.mxu0 0.0
    %1379 = vmatpush1.msra.mxu0 0.0
    %1380 = vmatprep.mubr.f32.mxu0 0.0
    %1381 = vmatmul.mubr.f32.gmra.mrb[0].mxu0 %v1305
    %v1382 = vpop.f32.mrb[0].mxu0
    %v1383 = vadd.f32 0.0, %v1382
    %v1384 = vpop.f32.mrb[0].mxu0
    %1385 = vmatprep.mubr.f32.mxu0 0.0
    %1386 = vmatmul.mubr.f32.gmra.mrb[0].mxu0 %v1308
    %v1387 = vpop.f32.mrb[0].mxu0
    %v1388 = vadd.f32 0.0, %v1387
    %v1389 = vpop.f32.mrb[0].mxu0
    %1390 = vmatprep.mubr.f32.mxu0 0.0
    %1391 = vmatmul.mubr.f32.gmra.mrb[0].mxu0 %v1311
    %v1392 = vpop.f32.mrb[0].mxu0
    %v1393 = vadd.f32 0.0, %v1392
    %v1394 = vpop.f32.mrb[0].mxu0
    %1395 = vmatprep.mubr.f32.mxu0 0.0
    %1396 = vmatmul.mubr.f32.gmra.mrb[0].mxu0 %v1314
    %v1397 = vpop.f32.mrb[0].mxu0
    %v1398 = vadd.f32 0.0, %v1397
    %v1399 = vpop.f32.mrb[0].mxu0
    %1400 = vdwg.mxu0
    %v1401 = vlaneseq
    %v1402 = vshrl.u32 %v1401, 7
    %v1403 = vsub.s32 3, %v1402
    %v1404 = vrot.slane %v553, %v1403
    %v1406 = vsel %vm571, %v1286, 0
    %v1409 = vsel %vm571, %v1291, 0
    %v1412 = vsel %vm571, %v1296, 0
    %v1415 = vsel %vm571, %v1301, 0
    %v1418 = vsel %vm571, %v1383, 0
    %v1421 = vsel %vm571, %v1388, 0
    %v1424 = vsel %vm571, %v1393, 0
    %v1427 = vsel %vm571, %v1398, 0
    %1429 = vmatprep.subr.mxu0 0.0
    %1430 = vmatpush1.msra.mxu0 %v549
    %1431 = vmatprep.subr.mxu0 0.0
    %1432 = vmatpush1.msra.mxu0 %v550
    %1433 = vmatprep.subr.mxu0 0.0
    %1434 = vmatpush1.msra.mxu0 %v551
    %1435 = vmatprep.subr.mxu0 0.0
    %1436 = vmatpush1.msra.mxu0 %v552
    %1437 = vmatprep.subr.mxu0 0.0
    %1438 = vmatpush1.msra.mxu0 0.0
    %1439 = vmatprep.subr.mxu0 0.0
    %1440 = vmatpush1.msra.mxu0 0.0
    %1441 = vmatprep.subr.mxu0 0.0
    %1442 = vmatpush1.msra.mxu0 0.0
    %1443 = vmatprep.subr.mxu0 0.0
    %1444 = vmatpush1.msra.mxu0 0.0
    %1445 = vmatprep.subr.mxu0 0.0
    %1446 = vmatpush1.msra.mxu0 0.0
    %1447 = vmatprep.subr.mxu0 0.0
    %1448 = vmatpush1.msra.mxu0 0.0
    %1449 = vmatprep.subr.mxu0 0.0
    %1450 = vmatpush1.msra.mxu0 0.0
    %1451 = vmatprep.subr.mxu0 0.0
    %1452 = vmatpush1.msra.mxu0 0.0
    %1453 = vmatprep.subr.mxu0 0.0
    %1454 = vmatpush1.msra.mxu0 0.0
    %1455 = vmatprep.subr.mxu0 0.0
    %1456 = vmatpush1.msra.mxu0 0.0
    %1457 = vmatprep.subr.mxu0 0.0
    %1458 = vmatpush1.msra.mxu0 0.0
    %1459 = vmatprep.subr.mxu0 0.0
    %1460 = vmatpush1.msra.mxu0 0.0
    %1461 = vmatprep.subr.mxu0 0.0
    %1462 = vmatpush1.msra.mxu0 0.0
    %1463 = vmatprep.subr.mxu0 0.0
    %1464 = vmatpush1.msra.mxu0 0.0
    %1465 = vmatprep.subr.mxu0 0.0
    %1466 = vmatpush1.msra.mxu0 0.0
    %1467 = vmatprep.subr.mxu0 0.0
    %1468 = vmatpush1.msra.mxu0 0.0
    %1469 = vmatprep.subr.mxu0 0.0
    %1470 = vmatpush1.msra.mxu0 0.0
    %1471 = vmatprep.subr.mxu0 0.0
    %1472 = vmatpush1.msra.mxu0 0.0
    %1473 = vmatprep.subr.mxu0 0.0
    %1474 = vmatpush1.msra.mxu0 0.0
    %1475 = vmatprep.subr.mxu0 0.0
    %1476 = vmatpush1.msra.mxu0 0.0
    %1477 = vmatprep.subr.mxu0 0.0
    %1478 = vmatpush1.msra.mxu0 0.0
    %1479 = vmatprep.subr.mxu0 0.0
    %1480 = vmatpush1.msra.mxu0 0.0
    %1481 = vmatprep.subr.mxu0 0.0
    %1482 = vmatpush1.msra.mxu0 0.0
    %1483 = vmatprep.subr.mxu0 0.0
    %1484 = vmatpush1.msra.mxu0 0.0
    %1485 = vmatprep.subr.mxu0 0.0
    %1486 = vmatpush1.msra.mxu0 0.0
    %1487 = vmatprep.subr.mxu0 0.0
    %1488 = vmatpush1.msra.mxu0 0.0
    %1489 = vmatprep.subr.mxu0 0.0
    %1490 = vmatpush1.msra.mxu0 0.0
    %1491 = vmatprep.subr.mxu0 0.0
    %1492 = vmatpush1.msra.mxu0 0.0
    %1493 = vmatprep.mubr.f32.mxu0 0.0
    %1494 = vmatmul.mubr.f32.gmra.mrb[0].mxu0 %v1406
    %v1495 = vpop.f32.mrb[0].mxu0
    %v1496 = vadd.f32 %v1404, %v1495
    %v1497 = vpop.f32.mrb[0].mxu0
    %1498 = vmatprep.mubr.f32.mxu0 0.0
    %1499 = vmatmul.mubr.f32.gmra.mrb[0].mxu0 %v1409
    %v1500 = vpop.f32.mrb[0].mxu0
    %v1501 = vadd.f32 %v1404, %v1500
    %v1502 = vpop.f32.mrb[0].mxu0
    %1503 = vmatprep.mubr.f32.mxu0 0.0
    %1504 = vmatmul.mubr.f32.gmra.mrb[0].mxu0 %v1412
    %v1505 = vpop.f32.mrb[0].mxu0
    %v1506 = vadd.f32 %v1404, %v1505
    %v1507 = vpop.f32.mrb[0].mxu0
    %1508 = vmatprep.mubr.f32.mxu0 0.0
    %1509 = vmatmul.mubr.f32.gmra.mrb[0].mxu0 %v1415
    %v1510 = vpop.f32.mrb[0].mxu0
    %v1511 = vadd.f32 %v1404, %v1510
    %v1512 = vpop.f32.mrb[0].mxu0
    %1513 = vmatprep.mubr.f32.mxu0 0.0
    %1514 = vmatmul.mubr.f32.gmra.mrb[0].mxu0 %v1418
    %v1515 = vpop.f32.mrb[0].mxu0
    %v1516 = vadd.f32 %v1404, %v1515
    %v1517 = vpop.f32.mrb[0].mxu0
    %1518 = vmatprep.mubr.f32.mxu0 0.0
    %1519 = vmatmul.mubr.f32.gmra.mrb[0].mxu0 %v1421
    %v1520 = vpop.f32.mrb[0].mxu0
    %v1521 = vadd.f32 %v1404, %v1520
    %v1522 = vpop.f32.mrb[0].mxu0
    %1523 = vmatprep.mubr.f32.mxu0 0.0
    %1524 = vmatmul.mubr.f32.gmra.mrb[0].mxu0 %v1424
    %v1525 = vpop.f32.mrb[0].mxu0
    %v1526 = vadd.f32 %v1404, %v1525
    %v1527 = vpop.f32.mrb[0].mxu0
    %1528 = vmatprep.mubr.f32.mxu0 0.0
    %1529 = vmatmul.mubr.f32.gmra.mrb[0].mxu0 %v1427
    %v1530 = vpop.f32.mrb[0].mxu0
    %v1531 = vadd.f32 %v1404, %v1530
    %v1532 = vpop.f32.mrb[0].mxu0
    %1533 = vdwg.mxu0
    %v1534 = vadd.f32 %v295, %v1496
    %v1535 = vadd.f32 %v300, %v1501
    %v1536 = vadd.f32 %v305, %v1506
    %v1537 = vadd.f32 %v310, %v1511
    %v1538 = vadd.f32 %v315, %v1516
    %v1539 = vadd.f32 %v320, %v1521
    %v1540 = vadd.f32 %v325, %v1526
    %v1541 = vadd.f32 %v330, %v1531
    %v1542 = vsel %vm571, %v1534, 0.0
    %1543 = vadd.xlane.f32.xlu0 %v1542
    %v1544 = vpop.xlane.xlu0 %1543
    %v1545 = vsel %vm571, %v1535, 0.0
    %1546 = vadd.xlane.f32.xlu0 %v1545
    %v1547 = vpop.xlane.xlu0 %1546
    %v1548 = vsel %vm571, %v1536, 0.0
    %1549 = vadd.xlane.f32.xlu0 %v1548
    %v1550 = vpop.xlane.xlu0 %1549
    %v1551 = vsel %vm571, %v1537, 0.0
    %1552 = vadd.xlane.f32.xlu0 %v1551
    %v1553 = vpop.xlane.xlu0 %1552
    %v1554 = vsel %vm571, %v1538, 0.0
    %1555 = vadd.xlane.f32.xlu0 %v1554
    %v1556 = vpop.xlane.xlu0 %1555
    %v1557 = vsel %vm571, %v1539, 0.0
    %1558 = vadd.xlane.f32.xlu0 %v1557
    %v1559 = vpop.xlane.xlu0 %1558
    %v1560 = vsel %vm571, %v1540, 0.0
    %1561 = vadd.xlane.f32.xlu0 %v1560
    %v1562 = vpop.xlane.xlu0 %1561
    %v1563 = vsel %vm571, %v1541, 0.0
    %1564 = vadd.xlane.f32.xlu0 %v1563
    %v1565 = vpop.xlane.xlu0 %1564
    %v1566 = vrcp.pop 32.0
    %v1567 = vmul.f32 %v1544, %v1566
    %v1568 = vmul.f32 %v1547, %v1566
    %v1569 = vmul.f32 %v1550, %v1566
    %v1570 = vmul.f32 %v1553, %v1566
    %v1571 = vmul.f32 %v1556, %v1566
    %v1572 = vmul.f32 %v1559, %v1566
    %v1573 = vmul.f32 %v1562, %v1566
    %v1574 = vmul.f32 %v1565, %v1566
    %v1575 = vsub.f32 %v1534, %v1567
    %v1576 = vsub.f32 %v1535, %v1568
    %v1577 = vsub.f32 %v1536, %v1569
    %v1578 = vsub.f32 %v1537, %v1570
    %v1579 = vsub.f32 %v1538, %v1571
    %v1580 = vsub.f32 %v1539, %v1572
    %v1581 = vsub.f32 %v1540, %v1573
    %v1582 = vsub.f32 %v1541, %v1574
    %v1583 = vmul.f32 %v1575, %v1575
    %v1584 = vmul.f32 %v1576, %v1576
    %v1585 = vmul.f32 %v1577, %v1577
    %v1586 = vmul.f32 %v1578, %v1578
    %v1587 = vmul.f32 %v1579, %v1579
    %v1588 = vmul.f32 %v1580, %v1580
    %v1589 = vmul.f32 %v1581, %v1581
    %v1590 = vmul.f32 %v1582, %v1582
    %v1591 = vsel %vm571, %v1583, 0.0
    %1592 = vadd.xlane.f32.xlu0 %v1591
    %v1593 = vpop.xlane.xlu0 %1592
    %v1594 = vsel %vm571, %v1584, 0.0
    %1595 = vadd.xlane.f32.xlu0 %v1594
    %v1596 = vpop.xlane.xlu0 %1595
    %v1597 = vsel %vm571, %v1585, 0.0
    %1598 = vadd.xlane.f32.xlu0 %v1597
    %v1599 = vpop.xlane.xlu0 %1598
    %v1600 = vsel %vm571, %v1586, 0.0
    %1601 = vadd.xlane.f32.xlu0 %v1600
    %v1602 = vpop.xlane.xlu0 %1601
    %v1603 = vsel %vm571, %v1587, 0.0
    %1604 = vadd.xlane.f32.xlu0 %v1603
    %v1605 = vpop.xlane.xlu0 %1604
    %v1606 = vsel %vm571, %v1588, 0.0
    %1607 = vadd.xlane.f32.xlu0 %v1606
    %v1608 = vpop.xlane.xlu0 %1607
    %v1609 = vsel %vm571, %v1589, 0.0
    %1610 = vadd.xlane.f32.xlu0 %v1609
    %v1611 = vpop.xlane.xlu0 %1610
    %v1612 = vsel %vm571, %v1590, 0.0
    %1613 = vadd.xlane.f32.xlu0 %v1612
    %v1614 = vpop.xlane.xlu0 %1613
    %v1615 = vmul.f32 %v1593, %v1566
    %v1616 = vmul.f32 %v1596, %v1566
    %v1617 = vmul.f32 %v1599, %v1566
    %v1618 = vmul.f32 %v1602, %v1566
    %v1619 = vmul.f32 %v1605, %v1566
    %v1620 = vmul.f32 %v1608, %v1566
    %v1621 = vmul.f32 %v1611, %v1566
    %v1622 = vmul.f32 %v1614, %v1566
    %v1623 = vadd.f32 %v1615, 1e-05
    %v1624 = vadd.f32 %v1616, 1e-05
    %v1625 = vadd.f32 %v1617, 1e-05
    %v1626 = vadd.f32 %v1618, 1e-05
    %v1627 = vadd.f32 %v1619, 1e-05
    %v1628 = vadd.f32 %v1620, 1e-05
    %v1629 = vadd.f32 %v1621, 1e-05
    %v1630 = vadd.f32 %v1622, 1e-05
    %v1631 = vrsqrt.pop %v1623
    %v1632 = vrsqrt.pop %v1624
    %v1633 = vrsqrt.pop %v1625
    %v1634 = vrsqrt.pop %v1626
    %v1635 = vrsqrt.pop %v1627
    %v1636 = vrsqrt.pop %v1628
    %v1637 = vrsqrt.pop %v1629
    %v1638 = vrsqrt.pop %v1630
    %v1639 = vmul.f32 %v1575, %v1631
    %v1640 = vmul.f32 %v1576, %v1632
    %v1641 = vmul.f32 %v1577, %v1633
    %v1642 = vmul.f32 %v1578, %v1634
    %v1643 = vmul.f32 %v1579, %v1635
    %v1644 = vmul.f32 %v1580, %v1636
    %v1645 = vmul.f32 %v1581, %v1637
    %v1646 = vmul.f32 %v1582, %v1638
    %v1647 = vlaneseq
    %v1648 = vshrl.u32 %v1647, 7
    %v1649 = vsub.s32 5, %v1648
    %v1650 = vrot.slane %v553, %v1649
    %v1651 = vmul.f32 %v1639, %v1650
    %v1652 = vmul.f32 %v1640, %v1650
    %v1653 = vmul.f32 %v1641, %v1650
    %v1654 = vmul.f32 %v1642, %v1650
    %v1655 = vmul.f32 %v1643, %v1650
    %v1656 = vmul.f32 %v1644, %v1650
    %v1657 = vmul.f32 %v1645, %v1650
    %v1658 = vmul.f32 %v1646, %v1650
    %v1659 = vlaneseq
    %v1660 = vshrl.u32 %v1659, 7
    %v1661 = vsub.s32 6, %v1660
    %v1662 = vrot.slane %v553, %v1661
    %v1663 = vadd.f32 %v1651, %v1662
    %v1664 = vadd.f32 %v1652, %v1662
    %v1665 = vadd.f32 %v1653, %v1662
    %v1666 = vadd.f32 %v1654, %v1662
    %v1667 = vadd.f32 %v1655, %v1662
    %v1668 = vadd.f32 %v1656, %v1662
    %v1669 = vadd.f32 %v1657, %v1662
    %v1670 = vadd.f32 %v1658, %v1662
    %v1672 = vlaneseq
    %v1673 = vshrl.u32 %v1672, 7
    %v1674 = vsub.s32 0, %v1673
    %v1675 = vrot.slane %v558, %v1674
    %v1678 = vsel %vm571, %v1663, 0
    %v1681 = vsel %vm571, %v1664, 0
    %v1684 = vsel %vm571, %v1665, 0
    %v1687 = vsel %vm571, %v1666, 0
    %v1690 = vsel %vm571, %v1667, 0
    %v1693 = vsel %vm571, %v1668, 0
    %v1696 = vsel %vm571, %v1669, 0
    %v1699 = vsel %vm571, %v1670, 0
    %1701 = vmatprep.subr.mxu0 0.0
    %1702 = vmatpush1.msra.mxu0 %v554
    %1703 = vmatprep.subr.mxu0 0.0
    %1704 = vmatpush1.msra.mxu0 %v555
    %1705 = vmatprep.subr.mxu0 0.0
    %1706 = vmatpush1.msra.mxu0 %v556
    %1707 = vmatprep.subr.mxu0 0.0
    %1708 = vmatpush1.msra.mxu0 %v557
    %1709 = vmatprep.subr.mxu0 0.0
    %1710 = vmatpush1.msra.mxu0 0.0
    %1711 = vmatprep.subr.mxu0 0.0
    %1712 = vmatpush1.msra.mxu0 0.0
    %1713 = vmatprep.subr.mxu0 0.0
    %1714 = vmatpush1.msra.mxu0 0.0
    %1715 = vmatprep.subr.mxu0 0.0
    %1716 = vmatpush1.msra.mxu0 0.0
    %1717 = vmatprep.subr.mxu0 0.0
    %1718 = vmatpush1.msra.mxu0 0.0
    %1719 = vmatprep.subr.mxu0 0.0
    %1720 = vmatpush1.msra.mxu0 0.0
    %1721 = vmatprep.subr.mxu0 0.0
    %1722 = vmatpush1.msra.mxu0 0.0
    %1723 = vmatprep.subr.mxu0 0.0
    %1724 = vmatpush1.msra.mxu0 0.0
    %1725 = vmatprep.subr.mxu0 0.0
    %1726 = vmatpush1.msra.mxu0 0.0
    %1727 = vmatprep.subr.mxu0 0.0
    %1728 = vmatpush1.msra.mxu0 0.0
    %1729 = vmatprep.subr.mxu0 0.0
    %1730 = vmatpush1.msra.mxu0 0.0
    %1731 = vmatprep.subr.mxu0 0.0
    %1732 = vmatpush1.msra.mxu0 0.0
    %1733 = vmatprep.subr.mxu0 0.0
    %1734 = vmatpush1.msra.mxu0 0.0
    %1735 = vmatprep.subr.mxu0 0.0
    %1736 = vmatpush1.msra.mxu0 0.0
    %1737 = vmatprep.subr.mxu0 0.0
    %1738 = vmatpush1.msra.mxu0 0.0
    %1739 = vmatprep.subr.mxu0 0.0
    %1740 = vmatpush1.msra.mxu0 0.0
    %1741 = vmatprep.subr.mxu0 0.0
    %1742 = vmatpush1.msra.mxu0 0.0
    %1743 = vmatprep.subr.mxu0 0.0
    %1744 = vmatpush1.msra.mxu0 0.0
    %1745 = vmatprep.subr.mxu0 0.0
    %1746 = vmatpush1.msra.mxu0 0.0
    %1747 = vmatprep.subr.mxu0 0.0
    %1748 = vmatpush1.msra.mxu0 0.0
    %1749 = vmatprep.subr.mxu0 0.0
    %1750 = vmatpush1.msra.mxu0 0.0
    %1751 = vmatprep.subr.mxu0 0.0
    %1752 = vmatpush1.msra.mxu0 0.0
    %1753 = vmatprep.subr.mxu0 0.0
    %1754 = vmatpush1.msra.mxu0 0.0
    %1755 = vmatprep.subr.mxu0 0.0
    %1756 = vmatpush1.msra.mxu0 0.0
    %1757 = vmatprep.subr.mxu0 0.0
    %1758 = vmatpush1.msra.mxu0 0.0
    %1759 = vmatprep.subr.mxu0 0.0
    %1760 = vmatpush1.msra.mxu0 0.0
    %1761 = vmatprep.subr.mxu0 0.0
    %1762 = vmatpush1.msra.mxu0 0.0
    %1763 = vmatprep.subr.mxu0 0.0
    %1764 = vmatpush1.msra.mxu0 0.0
    %1765 = vmatprep.mubr.f32.mxu0 0.0
    %1766 = vmatmul.mubr.f32.gmra.mrb[0].mxu0 %v1678
    %v1767 = vpop.f32.mrb[0].mxu0
    %v1768 = vadd.f32 %v1675, %v1767
    %v1769 = vpop.f32.mrb[0].mxu0
    %1770 = vmatprep.mubr.f32.mxu0 0.0
    %1771 = vmatmul.mubr.f32.gmra.mrb[0].mxu0 %v1681
    %v1772 = vpop.f32.mrb[0].mxu0
    %v1773 = vadd.f32 %v1675, %v1772
    %v1774 = vpop.f32.mrb[0].mxu0
    %1775 = vmatprep.mubr.f32.mxu0 0.0
    %1776 = vmatmul.mubr.f32.gmra.mrb[0].mxu0 %v1684
    %v1777 = vpop.f32.mrb[0].mxu0
    %v1778 = vadd.f32 %v1675, %v1777
    %v1779 = vpop.f32.mrb[0].mxu0
    %1780 = vmatprep.mubr.f32.mxu0 0.0
    %1781 = vmatmul.mubr.f32.gmra.mrb[0].mxu0 %v1687
    %v1782 = vpop.f32.mrb[0].mxu0
    %v1783 = vadd.f32 %v1675, %v1782
    %v1784 = vpop.f32.mrb[0].mxu0
    %1785 = vmatprep.mubr.f32.mxu0 0.0
    %1786 = vmatmul.mubr.f32.gmra.mrb[0].mxu0 %v1690
    %v1787 = vpop.f32.mrb[0].mxu0
    %v1788 = vadd.f32 %v1675, %v1787
    %v1789 = vpop.f32.mrb[0].mxu0
    %1790 = vmatprep.mubr.f32.mxu0 0.0
    %1791 = vmatmul.mubr.f32.gmra.mrb[0].mxu0 %v1693
    %v1792 = vpop.f32.mrb[0].mxu0
    %v1793 = vadd.f32 %v1675, %v1792
    %v1794 = vpop.f32.mrb[0].mxu0
    %1795 = vmatprep.mubr.f32.mxu0 0.0
    %1796 = vmatmul.mubr.f32.gmra.mrb[0].mxu0 %v1696
    %v1797 = vpop.f32.mrb[0].mxu0
    %v1798 = vadd.f32 %v1675, %v1797
    %v1799 = vpop.f32.mrb[0].mxu0
    %1800 = vmatprep.mubr.f32.mxu0 0.0
    %1801 = vmatmul.mubr.f32.gmra.mrb[0].mxu0 %v1699
    %v1802 = vpop.f32.mrb[0].mxu0
    %v1803 = vadd.f32 %v1675, %v1802
    %v1804 = vpop.f32.mrb[0].mxu0
    %1805 = vdwg.mxu0
    %v1806 = vmax.f32 %v1768, 0.0
    %v1807 = vmax.f32 %v1773, 0.0
    %v1808 = vmax.f32 %v1778, 0.0
    %v1809 = vmax.f32 %v1783, 0.0
    %v1810 = vmax.f32 %v1788, 0.0
    %v1811 = vmax.f32 %v1793, 0.0
    %v1812 = vmax.f32 %v1798, 0.0
    %v1813 = vmax.f32 %v1803, 0.0
    %v1814 = vlaneseq
    %v1815 = vshrl.u32 %v1814, 7
    %v1816 = vsub.s32 4, %v1815
    %v1817 = vrot.slane %v553, %v1816
    %vm1818 = vcmask 523264
    %v1820 = vsel %vm1818, %v1806, 0
    %v1823 = vsel %vm1818, %v1807, 0
    %v1826 = vsel %vm1818, %v1808, 0
    %v1829 = vsel %vm1818, %v1809, 0
    %v1832 = vsel %vm1818, %v1810, 0
    %v1835 = vsel %vm1818, %v1811, 0
    %v1838 = vsel %vm1818, %v1812, 0
    %v1841 = vsel %vm1818, %v1813, 0
    %1843 = vmatprep.subr.mxu0 0.0
    %1844 = vmatpush1.msra.mxu0 %v559
    %1845 = vmatprep.subr.mxu0 0.0
    %1846 = vmatpush1.msra.mxu0 %v560
    %1847 = vmatprep.subr.mxu0 0.0
    %1848 = vmatpush1.msra.mxu0 %v561
    %1849 = vmatprep.subr.mxu0 0.0
    %1850 = vmatpush1.msra.mxu0 %v562
    %1851 = vmatprep.subr.mxu0 0.0
    %1852 = vmatpush1.msra.mxu0 %v563
    %1853 = vmatprep.subr.mxu0 0.0
    %1854 = vmatpush1.msra.mxu0 %v564
    %1855 = vmatprep.subr.mxu0 0.0
    %1856 = vmatpush1.msra.mxu0 %v565
    %1857 = vmatprep.subr.mxu0 0.0
    %1858 = vmatpush1.msra.mxu0 %v566
    %1859 = vmatprep.subr.mxu0 0.0
    %1860 = vmatpush1.msra.mxu0 0.0
    %1861 = vmatprep.subr.mxu0 0.0
    %1862 = vmatpush1.msra.mxu0 0.0
    %1863 = vmatprep.subr.mxu0 0.0
    %1864 = vmatpush1.msra.mxu0 0.0
    %1865 = vmatprep.subr.mxu0 0.0
    %1866 = vmatpush1.msra.mxu0 0.0
    %1867 = vmatprep.subr.mxu0 0.0
    %1868 = vmatpush1.msra.mxu0 0.0
    %1869 = vmatprep.subr.mxu0 0.0
    %1870 = vmatpush1.msra.mxu0 0.0
    %1871 = vmatprep.subr.mxu0 0.0
    %1872 = vmatpush1.msra.mxu0 0.0
    %1873 = vmatprep.subr.mxu0 0.0
    %1874 = vmatpush1.msra.mxu0 0.0
    %1875 = vmatprep.subr.mxu0 0.0
    %1876 = vmatpush1.msra.mxu0 0.0
    %1877 = vmatprep.subr.mxu0 0.0
    %1878 = vmatpush1.msra.mxu0 0.0
    %1879 = vmatprep.subr.mxu0 0.0
    %1880 = vmatpush1.msra.mxu0 0.0
    %1881 = vmatprep.subr.mxu0 0.0
    %1882 = vmatpush1.msra.mxu0 0.0
    %1883 = vmatprep.subr.mxu0 0.0
    %1884 = vmatpush1.msra.mxu0 0.0
    %1885 = vmatprep.subr.mxu0 0.0
    %1886 = vmatpush1.msra.mxu0 0.0
    %1887 = vmatprep.subr.mxu0 0.0
    %1888 = vmatpush1.msra.mxu0 0.0
    %1889 = vmatprep.subr.mxu0 0.0
    %1890 = vmatpush1.msra.mxu0 0.0
    %1891 = vmatprep.subr.mxu0 0.0
    %1892 = vmatpush1.msra.mxu0 0.0
    %1893 = vmatprep.subr.mxu0 0.0
    %1894 = vmatpush1.msra.mxu0 0.0
    %1895 = vmatprep.subr.mxu0 0.0
    %1896 = vmatpush1.msra.mxu0 0.0
    %1897 = vmatprep.subr.mxu0 0.0
    %1898 = vmatpush1.msra.mxu0 0.0
    %1899 = vmatprep.subr.mxu0 0.0
    %1900 = vmatpush1.msra.mxu0 0.0
    %1901 = vmatprep.subr.mxu0 0.0
    %1902 = vmatpush1.msra.mxu0 0.0
    %1903 = vmatprep.subr.mxu0 0.0
    %1904 = vmatpush1.msra.mxu0 0.0
    %1905 = vmatprep.subr.mxu0 0.0
    %1906 = vmatpush1.msra.mxu0 0.0
    %1907 = vmatprep.mubr.f32.mxu0 0.0
    %1908 = vmatmul.mubr.f32.gmra.mrb[0].mxu0 %v1820
    %v1909 = vpop.f32.mrb[0].mxu0
    %v1910 = vadd.f32 %v1817, %v1909
    %v1911 = vpop.f32.mrb[0].mxu0
    %1912 = vmatprep.mubr.f32.mxu0 0.0
    %1913 = vmatmul.mubr.f32.gmra.mrb[0].mxu0 %v1823
    %v1914 = vpop.f32.mrb[0].mxu0
    %v1915 = vadd.f32 %v1817, %v1914
    %v1916 = vpop.f32.mrb[0].mxu0
    %1917 = vmatprep.mubr.f32.mxu0 0.0
    %1918 = vmatmul.mubr.f32.gmra.mrb[0].mxu0 %v1826
    %v1919 = vpop.f32.mrb[0].mxu0
    %v1920 = vadd.f32 %v1817, %v1919
    %v1921 = vpop.f32.mrb[0].mxu0
    %1922 = vmatprep.mubr.f32.mxu0 0.0
    %1923 = vmatmul.mubr.f32.gmra.mrb[0].mxu0 %v1829
    %v1924 = vpop.f32.mrb[0].mxu0
    %v1925 = vadd.f32 %v1817, %v1924
    %v1926 = vpop.f32.mrb[0].mxu0
    %1927 = vmatprep.mubr.f32.mxu0 0.0
    %1928 = vmatmul.mubr.f32.gmra.mrb[0].mxu0 %v1832
    %v1929 = vpop.f32.mrb[0].mxu0
    %v1930 = vadd.f32 %v1817, %v1929
    %v1931 = vpop.f32.mrb[0].mxu0
    %1932 = vmatprep.mubr.f32.mxu0 0.0
    %1933 = vmatmul.mubr.f32.gmra.mrb[0].mxu0 %v1835
    %v1934 = vpop.f32.mrb[0].mxu0
    %v1935 = vadd.f32 %v1817, %v1934
    %v1936 = vpop.f32.mrb[0].mxu0
    %1937 = vmatprep.mubr.f32.mxu0 0.0
    %1938 = vmatmul.mubr.f32.gmra.mrb[0].mxu0 %v1838
    %v1939 = vpop.f32.mrb[0].mxu0
    %v1940 = vadd.f32 %v1817, %v1939
    %v1941 = vpop.f32.mrb[0].mxu0
    %1942 = vmatprep.mubr.f32.mxu0 0.0
    %1943 = vmatmul.mubr.f32.gmra.mrb[0].mxu0 %v1841
    %v1944 = vpop.f32.mrb[0].mxu0
    %v1945 = vadd.f32 %v1817, %v1944
    %v1946 = vpop.f32.mrb[0].mxu0
    %1947 = vdwg.mxu0
    %v1948 = vadd.f32 %v1663, %v1910
    %v1949 = vadd.f32 %v1664, %v1915
    %v1950 = vadd.f32 %v1665, %v1920
    %v1951 = vadd.f32 %v1666, %v1925
    %v1952 = vadd.f32 %v1667, %v1930
    %v1953 = vadd.f32 %v1668, %v1935
    %v1954 = vadd.f32 %v1669, %v1940
    %v1955 = vadd.f32 %v1670, %v1945
    %v1956 = vsel %vm571, %v1948, 0.0
    %1957 = vadd.xlane.f32.xlu0 %v1956
    %v1958 = vpop.xlane.xlu0 %1957
    %v1959 = vsel %vm571, %v1949, 0.0
    %1960 = vadd.xlane.f32.xlu0 %v1959
    %v1961 = vpop.xlane.xlu0 %1960
    %v1962 = vsel %vm571, %v1950, 0.0
    %1963 = vadd.xlane.f32.xlu0 %v1962
    %v1964 = vpop.xlane.xlu0 %1963
    %v1965 = vsel %vm571, %v1951, 0.0
    %1966 = vadd.xlane.f32.xlu0 %v1965
    %v1967 = vpop.xlane.xlu0 %1966
    %v1968 = vsel %vm571, %v1952, 0.0
    %1969 = vadd.xlane.f32.xlu0 %v1968
    %v1970 = vpop.xlane.xlu0 %1969
    %v1971 = vsel %vm571, %v1953, 0.0
    %1972 = vadd.xlane.f32.xlu0 %v1971
    %v1973 = vpop.xlane.xlu0 %1972
    %v1974 = vsel %vm571, %v1954, 0.0
    %1975 = vadd.xlane.f32.xlu0 %v1974
    %v1976 = vpop.xlane.xlu0 %1975
    %v1977 = vsel %vm571, %v1955, 0.0
    %1978 = vadd.xlane.f32.xlu0 %v1977
    %v1979 = vpop.xlane.xlu0 %1978
    %v1980 = vmul.f32 %v1958, %v1566
    %v1981 = vmul.f32 %v1961, %v1566
    %v1982 = vmul.f32 %v1964, %v1566
    %v1983 = vmul.f32 %v1967, %v1566
    %v1984 = vmul.f32 %v1970, %v1566
    %v1985 = vmul.f32 %v1973, %v1566
    %v1986 = vmul.f32 %v1976, %v1566
    %v1987 = vmul.f32 %v1979, %v1566
    %v1988 = vsub.f32 %v1948, %v1980
    %v1989 = vsub.f32 %v1949, %v1981
    %v1990 = vsub.f32 %v1950, %v1982
    %v1991 = vsub.f32 %v1951, %v1983
    %v1992 = vsub.f32 %v1952, %v1984
    %v1993 = vsub.f32 %v1953, %v1985
    %v1994 = vsub.f32 %v1954, %v1986
    %v1995 = vsub.f32 %v1955, %v1987
    %v1996 = vmul.f32 %v1988, %v1988
    %v1997 = vmul.f32 %v1989, %v1989
    %v1998 = vmul.f32 %v1990, %v1990
    %v1999 = vmul.f32 %v1991, %v1991
    %v2000 = vmul.f32 %v1992, %v1992
    %v2001 = vmul.f32 %v1993, %v1993
    %v2002 = vmul.f32 %v1994, %v1994
    %v2003 = vmul.f32 %v1995, %v1995
    %v2004 = vsel %vm571, %v1996, 0.0
    %2005 = vadd.xlane.f32.xlu0 %v2004
    %v2006 = vpop.xlane.xlu0 %2005
    %v2007 = vsel %vm571, %v1997, 0.0
    %2008 = vadd.xlane.f32.xlu0 %v2007
    %v2009 = vpop.xlane.xlu0 %2008
    %v2010 = vsel %vm571, %v1998, 0.0
    %2011 = vadd.xlane.f32.xlu0 %v2010
    %v2012 = vpop.xlane.xlu0 %2011
    %v2013 = vsel %vm571, %v1999, 0.0
    %2014 = vadd.xlane.f32.xlu0 %v2013
    %v2015 = vpop.xlane.xlu0 %2014
    %v2016 = vsel %vm571, %v2000, 0.0
    %2017 = vadd.xlane.f32.xlu0 %v2016
    %v2018 = vpop.xlane.xlu0 %2017
    %v2019 = vsel %vm571, %v2001, 0.0
    %2020 = vadd.xlane.f32.xlu0 %v2019
    %v2021 = vpop.xlane.xlu0 %2020
    %v2022 = vsel %vm571, %v2002, 0.0
    %2023 = vadd.xlane.f32.xlu0 %v2022
    %v2024 = vpop.xlane.xlu0 %2023
    %v2025 = vsel %vm571, %v2003, 0.0
    %2026 = vadd.xlane.f32.xlu0 %v2025
    %v2027 = vpop.xlane.xlu0 %2026
    %v2028 = vmul.f32 %v2006, %v1566
    %v2029 = vmul.f32 %v2009, %v1566
    %v2030 = vmul.f32 %v2012, %v1566
    %v2031 = vmul.f32 %v2015, %v1566
    %v2032 = vmul.f32 %v2018, %v1566
    %v2033 = vmul.f32 %v2021, %v1566
    %v2034 = vmul.f32 %v2024, %v1566
    %v2035 = vmul.f32 %v2027, %v1566
    %v2036 = vadd.f32 %v2028, 1e-05
    %v2037 = vadd.f32 %v2029, 1e-05
    %v2038 = vadd.f32 %v2030, 1e-05
    %v2039 = vadd.f32 %v2031, 1e-05
    %v2040 = vadd.f32 %v2032, 1e-05
    %v2041 = vadd.f32 %v2033, 1e-05
    %v2042 = vadd.f32 %v2034, 1e-05
    %v2043 = vadd.f32 %v2035, 1e-05
    %v2044 = vrsqrt.pop %v2036
    %v2045 = vrsqrt.pop %v2037
    %v2046 = vrsqrt.pop %v2038
    %v2047 = vrsqrt.pop %v2039
    %v2048 = vrsqrt.pop %v2040
    %v2049 = vrsqrt.pop %v2041
    %v2050 = vrsqrt.pop %v2042
    %v2051 = vrsqrt.pop %v2043
    %v2052 = vmul.f32 %v1988, %v2044
    %v2053 = vmul.f32 %v1989, %v2045
    %v2054 = vmul.f32 %v1990, %v2046
    %v2055 = vmul.f32 %v1991, %v2047
    %v2056 = vmul.f32 %v1992, %v2048
    %v2057 = vmul.f32 %v1993, %v2049
    %v2058 = vmul.f32 %v1994, %v2050
    %v2059 = vmul.f32 %v1995, %v2051
    %v2060 = vmul.f32 %v2052, %v1650
    %v2061 = vmul.f32 %v2053, %v1650
    %v2062 = vmul.f32 %v2054, %v1650
    %v2063 = vmul.f32 %v2055, %v1650
    %v2064 = vmul.f32 %v2056, %v1650
    %v2065 = vmul.f32 %v2057, %v1650
    %v2066 = vmul.f32 %v2058, %v1650
    %v2067 = vmul.f32 %v2059, %v1650
    %v2068 = vadd.f32 %v2060, %v1662
    %v2069 = vadd.f32 %v2061, %v1662
    %v2070 = vadd.f32 %v2062, %v1662
    %v2071 = vadd.f32 %v2063, %v1662
    %v2072 = vadd.f32 %v2064, %v1662
    %v2073 = vadd.f32 %v2065, %v1662
    %v2074 = vadd.f32 %v2066, %v1662
    %v2075 = vadd.f32 %v2067, %v1662
    %s2076 = scalar_lea.vmem [#allocation8], 128
    %v2077 = vld [vmem:[%s2076] sm:$0xff]
    %v2078 = vld [vmem:[%s2076 + $0x8] sm:$0xff]
    %v2079 = vld [vmem:[%s2076 + $0x10] sm:$0xff]
    %v2080 = vld [vmem:[%s2076 + $0x18] sm:$0xff]
    %s2081 = scalar_lea.vmem [#allocation8], 160
    %v2082 = vld [vmem:[%s2081] sm:$0xff]
    %v2083 = vld [vmem:[%s2081 + $0x8] sm:$0xff]
    %v2084 = vld [vmem:[%s2081 + $0x10] sm:$0xff]
    %v2085 = vld [vmem:[%s2081 + $0x18] sm:$0xff]
    %s2086 = scalar_lea.vmem [#allocation8], 192
    %v2087 = vld [vmem:[%s2086] sm:$0xff]
    %v2088 = vld [vmem:[%s2086 + $0x8] sm:$0xff]
    %v2089 = vld [vmem:[%s2086 + $0x10] sm:$0xff]
    %v2090 = vld [vmem:[%s2086 + $0x18] sm:$0xff]
    %s2091 = scalar_lea.vmem [#allocation8], 224
    %v2092 = vld [vmem:[%s2091] sm:$0xff]
    %v2093 = vld [vmem:[%s2091 + $0x8] sm:$0xff]
    %v2094 = vld [vmem:[%s2091 + $0x10] sm:$0xff]
    %v2095 = vld [vmem:[%s2091 + $0x18] sm:$0xff]
    %s2096 = scalar_lea.vmem [#allocation11], 8
    %v2097 = vld [vmem:[%s2096] sm:$0x7f]
    %s2098 = scalar_lea.vmem %s6, 32
    %v2099 = vld [vmem:[%s2098] sm:$0xff]
    %v2100 = vld [vmem:[%s2098 + $0x8] sm:$0xff]
    %v2101 = vld [vmem:[%s2098 + $0x10] sm:$0xff]
    %v2102 = vld [vmem:[%s2098 + $0x18] sm:$0xff]
    %s2103 = scalar_lea.vmem %s9, 1
    %v2104 = vld [vmem:[%s2103] sm:$0x1]
    %s2105 = scalar_lea.vmem [#allocation10], 64
    %v2106 = vld [vmem:[%s2105] sm:$0xff]
    %v2107 = vld [vmem:[%s2105 + $0x8] sm:$0xff]
    %v2108 = vld [vmem:[%s2105 + $0x10] sm:$0xff]
    %v2109 = vld [vmem:[%s2105 + $0x18] sm:$0xff]
    %v2110 = vld [vmem:[%s2105 + $0x20] sm:$0xff]
    %v2111 = vld [vmem:[%s2105 + $0x28] sm:$0xff]
    %v2112 = vld [vmem:[%s2105 + $0x30] sm:$0xff]
    %v2113 = vld [vmem:[%s2105 + $0x38] sm:$0xff]
    %v2114 = vlaneseq
    %v2115 = vshrl.u32 %v2114, 7
    %v2116 = vsub.s32 0, %v2115
    %v2117 = vrot.slane %v2097, %v2116
    %v2119 = vsel %vm571, %v2068, 0
    %v2122 = vsel %vm571, %v2069, 0
    %v2125 = vsel %vm571, %v2070, 0
    %v2128 = vsel %vm571, %v2071, 0
    %v2131 = vsel %vm571, %v2072, 0
    %v2134 = vsel %vm571, %v2073, 0
    %v2137 = vsel %vm571, %v2074, 0
    %v2140 = vsel %vm571, %v2075, 0
    %2142 = vmatprep.subr.mxu0 0.0
    %2143 = vmatpush1.msra.mxu0 %v2077
    %2144 = vmatprep.subr.mxu0 0.0
    %2145 = vmatpush1.msra.mxu0 %v2078
    %2146 = vmatprep.subr.mxu0 0.0
    %2147 = vmatpush1.msra.mxu0 %v2079
    %2148 = vmatprep.subr.mxu0 0.0
    %2149 = vmatpush1.msra.mxu0 %v2080
    %2150 = vmatprep.subr.mxu0 0.0
    %2151 = vmatpush1.msra.mxu0 0.0
    %2152 = vmatprep.subr.mxu0 0.0
    %2153 = vmatpush1.msra.mxu0 0.0
    %2154 = vmatprep.subr.mxu0 0.0
    %2155 = vmatpush1.msra.mxu0 0.0
    %2156 = vmatprep.subr.mxu0 0.0
    %2157 = vmatpush1.msra.mxu0 0.0
    %2158 = vmatprep.subr.mxu0 0.0
    %2159 = vmatpush1.msra.mxu0 0.0
    %2160 = vmatprep.subr.mxu0 0.0
    %2161 = vmatpush1.msra.mxu0 0.0
    %2162 = vmatprep.subr.mxu0 0.0
    %2163 = vmatpush1.msra.mxu0 0.0
    %2164 = vmatprep.subr.mxu0 0.0
    %2165 = vmatpush1.msra.mxu0 0.0
    %2166 = vmatprep.subr.mxu0 0.0
    %2167 = vmatpush1.msra.mxu0 0.0
    %2168 = vmatprep.subr.mxu0 0.0
    %2169 = vmatpush1.msra.mxu0 0.0
    %2170 = vmatprep.subr.mxu0 0.0
    %2171 = vmatpush1.msra.mxu0 0.0
    %2172 = vmatprep.subr.mxu0 0.0
    %2173 = vmatpush1.msra.mxu0 0.0
    %2174 = vmatprep.subr.mxu0 0.0
    %2175 = vmatpush1.msra.mxu0 0.0
    %2176 = vmatprep.subr.mxu0 0.0
    %2177 = vmatpush1.msra.mxu0 0.0
    %2178 = vmatprep.subr.mxu0 0.0
    %2179 = vmatpush1.msra.mxu0 0.0
    %2180 = vmatprep.subr.mxu0 0.0
    %2181 = vmatpush1.msra.mxu0 0.0
    %2182 = vmatprep.subr.mxu0 0.0
    %2183 = vmatpush1.msra.mxu0 0.0
    %2184 = vmatprep.subr.mxu0 0.0
    %2185 = vmatpush1.msra.mxu0 0.0
    %2186 = vmatprep.subr.mxu0 0.0
    %2187 = vmatpush1.msra.mxu0 0.0
    %2188 = vmatprep.subr.mxu0 0.0
    %2189 = vmatpush1.msra.mxu0 0.0
    %2190 = vmatprep.subr.mxu0 0.0
    %2191 = vmatpush1.msra.mxu0 0.0
    %2192 = vmatprep.subr.mxu0 0.0
    %2193 = vmatpush1.msra.mxu0 0.0
    %2194 = vmatprep.subr.mxu0 0.0
    %2195 = vmatpush1.msra.mxu0 0.0
    %2196 = vmatprep.subr.mxu0 0.0
    %2197 = vmatpush1.msra.mxu0 0.0
    %2198 = vmatprep.subr.mxu0 0.0
    %2199 = vmatpush1.msra.mxu0 0.0
    %2200 = vmatprep.subr.mxu0 0.0
    %2201 = vmatpush1.msra.mxu0 0.0
    %2202 = vmatprep.subr.mxu0 0.0
    %2203 = vmatpush1.msra.mxu0 0.0
    %2204 = vmatprep.subr.mxu0 0.0
    %2205 = vmatpush1.msra.mxu0 0.0
    %2206 = vmatprep.mubr.f32.mxu0 0.0
    %2207 = vmatmul.mubr.f32.gmra.mrb[0].mxu0 %v2119
    %v2208 = vpop.f32.mrb[0].mxu0
    %v2209 = vadd.f32 %v2117, %v2208
    %v2210 = vpop.f32.mrb[0].mxu0
    %2211 = vmatprep.mubr.f32.mxu0 0.0
    %2212 = vmatmul.mubr.f32.gmra.mrb[0].mxu0 %v2122
    %v2213 = vpop.f32.mrb[0].mxu0
    %v2214 = vadd.f32 %v2117, %v2213
    %v2215 = vpop.f32.mrb[0].mxu0
    %2216 = vmatprep.mubr.f32.mxu0 0.0
    %2217 = vmatmul.mubr.f32.gmra.mrb[0].mxu0 %v2125
    %v2218 = vpop.f32.mrb[0].mxu0
    %v2219 = vadd.f32 %v2117, %v2218
    %v2220 = vpop.f32.mrb[0].mxu0
    %2221 = vmatprep.mubr.f32.mxu0 0.0
    %2222 = vmatmul.mubr.f32.gmra.mrb[0].mxu0 %v2128
    %v2223 = vpop.f32.mrb[0].mxu0
    %v2224 = vadd.f32 %v2117, %v2223
    %v2225 = vpop.f32.mrb[0].mxu0
    %2226 = vmatprep.mubr.f32.mxu0 0.0
    %2227 = vmatmul.mubr.f32.gmra.mrb[0].mxu0 %v2131
    %v2228 = vpop.f32.mrb[0].mxu0
    %v2229 = vadd.f32 %v2117, %v2228
    %v2230 = vpop.f32.mrb[0].mxu0
    %2231 = vmatprep.mubr.f32.mxu0 0.0
    %2232 = vmatmul.mubr.f32.gmra.mrb[0].mxu0 %v2134
    %v2233 = vpop.f32.mrb[0].mxu0
    %v2234 = vadd.f32 %v2117, %v2233
    %v2235 = vpop.f32.mrb[0].mxu0
    %2236 = vmatprep.mubr.f32.mxu0 0.0
    %2237 = vmatmul.mubr.f32.gmra.mrb[0].mxu0 %v2137
    %v2238 = vpop.f32.mrb[0].mxu0
    %v2239 = vadd.f32 %v2117, %v2238
    %v2240 = vpop.f32.mrb[0].mxu0
    %2241 = vmatprep.mubr.f32.mxu0 0.0
    %2242 = vmatmul.mubr.f32.gmra.mrb[0].mxu0 %v2140
    %v2243 = vpop.f32.mrb[0].mxu0
    %v2244 = vadd.f32 %v2117, %v2243
    %v2245 = vpop.f32.mrb[0].mxu0
    %2246 = vdwg.mxu0
    %v2247 = vlaneseq
    %v2248 = vshrl.u32 %v2247, 7
    %v2249 = vsub.s32 1, %v2248
    %v2250 = vrot.slane %v2097, %v2249
    %2251 = vmatprep.subr.mxu0 0.0
    %2252 = vmatpush1.msra.mxu0 %v2082
    %2253 = vmatprep.subr.mxu0 0.0
    %2254 = vmatpush1.msra.mxu0 %v2083
    %2255 = vmatprep.subr.mxu0 0.0
    %2256 = vmatpush1.msra.mxu0 %v2084
    %2257 = vmatprep.subr.mxu0 0.0
    %2258 = vmatpush1.msra.mxu0 %v2085
    %2259 = vmatprep.subr.mxu0 0.0
    %2260 = vmatpush1.msra.mxu0 0.0
    %2261 = vmatprep.subr.mxu0 0.0
    %2262 = vmatpush1.msra.mxu0 0.0
    %2263 = vmatprep.subr.mxu0 0.0
    %2264 = vmatpush1.msra.mxu0 0.0
    %2265 = vmatprep.subr.mxu0 0.0
    %2266 = vmatpush1.msra.mxu0 0.0
    %2267 = vmatprep.subr.mxu0 0.0
    %2268 = vmatpush1.msra.mxu0 0.0
    %2269 = vmatprep.subr.mxu0 0.0
    %2270 = vmatpush1.msra.mxu0 0.0
    %2271 = vmatprep.subr.mxu0 0.0
    %2272 = vmatpush1.msra.mxu0 0.0
    %2273 = vmatprep.subr.mxu0 0.0
    %2274 = vmatpush1.msra.mxu0 0.0
    %2275 = vmatprep.subr.mxu0 0.0
    %2276 = vmatpush1.msra.mxu0 0.0
    %2277 = vmatprep.subr.mxu0 0.0
    %2278 = vmatpush1.msra.mxu0 0.0
    %2279 = vmatprep.subr.mxu0 0.0
    %2280 = vmatpush1.msra.mxu0 0.0
    %2281 = vmatprep.subr.mxu0 0.0
    %2282 = vmatpush1.msra.mxu0 0.0
    %2283 = vmatprep.subr.mxu0 0.0
    %2284 = vmatpush1.msra.mxu0 0.0
    %2285 = vmatprep.subr.mxu0 0.0
    %2286 = vmatpush1.msra.mxu0 0.0
    %2287 = vmatprep.subr.mxu0 0.0
    %2288 = vmatpush1.msra.mxu0 0.0
    %2289 = vmatprep.subr.mxu0 0.0
    %2290 = vmatpush1.msra.mxu0 0.0
    %2291 = vmatprep.subr.mxu0 0.0
    %2292 = vmatpush1.msra.mxu0 0.0
    %2293 = vmatprep.subr.mxu0 0.0
    %2294 = vmatpush1.msra.mxu0 0.0
    %2295 = vmatprep.subr.mxu0 0.0
    %2296 = vmatpush1.msra.mxu0 0.0
    %2297 = vmatprep.subr.mxu0 0.0
    %2298 = vmatpush1.msra.mxu0 0.0
    %2299 = vmatprep.subr.mxu0 0.0
    %2300 = vmatpush1.msra.mxu0 0.0
    %2301 = vmatprep.subr.mxu0 0.0
    %2302 = vmatpush1.msra.mxu0 0.0
    %2303 = vmatprep.subr.mxu0 0.0
    %2304 = vmatpush1.msra.mxu0 0.0
    %2305 = vmatprep.subr.mxu0 0.0
    %2306 = vmatpush1.msra.mxu0 0.0
    %2307 = vmatprep.subr.mxu0 0.0
    %2308 = vmatpush1.msra.mxu0 0.0
    %2309 = vmatprep.subr.mxu0 0.0
    %2310 = vmatpush1.msra.mxu0 0.0
    %2311 = vmatprep.subr.mxu0 0.0
    %2312 = vmatpush1.msra.mxu0 0.0
    %2313 = vmatprep.subr.mxu0 0.0
    %2314 = vmatpush1.msra.mxu0 0.0
    %2315 = vmatprep.mubr.f32.mxu0 0.0
    %2316 = vmatmul.mubr.f32.gmra.mrb[0].mxu0 %v2119
    %v2317 = vpop.f32.mrb[0].mxu0
    %v2318 = vadd.f32 %v2250, %v2317
    %v2319 = vpop.f32.mrb[0].mxu0
    %2320 = vmatprep.mubr.f32.mxu0 0.0
    %2321 = vmatmul.mubr.f32.gmra.mrb[0].mxu0 %v2122
    %v2322 = vpop.f32.mrb[0].mxu0
    %v2323 = vadd.f32 %v2250, %v2322
    %v2324 = vpop.f32.mrb[0].mxu0
    %2325 = vmatprep.mubr.f32.mxu0 0.0
    %2326 = vmatmul.mubr.f32.gmra.mrb[0].mxu0 %v2125
    %v2327 = vpop.f32.mrb[0].mxu0
    %v2328 = vadd.f32 %v2250, %v2327
    %v2329 = vpop.f32.mrb[0].mxu0
    %2330 = vmatprep.mubr.f32.mxu0 0.0
    %2331 = vmatmul.mubr.f32.gmra.mrb[0].mxu0 %v2128
    %v2332 = vpop.f32.mrb[0].mxu0
    %v2333 = vadd.f32 %v2250, %v2332
    %v2334 = vpop.f32.mrb[0].mxu0
    %2335 = vmatprep.mubr.f32.mxu0 0.0
    %2336 = vmatmul.mubr.f32.gmra.mrb[0].mxu0 %v2131
    %v2337 = vpop.f32.mrb[0].mxu0
    %v2338 = vadd.f32 %v2250, %v2337
    %v2339 = vpop.f32.mrb[0].mxu0
    %2340 = vmatprep.mubr.f32.mxu0 0.0
    %2341 = vmatmul.mubr.f32.gmra.mrb[0].mxu0 %v2134
    %v2342 = vpop.f32.mrb[0].mxu0
    %v2343 = vadd.f32 %v2250, %v2342
    %v2344 = vpop.f32.mrb[0].mxu0
    %2345 = vmatprep.mubr.f32.mxu0 0.0
    %2346 = vmatmul.mubr.f32.gmra.mrb[0].mxu0 %v2137
    %v2347 = vpop.f32.mrb[0].mxu0
    %v2348 = vadd.f32 %v2250, %v2347
    %v2349 = vpop.f32.mrb[0].mxu0
    %2350 = vmatprep.mubr.f32.mxu0 0.0
    %2351 = vmatmul.mubr.f32.gmra.mrb[0].mxu0 %v2140
    %v2352 = vpop.f32.mrb[0].mxu0
    %v2353 = vadd.f32 %v2250, %v2352
    %v2354 = vpop.f32.mrb[0].mxu0
    %2355 = vdwg.mxu0
    %v2356 = vlaneseq
    %v2357 = vshrl.u32 %v2356, 7
    %v2358 = vsub.s32 2, %v2357
    %v2359 = vrot.slane %v2097, %v2358
    %2360 = vmatprep.subr.mxu0 0.0
    %2361 = vmatpush1.msra.mxu0 %v2087
    %2362 = vmatprep.subr.mxu0 0.0
    %2363 = vmatpush1.msra.mxu0 %v2088
    %2364 = vmatprep.subr.mxu0 0.0
    %2365 = vmatpush1.msra.mxu0 %v2089
    %2366 = vmatprep.subr.mxu0 0.0
    %2367 = vmatpush1.msra.mxu0 %v2090
    %2368 = vmatprep.subr.mxu0 0.0
    %2369 = vmatpush1.msra.mxu0 0.0
    %2370 = vmatprep.subr.mxu0 0.0
    %2371 = vmatpush1.msra.mxu0 0.0
    %2372 = vmatprep.subr.mxu0 0.0
    %2373 = vmatpush1.msra.mxu0 0.0
    %2374 = vmatprep.subr.mxu0 0.0
    %2375 = vmatpush1.msra.mxu0 0.0
    %2376 = vmatprep.subr.mxu0 0.0
    %2377 = vmatpush1.msra.mxu0 0.0
    %2378 = vmatprep.subr.mxu0 0.0
    %2379 = vmatpush1.msra.mxu0 0.0
    %2380 = vmatprep.subr.mxu0 0.0
    %2381 = vmatpush1.msra.mxu0 0.0
    %2382 = vmatprep.subr.mxu0 0.0
    %2383 = vmatpush1.msra.mxu0 0.0
    %2384 = vmatprep.subr.mxu0 0.0
    %2385 = vmatpush1.msra.mxu0 0.0
    %2386 = vmatprep.subr.mxu0 0.0
    %2387 = vmatpush1.msra.mxu0 0.0
    %2388 = vmatprep.subr.mxu0 0.0
    %2389 = vmatpush1.msra.mxu0 0.0
    %2390 = vmatprep.subr.mxu0 0.0
    %2391 = vmatpush1.msra.mxu0 0.0
    %2392 = vmatprep.subr.mxu0 0.0
    %2393 = vmatpush1.msra.mxu0 0.0
    %2394 = vmatprep.subr.mxu0 0.0
    %2395 = vmatpush1.msra.mxu0 0.0
    %2396 = vmatprep.subr.mxu0 0.0
    %2397 = vmatpush1.msra.mxu0 0.0
    %2398 = vmatprep.subr.mxu0 0.0
    %2399 = vmatpush1.msra.mxu0 0.0
    %2400 = vmatprep.subr.mxu0 0.0
    %2401 = vmatpush1.msra.mxu0 0.0
    %2402 = vmatprep.subr.mxu0 0.0
    %2403 = vmatpush1.msra.mxu0 0.0
    %2404 = vmatprep.subr.mxu0 0.0
    %2405 = vmatpush1.msra.mxu0 0.0
    %2406 = vmatprep.subr.mxu0 0.0
    %2407 = vmatpush1.msra.mxu0 0.0
    %2408 = vmatprep.subr.mxu0 0.0
    %2409 = vmatpush1.msra.mxu0 0.0
    %2410 = vmatprep.subr.mxu0 0.0
    %2411 = vmatpush1.msra.mxu0 0.0
    %2412 = vmatprep.subr.mxu0 0.0
    %2413 = vmatpush1.msra.mxu0 0.0
    %2414 = vmatprep.subr.mxu0 0.0
    %2415 = vmatpush1.msra.mxu0 0.0
    %2416 = vmatprep.subr.mxu0 0.0
    %2417 = vmatpush1.msra.mxu0 0.0
    %2418 = vmatprep.subr.mxu0 0.0
    %2419 = vmatpush1.msra.mxu0 0.0
    %2420 = vmatprep.subr.mxu0 0.0
    %2421 = vmatpush1.msra.mxu0 0.0
    %2422 = vmatprep.subr.mxu0 0.0
    %2423 = vmatpush1.msra.mxu0 0.0
    %2424 = vmatprep.mubr.f32.mxu0 0.0
    %2425 = vmatmul.mubr.f32.gmra.mrb[0].mxu0 %v2119
    %v2426 = vpop.f32.mrb[0].mxu0
    %v2427 = vadd.f32 %v2359, %v2426
    %v2428 = vpop.f32.mrb[0].mxu0
    %2429 = vmatprep.mubr.f32.mxu0 0.0
    %2430 = vmatmul.mubr.f32.gmra.mrb[0].mxu0 %v2122
    %v2431 = vpop.f32.mrb[0].mxu0
    %v2432 = vadd.f32 %v2359, %v2431
    %v2433 = vpop.f32.mrb[0].mxu0
    %2434 = vmatprep.mubr.f32.mxu0 0.0
    %2435 = vmatmul.mubr.f32.gmra.mrb[0].mxu0 %v2125
    %v2436 = vpop.f32.mrb[0].mxu0
    %v2437 = vadd.f32 %v2359, %v2436
    %v2438 = vpop.f32.mrb[0].mxu0
    %2439 = vmatprep.mubr.f32.mxu0 0.0
    %2440 = vmatmul.mubr.f32.gmra.mrb[0].mxu0 %v2128
    %v2441 = vpop.f32.mrb[0].mxu0
    %v2442 = vadd.f32 %v2359, %v2441
    %v2443 = vpop.f32.mrb[0].mxu0
    %2444 = vmatprep.mubr.f32.mxu0 0.0
    %2445 = vmatmul.mubr.f32.gmra.mrb[0].mxu0 %v2131
    %v2446 = vpop.f32.mrb[0].mxu0
    %v2447 = vadd.f32 %v2359, %v2446
    %v2448 = vpop.f32.mrb[0].mxu0
    %2449 = vmatprep.mubr.f32.mxu0 0.0
    %2450 = vmatmul.mubr.f32.gmra.mrb[0].mxu0 %v2134
    %v2451 = vpop.f32.mrb[0].mxu0
    %v2452 = vadd.f32 %v2359, %v2451
    %v2453 = vpop.f32.mrb[0].mxu0
    %2454 = vmatprep.mubr.f32.mxu0 0.0
    %2455 = vmatmul.mubr.f32.gmra.mrb[0].mxu0 %v2137
    %v2456 = vpop.f32.mrb[0].mxu0
    %v2457 = vadd.f32 %v2359, %v2456
    %v2458 = vpop.f32.mrb[0].mxu0
    %2459 = vmatprep.mubr.f32.mxu0 0.0
    %2460 = vmatmul.mubr.f32.gmra.mrb[0].mxu0 %v2140
    %v2461 = vpop.f32.mrb[0].mxu0
    %v2462 = vadd.f32 %v2359, %v2461
    %v2463 = vpop.f32.mrb[0].mxu0
    %2464 = vdwg.mxu0
    %v2466 = vsel %vm571, %v2318, 0
    %v2469 = vsel %vm571, %v2323, 0
    %v2472 = vsel %vm571, %v2328, 0
    %v2475 = vsel %vm571, %v2333, 0
    %2477 = vmatprep.subr.mxu0 0.0
    %2478 = vmatpush1.msra.mxu0 %v2209
    %2479 = vmatprep.subr.mxu0 0.0
    %2480 = vmatpush1.msra.mxu0 %v2214
    %2481 = vmatprep.subr.mxu0 0.0
    %2482 = vmatpush1.msra.mxu0 %v2219
    %2483 = vmatprep.subr.mxu0 0.0
    %2484 = vmatpush1.msra.mxu0 %v2224
    %2485 = vmatprep.subr.mxu0 0.0
    %2486 = vmatpush1.msra.mxu0 0.0
    %2487 = vmatprep.subr.mxu0 0.0
    %2488 = vmatpush1.msra.mxu0 0.0
    %2489 = vmatprep.subr.mxu0 0.0
    %2490 = vmatpush1.msra.mxu0 0.0
    %2491 = vmatprep.subr.mxu0 0.0
    %2492 = vmatpush1.msra.mxu0 0.0
    %2493 = vmatprep.subr.mxu0 0.0
    %2494 = vmatpush1.msra.mxu0 0.0
    %2495 = vmatprep.subr.mxu0 0.0
    %2496 = vmatpush1.msra.mxu0 0.0
    %2497 = vmatprep.subr.mxu0 0.0
    %2498 = vmatpush1.msra.mxu0 0.0
    %2499 = vmatprep.subr.mxu0 0.0
    %2500 = vmatpush1.msra.mxu0 0.0
    %2501 = vmatprep.subr.mxu0 0.0
    %2502 = vmatpush1.msra.mxu0 0.0
    %2503 = vmatprep.subr.mxu0 0.0
    %2504 = vmatpush1.msra.mxu0 0.0
    %2505 = vmatprep.subr.mxu0 0.0
    %2506 = vmatpush1.msra.mxu0 0.0
    %2507 = vmatprep.subr.mxu0 0.0
    %2508 = vmatpush1.msra.mxu0 0.0
    %2509 = vmatprep.subr.mxu0 0.0
    %2510 = vmatpush1.msra.mxu0 0.0
    %2511 = vmatprep.subr.mxu0 0.0
    %2512 = vmatpush1.msra.mxu0 0.0
    %2513 = vmatprep.subr.mxu0 0.0
    %2514 = vmatpush1.msra.mxu0 0.0
    %2515 = vmatprep.subr.mxu0 0.0
    %2516 = vmatpush1.msra.mxu0 0.0
    %2517 = vmatprep.subr.mxu0 0.0
    %2518 = vmatpush1.msra.mxu0 0.0
    %2519 = vmatprep.subr.mxu0 0.0
    %2520 = vmatpush1.msra.mxu0 0.0
    %2521 = vmatprep.subr.mxu0 0.0
    %2522 = vmatpush1.msra.mxu0 0.0
    %2523 = vmatprep.subr.mxu0 0.0
    %2524 = vmatpush1.msra.mxu0 0.0
    %2525 = vmatprep.subr.mxu0 0.0
    %2526 = vmatpush1.msra.mxu0 0.0
    %2527 = vmatprep.subr.mxu0 0.0
    %2528 = vmatpush1.msra.mxu0 0.0
    %2529 = vmatprep.subr.mxu0 0.0
    %2530 = vmatpush1.msra.mxu0 0.0
    %2531 = vmatprep.subr.mxu0 0.0
    %2532 = vmatpush1.msra.mxu0 0.0
    %2533 = vmatprep.subr.mxu0 0.0
    %2534 = vmatpush1.msra.mxu0 0.0
    %2535 = vmatprep.subr.mxu0 0.0
    %2536 = vmatpush1.msra.mxu0 0.0
    %2537 = vmatprep.subr.mxu0 0.0
    %2538 = vmatpush1.msra.mxu0 0.0
    %2539 = vmatprep.subr.mxu0 0.0
    %2540 = vmatpush1.msra.mxu0 0.0
    %2541 = vmatprep.mubr.f32.mxu0 0.0
    %2542 = vmatmul.mubr.f32.gmra.mrb[0].mxu0 %v2466
    %v2543 = vpop.f32.mrb[0].mxu0
    %v2544 = vadd.f32 0.0, %v2543
    %v2545 = vpop.f32.mrb[0].mxu0
    %2546 = vmatprep.mubr.f32.mxu0 0.0
    %2547 = vmatmul.mubr.f32.gmra.mrb[0].mxu0 %v2469
    %v2548 = vpop.f32.mrb[0].mxu0
    %v2549 = vadd.f32 0.0, %v2548
    %v2550 = vpop.f32.mrb[0].mxu0
    %2551 = vmatprep.mubr.f32.mxu0 0.0
    %2552 = vmatmul.mubr.f32.gmra.mrb[0].mxu0 %v2472
    %v2553 = vpop.f32.mrb[0].mxu0
    %v2554 = vadd.f32 0.0, %v2553
    %v2555 = vpop.f32.mrb[0].mxu0
    %2556 = vmatprep.mubr.f32.mxu0 0.0
    %2557 = vmatmul.mubr.f32.gmra.mrb[0].mxu0 %v2475
    %v2558 = vpop.f32.mrb[0].mxu0
    %v2559 = vadd.f32 0.0, %v2558
    %v2560 = vpop.f32.mrb[0].mxu0
    %2561 = vdwg.mxu0
    %v2563 = vsel %vm571, %v2338, 0
    %v2566 = vsel %vm571, %v2343, 0
    %v2569 = vsel %vm571, %v2348, 0
    %v2572 = vsel %vm571, %v2353, 0
    %2574 = vmatprep.subr.mxu0 0.0
    %2575 = vmatpush1.msra.mxu0 %v2229
    %2576 = vmatprep.subr.mxu0 0.0
    %2577 = vmatpush1.msra.mxu0 %v2234
    %2578 = vmatprep.subr.mxu0 0.0
    %2579 = vmatpush1.msra.mxu0 %v2239
    %2580 = vmatprep.subr.mxu0 0.0
    %2581 = vmatpush1.msra.mxu0 %v2244
    %2582 = vmatprep.subr.mxu0 0.0
    %2583 = vmatpush1.msra.mxu0 0.0
    %2584 = vmatprep.subr.mxu0 0.0
    %2585 = vmatpush1.msra.mxu0 0.0
    %2586 = vmatprep.subr.mxu0 0.0
    %2587 = vmatpush1.msra.mxu0 0.0
    %2588 = vmatprep.subr.mxu0 0.0
    %2589 = vmatpush1.msra.mxu0 0.0
    %2590 = vmatprep.subr.mxu0 0.0
    %2591 = vmatpush1.msra.mxu0 0.0
    %2592 = vmatprep.subr.mxu0 0.0
    %2593 = vmatpush1.msra.mxu0 0.0
    %2594 = vmatprep.subr.mxu0 0.0
    %2595 = vmatpush1.msra.mxu0 0.0
    %2596 = vmatprep.subr.mxu0 0.0
    %2597 = vmatpush1.msra.mxu0 0.0
    %2598 = vmatprep.subr.mxu0 0.0
    %2599 = vmatpush1.msra.mxu0 0.0
    %2600 = vmatprep.subr.mxu0 0.0
    %2601 = vmatpush1.msra.mxu0 0.0
    %2602 = vmatprep.subr.mxu0 0.0
    %2603 = vmatpush1.msra.mxu0 0.0
    %2604 = vmatprep.subr.mxu0 0.0
    %2605 = vmatpush1.msra.mxu0 0.0
    %2606 = vmatprep.subr.mxu0 0.0
    %2607 = vmatpush1.msra.mxu0 0.0
    %2608 = vmatprep.subr.mxu0 0.0
    %2609 = vmatpush1.msra.mxu0 0.0
    %2610 = vmatprep.subr.mxu0 0.0
    %2611 = vmatpush1.msra.mxu0 0.0
    %2612 = vmatprep.subr.mxu0 0.0
    %2613 = vmatpush1.msra.mxu0 0.0
    %2614 = vmatprep.subr.mxu0 0.0
    %2615 = vmatpush1.msra.mxu0 0.0
    %2616 = vmatprep.subr.mxu0 0.0
    %2617 = vmatpush1.msra.mxu0 0.0
    %2618 = vmatprep.subr.mxu0 0.0
    %2619 = vmatpush1.msra.mxu0 0.0
    %2620 = vmatprep.subr.mxu0 0.0
    %2621 = vmatpush1.msra.mxu0 0.0
    %2622 = vmatprep.subr.mxu0 0.0
    %2623 = vmatpush1.msra.mxu0 0.0
    %2624 = vmatprep.subr.mxu0 0.0
    %2625 = vmatpush1.msra.mxu0 0.0
    %2626 = vmatprep.subr.mxu0 0.0
    %2627 = vmatpush1.msra.mxu0 0.0
    %2628 = vmatprep.subr.mxu0 0.0
    %2629 = vmatpush1.msra.mxu0 0.0
    %2630 = vmatprep.subr.mxu0 0.0
    %2631 = vmatpush1.msra.mxu0 0.0
    %2632 = vmatprep.subr.mxu0 0.0
    %2633 = vmatpush1.msra.mxu0 0.0
    %2634 = vmatprep.subr.mxu0 0.0
    %2635 = vmatpush1.msra.mxu0 0.0
    %2636 = vmatprep.subr.mxu0 0.0
    %2637 = vmatpush1.msra.mxu0 0.0
    %2638 = vmatprep.mubr.f32.mxu0 0.0
    %2639 = vmatmul.mubr.f32.gmra.mrb[0].mxu0 %v2563
    %v2640 = vpop.f32.mrb[0].mxu0
    %v2641 = vadd.f32 0.0, %v2640
    %v2642 = vpop.f32.mrb[0].mxu0
    %2643 = vmatprep.mubr.f32.mxu0 0.0
    %2644 = vmatmul.mubr.f32.gmra.mrb[0].mxu0 %v2566
    %v2645 = vpop.f32.mrb[0].mxu0
    %v2646 = vadd.f32 0.0, %v2645
    %v2647 = vpop.f32.mrb[0].mxu0
    %2648 = vmatprep.mubr.f32.mxu0 0.0
    %2649 = vmatmul.mubr.f32.gmra.mrb[0].mxu0 %v2569
    %v2650 = vpop.f32.mrb[0].mxu0
    %v2651 = vadd.f32 0.0, %v2650
    %v2652 = vpop.f32.mrb[0].mxu0
    %2653 = vmatprep.mubr.f32.mxu0 0.0
    %2654 = vmatmul.mubr.f32.gmra.mrb[0].mxu0 %v2572
    %v2655 = vpop.f32.mrb[0].mxu0
    %v2656 = vadd.f32 0.0, %v2655
    %v2657 = vpop.f32.mrb[0].mxu0
    %2658 = vdwg.mxu0
    %v2659 = vmul.f32 %v2544, 0.5
    %v2660 = vmul.f32 %v2549, 0.5
    %v2661 = vmul.f32 %v2554, 0.5
    %v2662 = vmul.f32 %v2559, 0.5
    %v2663 = vmul.f32 %v2641, 0.5
    %v2664 = vmul.f32 %v2646, 0.5
    %v2665 = vmul.f32 %v2651, 0.5
    %v2666 = vmul.f32 %v2656, 0.5
    %v2667 = vsel %vm571, %v2659, -inf
    %v2668 = vsel %vm571, %v2660, -inf
    %v2669 = vsel %vm571, %v2661, -inf
    %v2670 = vmax.f32 %v2667, %v2669
    %v2671 = vsel %vm571, %v2662, -inf
    %v2672 = vmax.f32 %v2668, %v2671
    %v2673 = vmax.f32 %v2670, %v2672
    %v2674 = vrot.slane %v2673, 4
    %v2675 = vmax.f32 %v2673, %v2674
    %v2676 = vrot.slane %v2675, 2
    %v2677 = vmax.f32 %v2675, %v2676
    %v2678 = vrot.slane %v2677, 1
    %v2679 = vmax.f32 %v2677, %v2678
    %v2680 = vsel %vm571, %v2663, -inf
    %v2681 = vsel %vm571, %v2664, -inf
    %v2682 = vsel %vm571, %v2665, -inf
    %v2683 = vmax.f32 %v2680, %v2682
    %v2684 = vsel %vm571, %v2666, -inf
    %v2685 = vmax.f32 %v2681, %v2684
    %v2686 = vmax.f32 %v2683, %v2685
    %v2687 = vrot.slane %v2686, 4
    %v2688 = vmax.f32 %v2686, %v2687
    %v2689 = vrot.slane %v2688, 2
    %v2690 = vmax.f32 %v2688, %v2689
    %v2691 = vrot.slane %v2690, 1
    %v2692 = vmax.f32 %v2690, %v2691
    %v2693 = vsub.f32 %v2659, %v2679
    %v2694 = vsub.f32 %v2660, %v2679
    %v2695 = vsub.f32 %v2661, %v2679
    %v2696 = vsub.f32 %v2662, %v2679
    %v2697 = vsub.f32 %v2663, %v2692
    %v2698 = vsub.f32 %v2664, %v2692
    %v2699 = vsub.f32 %v2665, %v2692
    %v2700 = vsub.f32 %v2666, %v2692
    %v2701 = vmul.f32 %v2693, 1.442695
    %v2702 = vpow.pop %v2701
    %v2703 = vmul.f32 %v2694, 1.442695
    %v2704 = vpow.pop %v2703
    %v2705 = vmul.f32 %v2695, 1.442695
    %v2706 = vpow.pop %v2705
    %v2707 = vmul.f32 %v2696, 1.442695
    %v2708 = vpow.pop %v2707
    %v2709 = vmul.f32 %v2697, 1.442695
    %v2710 = vpow.pop %v2709
    %v2711 = vmul.f32 %v2698, 1.442695
    %v2712 = vpow.pop %v2711
    %v2713 = vmul.f32 %v2699, 1.442695
    %v2714 = vpow.pop %v2713
    %v2715 = vmul.f32 %v2700, 1.442695
    %v2716 = vpow.pop %v2715
    %v2717 = vsel %vm571, %v2702, 0.0
    %v2718 = vsel %vm571, %v2704, 0.0
    %v2719 = vadd.f32 %v2717, %v2718
    %v2720 = vsel %vm571, %v2706, 0.0
    %v2721 = vadd.f32 %v2719, %v2720
    %v2722 = vsel %vm571, %v2708, 0.0
    %v2723 = vadd.f32 %v2721, %v2722
    %v2724 = vrot.slane %v2723, 4
    %v2725 = vadd.f32 %v2723, %v2724
    %v2726 = vrot.slane %v2725, 2
    %v2727 = vadd.f32 %v2725, %v2726
    %v2728 = vrot.slane %v2727, 1
    %v2729 = vadd.f32 %v2727, %v2728
    %v2730 = vsel %vm571, %v2710, 0.0
    %v2731 = vsel %vm571, %v2712, 0.0
    %v2732 = vadd.f32 %v2730, %v2731
    %v2733 = vsel %vm571, %v2714, 0.0
    %v2734 = vadd.f32 %v2732, %v2733
    %v2735 = vsel %vm571, %v2716, 0.0
    %v2736 = vadd.f32 %v2734, %v2735
    %v2737 = vrot.slane %v2736, 4
    %v2738 = vadd.f32 %v2736, %v2737
    %v2739 = vrot.slane %v2738, 2
    %v2740 = vadd.f32 %v2738, %v2739
    %v2741 = vrot.slane %v2740, 1
    %v2742 = vadd.f32 %v2740, %v2741
    %v2743 = vrcp.pop %v2729
    %v2744 = vrcp.pop %v2742
    %v2745 = vmul.f32 %v2702, %v2743
    %v2746 = vmul.f32 %v2704, %v2743
    %v2747 = vmul.f32 %v2706, %v2743
    %v2748 = vmul.f32 %v2708, %v2743
    %v2749 = vmul.f32 %v2710, %v2744
    %v2750 = vmul.f32 %v2712, %v2744
    %v2751 = vmul.f32 %v2714, %v2744
    %v2752 = vmul.f32 %v2716, %v2744
    %v2754 = vsel %vm571, %v2745, 0
    %v2757 = vsel %vm571, %v2746, 0
    %v2760 = vsel %vm571, %v2747, 0
    %v2763 = vsel %vm571, %v2748, 0
    %2765 = vmatprep.subr.mxu0 0.0
    %2766 = vmatpush1.msra.mxu0 %v2427
    %2767 = vmatprep.subr.mxu0 0.0
    %2768 = vmatpush1.msra.mxu0 %v2432
    %2769 = vmatprep.subr.mxu0 0.0
    %2770 = vmatpush1.msra.mxu0 %v2437
    %2771 = vmatprep.subr.mxu0 0.0
    %2772 = vmatpush1.msra.mxu0 %v2442
    %2773 = vmatprep.subr.mxu0 0.0
    %2774 = vmatpush1.msra.mxu0 0.0
    %2775 = vmatprep.subr.mxu0 0.0
    %2776 = vmatpush1.msra.mxu0 0.0
    %2777 = vmatprep.subr.mxu0 0.0
    %2778 = vmatpush1.msra.mxu0 0.0
    %2779 = vmatprep.subr.mxu0 0.0
    %2780 = vmatpush1.msra.mxu0 0.0
    %2781 = vmatprep.subr.mxu0 0.0
    %2782 = vmatpush1.msra.mxu0 0.0
    %2783 = vmatprep.subr.mxu0 0.0
    %2784 = vmatpush1.msra.mxu0 0.0
    %2785 = vmatprep.subr.mxu0 0.0
    %2786 = vmatpush1.msra.mxu0 0.0
    %2787 = vmatprep.subr.mxu0 0.0
    %2788 = vmatpush1.msra.mxu0 0.0
    %2789 = vmatprep.subr.mxu0 0.0
    %2790 = vmatpush1.msra.mxu0 0.0
    %2791 = vmatprep.subr.mxu0 0.0
    %2792 = vmatpush1.msra.mxu0 0.0
    %2793 = vmatprep.subr.mxu0 0.0
    %2794 = vmatpush1.msra.mxu0 0.0
    %2795 = vmatprep.subr.mxu0 0.0
    %2796 = vmatpush1.msra.mxu0 0.0
    %2797 = vmatprep.subr.mxu0 0.0
    %2798 = vmatpush1.msra.mxu0 0.0
    %2799 = vmatprep.subr.mxu0 0.0
    %2800 = vmatpush1.msra.mxu0 0.0
    %2801 = vmatprep.subr.mxu0 0.0
    %2802 = vmatpush1.msra.mxu0 0.0
    %2803 = vmatprep.subr.mxu0 0.0
    %2804 = vmatpush1.msra.mxu0 0.0
    %2805 = vmatprep.subr.mxu0 0.0
    %2806 = vmatpush1.msra.mxu0 0.0
    %2807 = vmatprep.subr.mxu0 0.0
    %2808 = vmatpush1.msra.mxu0 0.0
    %2809 = vmatprep.subr.mxu0 0.0
    %2810 = vmatpush1.msra.mxu0 0.0
    %2811 = vmatprep.subr.mxu0 0.0
    %2812 = vmatpush1.msra.mxu0 0.0
    %2813 = vmatprep.subr.mxu0 0.0
    %2814 = vmatpush1.msra.mxu0 0.0
    %2815 = vmatprep.subr.mxu0 0.0
    %2816 = vmatpush1.msra.mxu0 0.0
    %2817 = vmatprep.subr.mxu0 0.0
    %2818 = vmatpush1.msra.mxu0 0.0
    %2819 = vmatprep.subr.mxu0 0.0
    %2820 = vmatpush1.msra.mxu0 0.0
    %2821 = vmatprep.subr.mxu0 0.0
    %2822 = vmatpush1.msra.mxu0 0.0
    %2823 = vmatprep.subr.mxu0 0.0
    %2824 = vmatpush1.msra.mxu0 0.0
    %2825 = vmatprep.subr.mxu0 0.0
    %2826 = vmatpush1.msra.mxu0 0.0
    %2827 = vmatprep.subr.mxu0 0.0
    %2828 = vmatpush1.msra.mxu0 0.0
    %2829 = vmatprep.mubr.f32.mxu0 0.0
    %2830 = vmatmul.mubr.f32.gmra.mrb[0].mxu0 %v2754
    %v2831 = vpop.f32.mrb[0].mxu0
    %v2832 = vadd.f32 0.0, %v2831
    %v2833 = vpop.f32.mrb[0].mxu0
    %2834 = vmatprep.mubr.f32.mxu0 0.0
    %2835 = vmatmul.mubr.f32.gmra.mrb[0].mxu0 %v2757
    %v2836 = vpop.f32.mrb[0].mxu0
    %v2837 = vadd.f32 0.0, %v2836
    %v2838 = vpop.f32.mrb[0].mxu0
    %2839 = vmatprep.mubr.f32.mxu0 0.0
    %2840 = vmatmul.mubr.f32.gmra.mrb[0].mxu0 %v2760
    %v2841 = vpop.f32.mrb[0].mxu0
    %v2842 = vadd.f32 0.0, %v2841
    %v2843 = vpop.f32.mrb[0].mxu0
    %2844 = vmatprep.mubr.f32.mxu0 0.0
    %2845 = vmatmul.mubr.f32.gmra.mrb[0].mxu0 %v2763
    %v2846 = vpop.f32.mrb[0].mxu0
    %v2847 = vadd.f32 0.0, %v2846
    %v2848 = vpop.f32.mrb[0].mxu0
    %2849 = vdwg.mxu0
    %v2851 = vsel %vm571, %v2749, 0
    %v2854 = vsel %vm571, %v2750, 0
    %v2857 = vsel %vm571, %v2751, 0
    %v2860 = vsel %vm571, %v2752, 0
    %2862 = vmatprep.subr.mxu0 0.0
    %2863 = vmatpush1.msra.mxu0 %v2447
    %2864 = vmatprep.subr.mxu0 0.0
    %2865 = vmatpush1.msra.mxu0 %v2452
    %2866 = vmatprep.subr.mxu0 0.0
    %2867 = vmatpush1.msra.mxu0 %v2457
    %2868 = vmatprep.subr.mxu0 0.0
    %2869 = vmatpush1.msra.mxu0 %v2462
    %2870 = vmatprep.subr.mxu0 0.0
    %2871 = vmatpush1.msra.mxu0 0.0
    %2872 = vmatprep.subr.mxu0 0.0
    %2873 = vmatpush1.msra.mxu0 0.0
    %2874 = vmatprep.subr.mxu0 0.0
    %2875 = vmatpush1.msra.mxu0 0.0
    %2876 = vmatprep.subr.mxu0 0.0
    %2877 = vmatpush1.msra.mxu0 0.0
    %2878 = vmatprep.subr.mxu0 0.0
    %2879 = vmatpush1.msra.mxu0 0.0
    %2880 = vmatprep.subr.mxu0 0.0
    %2881 = vmatpush1.msra.mxu0 0.0
    %2882 = vmatprep.subr.mxu0 0.0
    %2883 = vmatpush1.msra.mxu0 0.0
    %2884 = vmatprep.subr.mxu0 0.0
    %2885 = vmatpush1.msra.mxu0 0.0
    %2886 = vmatprep.subr.mxu0 0.0
    %2887 = vmatpush1.msra.mxu0 0.0
    %2888 = vmatprep.subr.mxu0 0.0
    %2889 = vmatpush1.msra.mxu0 0.0
    %2890 = vmatprep.subr.mxu0 0.0
    %2891 = vmatpush1.msra.mxu0 0.0
    %2892 = vmatprep.subr.mxu0 0.0
    %2893 = vmatpush1.msra.mxu0 0.0
    %2894 = vmatprep.subr.mxu0 0.0
    %2895 = vmatpush1.msra.mxu0 0.0
    %2896 = vmatprep.subr.mxu0 0.0
    %2897 = vmatpush1.msra.mxu0 0.0
    %2898 = vmatprep.subr.mxu0 0.0
    %2899 = vmatpush1.msra.mxu0 0.0
    %2900 = vmatprep.subr.mxu0 0.0
    %2901 = vmatpush1.msra.mxu0 0.0
    %2902 = vmatprep.subr.mxu0 0.0
    %2903 = vmatpush1.msra.mxu0 0.0
    %2904 = vmatprep.subr.mxu0 0.0
    %2905 = vmatpush1.msra.mxu0 0.0
    %2906 = vmatprep.subr.mxu0 0.0
    %2907 = vmatpush1.msra.mxu0 0.0
    %2908 = vmatprep.subr.mxu0 0.0
    %2909 = vmatpush1.msra.mxu0 0.0
    %2910 = vmatprep.subr.mxu0 0.0
    %2911 = vmatpush1.msra.mxu0 0.0
    %2912 = vmatprep.subr.mxu0 0.0
    %2913 = vmatpush1.msra.mxu0 0.0
    %2914 = vmatprep.subr.mxu0 0.0
    %2915 = vmatpush1.msra.mxu0 0.0
    %2916 = vmatprep.subr.mxu0 0.0
    %2917 = vmatpush1.msra.mxu0 0.0
    %2918 = vmatprep.subr.mxu0 0.0
    %2919 = vmatpush1.msra.mxu0 0.0
    %2920 = vmatprep.subr.mxu0 0.0
    %2921 = vmatpush1.msra.mxu0 0.0
    %2922 = vmatprep.subr.mxu0 0.0
    %2923 = vmatpush1.msra.mxu0 0.0
    %2924 = vmatprep.subr.mxu0 0.0
    %2925 = vmatpush1.msra.mxu0 0.0
    %2926 = vmatprep.mubr.f32.mxu0 0.0
    %2927 = vmatmul.mubr.f32.gmra.mrb[0].mxu0 %v2851
    %v2928 = vpop.f32.mrb[0].mxu0
    %v2929 = vadd.f32 0.0, %v2928
    %v2930 = vpop.f32.mrb[0].mxu0
    %2931 = vmatprep.mubr.f32.mxu0 0.0
    %2932 = vmatmul.mubr.f32.gmra.mrb[0].mxu0 %v2854
    %v2933 = vpop.f32.mrb[0].mxu0
    %v2934 = vadd.f32 0.0, %v2933
    %v2935 = vpop.f32.mrb[0].mxu0
    %2936 = vmatprep.mubr.f32.mxu0 0.0
    %2937 = vmatmul.mubr.f32.gmra.mrb[0].mxu0 %v2857
    %v2938 = vpop.f32.mrb[0].mxu0
    %v2939 = vadd.f32 0.0, %v2938
    %v2940 = vpop.f32.mrb[0].mxu0
    %2941 = vmatprep.mubr.f32.mxu0 0.0
    %2942 = vmatmul.mubr.f32.gmra.mrb[0].mxu0 %v2860
    %v2943 = vpop.f32.mrb[0].mxu0
    %v2944 = vadd.f32 0.0, %v2943
    %v2945 = vpop.f32.mrb[0].mxu0
    %2946 = vdwg.mxu0
    %v2947 = vlaneseq
    %v2948 = vshrl.u32 %v2947, 7
    %v2949 = vsub.s32 3, %v2948
    %v2950 = vrot.slane %v2097, %v2949
    %v2952 = vsel %vm571, %v2832, 0
    %v2955 = vsel %vm571, %v2837, 0
    %v2958 = vsel %vm571, %v2842, 0
    %v2961 = vsel %vm571, %v2847, 0
    %v2964 = vsel %vm571, %v2929, 0
    %v2967 = vsel %vm571, %v2934, 0
    %v2970 = vsel %vm571, %v2939, 0
    %v2973 = vsel %vm571, %v2944, 0
    %2975 = vmatprep.subr.mxu0 0.0
    %2976 = vmatpush1.msra.mxu0 %v2092
    %2977 = vmatprep.subr.mxu0 0.0
    %2978 = vmatpush1.msra.mxu0 %v2093
    %2979 = vmatprep.subr.mxu0 0.0
    %2980 = vmatpush1.msra.mxu0 %v2094
    %2981 = vmatprep.subr.mxu0 0.0
    %2982 = vmatpush1.msra.mxu0 %v2095
    %2983 = vmatprep.subr.mxu0 0.0
    %2984 = vmatpush1.msra.mxu0 0.0
    %2985 = vmatprep.subr.mxu0 0.0
    %2986 = vmatpush1.msra.mxu0 0.0
    %2987 = vmatprep.subr.mxu0 0.0
    %2988 = vmatpush1.msra.mxu0 0.0
    %2989 = vmatprep.subr.mxu0 0.0
    %2990 = vmatpush1.msra.mxu0 0.0
    %2991 = vmatprep.subr.mxu0 0.0
    %2992 = vmatpush1.msra.mxu0 0.0
    %2993 = vmatprep.subr.mxu0 0.0
    %2994 = vmatpush1.msra.mxu0 0.0
    %2995 = vmatprep.subr.mxu0 0.0
    %2996 = vmatpush1.msra.mxu0 0.0
    %2997 = vmatprep.subr.mxu0 0.0
    %2998 = vmatpush1.msra.mxu0 0.0
    %2999 = vmatprep.subr.mxu0 0.0
    %3000 = vmatpush1.msra.mxu0 0.0
    %3001 = vmatprep.subr.mxu0 0.0
    %3002 = vmatpush1.msra.mxu0 0.0
    %3003 = vmatprep.subr.mxu0 0.0
    %3004 = vmatpush1.msra.mxu0 0.0
    %3005 = vmatprep.subr.mxu0 0.0
    %3006 = vmatpush1.msra.mxu0 0.0
    %3007 = vmatprep.subr.mxu0 0.0
    %3008 = vmatpush1.msra.mxu0 0.0
    %3009 = vmatprep.subr.mxu0 0.0
    %3010 = vmatpush1.msra.mxu0 0.0
    %3011 = vmatprep.subr.mxu0 0.0
    %3012 = vmatpush1.msra.mxu0 0.0
    %3013 = vmatprep.subr.mxu0 0.0
    %3014 = vmatpush1.msra.mxu0 0.0
    %3015 = vmatprep.subr.mxu0 0.0
    %3016 = vmatpush1.msra.mxu0 0.0
    %3017 = vmatprep.subr.mxu0 0.0
    %3018 = vmatpush1.msra.mxu0 0.0
    %3019 = vmatprep.subr.mxu0 0.0
    %3020 = vmatpush1.msra.mxu0 0.0
    %3021 = vmatprep.subr.mxu0 0.0
    %3022 = vmatpush1.msra.mxu0 0.0
    %3023 = vmatprep.subr.mxu0 0.0
    %3024 = vmatpush1.msra.mxu0 0.0
    %3025 = vmatprep.subr.mxu0 0.0
    %3026 = vmatpush1.msra.mxu0 0.0
    %3027 = vmatprep.subr.mxu0 0.0
    %3028 = vmatpush1.msra.mxu0 0.0
    %3029 = vmatprep.subr.mxu0 0.0
    %3030 = vmatpush1.msra.mxu0 0.0
    %3031 = vmatprep.subr.mxu0 0.0
    %3032 = vmatpush1.msra.mxu0 0.0
    %3033 = vmatprep.subr.mxu0 0.0
    %3034 = vmatpush1.msra.mxu0 0.0
    %3035 = vmatprep.subr.mxu0 0.0
    %3036 = vmatpush1.msra.mxu0 0.0
    %3037 = vmatprep.subr.mxu0 0.0
    %3038 = vmatpush1.msra.mxu0 0.0
    %3039 = vmatprep.mubr.f32.mxu0 0.0
    %3040 = vmatmul.mubr.f32.gmra.mrb[0].mxu0 %v2952
    %v3041 = vpop.f32.mrb[0].mxu0
    %v3042 = vadd.f32 %v2950, %v3041
    %v3043 = vpop.f32.mrb[0].mxu0
    %3044 = vmatprep.mubr.f32.mxu0 0.0
    %3045 = vmatmul.mubr.f32.gmra.mrb[0].mxu0 %v2955
    %v3046 = vpop.f32.mrb[0].mxu0
    %v3047 = vadd.f32 %v2950, %v3046
    %v3048 = vpop.f32.mrb[0].mxu0
    %3049 = vmatprep.mubr.f32.mxu0 0.0
    %3050 = vmatmul.mubr.f32.gmra.mrb[0].mxu0 %v2958
    %v3051 = vpop.f32.mrb[0].mxu0
    %v3052 = vadd.f32 %v2950, %v3051
    %v3053 = vpop.f32.mrb[0].mxu0
    %3054 = vmatprep.mubr.f32.mxu0 0.0
    %3055 = vmatmul.mubr.f32.gmra.mrb[0].mxu0 %v2961
    %v3056 = vpop.f32.mrb[0].mxu0
    %v3057 = vadd.f32 %v2950, %v3056
    %v3058 = vpop.f32.mrb[0].mxu0
    %3059 = vmatprep.mubr.f32.mxu0 0.0
    %3060 = vmatmul.mubr.f32.gmra.mrb[0].mxu0 %v2964
    %v3061 = vpop.f32.mrb[0].mxu0
    %v3062 = vadd.f32 %v2950, %v3061
    %v3063 = vpop.f32.mrb[0].mxu0
    %3064 = vmatprep.mubr.f32.mxu0 0.0
    %3065 = vmatmul.mubr.f32.gmra.mrb[0].mxu0 %v2967
    %v3066 = vpop.f32.mrb[0].mxu0
    %v3067 = vadd.f32 %v2950, %v3066
    %v3068 = vpop.f32.mrb[0].mxu0
    %3069 = vmatprep.mubr.f32.mxu0 0.0
    %3070 = vmatmul.mubr.f32.gmra.mrb[0].mxu0 %v2970
    %v3071 = vpop.f32.mrb[0].mxu0
    %v3072 = vadd.f32 %v2950, %v3071
    %v3073 = vpop.f32.mrb[0].mxu0
    %3074 = vmatprep.mubr.f32.mxu0 0.0
    %3075 = vmatmul.mubr.f32.gmra.mrb[0].mxu0 %v2973
    %v3076 = vpop.f32.mrb[0].mxu0
    %v3077 = vadd.f32 %v2950, %v3076
    %v3078 = vpop.f32.mrb[0].mxu0
    %3079 = vdwg.mxu0
    %v3080 = vadd.f32 %v2068, %v3042
    %v3081 = vadd.f32 %v2069, %v3047
    %v3082 = vadd.f32 %v2070, %v3052
    %v3083 = vadd.f32 %v2071, %v3057
    %v3084 = vadd.f32 %v2072, %v3062
    %v3085 = vadd.f32 %v2073, %v3067
    %v3086 = vadd.f32 %v2074, %v3072
    %v3087 = vadd.f32 %v2075, %v3077
    %v3088 = vsel %vm571, %v3080, 0.0
    %3089 = vadd.xlane.f32.xlu0 %v3088
    %v3090 = vpop.xlane.xlu0 %3089
    %v3091 = vsel %vm571, %v3081, 0.0
    %3092 = vadd.xlane.f32.xlu0 %v3091
    %v3093 = vpop.xlane.xlu0 %3092
    %v3094 = vsel %vm571, %v3082, 0.0
    %3095 = vadd.xlane.f32.xlu0 %v3094
    %v3096 = vpop.xlane.xlu0 %3095
    %v3097 = vsel %vm571, %v3083, 0.0
    %3098 = vadd.xlane.f32.xlu0 %v3097
    %v3099 = vpop.xlane.xlu0 %3098
    %v3100 = vsel %vm571, %v3084, 0.0
    %3101 = vadd.xlane.f32.xlu0 %v3100
    %v3102 = vpop.xlane.xlu0 %3101
    %v3103 = vsel %vm571, %v3085, 0.0
    %3104 = vadd.xlane.f32.xlu0 %v3103
    %v3105 = vpop.xlane.xlu0 %3104
    %v3106 = vsel %vm571, %v3086, 0.0
    %3107 = vadd.xlane.f32.xlu0 %v3106
    %v3108 = vpop.xlane.xlu0 %3107
    %v3109 = vsel %vm571, %v3087, 0.0
    %3110 = vadd.xlane.f32.xlu0 %v3109
    %v3111 = vpop.xlane.xlu0 %3110
    %v3112 = vmul.f32 %v3090, %v1566
    %v3113 = vmul.f32 %v3093, %v1566
    %v3114 = vmul.f32 %v3096, %v1566
    %v3115 = vmul.f32 %v3099, %v1566
    %v3116 = vmul.f32 %v3102, %v1566
    %v3117 = vmul.f32 %v3105, %v1566
    %v3118 = vmul.f32 %v3108, %v1566
    %v3119 = vmul.f32 %v3111, %v1566
    %v3120 = vsub.f32 %v3080, %v3112
    %v3121 = vsub.f32 %v3081, %v3113
    %v3122 = vsub.f32 %v3082, %v3114
    %v3123 = vsub.f32 %v3083, %v3115
    %v3124 = vsub.f32 %v3084, %v3116
    %v3125 = vsub.f32 %v3085, %v3117
    %v3126 = vsub.f32 %v3086, %v3118
    %v3127 = vsub.f32 %v3087, %v3119
    %v3128 = vmul.f32 %v3120, %v3120
    %v3129 = vmul.f32 %v3121, %v3121
    %v3130 = vmul.f32 %v3122, %v3122
    %v3131 = vmul.f32 %v3123, %v3123
    %v3132 = vmul.f32 %v3124, %v3124
    %v3133 = vmul.f32 %v3125, %v3125
    %v3134 = vmul.f32 %v3126, %v3126
    %v3135 = vmul.f32 %v3127, %v3127
    %v3136 = vsel %vm571, %v3128, 0.0
    %3137 = vadd.xlane.f32.xlu0 %v3136
    %v3138 = vpop.xlane.xlu0 %3137
    %v3139 = vsel %vm571, %v3129, 0.0
    %3140 = vadd.xlane.f32.xlu0 %v3139
    %v3141 = vpop.xlane.xlu0 %3140
    %v3142 = vsel %vm571, %v3130, 0.0
    %3143 = vadd.xlane.f32.xlu0 %v3142
    %v3144 = vpop.xlane.xlu0 %3143
    %v3145 = vsel %vm571, %v3131, 0.0
    %3146 = vadd.xlane.f32.xlu0 %v3145
    %v3147 = vpop.xlane.xlu0 %3146
    %v3148 = vsel %vm571, %v3132, 0.0
    %3149 = vadd.xlane.f32.xlu0 %v3148
    %v3150 = vpop.xlane.xlu0 %3149
    %v3151 = vsel %vm571, %v3133, 0.0
    %3152 = vadd.xlane.f32.xlu0 %v3151
    %v3153 = vpop.xlane.xlu0 %3152
    %v3154 = vsel %vm571, %v3134, 0.0
    %3155 = vadd.xlane.f32.xlu0 %v3154
    %v3156 = vpop.xlane.xlu0 %3155
    %v3157 = vsel %vm571, %v3135, 0.0
    %3158 = vadd.xlane.f32.xlu0 %v3157
    %v3159 = vpop.xlane.xlu0 %3158
    %v3160 = vmul.f32 %v3138, %v1566
    %v3161 = vmul.f32 %v3141, %v1566
    %v3162 = vmul.f32 %v3144, %v1566
    %v3163 = vmul.f32 %v3147, %v1566
    %v3164 = vmul.f32 %v3150, %v1566
    %v3165 = vmul.f32 %v3153, %v1566
    %v3166 = vmul.f32 %v3156, %v1566
    %v3167 = vmul.f32 %v3159, %v1566
    %v3168 = vadd.f32 %v3160, 1e-05
    %v3169 = vadd.f32 %v3161, 1e-05
    %v3170 = vadd.f32 %v3162, 1e-05
    %v3171 = vadd.f32 %v3163, 1e-05
    %v3172 = vadd.f32 %v3164, 1e-05
    %v3173 = vadd.f32 %v3165, 1e-05
    %v3174 = vadd.f32 %v3166, 1e-05
    %v3175 = vadd.f32 %v3167, 1e-05
    %v3176 = vrsqrt.pop %v3168
    %v3177 = vrsqrt.pop %v3169
    %v3178 = vrsqrt.pop %v3170
    %v3179 = vrsqrt.pop %v3171
    %v3180 = vrsqrt.pop %v3172
    %v3181 = vrsqrt.pop %v3173
    %v3182 = vrsqrt.pop %v3174
    %v3183 = vrsqrt.pop %v3175
    %v3184 = vmul.f32 %v3120, %v3176
    %v3185 = vmul.f32 %v3121, %v3177
    %v3186 = vmul.f32 %v3122, %v3178
    %v3187 = vmul.f32 %v3123, %v3179
    %v3188 = vmul.f32 %v3124, %v3180
    %v3189 = vmul.f32 %v3125, %v3181
    %v3190 = vmul.f32 %v3126, %v3182
    %v3191 = vmul.f32 %v3127, %v3183
    %v3192 = vlaneseq
    %v3193 = vshrl.u32 %v3192, 7
    %v3194 = vsub.s32 5, %v3193
    %v3195 = vrot.slane %v2097, %v3194
    %v3196 = vmul.f32 %v3184, %v3195
    %v3197 = vmul.f32 %v3185, %v3195
    %v3198 = vmul.f32 %v3186, %v3195
    %v3199 = vmul.f32 %v3187, %v3195
    %v3200 = vmul.f32 %v3188, %v3195
    %v3201 = vmul.f32 %v3189, %v3195
    %v3202 = vmul.f32 %v3190, %v3195
    %v3203 = vmul.f32 %v3191, %v3195
    %v3204 = vlaneseq
    %v3205 = vshrl.u32 %v3204, 7
    %v3206 = vsub.s32 6, %v3205
    %v3207 = vrot.slane %v2097, %v3206
    %v3208 = vadd.f32 %v3196, %v3207
    %v3209 = vadd.f32 %v3197, %v3207
    %v3210 = vadd.f32 %v3198, %v3207
    %v3211 = vadd.f32 %v3199, %v3207
    %v3212 = vadd.f32 %v3200, %v3207
    %v3213 = vadd.f32 %v3201, %v3207
    %v3214 = vadd.f32 %v3202, %v3207
    %v3215 = vadd.f32 %v3203, %v3207
    %v3217 = vlaneseq
    %v3218 = vshrl.u32 %v3217, 7
    %v3219 = vsub.s32 0, %v3218
    %v3220 = vrot.slane %v2104, %v3219
    %v3223 = vsel %vm571, %v3208, 0
    %v3226 = vsel %vm571, %v3209, 0
    %v3229 = vsel %vm571, %v3210, 0
    %v3232 = vsel %vm571, %v3211, 0
    %v3235 = vsel %vm571, %v3212, 0
    %v3238 = vsel %vm571, %v3213, 0
    %v3241 = vsel %vm571, %v3214, 0
    %v3244 = vsel %vm571, %v3215, 0
    %3246 = vmatprep.subr.mxu0 0.0
    %3247 = vmatpush1.msra.mxu0 %v2099
    %3248 = vmatprep.subr.mxu0 0.0
    %3249 = vmatpush1.msra.mxu0 %v2100
    %3250 = vmatprep.subr.mxu0 0.0
    %3251 = vmatpush1.msra.mxu0 %v2101
    %3252 = vmatprep.subr.mxu0 0.0
    %3253 = vmatpush1.msra.mxu0 %v2102
    %3254 = vmatprep.subr.mxu0 0.0
    %3255 = vmatpush1.msra.mxu0 0.0
    %3256 = vmatprep.subr.mxu0 0.0
    %3257 = vmatpush1.msra.mxu0 0.0
    %3258 = vmatprep.subr.mxu0 0.0
    %3259 = vmatpush1.msra.mxu0 0.0
    %3260 = vmatprep.subr.mxu0 0.0
    %3261 = vmatpush1.msra.mxu0 0.0
    %3262 = vmatprep.subr.mxu0 0.0
    %3263 = vmatpush1.msra.mxu0 0.0
    %3264 = vmatprep.subr.mxu0 0.0
    %3265 = vmatpush1.msra.mxu0 0.0
    %3266 = vmatprep.subr.mxu0 0.0
    %3267 = vmatpush1.msra.mxu0 0.0
    %3268 = vmatprep.subr.mxu0 0.0
    %3269 = vmatpush1.msra.mxu0 0.0
    %3270 = vmatprep.subr.mxu0 0.0
    %3271 = vmatpush1.msra.mxu0 0.0
    %3272 = vmatprep.subr.mxu0 0.0
    %3273 = vmatpush1.msra.mxu0 0.0
    %3274 = vmatprep.subr.mxu0 0.0
    %3275 = vmatpush1.msra.mxu0 0.0
    %3276 = vmatprep.subr.mxu0 0.0
    %3277 = vmatpush1.msra.mxu0 0.0
    %3278 = vmatprep.subr.mxu0 0.0
    %3279 = vmatpush1.msra.mxu0 0.0
    %3280 = vmatprep.subr.mxu0 0.0
    %3281 = vmatpush1.msra.mxu0 0.0
    %3282 = vmatprep.subr.mxu0 0.0
    %3283 = vmatpush1.msra.mxu0 0.0
    %3284 = vmatprep.subr.mxu0 0.0
    %3285 = vmatpush1.msra.mxu0 0.0
    %3286 = vmatprep.subr.mxu0 0.0
    %3287 = vmatpush1.msra.mxu0 0.0
    %3288 = vmatprep.subr.mxu0 0.0
    %3289 = vmatpush1.msra.mxu0 0.0
    %3290 = vmatprep.subr.mxu0 0.0
    %3291 = vmatpush1.msra.mxu0 0.0
    %3292 = vmatprep.subr.mxu0 0.0
    %3293 = vmatpush1.msra.mxu0 0.0
    %3294 = vmatprep.subr.mxu0 0.0
    %3295 = vmatpush1.msra.mxu0 0.0
    %3296 = vmatprep.subr.mxu0 0.0
    %3297 = vmatpush1.msra.mxu0 0.0
    %3298 = vmatprep.subr.mxu0 0.0
    %3299 = vmatpush1.msra.mxu0 0.0
    %3300 = vmatprep.subr.mxu0 0.0
    %3301 = vmatpush1.msra.mxu0 0.0
    %3302 = vmatprep.subr.mxu0 0.0
    %3303 = vmatpush1.msra.mxu0 0.0
    %3304 = vmatprep.subr.mxu0 0.0
    %3305 = vmatpush1.msra.mxu0 0.0
    %3306 = vmatprep.subr.mxu0 0.0
    %3307 = vmatpush1.msra.mxu0 0.0
    %3308 = vmatprep.subr.mxu0 0.0
    %3309 = vmatpush1.msra.mxu0 0.0
    %3310 = vmatprep.mubr.f32.mxu0 0.0
    %3311 = vmatmul.mubr.f32.gmra.mrb[0].mxu0 %v3223
    %v3312 = vpop.f32.mrb[0].mxu0
    %v3313 = vadd.f32 %v3220, %v3312
    %v3314 = vpop.f32.mrb[0].mxu0
    %3315 = vmatprep.mubr.f32.mxu0 0.0
    %3316 = vmatmul.mubr.f32.gmra.mrb[0].mxu0 %v3226
    %v3317 = vpop.f32.mrb[0].mxu0
    %v3318 = vadd.f32 %v3220, %v3317
    %v3319 = vpop.f32.mrb[0].mxu0
    %3320 = vmatprep.mubr.f32.mxu0 0.0
    %3321 = vmatmul.mubr.f32.gmra.mrb[0].mxu0 %v3229
    %v3322 = vpop.f32.mrb[0].mxu0
    %v3323 = vadd.f32 %v3220, %v3322
    %v3324 = vpop.f32.mrb[0].mxu0
    %3325 = vmatprep.mubr.f32.mxu0 0.0
    %3326 = vmatmul.mubr.f32.gmra.mrb[0].mxu0 %v3232
    %v3327 = vpop.f32.mrb[0].mxu0
    %v3328 = vadd.f32 %v3220, %v3327
    %v3329 = vpop.f32.mrb[0].mxu0
    %3330 = vmatprep.mubr.f32.mxu0 0.0
    %3331 = vmatmul.mubr.f32.gmra.mrb[0].mxu0 %v3235
    %v3332 = vpop.f32.mrb[0].mxu0
    %v3333 = vadd.f32 %v3220, %v3332
    %v3334 = vpop.f32.mrb[0].mxu0
    %3335 = vmatprep.mubr.f32.mxu0 0.0
    %3336 = vmatmul.mubr.f32.gmra.mrb[0].mxu0 %v3238
    %v3337 = vpop.f32.mrb[0].mxu0
    %v3338 = vadd.f32 %v3220, %v3337
    %v3339 = vpop.f32.mrb[0].mxu0
    %3340 = vmatprep.mubr.f32.mxu0 0.0
    %3341 = vmatmul.mubr.f32.gmra.mrb[0].mxu0 %v3241
    %v3342 = vpop.f32.mrb[0].mxu0
    %v3343 = vadd.f32 %v3220, %v3342
    %v3344 = vpop.f32.mrb[0].mxu0
    %3345 = vmatprep.mubr.f32.mxu0 0.0
    %3346 = vmatmul.mubr.f32.gmra.mrb[0].mxu0 %v3244
    %v3347 = vpop.f32.mrb[0].mxu0
    %v3348 = vadd.f32 %v3220, %v3347
    %v3349 = vpop.f32.mrb[0].mxu0
    %3350 = vdwg.mxu0
    %v3351 = vmax.f32 %v3313, 0.0
    %v3352 = vmax.f32 %v3318, 0.0
    %v3353 = vmax.f32 %v3323, 0.0
    %v3354 = vmax.f32 %v3328, 0.0
    %v3355 = vmax.f32 %v3333, 0.0
    %v3356 = vmax.f32 %v3338, 0.0
    %v3357 = vmax.f32 %v3343, 0.0
    %v3358 = vmax.f32 %v3348, 0.0
    %v3359 = vlaneseq
    %v3360 = vshrl.u32 %v3359, 7
    %v3361 = vsub.s32 4, %v3360
    %v3362 = vrot.slane %v2097, %v3361
    %v3364 = vsel %vm1818, %v3351, 0
    %v3367 = vsel %vm1818, %v3352, 0
    %v3370 = vsel %vm1818, %v3353, 0
    %v3373 = vsel %vm1818, %v3354, 0
    %v3376 = vsel %vm1818, %v3355, 0
    %v3379 = vsel %vm1818, %v3356, 0
    %v3382 = vsel %vm1818, %v3357, 0
    %v3385 = vsel %vm1818, %v3358, 0
    %3387 = vmatprep.subr.mxu0 0.0
    %3388 = vmatpush1.msra.mxu0 %v2106
    %3389 = vmatprep.subr.mxu0 0.0
    %3390 = vmatpush1.msra.mxu0 %v2107
    %3391 = vmatprep.subr.mxu0 0.0
    %3392 = vmatpush1.msra.mxu0 %v2108
    %3393 = vmatprep.subr.mxu0 0.0
    %3394 = vmatpush1.msra.mxu0 %v2109
    %3395 = vmatprep.subr.mxu0 0.0
    %3396 = vmatpush1.msra.mxu0 %v2110
    %3397 = vmatprep.subr.mxu0 0.0
    %3398 = vmatpush1.msra.mxu0 %v2111
    %3399 = vmatprep.subr.mxu0 0.0
    %3400 = vmatpush1.msra.mxu0 %v2112
    %3401 = vmatprep.subr.mxu0 0.0
    %3402 = vmatpush1.msra.mxu0 %v2113
    %3403 = vmatprep.subr.mxu0 0.0
    %3404 = vmatpush1.msra.mxu0 0.0
    %3405 = vmatprep.subr.mxu0 0.0
    %3406 = vmatpush1.msra.mxu0 0.0
    %3407 = vmatprep.subr.mxu0 0.0
    %3408 = vmatpush1.msra.mxu0 0.0
    %3409 = vmatprep.subr.mxu0 0.0
    %3410 = vmatpush1.msra.mxu0 0.0
    %3411 = vmatprep.subr.mxu0 0.0
    %3412 = vmatpush1.msra.mxu0 0.0
    %3413 = vmatprep.subr.mxu0 0.0
    %3414 = vmatpush1.msra.mxu0 0.0
    %3415 = vmatprep.subr.mxu0 0.0
    %3416 = vmatpush1.msra.mxu0 0.0
    %3417 = vmatprep.subr.mxu0 0.0
    %3418 = vmatpush1.msra.mxu0 0.0
    %3419 = vmatprep.subr.mxu0 0.0
    %3420 = vmatpush1.msra.mxu0 0.0
    %3421 = vmatprep.subr.mxu0 0.0
    %3422 = vmatpush1.msra.mxu0 0.0
    %3423 = vmatprep.subr.mxu0 0.0
    %3424 = vmatpush1.msra.mxu0 0.0
    %3425 = vmatprep.subr.mxu0 0.0
    %3426 = vmatpush1.msra.mxu0 0.0
    %3427 = vmatprep.subr.mxu0 0.0
    %3428 = vmatpush1.msra.mxu0 0.0
    %3429 = vmatprep.subr.mxu0 0.0
    %3430 = vmatpush1.msra.mxu0 0.0
    %3431 = vmatprep.subr.mxu0 0.0
    %3432 = vmatpush1.msra.mxu0 0.0
    %3433 = vmatprep.subr.mxu0 0.0
    %3434 = vmatpush1.msra.mxu0 0.0
    %3435 = vmatprep.subr.mxu0 0.0
    %3436 = vmatpush1.msra.mxu0 0.0
    %3437 = vmatprep.subr.mxu0 0.0
    %3438 = vmatpush1.msra.mxu0 0.0
    %3439 = vmatprep.subr.mxu0 0.0
    %3440 = vmatpush1.msra.mxu0 0.0
    %3441 = vmatprep.subr.mxu0 0.0
    %3442 = vmatpush1.msra.mxu0 0.0
    %3443 = vmatprep.subr.mxu0 0.0
    %3444 = vmatpush1.msra.mxu0 0.0
    %3445 = vmatprep.subr.mxu0 0.0
    %3446 = vmatpush1.msra.mxu0 0.0
    %3447 = vmatprep.subr.mxu0 0.0
    %3448 = vmatpush1.msra.mxu0 0.0
    %3449 = vmatprep.subr.mxu0 0.0
    %3450 = vmatpush1.msra.mxu0 0.0
    %3451 = vmatprep.mubr.f32.mxu0 0.0
    %3452 = vmatmul.mubr.f32.gmra.mrb[0].mxu0 %v3364
    %v3453 = vpop.f32.mrb[0].mxu0
    %v3454 = vadd.f32 %v3362, %v3453
    %v3455 = vpop.f32.mrb[0].mxu0
    %3456 = vmatprep.mubr.f32.mxu0 0.0
    %3457 = vmatmul.mubr.f32.gmra.mrb[0].mxu0 %v3367
    %v3458 = vpop.f32.mrb[0].mxu0
    %v3459 = vadd.f32 %v3362, %v3458
    %v3460 = vpop.f32.mrb[0].mxu0
    %3461 = vmatprep.mubr.f32.mxu0 0.0
    %3462 = vmatmul.mubr.f32.gmra.mrb[0].mxu0 %v3370
    %v3463 = vpop.f32.mrb[0].mxu0
    %v3464 = vadd.f32 %v3362, %v3463
    %v3465 = vpop.f32.mrb[0].mxu0
    %3466 = vmatprep.mubr.f32.mxu0 0.0
    %3467 = vmatmul.mubr.f32.gmra.mrb[0].mxu0 %v3373
    %v3468 = vpop.f32.mrb[0].mxu0
    %v3469 = vadd.f32 %v3362, %v3468
    %v3470 = vpop.f32.mrb[0].mxu0
    %3471 = vmatprep.mubr.f32.mxu0 0.0
    %3472 = vmatmul.mubr.f32.gmra.mrb[0].mxu0 %v3376
    %v3473 = vpop.f32.mrb[0].mxu0
    %v3474 = vadd.f32 %v3362, %v3473
    %v3475 = vpop.f32.mrb[0].mxu0
    %3476 = vmatprep.mubr.f32.mxu0 0.0
    %3477 = vmatmul.mubr.f32.gmra.mrb[0].mxu0 %v3379
    %v3478 = vpop.f32.mrb[0].mxu0
    %v3479 = vadd.f32 %v3362, %v3478
    %v3480 = vpop.f32.mrb[0].mxu0
    %3481 = vmatprep.mubr.f32.mxu0 0.0
    %3482 = vmatmul.mubr.f32.gmra.mrb[0].mxu0 %v3382
    %v3483 = vpop.f32.mrb[0].mxu0
    %v3484 = vadd.f32 %v3362, %v3483
    %v3485 = vpop.f32.mrb[0].mxu0
    %3486 = vmatprep.mubr.f32.mxu0 0.0
    %3487 = vmatmul.mubr.f32.gmra.mrb[0].mxu0 %v3385
    %v3488 = vpop.f32.mrb[0].mxu0
    %v3489 = vadd.f32 %v3362, %v3488
    %v3490 = vpop.f32.mrb[0].mxu0
    %3491 = vdwg.mxu0
    %v3492 = vadd.f32 %v3208, %v3454
    %v3493 = vadd.f32 %v3209, %v3459
    %v3494 = vadd.f32 %v3210, %v3464
    %v3495 = vadd.f32 %v3211, %v3469
    %v3496 = vadd.f32 %v3212, %v3474
    %v3497 = vadd.f32 %v3213, %v3479
    %v3498 = vadd.f32 %v3214, %v3484
    %v3499 = vadd.f32 %v3215, %v3489
    %v3500 = vsel %vm571, %v3492, 0.0
    %3501 = vadd.xlane.f32.xlu0 %v3500
    %v3502 = vpop.xlane.xlu0 %3501
    %v3503 = vsel %vm571, %v3493, 0.0
    %3504 = vadd.xlane.f32.xlu0 %v3503
    %v3505 = vpop.xlane.xlu0 %3504
    %v3506 = vsel %vm571, %v3494, 0.0
    %3507 = vadd.xlane.f32.xlu0 %v3506
    %v3508 = vpop.xlane.xlu0 %3507
    %v3509 = vsel %vm571, %v3495, 0.0
    %3510 = vadd.xlane.f32.xlu0 %v3509
    %v3511 = vpop.xlane.xlu0 %3510
    %v3512 = vsel %vm571, %v3496, 0.0
    %3513 = vadd.xlane.f32.xlu0 %v3512
    %v3514 = vpop.xlane.xlu0 %3513
    %v3515 = vsel %vm571, %v3497, 0.0
    %3516 = vadd.xlane.f32.xlu0 %v3515
    %v3517 = vpop.xlane.xlu0 %3516
    %v3518 = vsel %vm571, %v3498, 0.0
    %3519 = vadd.xlane.f32.xlu0 %v3518
    %v3520 = vpop.xlane.xlu0 %3519
    %v3521 = vsel %vm571, %v3499, 0.0
    %3522 = vadd.xlane.f32.xlu0 %v3521
    %v3523 = vpop.xlane.xlu0 %3522
    %v3524 = vmul.f32 %v3502, %v1566
    %v3525 = vmul.f32 %v3505, %v1566
    %v3526 = vmul.f32 %v3508, %v1566
    %v3527 = vmul.f32 %v3511, %v1566
    %v3528 = vmul.f32 %v3514, %v1566
    %v3529 = vmul.f32 %v3517, %v1566
    %v3530 = vmul.f32 %v3520, %v1566
    %v3531 = vmul.f32 %v3523, %v1566
    %v3532 = vsub.f32 %v3492, %v3524
    %v3533 = vsub.f32 %v3493, %v3525
    %v3534 = vsub.f32 %v3494, %v3526
    %v3535 = vsub.f32 %v3495, %v3527
    %v3536 = vsub.f32 %v3496, %v3528
    %v3537 = vsub.f32 %v3497, %v3529
    %v3538 = vsub.f32 %v3498, %v3530
    %v3539 = vsub.f32 %v3499, %v3531
    %v3540 = vmul.f32 %v3532, %v3532
    %v3541 = vmul.f32 %v3533, %v3533
    %v3542 = vmul.f32 %v3534, %v3534
    %v3543 = vmul.f32 %v3535, %v3535
    %v3544 = vmul.f32 %v3536, %v3536
    %v3545 = vmul.f32 %v3537, %v3537
    %v3546 = vmul.f32 %v3538, %v3538
    %v3547 = vmul.f32 %v3539, %v3539
    %v3548 = vsel %vm571, %v3540, 0.0
    %3549 = vadd.xlane.f32.xlu0 %v3548
    %v3550 = vpop.xlane.xlu0 %3549
    %v3551 = vsel %vm571, %v3541, 0.0
    %3552 = vadd.xlane.f32.xlu0 %v3551
    %v3553 = vpop.xlane.xlu0 %3552
    %v3554 = vsel %vm571, %v3542, 0.0
    %3555 = vadd.xlane.f32.xlu0 %v3554
    %v3556 = vpop.xlane.xlu0 %3555
    %v3557 = vsel %vm571, %v3543, 0.0
    %3558 = vadd.xlane.f32.xlu0 %v3557
    %v3559 = vpop.xlane.xlu0 %3558
    %v3560 = vsel %vm571, %v3544, 0.0
    %3561 = vadd.xlane.f32.xlu0 %v3560
    %v3562 = vpop.xlane.xlu0 %3561
    %v3563 = vsel %vm571, %v3545, 0.0
    %3564 = vadd.xlane.f32.xlu0 %v3563
    %v3565 = vpop.xlane.xlu0 %3564
    %v3566 = vsel %vm571, %v3546, 0.0
    %3567 = vadd.xlane.f32.xlu0 %v3566
    %v3568 = vpop.xlane.xlu0 %3567
    %v3569 = vsel %vm571, %v3547, 0.0
    %3570 = vadd.xlane.f32.xlu0 %v3569
    %v3571 = vpop.xlane.xlu0 %3570
    %v3572 = vmul.f32 %v3550, %v1566
    %v3573 = vmul.f32 %v3553, %v1566
    %v3574 = vmul.f32 %v3556, %v1566
    %v3575 = vmul.f32 %v3559, %v1566
    %v3576 = vmul.f32 %v3562, %v1566
    %v3577 = vmul.f32 %v3565, %v1566
    %v3578 = vmul.f32 %v3568, %v1566
    %v3579 = vmul.f32 %v3571, %v1566
    %v3580 = vadd.f32 %v3572, 1e-05
    %v3581 = vadd.f32 %v3573, 1e-05
    %v3582 = vadd.f32 %v3574, 1e-05
    %v3583 = vadd.f32 %v3575, 1e-05
    %v3584 = vadd.f32 %v3576, 1e-05
    %v3585 = vadd.f32 %v3577, 1e-05
    %v3586 = vadd.f32 %v3578, 1e-05
    %v3587 = vadd.f32 %v3579, 1e-05
    %v3588 = vrsqrt.pop %v3580
    %v3589 = vrsqrt.pop %v3581
    %v3590 = vrsqrt.pop %v3582
    %v3591 = vrsqrt.pop %v3583
    %v3592 = vrsqrt.pop %v3584
    %v3593 = vrsqrt.pop %v3585
    %v3594 = vrsqrt.pop %v3586
    %v3595 = vrsqrt.pop %v3587
    %v3596 = vmul.f32 %v3532, %v3588
    %v3597 = vmul.f32 %v3533, %v3589
    %v3598 = vmul.f32 %v3534, %v3590
    %v3599 = vmul.f32 %v3535, %v3591
    %v3600 = vmul.f32 %v3536, %v3592
    %v3601 = vmul.f32 %v3537, %v3593
    %v3602 = vmul.f32 %v3538, %v3594
    %v3603 = vmul.f32 %v3539, %v3595
    %v3604 = vmul.f32 %v3596, %v3195
    %v3605 = vmul.f32 %v3597, %v3195
    %v3606 = vmul.f32 %v3598, %v3195
    %v3607 = vmul.f32 %v3599, %v3195
    %v3608 = vmul.f32 %v3600, %v3195
    %v3609 = vmul.f32 %v3601, %v3195
    %v3610 = vmul.f32 %v3602, %v3195
    %v3611 = vmul.f32 %v3603, %v3195
    %v3612 = vadd.f32 %v3604, %v3207
    %v3613 = vadd.f32 %v3605, %v3207
    %v3614 = vadd.f32 %v3606, %v3207
    %v3615 = vadd.f32 %v3607, %v3207
    %v3616 = vadd.f32 %v3608, %v3207
    %v3617 = vadd.f32 %v3609, %v3207
    %v3618 = vadd.f32 %v3610, %v3207
    %v3619 = vadd.f32 %v3611, %v3207
    %s3620 = scalar_lea.vmem [#allocation8], 256
    %v3621 = vld [vmem:[%s3620] sm:$0xff]
    %v3622 = vld [vmem:[%s3620 + $0x8] sm:$0xff]
    %v3623 = vld [vmem:[%s3620 + $0x10] sm:$0xff]
    %v3624 = vld [vmem:[%s3620 + $0x18] sm:$0xff]
    %s3625 = scalar_lea.vmem [#allocation8], 288
    %v3626 = vld [vmem:[%s3625] sm:$0xff]
    %v3627 = vld [vmem:[%s3625 + $0x8] sm:$0xff]
    %v3628 = vld [vmem:[%s3625 + $0x10] sm:$0xff]
    %v3629 = vld [vmem:[%s3625 + $0x18] sm:$0xff]
    %s3630 = scalar_lea.vmem [#allocation8], 320
    %v3631 = vld [vmem:[%s3630] sm:$0xff]
    %v3632 = vld [vmem:[%s3630 + $0x8] sm:$0xff]
    %v3633 = vld [vmem:[%s3630 + $0x10] sm:$0xff]
    %v3634 = vld [vmem:[%s3630 + $0x18] sm:$0xff]
    %s3635 = scalar_lea.vmem [#allocation8], 352
    %v3636 = vld [vmem:[%s3635] sm:$0xff]
    %v3637 = vld [vmem:[%s3635 + $0x8] sm:$0xff]
    %v3638 = vld [vmem:[%s3635 + $0x10] sm:$0xff]
    %v3639 = vld [vmem:[%s3635 + $0x18] sm:$0xff]
    %s3640 = scalar_lea.vmem [#allocation11], 16
    %v3641 = vld [vmem:[%s3640] sm:$0x7f]
    %s3642 = scalar_lea.vmem %s6, 64
    %v3643 = vld [vmem:[%s3642] sm:$0xff]
    %v3644 = vld [vmem:[%s3642 + $0x8] sm:$0xff]
    %v3645 = vld [vmem:[%s3642 + $0x10] sm:$0xff]
    %v3646 = vld [vmem:[%s3642 + $0x18] sm:$0xff]
    %s3647 = scalar_lea.vmem %s9, 2
    %v3648 = vld [vmem:[%s3647] sm:$0x1]
    %s3649 = scalar_lea.vmem [#allocation10], 128
    %v3650 = vld [vmem:[%s3649] sm:$0xff]
    %v3651 = vld [vmem:[%s3649 + $0x8] sm:$0xff]
    %v3652 = vld [vmem:[%s3649 + $0x10] sm:$0xff]
    %v3653 = vld [vmem:[%s3649 + $0x18] sm:$0xff]
    %v3654 = vld [vmem:[%s3649 + $0x20] sm:$0xff]
    %v3655 = vld [vmem:[%s3649 + $0x28] sm:$0xff]
    %v3656 = vld [vmem:[%s3649 + $0x30] sm:$0xff]
    %v3657 = vld [vmem:[%s3649 + $0x38] sm:$0xff]
    %v3658 = vlaneseq
    %v3659 = vshrl.u32 %v3658, 7
    %v3660 = vsub.s32 0, %v3659
    %v3661 = vrot.slane %v3641, %v3660
    %v3663 = vsel %vm571, %v496, 0
    %v3666 = vsel %vm571, %v501, 0
    %v3669 = vsel %vm571, %v506, 0
    %v3672 = vsel %vm571, %v511, 0
    %v3675 = vsel %vm571, %v516, 0
    %v3678 = vsel %vm571, %v521, 0
    %v3681 = vsel %vm571, %v526, 0
    %v3684 = vsel %vm571, %v531, 0
    %3686 = vmatprep.subr.mxu0 0.0
    %3687 = vmatpush1.msra.mxu0 %v3621
    %3688 = vmatprep.subr.mxu0 0.0
    %3689 = vmatpush1.msra.mxu0 %v3622
    %3690 = vmatprep.subr.mxu0 0.0
    %3691 = vmatpush1.msra.mxu0 %v3623
    %3692 = vmatprep.subr.mxu0 0.0
    %3693 = vmatpush1.msra.mxu0 %v3624
    %3694 = vmatprep.subr.mxu0 0.0
    %3695 = vmatpush1.msra.mxu0 0.0
    %3696 = vmatprep.subr.mxu0 0.0
    %3697 = vmatpush1.msra.mxu0 0.0
    %3698 = vmatprep.subr.mxu0 0.0
    %3699 = vmatpush1.msra.mxu0 0.0
    %3700 = vmatprep.subr.mxu0 0.0
    %3701 = vmatpush1.msra.mxu0 0.0
    %3702 = vmatprep.subr.mxu0 0.0
    %3703 = vmatpush1.msra.mxu0 0.0
    %3704 = vmatprep.subr.mxu0 0.0
    %3705 = vmatpush1.msra.mxu0 0.0
    %3706 = vmatprep.subr.mxu0 0.0
    %3707 = vmatpush1.msra.mxu0 0.0
    %3708 = vmatprep.subr.mxu0 0.0
    %3709 = vmatpush1.msra.mxu0 0.0
    %3710 = vmatprep.subr.mxu0 0.0
    %3711 = vmatpush1.msra.mxu0 0.0
    %3712 = vmatprep.subr.mxu0 0.0
    %3713 = vmatpush1.msra.mxu0 0.0
    %3714 = vmatprep.subr.mxu0 0.0
    %3715 = vmatpush1.msra.mxu0 0.0
    %3716 = vmatprep.subr.mxu0 0.0
    %3717 = vmatpush1.msra.mxu0 0.0
    %3718 = vmatprep.subr.mxu0 0.0
    %3719 = vmatpush1.msra.mxu0 0.0
    %3720 = vmatprep.subr.mxu0 0.0
    %3721 = vmatpush1.msra.mxu0 0.0
    %3722 = vmatprep.subr.mxu0 0.0
    %3723 = vmatpush1.msra.mxu0 0.0
    %3724 = vmatprep.subr.mxu0 0.0
    %3725 = vmatpush1.msra.mxu0 0.0
    %3726 = vmatprep.subr.mxu0 0.0
    %3727 = vmatpush1.msra.mxu0 0.0
    %3728 = vmatprep.subr.mxu0 0.0
    %3729 = vmatpush1.msra.mxu0 0.0
    %3730 = vmatprep.subr.mxu0 0.0
    %3731 = vmatpush1.msra.mxu0 0.0
    %3732 = vmatprep.subr.mxu0 0.0
    %3733 = vmatpush1.msra.mxu0 0.0
    %3734 = vmatprep.subr.mxu0 0.0
    %3735 = vmatpush1.msra.mxu0 0.0
    %3736 = vmatprep.subr.mxu0 0.0
    %3737 = vmatpush1.msra.mxu0 0.0
    %3738 = vmatprep.subr.mxu0 0.0
    %3739 = vmatpush1.msra.mxu0 0.0
    %3740 = vmatprep.subr.mxu0 0.0
    %3741 = vmatpush1.msra.mxu0 0.0
    %3742 = vmatprep.subr.mxu0 0.0
    %3743 = vmatpush1.msra.mxu0 0.0
    %3744 = vmatprep.subr.mxu0 0.0
    %3745 = vmatpush1.msra.mxu0 0.0
    %3746 = vmatprep.subr.mxu0 0.0
    %3747 = vmatpush1.msra.mxu0 0.0
    %3748 = vmatprep.subr.mxu0 0.0
    %3749 = vmatpush1.msra.mxu0 0.0
    %3750 = vmatprep.mubr.f32.mxu0 0.0
    %3751 = vmatmul.mubr.f32.gmra.mrb[0].mxu0 %v3663
    %v3752 = vpop.f32.mrb[0].mxu0
    %v3753 = vadd.f32 %v3661, %v3752
    %v3754 = vpop.f32.mrb[0].mxu0
    %3755 = vmatprep.mubr.f32.mxu0 0.0
    %3756 = vmatmul.mubr.f32.gmra.mrb[0].mxu0 %v3666
    %v3757 = vpop.f32.mrb[0].mxu0
    %v3758 = vadd.f32 %v3661, %v3757
    %v3759 = vpop.f32.mrb[0].mxu0
    %3760 = vmatprep.mubr.f32.mxu0 0.0
    %3761 = vmatmul.mubr.f32.gmra.mrb[0].mxu0 %v3669
    %v3762 = vpop.f32.mrb[0].mxu0
    %v3763 = vadd.f32 %v3661, %v3762
    %v3764 = vpop.f32.mrb[0].mxu0
    %3765 = vmatprep.mubr.f32.mxu0 0.0
    %3766 = vmatmul.mubr.f32.gmra.mrb[0].mxu0 %v3672
    %v3767 = vpop.f32.mrb[0].mxu0
    %v3768 = vadd.f32 %v3661, %v3767
    %v3769 = vpop.f32.mrb[0].mxu0
    %3770 = vmatprep.mubr.f32.mxu0 0.0
    %3771 = vmatmul.mubr.f32.gmra.mrb[0].mxu0 %v3675
    %v3772 = vpop.f32.mrb[0].mxu0
    %v3773 = vadd.f32 %v3661, %v3772
    %v3774 = vpop.f32.mrb[0].mxu0
    %3775 = vmatprep.mubr.f32.mxu0 0.0
    %3776 = vmatmul.mubr.f32.gmra.mrb[0].mxu0 %v3678
    %v3777 = vpop.f32.mrb[0].mxu0
    %v3778 = vadd.f32 %v3661, %v3777
    %v3779 = vpop.f32.mrb[0].mxu0
    %3780 = vmatprep.mubr.f32.mxu0 0.0
    %3781 = vmatmul.mubr.f32.gmra.mrb[0].mxu0 %v3681
    %v3782 = vpop.f32.mrb[0].mxu0
    %v3783 = vadd.f32 %v3661, %v3782
    %v3784 = vpop.f32.mrb[0].mxu0
    %3785 = vmatprep.mubr.f32.mxu0 0.0
    %3786 = vmatmul.mubr.f32.gmra.mrb[0].mxu0 %v3684
    %v3787 = vpop.f32.mrb[0].mxu0
    %v3788 = vadd.f32 %v3661, %v3787
    %v3789 = vpop.f32.mrb[0].mxu0
    %3790 = vdwg.mxu0
    %v3791 = vlaneseq
    %v3792 = vshrl.u32 %v3791, 7
    %v3793 = vsub.s32 1, %v3792
    %v3794 = vrot.slane %v3641, %v3793
    %3795 = vmatprep.subr.mxu0 0.0
    %3796 = vmatpush1.msra.mxu0 %v3626
    %3797 = vmatprep.subr.mxu0 0.0
    %3798 = vmatpush1.msra.mxu0 %v3627
    %3799 = vmatprep.subr.mxu0 0.0
    %3800 = vmatpush1.msra.mxu0 %v3628
    %3801 = vmatprep.subr.mxu0 0.0
    %3802 = vmatpush1.msra.mxu0 %v3629
    %3803 = vmatprep.subr.mxu0 0.0
    %3804 = vmatpush1.msra.mxu0 0.0
    %3805 = vmatprep.subr.mxu0 0.0
    %3806 = vmatpush1.msra.mxu0 0.0
    %3807 = vmatprep.subr.mxu0 0.0
    %3808 = vmatpush1.msra.mxu0 0.0
    %3809 = vmatprep.subr.mxu0 0.0
    %3810 = vmatpush1.msra.mxu0 0.0
    %3811 = vmatprep.subr.mxu0 0.0
    %3812 = vmatpush1.msra.mxu0 0.0
    %3813 = vmatprep.subr.mxu0 0.0
    %3814 = vmatpush1.msra.mxu0 0.0
    %3815 = vmatprep.subr.mxu0 0.0
    %3816 = vmatpush1.msra.mxu0 0.0
    %3817 = vmatprep.subr.mxu0 0.0
    %3818 = vmatpush1.msra.mxu0 0.0
    %3819 = vmatprep.subr.mxu0 0.0
    %3820 = vmatpush1.msra.mxu0 0.0
    %3821 = vmatprep.subr.mxu0 0.0
    %3822 = vmatpush1.msra.mxu0 0.0
    %3823 = vmatprep.subr.mxu0 0.0
    %3824 = vmatpush1.msra.mxu0 0.0
    %3825 = vmatprep.subr.mxu0 0.0
    %3826 = vmatpush1.msra.mxu0 0.0
    %3827 = vmatprep.subr.mxu0 0.0
    %3828 = vmatpush1.msra.mxu0 0.0
    %3829 = vmatprep.subr.mxu0 0.0
    %3830 = vmatpush1.msra.mxu0 0.0
    %3831 = vmatprep.subr.mxu0 0.0
    %3832 = vmatpush1.msra.mxu0 0.0
    %3833 = vmatprep.subr.mxu0 0.0
    %3834 = vmatpush1.msra.mxu0 0.0
    %3835 = vmatprep.subr.mxu0 0.0
    %3836 = vmatpush1.msra.mxu0 0.0
    %3837 = vmatprep.subr.mxu0 0.0
    %3838 = vmatpush1.msra.mxu0 0.0
    %3839 = vmatprep.subr.mxu0 0.0
    %3840 = vmatpush1.msra.mxu0 0.0
    %3841 = vmatprep.subr.mxu0 0.0
    %3842 = vmatpush1.msra.mxu0 0.0
    %3843 = vmatprep.subr.mxu0 0.0
    %3844 = vmatpush1.msra.mxu0 0.0
    %3845 = vmatprep.subr.mxu0 0.0
    %3846 = vmatpush1.msra.mxu0 0.0
    %3847 = vmatprep.subr.mxu0 0.0
    %3848 = vmatpush1.msra.mxu0 0.0
    %3849 = vmatprep.subr.mxu0 0.0
    %3850 = vmatpush1.msra.mxu0 0.0
    %3851 = vmatprep.subr.mxu0 0.0
    %3852 = vmatpush1.msra.mxu0 0.0
    %3853 = vmatprep.subr.mxu0 0.0
    %3854 = vmatpush1.msra.mxu0 0.0
    %3855 = vmatprep.subr.mxu0 0.0
    %3856 = vmatpush1.msra.mxu0 0.0
    %3857 = vmatprep.subr.mxu0 0.0
    %3858 = vmatpush1.msra.mxu0 0.0
    %3859 = vmatprep.mubr.f32.mxu0 0.0
    %3860 = vmatmul.mubr.f32.gmra.mrb[0].mxu0 %v3663
    %v3861 = vpop.f32.mrb[0].mxu0
    %v3862 = vadd.f32 %v3794, %v3861
    %v3863 = vpop.f32.mrb[0].mxu0
    %3864 = vmatprep.mubr.f32.mxu0 0.0
    %3865 = vmatmul.mubr.f32.gmra.mrb[0].mxu0 %v3666
    %v3866 = vpop.f32.mrb[0].mxu0
    %v3867 = vadd.f32 %v3794, %v3866
    %v3868 = vpop.f32.mrb[0].mxu0
    %3869 = vmatprep.mubr.f32.mxu0 0.0
    %3870 = vmatmul.mubr.f32.gmra.mrb[0].mxu0 %v3669
    %v3871 = vpop.f32.mrb[0].mxu0
    %v3872 = vadd.f32 %v3794, %v3871
    %v3873 = vpop.f32.mrb[0].mxu0
    %3874 = vmatprep.mubr.f32.mxu0 0.0
    %3875 = vmatmul.mubr.f32.gmra.mrb[0].mxu0 %v3672
    %v3876 = vpop.f32.mrb[0].mxu0
    %v3877 = vadd.f32 %v3794, %v3876
    %v3878 = vpop.f32.mrb[0].mxu0
    %3879 = vmatprep.mubr.f32.mxu0 0.0
    %3880 = vmatmul.mubr.f32.gmra.mrb[0].mxu0 %v3675
    %v3881 = vpop.f32.mrb[0].mxu0
    %v3882 = vadd.f32 %v3794, %v3881
    %v3883 = vpop.f32.mrb[0].mxu0
    %3884 = vmatprep.mubr.f32.mxu0 0.0
    %3885 = vmatmul.mubr.f32.gmra.mrb[0].mxu0 %v3678
    %v3886 = vpop.f32.mrb[0].mxu0
    %v3887 = vadd.f32 %v3794, %v3886
    %v3888 = vpop.f32.mrb[0].mxu0
    %3889 = vmatprep.mubr.f32.mxu0 0.0
    %3890 = vmatmul.mubr.f32.gmra.mrb[0].mxu0 %v3681
    %v3891 = vpop.f32.mrb[0].mxu0
    %v3892 = vadd.f32 %v3794, %v3891
    %v3893 = vpop.f32.mrb[0].mxu0
    %3894 = vmatprep.mubr.f32.mxu0 0.0
    %3895 = vmatmul.mubr.f32.gmra.mrb[0].mxu0 %v3684
    %v3896 = vpop.f32.mrb[0].mxu0
    %v3897 = vadd.f32 %v3794, %v3896
    %v3898 = vpop.f32.mrb[0].mxu0
    %3899 = vdwg.mxu0
    %v3900 = vlaneseq
    %v3901 = vshrl.u32 %v3900, 7
    %v3902 = vsub.s32 2, %v3901
    %v3903 = vrot.slane %v3641, %v3902
    %3904 = vmatprep.subr.mxu0 0.0
    %3905 = vmatpush1.msra.mxu0 %v3631
    %3906 = vmatprep.subr.mxu0 0.0
    %3907 = vmatpush1.msra.mxu0 %v3632
    %3908 = vmatprep.subr.mxu0 0.0
    %3909 = vmatpush1.msra.mxu0 %v3633
    %3910 = vmatprep.subr.mxu0 0.0
    %3911 = vmatpush1.msra.mxu0 %v3634
    %3912 = vmatprep.subr.mxu0 0.0
    %3913 = vmatpush1.msra.mxu0 0.0
    %3914 = vmatprep.subr.mxu0 0.0
    %3915 = vmatpush1.msra.mxu0 0.0
    %3916 = vmatprep.subr.mxu0 0.0
    %3917 = vmatpush1.msra.mxu0 0.0
    %3918 = vmatprep.subr.mxu0 0.0
    %3919 = vmatpush1.msra.mxu0 0.0
    %3920 = vmatprep.subr.mxu0 0.0
    %3921 = vmatpush1.msra.mxu0 0.0
    %3922 = vmatprep.subr.mxu0 0.0
    %3923 = vmatpush1.msra.mxu0 0.0
    %3924 = vmatprep.subr.mxu0 0.0
    %3925 = vmatpush1.msra.mxu0 0.0
    %3926 = vmatprep.subr.mxu0 0.0
    %3927 = vmatpush1.msra.mxu0 0.0
    %3928 = vmatprep.subr.mxu0 0.0
    %3929 = vmatpush1.msra.mxu0 0.0
    %3930 = vmatprep.subr.mxu0 0.0
    %3931 = vmatpush1.msra.mxu0 0.0
    %3932 = vmatprep.subr.mxu0 0.0
    %3933 = vmatpush1.msra.mxu0 0.0
    %3934 = vmatprep.subr.mxu0 0.0
    %3935 = vmatpush1.msra.mxu0 0.0
    %3936 = vmatprep.subr.mxu0 0.0
    %3937 = vmatpush1.msra.mxu0 0.0
    %3938 = vmatprep.subr.mxu0 0.0
    %3939 = vmatpush1.msra.mxu0 0.0
    %3940 = vmatprep.subr.mxu0 0.0
    %3941 = vmatpush1.msra.mxu0 0.0
    %3942 = vmatprep.subr.mxu0 0.0
    %3943 = vmatpush1.msra.mxu0 0.0
    %3944 = vmatprep.subr.mxu0 0.0
    %3945 = vmatpush1.msra.mxu0 0.0
    %3946 = vmatprep.subr.mxu0 0.0
    %3947 = vmatpush1.msra.mxu0 0.0
    %3948 = vmatprep.subr.mxu0 0.0
    %3949 = vmatpush1.msra.mxu0 0.0
    %3950 = vmatprep.subr.mxu0 0.0
    %3951 = vmatpush1.msra.mxu0 0.0
    %3952 = vmatprep.subr.mxu0 0.0
    %3953 = vmatpush1.msra.mxu0 0.0
    %3954 = vmatprep.subr.mxu0 0.0
    %3955 = vmatpush1.msra.mxu0 0.0
    %3956 = vmatprep.subr.mxu0 0.0
    %3957 = vmatpush1.msra.mxu0 0.0
    %3958 = vmatprep.subr.mxu0 0.0
    %3959 = vmatpush1.msra.mxu0 0.0
    %3960 = vmatprep.subr.mxu0 0.0
    %3961 = vmatpush1.msra.mxu0 0.0
    %3962 = vmatprep.subr.mxu0 0.0
    %3963 = vmatpush1.msra.mxu0 0.0
    %3964 = vmatprep.subr.mxu0 0.0
    %3965 = vmatpush1.msra.mxu0 0.0
    %3966 = vmatprep.subr.mxu0 0.0
    %3967 = vmatpush1.msra.mxu0 0.0
    %3968 = vmatprep.mubr.f32.mxu0 0.0
    %3969 = vmatmul.mubr.f32.gmra.mrb[0].mxu0 %v3663
    %v3970 = vpop.f32.mrb[0].mxu0
    %v3971 = vadd.f32 %v3903, %v3970
    %v3972 = vpop.f32.mrb[0].mxu0
    %3973 = vmatprep.mubr.f32.mxu0 0.0
    %3974 = vmatmul.mubr.f32.gmra.mrb[0].mxu0 %v3666
    %v3975 = vpop.f32.mrb[0].mxu0
    %v3976 = vadd.f32 %v3903, %v3975
    %v3977 = vpop.f32.mrb[0].mxu0
    %3978 = vmatprep.mubr.f32.mxu0 0.0
    %3979 = vmatmul.mubr.f32.gmra.mrb[0].mxu0 %v3669
    %v3980 = vpop.f32.mrb[0].mxu0
    %v3981 = vadd.f32 %v3903, %v3980
    %v3982 = vpop.f32.mrb[0].mxu0
    %3983 = vmatprep.mubr.f32.mxu0 0.0
    %3984 = vmatmul.mubr.f32.gmra.mrb[0].mxu0 %v3672
    %v3985 = vpop.f32.mrb[0].mxu0
    %v3986 = vadd.f32 %v3903, %v3985
    %v3987 = vpop.f32.mrb[0].mxu0
    %3988 = vmatprep.mubr.f32.mxu0 0.0
    %3989 = vmatmul.mubr.f32.gmra.mrb[0].mxu0 %v3675
    %v3990 = vpop.f32.mrb[0].mxu0
    %v3991 = vadd.f32 %v3903, %v3990
    %v3992 = vpop.f32.mrb[0].mxu0
    %3993 = vmatprep.mubr.f32.mxu0 0.0
    %3994 = vmatmul.mubr.f32.gmra.mrb[0].mxu0 %v3678
    %v3995 = vpop.f32.mrb[0].mxu0
    %v3996 = vadd.f32 %v3903, %v3995
    %v3997 = vpop.f32.mrb[0].mxu0
    %3998 = vmatprep.mubr.f32.mxu0 0.0
    %3999 = vmatmul.mubr.f32.gmra.mrb[0].mxu0 %v3681
    %v4000 = vpop.f32.mrb[0].mxu0
    %v4001 = vadd.f32 %v3903, %v4000
    %v4002 = vpop.f32.mrb[0].mxu0
    %4003 = vmatprep.mubr.f32.mxu0 0.0
    %4004 = vmatmul.mubr.f32.gmra.mrb[0].mxu0 %v3684
    %v4005 = vpop.f32.mrb[0].mxu0
    %v4006 = vadd.f32 %v3903, %v4005
    %v4007 = vpop.f32.mrb[0].mxu0
    %4008 = vdwg.mxu0
    %v4010 = vsel %vm571, %v3862, 0
    %v4013 = vsel %vm571, %v3867, 0
    %v4016 = vsel %vm571, %v3872, 0
    %v4019 = vsel %vm571, %v3877, 0
    %4021 = vmatprep.subr.mxu0 0.0
    %4022 = vmatpush1.msra.mxu0 %v3753
    %4023 = vmatprep.subr.mxu0 0.0
    %4024 = vmatpush1.msra.mxu0 %v3758
    %4025 = vmatprep.subr.mxu0 0.0
    %4026 = vmatpush1.msra.mxu0 %v3763
    %4027 = vmatprep.subr.mxu0 0.0
    %4028 = vmatpush1.msra.mxu0 %v3768
    %4029 = vmatprep.subr.mxu0 0.0
    %4030 = vmatpush1.msra.mxu0 0.0
    %4031 = vmatprep.subr.mxu0 0.0
    %4032 = vmatpush1.msra.mxu0 0.0
    %4033 = vmatprep.subr.mxu0 0.0
    %4034 = vmatpush1.msra.mxu0 0.0
    %4035 = vmatprep.subr.mxu0 0.0
    %4036 = vmatpush1.msra.mxu0 0.0
    %4037 = vmatprep.subr.mxu0 0.0
    %4038 = vmatpush1.msra.mxu0 0.0
    %4039 = vmatprep.subr.mxu0 0.0
    %4040 = vmatpush1.msra.mxu0 0.0
    %4041 = vmatprep.subr.mxu0 0.0
    %4042 = vmatpush1.msra.mxu0 0.0
    %4043 = vmatprep.subr.mxu0 0.0
    %4044 = vmatpush1.msra.mxu0 0.0
    %4045 = vmatprep.subr.mxu0 0.0
    %4046 = vmatpush1.msra.mxu0 0.0
    %4047 = vmatprep.subr.mxu0 0.0
    %4048 = vmatpush1.msra.mxu0 0.0
    %4049 = vmatprep.subr.mxu0 0.0
    %4050 = vmatpush1.msra.mxu0 0.0
    %4051 = vmatprep.subr.mxu0 0.0
    %4052 = vmatpush1.msra.mxu0 0.0
    %4053 = vmatprep.subr.mxu0 0.0
    %4054 = vmatpush1.msra.mxu0 0.0
    %4055 = vmatprep.subr.mxu0 0.0
    %4056 = vmatpush1.msra.mxu0 0.0
    %4057 = vmatprep.subr.mxu0 0.0
    %4058 = vmatpush1.msra.mxu0 0.0
    %4059 = vmatprep.subr.mxu0 0.0
    %4060 = vmatpush1.msra.mxu0 0.0
    %4061 = vmatprep.subr.mxu0 0.0
    %4062 = vmatpush1.msra.mxu0 0.0
    %4063 = vmatprep.subr.mxu0 0.0
    %4064 = vmatpush1.msra.mxu0 0.0
    %4065 = vmatprep.subr.mxu0 0.0
    %4066 = vmatpush1.msra.mxu0 0.0
    %4067 = vmatprep.subr.mxu0 0.0
    %4068 = vmatpush1.msra.mxu0 0.0
    %4069 = vmatprep.subr.mxu0 0.0
    %4070 = vmatpush1.msra.mxu0 0.0
    %4071 = vmatprep.subr.mxu0 0.0
    %4072 = vmatpush1.msra.mxu0 0.0
    %4073 = vmatprep.subr.mxu0 0.0
    %4074 = vmatpush1.msra.mxu0 0.0
    %4075 = vmatprep.subr.mxu0 0.0
    %4076 = vmatpush1.msra.mxu0 0.0
    %4077 = vmatprep.subr.mxu0 0.0
    %4078 = vmatpush1.msra.mxu0 0.0
    %4079 = vmatprep.subr.mxu0 0.0
    %4080 = vmatpush1.msra.mxu0 0.0
    %4081 = vmatprep.subr.mxu0 0.0
    %4082 = vmatpush1.msra.mxu0 0.0
    %4083 = vmatprep.subr.mxu0 0.0
    %4084 = vmatpush1.msra.mxu0 0.0
    %4085 = vmatprep.mubr.f32.mxu0 0.0
    %4086 = vmatmul.mubr.f32.gmra.mrb[0].mxu0 %v4010
    %v4087 = vpop.f32.mrb[0].mxu0
    %v4088 = vadd.f32 0.0, %v4087
    %v4089 = vpop.f32.mrb[0].mxu0
    %4090 = vmatprep.mubr.f32.mxu0 0.0
    %4091 = vmatmul.mubr.f32.gmra.mrb[0].mxu0 %v4013
    %v4092 = vpop.f32.mrb[0].mxu0
    %v4093 = vadd.f32 0.0, %v4092
    %v4094 = vpop.f32.mrb[0].mxu0
    %4095 = vmatprep.mubr.f32.mxu0 0.0
    %4096 = vmatmul.mubr.f32.gmra.mrb[0].mxu0 %v4016
    %v4097 = vpop.f32.mrb[0].mxu0
    %v4098 = vadd.f32 0.0, %v4097
    %v4099 = vpop.f32.mrb[0].mxu0
    %4100 = vmatprep.mubr.f32.mxu0 0.0
    %4101 = vmatmul.mubr.f32.gmra.mrb[0].mxu0 %v4019
    %v4102 = vpop.f32.mrb[0].mxu0
    %v4103 = vadd.f32 0.0, %v4102
    %v4104 = vpop.f32.mrb[0].mxu0
    %4105 = vdwg.mxu0
    %v4107 = vsel %vm571, %v3882, 0
    %v4110 = vsel %vm571, %v3887, 0
    %v4113 = vsel %vm571, %v3892, 0
    %v4116 = vsel %vm571, %v3897, 0
    %4118 = vmatprep.subr.mxu0 0.0
    %4119 = vmatpush1.msra.mxu0 %v3773
    %4120 = vmatprep.subr.mxu0 0.0
    %4121 = vmatpush1.msra.mxu0 %v3778
    %4122 = vmatprep.subr.mxu0 0.0
    %4123 = vmatpush1.msra.mxu0 %v3783
    %4124 = vmatprep.subr.mxu0 0.0
    %4125 = vmatpush1.msra.mxu0 %v3788
    %4126 = vmatprep.subr.mxu0 0.0
    %4127 = vmatpush1.msra.mxu0 0.0
    %4128 = vmatprep.subr.mxu0 0.0
    %4129 = vmatpush1.msra.mxu0 0.0
    %4130 = vmatprep.subr.mxu0 0.0
    %4131 = vmatpush1.msra.mxu0 0.0
    %4132 = vmatprep.subr.mxu0 0.0
    %4133 = vmatpush1.msra.mxu0 0.0
    %4134 = vmatprep.subr.mxu0 0.0
    %4135 = vmatpush1.msra.mxu0 0.0
    %4136 = vmatprep.subr.mxu0 0.0
    %4137 = vmatpush1.msra.mxu0 0.0
    %4138 = vmatprep.subr.mxu0 0.0
    %4139 = vmatpush1.msra.mxu0 0.0
    %4140 = vmatprep.subr.mxu0 0.0
    %4141 = vmatpush1.msra.mxu0 0.0
    %4142 = vmatprep.subr.mxu0 0.0
    %4143 = vmatpush1.msra.mxu0 0.0
    %4144 = vmatprep.subr.mxu0 0.0
    %4145 = vmatpush1.msra.mxu0 0.0
    %4146 = vmatprep.subr.mxu0 0.0
    %4147 = vmatpush1.msra.mxu0 0.0
    %4148 = vmatprep.subr.mxu0 0.0
    %4149 = vmatpush1.msra.mxu0 0.0
    %4150 = vmatprep.subr.mxu0 0.0
    %4151 = vmatpush1.msra.mxu0 0.0
    %4152 = vmatprep.subr.mxu0 0.0
    %4153 = vmatpush1.msra.mxu0 0.0
    %4154 = vmatprep.subr.mxu0 0.0
    %4155 = vmatpush1.msra.mxu0 0.0
    %4156 = vmatprep.subr.mxu0 0.0
    %4157 = vmatpush1.msra.mxu0 0.0
    %4158 = vmatprep.subr.mxu0 0.0
    %4159 = vmatpush1.msra.mxu0 0.0
    %4160 = vmatprep.subr.mxu0 0.0
    %4161 = vmatpush1.msra.mxu0 0.0
    %4162 = vmatprep.subr.mxu0 0.0
    %4163 = vmatpush1.msra.mxu0 0.0
    %4164 = vmatprep.subr.mxu0 0.0
    %4165 = vmatpush1.msra.mxu0 0.0
    %4166 = vmatprep.subr.mxu0 0.0
    %4167 = vmatpush1.msra.mxu0 0.0
    %4168 = vmatprep.subr.mxu0 0.0
    %4169 = vmatpush1.msra.mxu0 0.0
    %4170 = vmatprep.subr.mxu0 0.0
    %4171 = vmatpush1.msra.mxu0 0.0
    %4172 = vmatprep.subr.mxu0 0.0
    %4173 = vmatpush1.msra.mxu0 0.0
    %4174 = vmatprep.subr.mxu0 0.0
    %4175 = vmatpush1.msra.mxu0 0.0
    %4176 = vmatprep.subr.mxu0 0.0
    %4177 = vmatpush1.msra.mxu0 0.0
    %4178 = vmatprep.subr.mxu0 0.0
    %4179 = vmatpush1.msra.mxu0 0.0
    %4180 = vmatprep.subr.mxu0 0.0
    %4181 = vmatpush1.msra.mxu0 0.0
    %4182 = vmatprep.mubr.f32.mxu0 0.0
    %4183 = vmatmul.mubr.f32.gmra.mrb[0].mxu0 %v4107
    %v4184 = vpop.f32.mrb[0].mxu0
    %v4185 = vadd.f32 0.0, %v4184
    %v4186 = vpop.f32.mrb[0].mxu0
    %4187 = vmatprep.mubr.f32.mxu0 0.0
    %4188 = vmatmul.mubr.f32.gmra.mrb[0].mxu0 %v4110
    %v4189 = vpop.f32.mrb[0].mxu0
    %v4190 = vadd.f32 0.0, %v4189
    %v4191 = vpop.f32.mrb[0].mxu0
    %4192 = vmatprep.mubr.f32.mxu0 0.0
    %4193 = vmatmul.mubr.f32.gmra.mrb[0].mxu0 %v4113
    %v4194 = vpop.f32.mrb[0].mxu0
    %v4195 = vadd.f32 0.0, %v4194
    %v4196 = vpop.f32.mrb[0].mxu0
    %4197 = vmatprep.mubr.f32.mxu0 0.0
    %4198 = vmatmul.mubr.f32.gmra.mrb[0].mxu0 %v4116
    %v4199 = vpop.f32.mrb[0].mxu0
    %v4200 = vadd.f32 0.0, %v4199
    %v4201 = vpop.f32.mrb[0].mxu0
    %4202 = vdwg.mxu0
    %v4203 = vmul.f32 %v4088, 0.5
    %v4204 = vmul.f32 %v4093, 0.5
    %v4205 = vmul.f32 %v4098, 0.5
    %v4206 = vmul.f32 %v4103, 0.5
    %v4207 = vmul.f32 %v4185, 0.5
    %v4208 = vmul.f32 %v4190, 0.5
    %v4209 = vmul.f32 %v4195, 0.5
    %v4210 = vmul.f32 %v4200, 0.5
    %v4211 = vsel %vm571, %v4203, -inf
    %v4212 = vsel %vm571, %v4204, -inf
    %v4213 = vsel %vm571, %v4205, -inf
    %v4214 = vmax.f32 %v4211, %v4213
    %v4215 = vsel %vm571, %v4206, -inf
    %v4216 = vmax.f32 %v4212, %v4215
    %v4217 = vmax.f32 %v4214, %v4216
    %v4218 = vrot.slane %v4217, 4
    %v4219 = vmax.f32 %v4217, %v4218
    %v4220 = vrot.slane %v4219, 2
    %v4221 = vmax.f32 %v4219, %v4220
    %v4222 = vrot.slane %v4221, 1
    %v4223 = vmax.f32 %v4221, %v4222
    %v4224 = vsel %vm571, %v4207, -inf
    %v4225 = vsel %vm571, %v4208, -inf
    %v4226 = vsel %vm571, %v4209, -inf
    %v4227 = vmax.f32 %v4224, %v4226
    %v4228 = vsel %vm571, %v4210, -inf
    %v4229 = vmax.f32 %v4225, %v4228
    %v4230 = vmax.f32 %v4227, %v4229
    %v4231 = vrot.slane %v4230, 4
    %v4232 = vmax.f32 %v4230, %v4231
    %v4233 = vrot.slane %v4232, 2
    %v4234 = vmax.f32 %v4232, %v4233
    %v4235 = vrot.slane %v4234, 1
    %v4236 = vmax.f32 %v4234, %v4235
    %v4237 = vsub.f32 %v4203, %v4223
    %v4238 = vsub.f32 %v4204, %v4223
    %v4239 = vsub.f32 %v4205, %v4223
    %v4240 = vsub.f32 %v4206, %v4223
    %v4241 = vsub.f32 %v4207, %v4236
    %v4242 = vsub.f32 %v4208, %v4236
    %v4243 = vsub.f32 %v4209, %v4236
    %v4244 = vsub.f32 %v4210, %v4236
    %v4245 = vmul.f32 %v4237, 1.442695
    %v4246 = vpow.pop %v4245
    %v4247 = vmul.f32 %v4238, 1.442695
    %v4248 = vpow.pop %v4247
    %v4249 = vmul.f32 %v4239, 1.442695
    %v4250 = vpow.pop %v4249
    %v4251 = vmul.f32 %v4240, 1.442695
    %v4252 = vpow.pop %v4251
    %v4253 = vmul.f32 %v4241, 1.442695
    %v4254 = vpow.pop %v4253
    %v4255 = vmul.f32 %v4242, 1.442695
    %v4256 = vpow.pop %v4255
    %v4257 = vmul.f32 %v4243, 1.442695
    %v4258 = vpow.pop %v4257
    %v4259 = vmul.f32 %v4244, 1.442695
    %v4260 = vpow.pop %v4259
    %v4261 = vsel %vm571, %v4246, 0.0
    %v4262 = vsel %vm571, %v4248, 0.0
    %v4263 = vadd.f32 %v4261, %v4262
    %v4264 = vsel %vm571, %v4250, 0.0
    %v4265 = vadd.f32 %v4263, %v4264
    %v4266 = vsel %vm571, %v4252, 0.0
    %v4267 = vadd.f32 %v4265, %v4266
    %v4268 = vrot.slane %v4267, 4
    %v4269 = vadd.f32 %v4267, %v4268
    %v4270 = vrot.slane %v4269, 2
    %v4271 = vadd.f32 %v4269, %v4270
    %v4272 = vrot.slane %v4271, 1
    %v4273 = vadd.f32 %v4271, %v4272
    %v4274 = vsel %vm571, %v4254, 0.0
    %v4275 = vsel %vm571, %v4256, 0.0
    %v4276 = vadd.f32 %v4274, %v4275
    %v4277 = vsel %vm571, %v4258, 0.0
    %v4278 = vadd.f32 %v4276, %v4277
    %v4279 = vsel %vm571, %v4260, 0.0
    %v4280 = vadd.f32 %v4278, %v4279
    %v4281 = vrot.slane %v4280, 4
    %v4282 = vadd.f32 %v4280, %v4281
    %v4283 = vrot.slane %v4282, 2
    %v4284 = vadd.f32 %v4282, %v4283
    %v4285 = vrot.slane %v4284, 1
    %v4286 = vadd.f32 %v4284, %v4285
    %v4287 = vrcp.pop %v4273
    %v4288 = vrcp.pop %v4286
    %v4289 = vmul.f32 %v4246, %v4287
    %v4290 = vmul.f32 %v4248, %v4287
    %v4291 = vmul.f32 %v4250, %v4287
    %v4292 = vmul.f32 %v4252, %v4287
    %v4293 = vmul.f32 %v4254, %v4288
    %v4294 = vmul.f32 %v4256, %v4288
    %v4295 = vmul.f32 %v4258, %v4288
    %v4296 = vmul.f32 %v4260, %v4288
    %v4298 = vsel %vm571, %v4289, 0
    %v4301 = vsel %vm571, %v4290, 0
    %v4304 = vsel %vm571, %v4291, 0
    %v4307 = vsel %vm571, %v4292, 0
    %4309 = vmatprep.subr.mxu0 0.0
    %4310 = vmatpush1.msra.mxu0 %v3971
    %4311 = vmatprep.subr.mxu0 0.0
    %4312 = vmatpush1.msra.mxu0 %v3976
    %4313 = vmatprep.subr.mxu0 0.0
    %4314 = vmatpush1.msra.mxu0 %v3981
    %4315 = vmatprep.subr.mxu0 0.0
    %4316 = vmatpush1.msra.mxu0 %v3986
    %4317 = vmatprep.subr.mxu0 0.0
    %4318 = vmatpush1.msra.mxu0 0.0
    %4319 = vmatprep.subr.mxu0 0.0
    %4320 = vmatpush1.msra.mxu0 0.0
    %4321 = vmatprep.subr.mxu0 0.0
    %4322 = vmatpush1.msra.mxu0 0.0
    %4323 = vmatprep.subr.mxu0 0.0
    %4324 = vmatpush1.msra.mxu0 0.0
    %4325 = vmatprep.subr.mxu0 0.0
    %4326 = vmatpush1.msra.mxu0 0.0
    %4327 = vmatprep.subr.mxu0 0.0
    %4328 = vmatpush1.msra.mxu0 0.0
    %4329 = vmatprep.subr.mxu0 0.0
    %4330 = vmatpush1.msra.mxu0 0.0
    %4331 = vmatprep.subr.mxu0 0.0
    %4332 = vmatpush1.msra.mxu0 0.0
    %4333 = vmatprep.subr.mxu0 0.0
    %4334 = vmatpush1.msra.mxu0 0.0
    %4335 = vmatprep.subr.mxu0 0.0
    %4336 = vmatpush1.msra.mxu0 0.0
    %4337 = vmatprep.subr.mxu0 0.0
    %4338 = vmatpush1.msra.mxu0 0.0
    %4339 = vmatprep.subr.mxu0 0.0
    %4340 = vmatpush1.msra.mxu0 0.0
    %4341 = vmatprep.subr.mxu0 0.0
    %4342 = vmatpush1.msra.mxu0 0.0
    %4343 = vmatprep.subr.mxu0 0.0
    %4344 = vmatpush1.msra.mxu0 0.0
    %4345 = vmatprep.subr.mxu0 0.0
    %4346 = vmatpush1.msra.mxu0 0.0
    %4347 = vmatprep.subr.mxu0 0.0
    %4348 = vmatpush1.msra.mxu0 0.0
    %4349 = vmatprep.subr.mxu0 0.0
    %4350 = vmatpush1.msra.mxu0 0.0
    %4351 = vmatprep.subr.mxu0 0.0
    %4352 = vmatpush1.msra.mxu0 0.0
    %4353 = vmatprep.subr.mxu0 0.0
    %4354 = vmatpush1.msra.mxu0 0.0
    %4355 = vmatprep.subr.mxu0 0.0
    %4356 = vmatpush1.msra.mxu0 0.0
    %4357 = vmatprep.subr.mxu0 0.0
    %4358 = vmatpush1.msra.mxu0 0.0
    %4359 = vmatprep.subr.mxu0 0.0
    %4360 = vmatpush1.msra.mxu0 0.0
    %4361 = vmatprep.subr.mxu0 0.0
    %4362 = vmatpush1.msra.mxu0 0.0
    %4363 = vmatprep.subr.mxu0 0.0
    %4364 = vmatpush1.msra.mxu0 0.0
    %4365 = vmatprep.subr.mxu0 0.0
    %4366 = vmatpush1.msra.mxu0 0.0
    %4367 = vmatprep.subr.mxu0 0.0
    %4368 = vmatpush1.msra.mxu0 0.0
    %4369 = vmatprep.subr.mxu0 0.0
    %4370 = vmatpush1.msra.mxu0 0.0
    %4371 = vmatprep.subr.mxu0 0.0
    %4372 = vmatpush1.msra.mxu0 0.0
    %4373 = vmatprep.mubr.f32.mxu0 0.0
    %4374 = vmatmul.mubr.f32.gmra.mrb[0].mxu0 %v4298
    %v4375 = vpop.f32.mrb[0].mxu0
    %v4376 = vadd.f32 0.0, %v4375
    %v4377 = vpop.f32.mrb[0].mxu0
    %4378 = vmatprep.mubr.f32.mxu0 0.0
    %4379 = vmatmul.mubr.f32.gmra.mrb[0].mxu0 %v4301
    %v4380 = vpop.f32.mrb[0].mxu0
    %v4381 = vadd.f32 0.0, %v4380
    %v4382 = vpop.f32.mrb[0].mxu0
    %4383 = vmatprep.mubr.f32.mxu0 0.0
    %4384 = vmatmul.mubr.f32.gmra.mrb[0].mxu0 %v4304
    %v4385 = vpop.f32.mrb[0].mxu0
    %v4386 = vadd.f32 0.0, %v4385
    %v4387 = vpop.f32.mrb[0].mxu0
    %4388 = vmatprep.mubr.f32.mxu0 0.0
    %4389 = vmatmul.mubr.f32.gmra.mrb[0].mxu0 %v4307
    %v4390 = vpop.f32.mrb[0].mxu0
    %v4391 = vadd.f32 0.0, %v4390
    %v4392 = vpop.f32.mrb[0].mxu0
    %4393 = vdwg.mxu0
    %v4395 = vsel %vm571, %v4293, 0
    %v4398 = vsel %vm571, %v4294, 0
    %v4401 = vsel %vm571, %v4295, 0
    %v4404 = vsel %vm571, %v4296, 0
    %4406 = vmatprep.subr.mxu0 0.0
    %4407 = vmatpush1.msra.mxu0 %v3991
    %4408 = vmatprep.subr.mxu0 0.0
    %4409 = vmatpush1.msra.mxu0 %v3996
    %4410 = vmatprep.subr.mxu0 0.0
    %4411 = vmatpush1.msra.mxu0 %v4001
    %4412 = vmatprep.subr.mxu0 0.0
    %4413 = vmatpush1.msra.mxu0 %v4006
    %4414 = vmatprep.subr.mxu0 0.0
    %4415 = vmatpush1.msra.mxu0 0.0
    %4416 = vmatprep.subr.mxu0 0.0
    %4417 = vmatpush1.msra.mxu0 0.0
    %4418 = vmatprep.subr.mxu0 0.0
    %4419 = vmatpush1.msra.mxu0 0.0
    %4420 = vmatprep.subr.mxu0 0.0
    %4421 = vmatpush1.msra.mxu0 0.0
    %4422 = vmatprep.subr.mxu0 0.0
    %4423 = vmatpush1.msra.mxu0 0.0
    %4424 = vmatprep.subr.mxu0 0.0
    %4425 = vmatpush1.msra.mxu0 0.0
    %4426 = vmatprep.subr.mxu0 0.0
    %4427 = vmatpush1.msra.mxu0 0.0
    %4428 = vmatprep.subr.mxu0 0.0
    %4429 = vmatpush1.msra.mxu0 0.0
    %4430 = vmatprep.subr.mxu0 0.0
    %4431 = vmatpush1.msra.mxu0 0.0
    %4432 = vmatprep.subr.mxu0 0.0
    %4433 = vmatpush1.msra.mxu0 0.0
    %4434 = vmatprep.subr.mxu0 0.0
    %4435 = vmatpush1.msra.mxu0 0.0
    %4436 = vmatprep.subr.mxu0 0.0
    %4437 = vmatpush1.msra.mxu0 0.0
    %4438 = vmatprep.subr.mxu0 0.0
    %4439 = vmatpush1.msra.mxu0 0.0
    %4440 = vmatprep.subr.mxu0 0.0
    %4441 = vmatpush1.msra.mxu0 0.0
    %4442 = vmatprep.subr.mxu0 0.0
    %4443 = vmatpush1.msra.mxu0 0.0
    %4444 = vmatprep.subr.mxu0 0.0
    %4445 = vmatpush1.msra.mxu0 0.0
    %4446 = vmatprep.subr.mxu0 0.0
    %4447 = vmatpush1.msra.mxu0 0.0
    %4448 = vmatprep.subr.mxu0 0.0
    %4449 = vmatpush1.msra.mxu0 0.0
    %4450 = vmatprep.subr.mxu0 0.0
    %4451 = vmatpush1.msra.mxu0 0.0
    %4452 = vmatprep.subr.mxu0 0.0
    %4453 = vmatpush1.msra.mxu0 0.0
    %4454 = vmatprep.subr.mxu0 0.0
    %4455 = vmatpush1.msra.mxu0 0.0
    %4456 = vmatprep.subr.mxu0 0.0
    %4457 = vmatpush1.msra.mxu0 0.0
    %4458 = vmatprep.subr.mxu0 0.0
    %4459 = vmatpush1.msra.mxu0 0.0
    %4460 = vmatprep.subr.mxu0 0.0
    %4461 = vmatpush1.msra.mxu0 0.0
    %4462 = vmatprep.subr.mxu0 0.0
    %4463 = vmatpush1.msra.mxu0 0.0
    %4464 = vmatprep.subr.mxu0 0.0
    %4465 = vmatpush1.msra.mxu0 0.0
    %4466 = vmatprep.subr.mxu0 0.0
    %4467 = vmatpush1.msra.mxu0 0.0
    %4468 = vmatprep.subr.mxu0 0.0
    %4469 = vmatpush1.msra.mxu0 0.0
    %4470 = vmatprep.mubr.f32.mxu0 0.0
    %4471 = vmatmul.mubr.f32.gmra.mrb[0].mxu0 %v4395
    %v4472 = vpop.f32.mrb[0].mxu0
    %v4473 = vadd.f32 0.0, %v4472
    %v4474 = vpop.f32.mrb[0].mxu0
    %4475 = vmatprep.mubr.f32.mxu0 0.0
    %4476 = vmatmul.mubr.f32.gmra.mrb[0].mxu0 %v4398
    %v4477 = vpop.f32.mrb[0].mxu0
    %v4478 = vadd.f32 0.0, %v4477
    %v4479 = vpop.f32.mrb[0].mxu0
    %4480 = vmatprep.mubr.f32.mxu0 0.0
    %4481 = vmatmul.mubr.f32.gmra.mrb[0].mxu0 %v4401
    %v4482 = vpop.f32.mrb[0].mxu0
    %v4483 = vadd.f32 0.0, %v4482
    %v4484 = vpop.f32.mrb[0].mxu0
    %4485 = vmatprep.mubr.f32.mxu0 0.0
    %4486 = vmatmul.mubr.f32.gmra.mrb[0].mxu0 %v4404
    %v4487 = vpop.f32.mrb[0].mxu0
    %v4488 = vadd.f32 0.0, %v4487
    %v4489 = vpop.f32.mrb[0].mxu0
    %4490 = vdwg.mxu0
    %v4491 = vlaneseq
    %v4492 = vshrl.u32 %v4491, 7
    %v4493 = vsub.s32 3, %v4492
    %v4494 = vrot.slane %v3641, %v4493
    %v4496 = vsel %vm571, %v4376, 0
    %v4499 = vsel %vm571, %v4381, 0
    %v4502 = vsel %vm571, %v4386, 0
    %v4505 = vsel %vm571, %v4391, 0
    %v4508 = vsel %vm571, %v4473, 0
    %v4511 = vsel %vm571, %v4478, 0
    %v4514 = vsel %vm571, %v4483, 0
    %v4517 = vsel %vm571, %v4488, 0
    %4519 = vmatprep.subr.mxu0 0.0
    %4520 = vmatpush1.msra.mxu0 %v3636
    %4521 = vmatprep.subr.mxu0 0.0
    %4522 = vmatpush1.msra.mxu0 %v3637
    %4523 = vmatprep.subr.mxu0 0.0
    %4524 = vmatpush1.msra.mxu0 %v3638
    %4525 = vmatprep.subr.mxu0 0.0
    %4526 = vmatpush1.msra.mxu0 %v3639
    %4527 = vmatprep.subr.mxu0 0.0
    %4528 = vmatpush1.msra.mxu0 0.0
    %4529 = vmatprep.subr.mxu0 0.0
    %4530 = vmatpush1.msra.mxu0 0.0
    %4531 = vmatprep.subr.mxu0 0.0
    %4532 = vmatpush1.msra.mxu0 0.0
    %4533 = vmatprep.subr.mxu0 0.0
    %4534 = vmatpush1.msra.mxu0 0.0
    %4535 = vmatprep.subr.mxu0 0.0
    %4536 = vmatpush1.msra.mxu0 0.0
    %4537 = vmatprep.subr.mxu0 0.0
    %4538 = vmatpush1.msra.mxu0 0.0
    %4539 = vmatprep.subr.mxu0 0.0
    %4540 = vmatpush1.msra.mxu0 0.0
    %4541 = vmatprep.subr.mxu0 0.0
    %4542 = vmatpush1.msra.mxu0 0.0
    %4543 = vmatprep.subr.mxu0 0.0
    %4544 = vmatpush1.msra.mxu0 0.0
    %4545 = vmatprep.subr.mxu0 0.0
    %4546 = vmatpush1.msra.mxu0 0.0
    %4547 = vmatprep.subr.mxu0 0.0
    %4548 = vmatpush1.msra.mxu0 0.0
    %4549 = vmatprep.subr.mxu0 0.0
    %4550 = vmatpush1.msra.mxu0 0.0
    %4551 = vmatprep.subr.mxu0 0.0
    %4552 = vmatpush1.msra.mxu0 0.0
    %4553 = vmatprep.subr.mxu0 0.0
    %4554 = vmatpush1.msra.mxu0 0.0
    %4555 = vmatprep.subr.mxu0 0.0
    %4556 = vmatpush1.msra.mxu0 0.0
    %4557 = vmatprep.subr.mxu0 0.0
    %4558 = vmatpush1.msra.mxu0 0.0
    %4559 = vmatprep.subr.mxu0 0.0
    %4560 = vmatpush1.msra.mxu0 0.0
    %4561 = vmatprep.subr.mxu0 0.0
    %4562 = vmatpush1.msra.mxu0 0.0
    %4563 = vmatprep.subr.mxu0 0.0
    %4564 = vmatpush1.msra.mxu0 0.0
    %4565 = vmatprep.subr.mxu0 0.0
    %4566 = vmatpush1.msra.mxu0 0.0
    %4567 = vmatprep.subr.mxu0 0.0
    %4568 = vmatpush1.msra.mxu0 0.0
    %4569 = vmatprep.subr.mxu0 0.0
    %4570 = vmatpush1.msra.mxu0 0.0
    %4571 = vmatprep.subr.mxu0 0.0
    %4572 = vmatpush1.msra.mxu0 0.0
    %4573 = vmatprep.subr.mxu0 0.0
    %4574 = vmatpush1.msra.mxu0 0.0
    %4575 = vmatprep.subr.mxu0 0.0
    %4576 = vmatpush1.msra.mxu0 0.0
    %4577 = vmatprep.subr.mxu0 0.0
    %4578 = vmatpush1.msra.mxu0 0.0
    %4579 = vmatprep.subr.mxu0 0.0
    %4580 = vmatpush1.msra.mxu0 0.0
    %4581 = vmatprep.subr.mxu0 0.0
    %4582 = vmatpush1.msra.mxu0 0.0
    %4583 = vmatprep.mubr.f32.mxu0 0.0
    %4584 = vmatmul.mubr.f32.gmra.mrb[0].mxu0 %v4496
    %v4585 = vpop.f32.mrb[0].mxu0
    %v4586 = vadd.f32 %v4494, %v4585
    %v4587 = vpop.f32.mrb[0].mxu0
    %4588 = vmatprep.mubr.f32.mxu0 0.0
    %4589 = vmatmul.mubr.f32.gmra.mrb[0].mxu0 %v4499
    %v4590 = vpop.f32.mrb[0].mxu0
    %v4591 = vadd.f32 %v4494, %v4590
    %v4592 = vpop.f32.mrb[0].mxu0
    %4593 = vmatprep.mubr.f32.mxu0 0.0
    %4594 = vmatmul.mubr.f32.gmra.mrb[0].mxu0 %v4502
    %v4595 = vpop.f32.mrb[0].mxu0
    %v4596 = vadd.f32 %v4494, %v4595
    %v4597 = vpop.f32.mrb[0].mxu0
    %4598 = vmatprep.mubr.f32.mxu0 0.0
    %4599 = vmatmul.mubr.f32.gmra.mrb[0].mxu0 %v4505
    %v4600 = vpop.f32.mrb[0].mxu0
    %v4601 = vadd.f32 %v4494, %v4600
    %v4602 = vpop.f32.mrb[0].mxu0
    %4603 = vmatprep.mubr.f32.mxu0 0.0
    %4604 = vmatmul.mubr.f32.gmra.mrb[0].mxu0 %v4508
    %v4605 = vpop.f32.mrb[0].mxu0
    %v4606 = vadd.f32 %v4494, %v4605
    %v4607 = vpop.f32.mrb[0].mxu0
    %4608 = vmatprep.mubr.f32.mxu0 0.0
    %4609 = vmatmul.mubr.f32.gmra.mrb[0].mxu0 %v4511
    %v4610 = vpop.f32.mrb[0].mxu0
    %v4611 = vadd.f32 %v4494, %v4610
    %v4612 = vpop.f32.mrb[0].mxu0
    %4613 = vmatprep.mubr.f32.mxu0 0.0
    %4614 = vmatmul.mubr.f32.gmra.mrb[0].mxu0 %v4514
    %v4615 = vpop.f32.mrb[0].mxu0
    %v4616 = vadd.f32 %v4494, %v4615
    %v4617 = vpop.f32.mrb[0].mxu0
    %4618 = vmatprep.mubr.f32.mxu0 0.0
    %4619 = vmatmul.mubr.f32.gmra.mrb[0].mxu0 %v4517
    %v4620 = vpop.f32.mrb[0].mxu0
    %v4621 = vadd.f32 %v4494, %v4620
    %v4622 = vpop.f32.mrb[0].mxu0
    %4623 = vdwg.mxu0
    %v4624 = vadd.f32 %v496, %v4586
    %v4625 = vadd.f32 %v501, %v4591
    %v4626 = vadd.f32 %v506, %v4596
    %v4627 = vadd.f32 %v511, %v4601
    %v4628 = vadd.f32 %v516, %v4606
    %v4629 = vadd.f32 %v521, %v4611
    %v4630 = vadd.f32 %v526, %v4616
    %v4631 = vadd.f32 %v531, %v4621
    %v4632 = vsel %vm571, %v4624, 0.0
    %4633 = vadd.xlane.f32.xlu0 %v4632
    %v4634 = vpop.xlane.xlu0 %4633
    %v4635 = vsel %vm571, %v4625, 0.0
    %4636 = vadd.xlane.f32.xlu0 %v4635
    %v4637 = vpop.xlane.xlu0 %4636
    %v4638 = vsel %vm571, %v4626, 0.0
    %4639 = vadd.xlane.f32.xlu0 %v4638
    %v4640 = vpop.xlane.xlu0 %4639
    %v4641 = vsel %vm571, %v4627, 0.0
    %4642 = vadd.xlane.f32.xlu0 %v4641
    %v4643 = vpop.xlane.xlu0 %4642
    %v4644 = vsel %vm571, %v4628, 0.0
    %4645 = vadd.xlane.f32.xlu0 %v4644
    %v4646 = vpop.xlane.xlu0 %4645
    %v4647 = vsel %vm571, %v4629, 0.0
    %4648 = vadd.xlane.f32.xlu0 %v4647
    %v4649 = vpop.xlane.xlu0 %4648
    %v4650 = vsel %vm571, %v4630, 0.0
    %4651 = vadd.xlane.f32.xlu0 %v4650
    %v4652 = vpop.xlane.xlu0 %4651
    %v4653 = vsel %vm571, %v4631, 0.0
    %4654 = vadd.xlane.f32.xlu0 %v4653
    %v4655 = vpop.xlane.xlu0 %4654
    %v4656 = vmul.f32 %v4634, %v1566
    %v4657 = vmul.f32 %v4637, %v1566
    %v4658 = vmul.f32 %v4640, %v1566
    %v4659 = vmul.f32 %v4643, %v1566
    %v4660 = vmul.f32 %v4646, %v1566
    %v4661 = vmul.f32 %v4649, %v1566
    %v4662 = vmul.f32 %v4652, %v1566
    %v4663 = vmul.f32 %v4655, %v1566
    %v4664 = vsub.f32 %v4624, %v4656
    %v4665 = vsub.f32 %v4625, %v4657
    %v4666 = vsub.f32 %v4626, %v4658
    %v4667 = vsub.f32 %v4627, %v4659
    %v4668 = vsub.f32 %v4628, %v4660
    %v4669 = vsub.f32 %v4629, %v4661
    %v4670 = vsub.f32 %v4630, %v4662
    %v4671 = vsub.f32 %v4631, %v4663
    %v4672 = vmul.f32 %v4664, %v4664
    %v4673 = vmul.f32 %v4665, %v4665
    %v4674 = vmul.f32 %v4666, %v4666
    %v4675 = vmul.f32 %v4667, %v4667
    %v4676 = vmul.f32 %v4668, %v4668
    %v4677 = vmul.f32 %v4669, %v4669
    %v4678 = vmul.f32 %v4670, %v4670
    %v4679 = vmul.f32 %v4671, %v4671
    %v4680 = vsel %vm571, %v4672, 0.0
    %4681 = vadd.xlane.f32.xlu0 %v4680
    %v4682 = vpop.xlane.xlu0 %4681
    %v4683 = vsel %vm571, %v4673, 0.0
    %4684 = vadd.xlane.f32.xlu0 %v4683
    %v4685 = vpop.xlane.xlu0 %4684
    %v4686 = vsel %vm571, %v4674, 0.0
    %4687 = vadd.xlane.f32.xlu0 %v4686
    %v4688 = vpop.xlane.xlu0 %4687
    %v4689 = vsel %vm571, %v4675, 0.0
    %4690 = vadd.xlane.f32.xlu0 %v4689
    %v4691 = vpop.xlane.xlu0 %4690
    %v4692 = vsel %vm571, %v4676, 0.0
    %4693 = vadd.xlane.f32.xlu0 %v4692
    %v4694 = vpop.xlane.xlu0 %4693
    %v4695 = vsel %vm571, %v4677, 0.0
    %4696 = vadd.xlane.f32.xlu0 %v4695
    %v4697 = vpop.xlane.xlu0 %4696
    %v4698 = vsel %vm571, %v4678, 0.0
    %4699 = vadd.xlane.f32.xlu0 %v4698
    %v4700 = vpop.xlane.xlu0 %4699
    %v4701 = vsel %vm571, %v4679, 0.0
    %4702 = vadd.xlane.f32.xlu0 %v4701
    %v4703 = vpop.xlane.xlu0 %4702
    %v4704 = vmul.f32 %v4682, %v1566
    %v4705 = vmul.f32 %v4685, %v1566
    %v4706 = vmul.f32 %v4688, %v1566
    %v4707 = vmul.f32 %v4691, %v1566
    %v4708 = vmul.f32 %v4694, %v1566
    %v4709 = vmul.f32 %v4697, %v1566
    %v4710 = vmul.f32 %v4700, %v1566
    %v4711 = vmul.f32 %v4703, %v1566
    %v4712 = vadd.f32 %v4704, 1e-05
    %v4713 = vadd.f32 %v4705, 1e-05
    %v4714 = vadd.f32 %v4706, 1e-05
    %v4715 = vadd.f32 %v4707, 1e-05
    %v4716 = vadd.f32 %v4708, 1e-05
    %v4717 = vadd.f32 %v4709, 1e-05
    %v4718 = vadd.f32 %v4710, 1e-05
    %v4719 = vadd.f32 %v4711, 1e-05
    %v4720 = vrsqrt.pop %v4712
    %v4721 = vrsqrt.pop %v4713
    %v4722 = vrsqrt.pop %v4714
    %v4723 = vrsqrt.pop %v4715
    %v4724 = vrsqrt.pop %v4716
    %v4725 = vrsqrt.pop %v4717
    %v4726 = vrsqrt.pop %v4718
    %v4727 = vrsqrt.pop %v4719
    %v4728 = vmul.f32 %v4664, %v4720
    %v4729 = vmul.f32 %v4665, %v4721
    %v4730 = vmul.f32 %v4666, %v4722
    %v4731 = vmul.f32 %v4667, %v4723
    %v4732 = vmul.f32 %v4668, %v4724
    %v4733 = vmul.f32 %v4669, %v4725
    %v4734 = vmul.f32 %v4670, %v4726
    %v4735 = vmul.f32 %v4671, %v4727
    %v4736 = vlaneseq
    %v4737 = vshrl.u32 %v4736, 7
    %v4738 = vsub.s32 5, %v4737
    %v4739 = vrot.slane %v3641, %v4738
    %v4740 = vmul.f32 %v4728, %v4739
    %v4741 = vmul.f32 %v4729, %v4739
    %v4742 = vmul.f32 %v4730, %v4739
    %v4743 = vmul.f32 %v4731, %v4739
    %v4744 = vmul.f32 %v4732, %v4739
    %v4745 = vmul.f32 %v4733, %v4739
    %v4746 = vmul.f32 %v4734, %v4739
    %v4747 = vmul.f32 %v4735, %v4739
    %v4748 = vlaneseq
    %v4749 = vshrl.u32 %v4748, 7
    %v4750 = vsub.s32 6, %v4749
    %v4751 = vrot.slane %v3641, %v4750
    %v4752 = vadd.f32 %v4740, %v4751
    %v4753 = vadd.f32 %v4741, %v4751
    %v4754 = vadd.f32 %v4742, %v4751
    %v4755 = vadd.f32 %v4743, %v4751
    %v4756 = vadd.f32 %v4744, %v4751
    %v4757 = vadd.f32 %v4745, %v4751
    %v4758 = vadd.f32 %v4746, %v4751
    %v4759 = vadd.f32 %v4747, %v4751
    %v4761 = vsel %vm571, %v3612, 0
    %v4764 = vsel %vm571, %v3613, 0
    %v4767 = vsel %vm571, %v3614, 0
    %v4770 = vsel %vm571, %v3615, 0
    %v4773 = vsel %vm571, %v3616, 0
    %v4776 = vsel %vm571, %v3617, 0
    %v4779 = vsel %vm571, %v3618, 0
    %v4782 = vsel %vm571, %v3619, 0
    %4784 = vmatprep.subr.mxu0 0.0
    %4785 = vmatpush1.msra.mxu0 %v3626
    %4786 = vmatprep.subr.mxu0 0.0
    %4787 = vmatpush1.msra.mxu0 %v3627
    %4788 = vmatprep.subr.mxu0 0.0
    %4789 = vmatpush1.msra.mxu0 %v3628
    %4790 = vmatprep.subr.mxu0 0.0
    %4791 = vmatpush1.msra.mxu0 %v3629
    %4792 = vmatprep.subr.mxu0 0.0
    %4793 = vmatpush1.msra.mxu0 0.0
    %4794 = vmatprep.subr.mxu0 0.0
    %4795 = vmatpush1.msra.mxu0 0.0
    %4796 = vmatprep.subr.mxu0 0.0
    %4797 = vmatpush1.msra.mxu0 0.0
    %4798 = vmatprep.subr.mxu0 0.0
    %4799 = vmatpush1.msra.mxu0 0.0
    %4800 = vmatprep.subr.mxu0 0.0
    %4801 = vmatpush1.msra.mxu0 0.0
    %4802 = vmatprep.subr.mxu0 0.0
    %4803 = vmatpush1.msra.mxu0 0.0
    %4804 = vmatprep.subr.mxu0 0.0
    %4805 = vmatpush1.msra.mxu0 0.0
    %4806 = vmatprep.subr.mxu0 0.0
    %4807 = vmatpush1.msra.mxu0 0.0
    %4808 = vmatprep.subr.mxu0 0.0
    %4809 = vmatpush1.msra.mxu0 0.0
    %4810 = vmatprep.subr.mxu0 0.0
    %4811 = vmatpush1.msra.mxu0 0.0
    %4812 = vmatprep.subr.mxu0 0.0
    %4813 = vmatpush1.msra.mxu0 0.0
    %4814 = vmatprep.subr.mxu0 0.0
    %4815 = vmatpush1.msra.mxu0 0.0
    %4816 = vmatprep.subr.mxu0 0.0
    %4817 = vmatpush1.msra.mxu0 0.0
    %4818 = vmatprep.subr.mxu0 0.0
    %4819 = vmatpush1.msra.mxu0 0.0
    %4820 = vmatprep.subr.mxu0 0.0
    %4821 = vmatpush1.msra.mxu0 0.0
    %4822 = vmatprep.subr.mxu0 0.0
    %4823 = vmatpush1.msra.mxu0 0.0
    %4824 = vmatprep.subr.mxu0 0.0
    %4825 = vmatpush1.msra.mxu0 0.0
    %4826 = vmatprep.subr.mxu0 0.0
    %4827 = vmatpush1.msra.mxu0 0.0
    %4828 = vmatprep.subr.mxu0 0.0
    %4829 = vmatpush1.msra.mxu0 0.0
    %4830 = vmatprep.subr.mxu0 0.0
    %4831 = vmatpush1.msra.mxu0 0.0
    %4832 = vmatprep.subr.mxu0 0.0
    %4833 = vmatpush1.msra.mxu0 0.0
    %4834 = vmatprep.subr.mxu0 0.0
    %4835 = vmatpush1.msra.mxu0 0.0
    %4836 = vmatprep.subr.mxu0 0.0
    %4837 = vmatpush1.msra.mxu0 0.0
    %4838 = vmatprep.subr.mxu0 0.0
    %4839 = vmatpush1.msra.mxu0 0.0
    %4840 = vmatprep.subr.mxu0 0.0
    %4841 = vmatpush1.msra.mxu0 0.0
    %4842 = vmatprep.subr.mxu0 0.0
    %4843 = vmatpush1.msra.mxu0 0.0
    %4844 = vmatprep.subr.mxu0 0.0
    %4845 = vmatpush1.msra.mxu0 0.0
    %4846 = vmatprep.subr.mxu0 0.0
    %4847 = vmatpush1.msra.mxu0 0.0
    %4848 = vmatprep.mubr.f32.mxu0 0.0
    %4849 = vmatmul.mubr.f32.gmra.mrb[0].mxu0 %v4761
    %v4850 = vpop.f32.mrb[0].mxu0
    %v4851 = vadd.f32 %v3794, %v4850
    %v4852 = vpop.f32.mrb[0].mxu0
    %4853 = vmatprep.mubr.f32.mxu0 0.0
    %4854 = vmatmul.mubr.f32.gmra.mrb[0].mxu0 %v4764
    %v4855 = vpop.f32.mrb[0].mxu0
    %v4856 = vadd.f32 %v3794, %v4855
    %v4857 = vpop.f32.mrb[0].mxu0
    %4858 = vmatprep.mubr.f32.mxu0 0.0
    %4859 = vmatmul.mubr.f32.gmra.mrb[0].mxu0 %v4767
    %v4860 = vpop.f32.mrb[0].mxu0
    %v4861 = vadd.f32 %v3794, %v4860
    %v4862 = vpop.f32.mrb[0].mxu0
    %4863 = vmatprep.mubr.f32.mxu0 0.0
    %4864 = vmatmul.mubr.f32.gmra.mrb[0].mxu0 %v4770
    %v4865 = vpop.f32.mrb[0].mxu0
    %v4866 = vadd.f32 %v3794, %v4865
    %v4867 = vpop.f32.mrb[0].mxu0
    %4868 = vmatprep.mubr.f32.mxu0 0.0
    %4869 = vmatmul.mubr.f32.gmra.mrb[0].mxu0 %v4773
    %v4870 = vpop.f32.mrb[0].mxu0
    %v4871 = vadd.f32 %v3794, %v4870
    %v4872 = vpop.f32.mrb[0].mxu0
    %4873 = vmatprep.mubr.f32.mxu0 0.0
    %4874 = vmatmul.mubr.f32.gmra.mrb[0].mxu0 %v4776
    %v4875 = vpop.f32.mrb[0].mxu0
    %v4876 = vadd.f32 %v3794, %v4875
    %v4877 = vpop.f32.mrb[0].mxu0
    %4878 = vmatprep.mubr.f32.mxu0 0.0
    %4879 = vmatmul.mubr.f32.gmra.mrb[0].mxu0 %v4779
    %v4880 = vpop.f32.mrb[0].mxu0
    %v4881 = vadd.f32 %v3794, %v4880
    %v4882 = vpop.f32.mrb[0].mxu0
    %4883 = vmatprep.mubr.f32.mxu0 0.0
    %4884 = vmatmul.mubr.f32.gmra.mrb[0].mxu0 %v4782
    %v4885 = vpop.f32.mrb[0].mxu0
    %v4886 = vadd.f32 %v3794, %v4885
    %v4887 = vpop.f32.mrb[0].mxu0
    %4888 = vdwg.mxu0
    %4889 = vmatprep.subr.mxu0 0.0
    %4890 = vmatpush1.msra.mxu0 %v3631
    %4891 = vmatprep.subr.mxu0 0.0
    %4892 = vmatpush1.msra.mxu0 %v3632
    %4893 = vmatprep.subr.mxu0 0.0
    %4894 = vmatpush1.msra.mxu0 %v3633
    %4895 = vmatprep.subr.mxu0 0.0
    %4896 = vmatpush1.msra.mxu0 %v3634
    %4897 = vmatprep.subr.mxu0 0.0
    %4898 = vmatpush1.msra.mxu0 0.0
    %4899 = vmatprep.subr.mxu0 0.0
    %4900 = vmatpush1.msra.mxu0 0.0
    %4901 = vmatprep.subr.mxu0 0.0
    %4902 = vmatpush1.msra.mxu0 0.0
    %4903 = vmatprep.subr.mxu0 0.0
    %4904 = vmatpush1.msra.mxu0 0.0
    %4905 = vmatprep.subr.mxu0 0.0
    %4906 = vmatpush1.msra.mxu0 0.0
    %4907 = vmatprep.subr.mxu0 0.0
    %4908 = vmatpush1.msra.mxu0 0.0
    %4909 = vmatprep.subr.mxu0 0.0
    %4910 = vmatpush1.msra.mxu0 0.0
    %4911 = vmatprep.subr.mxu0 0.0
    %4912 = vmatpush1.msra.mxu0 0.0
    %4913 = vmatprep.subr.mxu0 0.0
    %4914 = vmatpush1.msra.mxu0 0.0
    %4915 = vmatprep.subr.mxu0 0.0
    %4916 = vmatpush1.msra.mxu0 0.0
    %4917 = vmatprep.subr.mxu0 0.0
    %4918 = vmatpush1.msra.mxu0 0.0
    %4919 = vmatprep.subr.mxu0 0.0
    %4920 = vmatpush1.msra.mxu0 0.0
    %4921 = vmatprep.subr.mxu0 0.0
    %4922 = vmatpush1.msra.mxu0 0.0
    %4923 = vmatprep.subr.mxu0 0.0
    %4924 = vmatpush1.msra.mxu0 0.0
    %4925 = vmatprep.subr.mxu0 0.0
    %4926 = vmatpush1.msra.mxu0 0.0
    %4927 = vmatprep.subr.mxu0 0.0
    %4928 = vmatpush1.msra.mxu0 0.0
    %4929 = vmatprep.subr.mxu0 0.0
    %4930 = vmatpush1.msra.mxu0 0.0
    %4931 = vmatprep.subr.mxu0 0.0
    %4932 = vmatpush1.msra.mxu0 0.0
    %4933 = vmatprep.subr.mxu0 0.0
    %4934 = vmatpush1.msra.mxu0 0.0
    %4935 = vmatprep.subr.mxu0 0.0
    %4936 = vmatpush1.msra.mxu0 0.0
    %4937 = vmatprep.subr.mxu0 0.0
    %4938 = vmatpush1.msra.mxu0 0.0
    %4939 = vmatprep.subr.mxu0 0.0
    %4940 = vmatpush1.msra.mxu0 0.0
    %4941 = vmatprep.subr.mxu0 0.0
    %4942 = vmatpush1.msra.mxu0 0.0
    %4943 = vmatprep.subr.mxu0 0.0
    %4944 = vmatpush1.msra.mxu0 0.0
    %4945 = vmatprep.subr.mxu0 0.0
    %4946 = vmatpush1.msra.mxu0 0.0
    %4947 = vmatprep.subr.mxu0 0.0
    %4948 = vmatpush1.msra.mxu0 0.0
    %4949 = vmatprep.subr.mxu0 0.0
    %4950 = vmatpush1.msra.mxu0 0.0
    %4951 = vmatprep.subr.mxu0 0.0
    %4952 = vmatpush1.msra.mxu0 0.0
    %4953 = vmatprep.mubr.f32.mxu0 0.0
    %4954 = vmatmul.mubr.f32.gmra.mrb[0].mxu0 %v4761
    %v4955 = vpop.f32.mrb[0].mxu0
    %v4956 = vadd.f32 %v3903, %v4955
    %v4957 = vpop.f32.mrb[0].mxu0
    %4958 = vmatprep.mubr.f32.mxu0 0.0
    %4959 = vmatmul.mubr.f32.gmra.mrb[0].mxu0 %v4764
    %v4960 = vpop.f32.mrb[0].mxu0
    %v4961 = vadd.f32 %v3903, %v4960
    %v4962 = vpop.f32.mrb[0].mxu0
    %4963 = vmatprep.mubr.f32.mxu0 0.0
    %4964 = vmatmul.mubr.f32.gmra.mrb[0].mxu0 %v4767
    %v4965 = vpop.f32.mrb[0].mxu0
    %v4966 = vadd.f32 %v3903, %v4965
    %v4967 = vpop.f32.mrb[0].mxu0
    %4968 = vmatprep.mubr.f32.mxu0 0.0
    %4969 = vmatmul.mubr.f32.gmra.mrb[0].mxu0 %v4770
    %v4970 = vpop.f32.mrb[0].mxu0
    %v4971 = vadd.f32 %v3903, %v4970
    %v4972 = vpop.f32.mrb[0].mxu0
    %4973 = vmatprep.mubr.f32.mxu0 0.0
    %4974 = vmatmul.mubr.f32.gmra.mrb[0].mxu0 %v4773
    %v4975 = vpop.f32.mrb[0].mxu0
    %v4976 = vadd.f32 %v3903, %v4975
    %v4977 = vpop.f32.mrb[0].mxu0
    %4978 = vmatprep.mubr.f32.mxu0 0.0
    %4979 = vmatmul.mubr.f32.gmra.mrb[0].mxu0 %v4776
    %v4980 = vpop.f32.mrb[0].mxu0
    %v4981 = vadd.f32 %v3903, %v4980
    %v4982 = vpop.f32.mrb[0].mxu0
    %4983 = vmatprep.mubr.f32.mxu0 0.0
    %4984 = vmatmul.mubr.f32.gmra.mrb[0].mxu0 %v4779
    %v4985 = vpop.f32.mrb[0].mxu0
    %v4986 = vadd.f32 %v3903, %v4985
    %v4987 = vpop.f32.mrb[0].mxu0
    %4988 = vmatprep.mubr.f32.mxu0 0.0
    %4989 = vmatmul.mubr.f32.gmra.mrb[0].mxu0 %v4782
    %v4990 = vpop.f32.mrb[0].mxu0
    %v4991 = vadd.f32 %v3903, %v4990
    %v4992 = vpop.f32.mrb[0].mxu0
    %4993 = vdwg.mxu0
    %v4995 = vsel %vm571, %v4851, 0
    %v4998 = vsel %vm571, %v4856, 0
    %v5001 = vsel %vm571, %v4861, 0
    %v5004 = vsel %vm571, %v4866, 0
    %5006 = vmatprep.subr.mxu0 0.0
    %5007 = vmatpush1.msra.mxu0 %v3753
    %5008 = vmatprep.subr.mxu0 0.0
    %5009 = vmatpush1.msra.mxu0 %v3758
    %5010 = vmatprep.subr.mxu0 0.0
    %5011 = vmatpush1.msra.mxu0 %v3763
    %5012 = vmatprep.subr.mxu0 0.0
    %5013 = vmatpush1.msra.mxu0 %v3768
    %5014 = vmatprep.subr.mxu0 0.0
    %5015 = vmatpush1.msra.mxu0 0.0
    %5016 = vmatprep.subr.mxu0 0.0
    %5017 = vmatpush1.msra.mxu0 0.0
    %5018 = vmatprep.subr.mxu0 0.0
    %5019 = vmatpush1.msra.mxu0 0.0
    %5020 = vmatprep.subr.mxu0 0.0
    %5021 = vmatpush1.msra.mxu0 0.0
    %5022 = vmatprep.subr.mxu0 0.0
    %5023 = vmatpush1.msra.mxu0 0.0
    %5024 = vmatprep.subr.mxu0 0.0
    %5025 = vmatpush1.msra.mxu0 0.0
    %5026 = vmatprep.subr.mxu0 0.0
    %5027 = vmatpush1.msra.mxu0 0.0
    %5028 = vmatprep.subr.mxu0 0.0
    %5029 = vmatpush1.msra.mxu0 0.0
    %5030 = vmatprep.subr.mxu0 0.0
    %5031 = vmatpush1.msra.mxu0 0.0
    %5032 = vmatprep.subr.mxu0 0.0
    %5033 = vmatpush1.msra.mxu0 0.0
    %5034 = vmatprep.subr.mxu0 0.0
    %5035 = vmatpush1.msra.mxu0 0.0
    %5036 = vmatprep.subr.mxu0 0.0
    %5037 = vmatpush1.msra.mxu0 0.0
    %5038 = vmatprep.subr.mxu0 0.0
    %5039 = vmatpush1.msra.mxu0 0.0
    %5040 = vmatprep.subr.mxu0 0.0
    %5041 = vmatpush1.msra.mxu0 0.0
    %5042 = vmatprep.subr.mxu0 0.0
    %5043 = vmatpush1.msra.mxu0 0.0
    %5044 = vmatprep.subr.mxu0 0.0
    %5045 = vmatpush1.msra.mxu0 0.0
    %5046 = vmatprep.subr.mxu0 0.0
    %5047 = vmatpush1.msra.mxu0 0.0
    %5048 = vmatprep.subr.mxu0 0.0
    %5049 = vmatpush1.msra.mxu0 0.0
    %5050 = vmatprep.subr.mxu0 0.0
    %5051 = vmatpush1.msra.mxu0 0.0
    %5052 = vmatprep.subr.mxu0 0.0
    %5053 = vmatpush1.msra.mxu0 0.0
    %5054 = vmatprep.subr.mxu0 0.0
    %5055 = vmatpush1.msra.mxu0 0.0
    %5056 = vmatprep.subr.mxu0 0.0
    %5057 = vmatpush1.msra.mxu0 0.0
    %5058 = vmatprep.subr.mxu0 0.0
    %5059 = vmatpush1.msra.mxu0 0.0
    %5060 = vmatprep.subr.mxu0 0.0
    %5061 = vmatpush1.msra.mxu0 0.0
    %5062 = vmatprep.subr.mxu0 0.0
    %5063 = vmatpush1.msra.mxu0 0.0
    %5064 = vmatprep.subr.mxu0 0.0
    %5065 = vmatpush1.msra.mxu0 0.0
    %5066 = vmatprep.subr.mxu0 0.0
    %5067 = vmatpush1.msra.mxu0 0.0
    %5068 = vmatprep.subr.mxu0 0.0
    %5069 = vmatpush1.msra.mxu0 0.0
    %5070 = vmatprep.mubr.f32.mxu0 0.0
    %5071 = vmatmul.mubr.f32.gmra.mrb[0].mxu0 %v4995
    %v5072 = vpop.f32.mrb[0].mxu0
    %v5073 = vadd.f32 0.0, %v5072
    %v5074 = vpop.f32.mrb[0].mxu0
    %5075 = vmatprep.mubr.f32.mxu0 0.0
    %5076 = vmatmul.mubr.f32.gmra.mrb[0].mxu0 %v4998
    %v5077 = vpop.f32.mrb[0].mxu0
    %v5078 = vadd.f32 0.0, %v5077
    %v5079 = vpop.f32.mrb[0].mxu0
    %5080 = vmatprep.mubr.f32.mxu0 0.0
    %5081 = vmatmul.mubr.f32.gmra.mrb[0].mxu0 %v5001
    %v5082 = vpop.f32.mrb[0].mxu0
    %v5083 = vadd.f32 0.0, %v5082
    %v5084 = vpop.f32.mrb[0].mxu0
    %5085 = vmatprep.mubr.f32.mxu0 0.0
    %5086 = vmatmul.mubr.f32.gmra.mrb[0].mxu0 %v5004
    %v5087 = vpop.f32.mrb[0].mxu0
    %v5088 = vadd.f32 0.0, %v5087
    %v5089 = vpop.f32.mrb[0].mxu0
    %5090 = vdwg.mxu0
    %v5092 = vsel %vm571, %v4871, 0
    %v5095 = vsel %vm571, %v4876, 0
    %v5098 = vsel %vm571, %v4881, 0
    %v5101 = vsel %vm571, %v4886, 0
    %5103 = vmatprep.subr.mxu0 0.0
    %5104 = vmatpush1.msra.mxu0 %v3773
    %5105 = vmatprep.subr.mxu0 0.0
    %5106 = vmatpush1.msra.mxu0 %v3778
    %5107 = vmatprep.subr.mxu0 0.0
    %5108 = vmatpush1.msra.mxu0 %v3783
    %5109 = vmatprep.subr.mxu0 0.0
    %5110 = vmatpush1.msra.mxu0 %v3788
    %5111 = vmatprep.subr.mxu0 0.0
    %5112 = vmatpush1.msra.mxu0 0.0
    %5113 = vmatprep.subr.mxu0 0.0
    %5114 = vmatpush1.msra.mxu0 0.0
    %5115 = vmatprep.subr.mxu0 0.0
    %5116 = vmatpush1.msra.mxu0 0.0
    %5117 = vmatprep.subr.mxu0 0.0
    %5118 = vmatpush1.msra.mxu0 0.0
    %5119 = vmatprep.subr.mxu0 0.0
    %5120 = vmatpush1.msra.mxu0 0.0
    %5121 = vmatprep.subr.mxu0 0.0
    %5122 = vmatpush1.msra.mxu0 0.0
    %5123 = vmatprep.subr.mxu0 0.0
    %5124 = vmatpush1.msra.mxu0 0.0
    %5125 = vmatprep.subr.mxu0 0.0
    %5126 = vmatpush1.msra.mxu0 0.0
    %5127 = vmatprep.subr.mxu0 0.0
    %5128 = vmatpush1.msra.mxu0 0.0
    %5129 = vmatprep.subr.mxu0 0.0
    %5130 = vmatpush1.msra.mxu0 0.0
    %5131 = vmatprep.subr.mxu0 0.0
    %5132 = vmatpush1.msra.mxu0 0.0
    %5133 = vmatprep.subr.mxu0 0.0
    %5134 = vmatpush1.msra.mxu0 0.0
    %5135 = vmatprep.subr.mxu0 0.0
    %5136 = vmatpush1.msra.mxu0 0.0
    %5137 = vmatprep.subr.mxu0 0.0
    %5138 = vmatpush1.msra.mxu0 0.0
    %5139 = vmatprep.subr.mxu0 0.0
    %5140 = vmatpush1.msra.mxu0 0.0
    %5141 = vmatprep.subr.mxu0 0.0
    %5142 = vmatpush1.msra.mxu0 0.0
    %5143 = vmatprep.subr.mxu0 0.0
    %5144 = vmatpush1.msra.mxu0 0.0
    %5145 = vmatprep.subr.mxu0 0.0
    %5146 = vmatpush1.msra.mxu0 0.0
    %5147 = vmatprep.subr.mxu0 0.0
    %5148 = vmatpush1.msra.mxu0 0.0
    %5149 = vmatprep.subr.mxu0 0.0
    %5150 = vmatpush1.msra.mxu0 0.0
    %5151 = vmatprep.subr.mxu0 0.0
    %5152 = vmatpush1.msra.mxu0 0.0
    %5153 = vmatprep.subr.mxu0 0.0
    %5154 = vmatpush1.msra.mxu0 0.0
    %5155 = vmatprep.subr.mxu0 0.0
    %5156 = vmatpush1.msra.mxu0 0.0
    %5157 = vmatprep.subr.mxu0 0.0
    %5158 = vmatpush1.msra.mxu0 0.0
    %5159 = vmatprep.subr.mxu0 0.0
    %5160 = vmatpush1.msra.mxu0 0.0
    %5161 = vmatprep.subr.mxu0 0.0
    %5162 = vmatpush1.msra.mxu0 0.0
    %5163 = vmatprep.subr.mxu0 0.0
    %5164 = vmatpush1.msra.mxu0 0.0
    %5165 = vmatprep.subr.mxu0 0.0
    %5166 = vmatpush1.msra.mxu0 0.0
    %5167 = vmatprep.mubr.f32.mxu0 0.0
    %5168 = vmatmul.mubr.f32.gmra.mrb[0].mxu0 %v5092
    %v5169 = vpop.f32.mrb[0].mxu0
    %v5170 = vadd.f32 0.0, %v5169
    %v5171 = vpop.f32.mrb[0].mxu0
    %5172 = vmatprep.mubr.f32.mxu0 0.0
    %5173 = vmatmul.mubr.f32.gmra.mrb[0].mxu0 %v5095
    %v5174 = vpop.f32.mrb[0].mxu0
    %v5175 = vadd.f32 0.0, %v5174
    %v5176 = vpop.f32.mrb[0].mxu0
    %5177 = vmatprep.mubr.f32.mxu0 0.0
    %5178 = vmatmul.mubr.f32.gmra.mrb[0].mxu0 %v5098
    %v5179 = vpop.f32.mrb[0].mxu0
    %v5180 = vadd.f32 0.0, %v5179
    %v5181 = vpop.f32.mrb[0].mxu0
    %5182 = vmatprep.mubr.f32.mxu0 0.0
    %5183 = vmatmul.mubr.f32.gmra.mrb[0].mxu0 %v5101
    %v5184 = vpop.f32.mrb[0].mxu0
    %v5185 = vadd.f32 0.0, %v5184
    %v5186 = vpop.f32.mrb[0].mxu0
    %5187 = vdwg.mxu0
    %v5188 = vmul.f32 %v5073, 0.5
    %v5189 = vmul.f32 %v5078, 0.5
    %v5190 = vmul.f32 %v5083, 0.5
    %v5191 = vmul.f32 %v5088, 0.5
    %v5192 = vmul.f32 %v5170, 0.5
    %v5193 = vmul.f32 %v5175, 0.5
    %v5194 = vmul.f32 %v5180, 0.5
    %v5195 = vmul.f32 %v5185, 0.5
    %v5196 = vsel %vm571, %v5188, -inf
    %v5197 = vsel %vm571, %v5189, -inf
    %v5198 = vsel %vm571, %v5190, -inf
    %v5199 = vmax.f32 %v5196, %v5198
    %v5200 = vsel %vm571, %v5191, -inf
    %v5201 = vmax.f32 %v5197, %v5200
    %v5202 = vmax.f32 %v5199, %v5201
    %v5203 = vrot.slane %v5202, 4
    %v5204 = vmax.f32 %v5202, %v5203
    %v5205 = vrot.slane %v5204, 2
    %v5206 = vmax.f32 %v5204, %v5205
    %v5207 = vrot.slane %v5206, 1
    %v5208 = vmax.f32 %v5206, %v5207
    %v5209 = vsel %vm571, %v5192, -inf
    %v5210 = vsel %vm571, %v5193, -inf
    %v5211 = vsel %vm571, %v5194, -inf
    %v5212 = vmax.f32 %v5209, %v5211
    %v5213 = vsel %vm571, %v5195, -inf
    %v5214 = vmax.f32 %v5210, %v5213
    %v5215 = vmax.f32 %v5212, %v5214
    %v5216 = vrot.slane %v5215, 4
    %v5217 = vmax.f32 %v5215, %v5216
    %v5218 = vrot.slane %v5217, 2
    %v5219 = vmax.f32 %v5217, %v5218
    %v5220 = vrot.slane %v5219, 1
    %v5221 = vmax.f32 %v5219, %v5220
    %v5222 = vsub.f32 %v5188, %v5208
    %v5223 = vsub.f32 %v5189, %v5208
    %v5224 = vsub.f32 %v5190, %v5208
    %v5225 = vsub.f32 %v5191, %v5208
    %v5226 = vsub.f32 %v5192, %v5221
    %v5227 = vsub.f32 %v5193, %v5221
    %v5228 = vsub.f32 %v5194, %v5221
    %v5229 = vsub.f32 %v5195, %v5221
    %v5230 = vmul.f32 %v5222, 1.442695
    %v5231 = vpow.pop %v5230
    %v5232 = vmul.f32 %v5223, 1.442695
    %v5233 = vpow.pop %v5232
    %v5234 = vmul.f32 %v5224, 1.442695
    %v5235 = vpow.pop %v5234
    %v5236 = vmul.f32 %v5225, 1.442695
    %v5237 = vpow.pop %v5236
    %v5238 = vmul.f32 %v5226, 1.442695
    %v5239 = vpow.pop %v5238
    %v5240 = vmul.f32 %v5227, 1.442695
    %v5241 = vpow.pop %v5240
    %v5242 = vmul.f32 %v5228, 1.442695
    %v5243 = vpow.pop %v5242
    %v5244 = vmul.f32 %v5229, 1.442695
    %v5245 = vpow.pop %v5244
    %v5246 = vsel %vm571, %v5231, 0.0
    %v5247 = vsel %vm571, %v5233, 0.0
    %v5248 = vadd.f32 %v5246, %v5247
    %v5249 = vsel %vm571, %v5235, 0.0
    %v5250 = vadd.f32 %v5248, %v5249
    %v5251 = vsel %vm571, %v5237, 0.0
    %v5252 = vadd.f32 %v5250, %v5251
    %v5253 = vrot.slane %v5252, 4
    %v5254 = vadd.f32 %v5252, %v5253
    %v5255 = vrot.slane %v5254, 2
    %v5256 = vadd.f32 %v5254, %v5255
    %v5257 = vrot.slane %v5256, 1
    %v5258 = vadd.f32 %v5256, %v5257
    %v5259 = vsel %vm571, %v5239, 0.0
    %v5260 = vsel %vm571, %v5241, 0.0
    %v5261 = vadd.f32 %v5259, %v5260
    %v5262 = vsel %vm571, %v5243, 0.0
    %v5263 = vadd.f32 %v5261, %v5262
    %v5264 = vsel %vm571, %v5245, 0.0
    %v5265 = vadd.f32 %v5263, %v5264
    %v5266 = vrot.slane %v5265, 4
    %v5267 = vadd.f32 %v5265, %v5266
    %v5268 = vrot.slane %v5267, 2
    %v5269 = vadd.f32 %v5267, %v5268
    %v5270 = vrot.slane %v5269, 1
    %v5271 = vadd.f32 %v5269, %v5270
    %v5272 = vrcp.pop %v5258
    %v5273 = vrcp.pop %v5271
    %v5274 = vmul.f32 %v5231, %v5272
    %v5275 = vmul.f32 %v5233, %v5272
    %v5276 = vmul.f32 %v5235, %v5272
    %v5277 = vmul.f32 %v5237, %v5272
    %v5278 = vmul.f32 %v5239, %v5273
    %v5279 = vmul.f32 %v5241, %v5273
    %v5280 = vmul.f32 %v5243, %v5273
    %v5281 = vmul.f32 %v5245, %v5273
    %v5283 = vsel %vm571, %v5274, 0
    %v5286 = vsel %vm571, %v5275, 0
    %v5289 = vsel %vm571, %v5276, 0
    %v5292 = vsel %vm571, %v5277, 0
    %5294 = vmatprep.subr.mxu0 0.0
    %5295 = vmatpush1.msra.mxu0 %v4956
    %5296 = vmatprep.subr.mxu0 0.0
    %5297 = vmatpush1.msra.mxu0 %v4961
    %5298 = vmatprep.subr.mxu0 0.0
    %5299 = vmatpush1.msra.mxu0 %v4966
    %5300 = vmatprep.subr.mxu0 0.0
    %5301 = vmatpush1.msra.mxu0 %v4971
    %5302 = vmatprep.subr.mxu0 0.0
    %5303 = vmatpush1.msra.mxu0 0.0
    %5304 = vmatprep.subr.mxu0 0.0
    %5305 = vmatpush1.msra.mxu0 0.0
    %5306 = vmatprep.subr.mxu0 0.0
    %5307 = vmatpush1.msra.mxu0 0.0
    %5308 = vmatprep.subr.mxu0 0.0
    %5309 = vmatpush1.msra.mxu0 0.0
    %5310 = vmatprep.subr.mxu0 0.0
    %5311 = vmatpush1.msra.mxu0 0.0
    %5312 = vmatprep.subr.mxu0 0.0
    %5313 = vmatpush1.msra.mxu0 0.0
    %5314 = vmatprep.subr.mxu0 0.0
    %5315 = vmatpush1.msra.mxu0 0.0
    %5316 = vmatprep.subr.mxu0 0.0
    %5317 = vmatpush1.msra.mxu0 0.0
    %5318 = vmatprep.subr.mxu0 0.0
    %5319 = vmatpush1.msra.mxu0 0.0
    %5320 = vmatprep.subr.mxu0 0.0
    %5321 = vmatpush1.msra.mxu0 0.0
    %5322 = vmatprep.subr.mxu0 0.0
    %5323 = vmatpush1.msra.mxu0 0.0
    %5324 = vmatprep.subr.mxu0 0.0
    %5325 = vmatpush1.msra.mxu0 0.0
    %5326 = vmatprep.subr.mxu0 0.0
    %5327 = vmatpush1.msra.mxu0 0.0
    %5328 = vmatprep.subr.mxu0 0.0
    %5329 = vmatpush1.msra.mxu0 0.0
    %5330 = vmatprep.subr.mxu0 0.0
    %5331 = vmatpush1.msra.mxu0 0.0
    %5332 = vmatprep.subr.mxu0 0.0
    %5333 = vmatpush1.msra.mxu0 0.0
    %5334 = vmatprep.subr.mxu0 0.0
    %5335 = vmatpush1.msra.mxu0 0.0
    %5336 = vmatprep.subr.mxu0 0.0
    %5337 = vmatpush1.msra.mxu0 0.0
    %5338 = vmatprep.subr.mxu0 0.0
    %5339 = vmatpush1.msra.mxu0 0.0
    %5340 = vmatprep.subr.mxu0 0.0
    %5341 = vmatpush1.msra.mxu0 0.0
    %5342 = vmatprep.subr.mxu0 0.0
    %5343 = vmatpush1.msra.mxu0 0.0
    %5344 = vmatprep.subr.mxu0 0.0
    %5345 = vmatpush1.msra.mxu0 0.0
    %5346 = vmatprep.subr.mxu0 0.0
    %5347 = vmatpush1.msra.mxu0 0.0
    %5348 = vmatprep.subr.mxu0 0.0
    %5349 = vmatpush1.msra.mxu0 0.0
    %5350 = vmatprep.subr.mxu0 0.0
    %5351 = vmatpush1.msra.mxu0 0.0
    %5352 = vmatprep.subr.mxu0 0.0
    %5353 = vmatpush1.msra.mxu0 0.0
    %5354 = vmatprep.subr.mxu0 0.0
    %5355 = vmatpush1.msra.mxu0 0.0
    %5356 = vmatprep.subr.mxu0 0.0
    %5357 = vmatpush1.msra.mxu0 0.0
    %5358 = vmatprep.mubr.f32.mxu0 0.0
    %5359 = vmatmul.mubr.f32.gmra.mrb[0].mxu0 %v5283
    %v5360 = vpop.f32.mrb[0].mxu0
    %v5361 = vadd.f32 0.0, %v5360
    %v5362 = vpop.f32.mrb[0].mxu0
    %5363 = vmatprep.mubr.f32.mxu0 0.0
    %5364 = vmatmul.mubr.f32.gmra.mrb[0].mxu0 %v5286
    %v5365 = vpop.f32.mrb[0].mxu0
    %v5366 = vadd.f32 0.0, %v5365
    %v5367 = vpop.f32.mrb[0].mxu0
    %5368 = vmatprep.mubr.f32.mxu0 0.0
    %5369 = vmatmul.mubr.f32.gmra.mrb[0].mxu0 %v5289
    %v5370 = vpop.f32.mrb[0].mxu0
    %v5371 = vadd.f32 0.0, %v5370
    %v5372 = vpop.f32.mrb[0].mxu0
    %5373 = vmatprep.mubr.f32.mxu0 0.0
    %5374 = vmatmul.mubr.f32.gmra.mrb[0].mxu0 %v5292
    %v5375 = vpop.f32.mrb[0].mxu0
    %v5376 = vadd.f32 0.0, %v5375
    %v5377 = vpop.f32.mrb[0].mxu0
    %5378 = vdwg.mxu0
    %v5380 = vsel %vm571, %v5278, 0
    %v5383 = vsel %vm571, %v5279, 0
    %v5386 = vsel %vm571, %v5280, 0
    %v5389 = vsel %vm571, %v5281, 0
    %5391 = vmatprep.subr.mxu0 0.0
    %5392 = vmatpush1.msra.mxu0 %v4976
    %5393 = vmatprep.subr.mxu0 0.0
    %5394 = vmatpush1.msra.mxu0 %v4981
    %5395 = vmatprep.subr.mxu0 0.0
    %5396 = vmatpush1.msra.mxu0 %v4986
    %5397 = vmatprep.subr.mxu0 0.0
    %5398 = vmatpush1.msra.mxu0 %v4991
    %5399 = vmatprep.subr.mxu0 0.0
    %5400 = vmatpush1.msra.mxu0 0.0
    %5401 = vmatprep.subr.mxu0 0.0
    %5402 = vmatpush1.msra.mxu0 0.0
    %5403 = vmatprep.subr.mxu0 0.0
    %5404 = vmatpush1.msra.mxu0 0.0
    %5405 = vmatprep.subr.mxu0 0.0
    %5406 = vmatpush1.msra.mxu0 0.0
    %5407 = vmatprep.subr.mxu0 0.0
    %5408 = vmatpush1.msra.mxu0 0.0
    %5409 = vmatprep.subr.mxu0 0.0
    %5410 = vmatpush1.msra.mxu0 0.0
    %5411 = vmatprep.subr.mxu0 0.0
    %5412 = vmatpush1.msra.mxu0 0.0
    %5413 = vmatprep.subr.mxu0 0.0
    %5414 = vmatpush1.msra.mxu0 0.0
    %5415 = vmatprep.subr.mxu0 0.0
    %5416 = vmatpush1.msra.mxu0 0.0
    %5417 = vmatprep.subr.mxu0 0.0
    %5418 = vmatpush1.msra.mxu0 0.0
    %5419 = vmatprep.subr.mxu0 0.0
    %5420 = vmatpush1.msra.mxu0 0.0
    %5421 = vmatprep.subr.mxu0 0.0
    %5422 = vmatpush1.msra.mxu0 0.0
    %5423 = vmatprep.subr.mxu0 0.0
    %5424 = vmatpush1.msra.mxu0 0.0
    %5425 = vmatprep.subr.mxu0 0.0
    %5426 = vmatpush1.msra.mxu0 0.0
    %5427 = vmatprep.subr.mxu0 0.0
    %5428 = vmatpush1.msra.mxu0 0.0
    %5429 = vmatprep.subr.mxu0 0.0
    %5430 = vmatpush1.msra.mxu0 0.0
    %5431 = vmatprep.subr.mxu0 0.0
    %5432 = vmatpush1.msra.mxu0 0.0
    %5433 = vmatprep.subr.mxu0 0.0
    %5434 = vmatpush1.msra.mxu0 0.0
    %5435 = vmatprep.subr.mxu0 0.0
    %5436 = vmatpush1.msra.mxu0 0.0
    %5437 = vmatprep.subr.mxu0 0.0
    %5438 = vmatpush1.msra.mxu0 0.0
    %5439 = vmatprep.subr.mxu0 0.0
    %5440 = vmatpush1.msra.mxu0 0.0
    %5441 = vmatprep.subr.mxu0 0.0
    %5442 = vmatpush1.msra.mxu0 0.0
    %5443 = vmatprep.subr.mxu0 0.0
    %5444 = vmatpush1.msra.mxu0 0.0
    %5445 = vmatprep.subr.mxu0 0.0
    %5446 = vmatpush1.msra.mxu0 0.0
    %5447 = vmatprep.subr.mxu0 0.0
    %5448 = vmatpush1.msra.mxu0 0.0
    %5449 = vmatprep.subr.mxu0 0.0
    %5450 = vmatpush1.msra.mxu0 0.0
    %5451 = vmatprep.subr.mxu0 0.0
    %5452 = vmatpush1.msra.mxu0 0.0
    %5453 = vmatprep.subr.mxu0 0.0
    %5454 = vmatpush1.msra.mxu0 0.0
    %5455 = vmatprep.mubr.f32.mxu0 0.0
    %5456 = vmatmul.mubr.f32.gmra.mrb[0].mxu0 %v5380
    %v5457 = vpop.f32.mrb[0].mxu0
    %v5458 = vadd.f32 0.0, %v5457
    %v5459 = vpop.f32.mrb[0].mxu0
    %5460 = vmatprep.mubr.f32.mxu0 0.0
    %5461 = vmatmul.mubr.f32.gmra.mrb[0].mxu0 %v5383
    %v5462 = vpop.f32.mrb[0].mxu0
    %v5463 = vadd.f32 0.0, %v5462
    %v5464 = vpop.f32.mrb[0].mxu0
    %5465 = vmatprep.mubr.f32.mxu0 0.0
    %5466 = vmatmul.mubr.f32.gmra.mrb[0].mxu0 %v5386
    %v5467 = vpop.f32.mrb[0].mxu0
    %v5468 = vadd.f32 0.0, %v5467
    %v5469 = vpop.f32.mrb[0].mxu0
    %5470 = vmatprep.mubr.f32.mxu0 0.0
    %5471 = vmatmul.mubr.f32.gmra.mrb[0].mxu0 %v5389
    %v5472 = vpop.f32.mrb[0].mxu0
    %v5473 = vadd.f32 0.0, %v5472
    %v5474 = vpop.f32.mrb[0].mxu0
    %5475 = vdwg.mxu0
    %v5477 = vsel %vm571, %v5361, 0
    %v5480 = vsel %vm571, %v5366, 0
    %v5483 = vsel %vm571, %v5371, 0
    %v5486 = vsel %vm571, %v5376, 0
    %v5489 = vsel %vm571, %v5458, 0
    %v5492 = vsel %vm571, %v5463, 0
    %v5495 = vsel %vm571, %v5468, 0
    %v5498 = vsel %vm571, %v5473, 0
    %5500 = vmatprep.subr.mxu0 0.0
    %5501 = vmatpush1.msra.mxu0 %v3636
    %5502 = vmatprep.subr.mxu0 0.0
    %5503 = vmatpush1.msra.mxu0 %v3637
    %5504 = vmatprep.subr.mxu0 0.0
    %5505 = vmatpush1.msra.mxu0 %v3638
    %5506 = vmatprep.subr.mxu0 0.0
    %5507 = vmatpush1.msra.mxu0 %v3639
    %5508 = vmatprep.subr.mxu0 0.0
    %5509 = vmatpush1.msra.mxu0 0.0
    %5510 = vmatprep.subr.mxu0 0.0
    %5511 = vmatpush1.msra.mxu0 0.0
    %5512 = vmatprep.subr.mxu0 0.0
    %5513 = vmatpush1.msra.mxu0 0.0
    %5514 = vmatprep.subr.mxu0 0.0
    %5515 = vmatpush1.msra.mxu0 0.0
    %5516 = vmatprep.subr.mxu0 0.0
    %5517 = vmatpush1.msra.mxu0 0.0
    %5518 = vmatprep.subr.mxu0 0.0
    %5519 = vmatpush1.msra.mxu0 0.0
    %5520 = vmatprep.subr.mxu0 0.0
    %5521 = vmatpush1.msra.mxu0 0.0
    %5522 = vmatprep.subr.mxu0 0.0
    %5523 = vmatpush1.msra.mxu0 0.0
    %5524 = vmatprep.subr.mxu0 0.0
    %5525 = vmatpush1.msra.mxu0 0.0
    %5526 = vmatprep.subr.mxu0 0.0
    %5527 = vmatpush1.msra.mxu0 0.0
    %5528 = vmatprep.subr.mxu0 0.0
    %5529 = vmatpush1.msra.mxu0 0.0
    %5530 = vmatprep.subr.mxu0 0.0
    %5531 = vmatpush1.msra.mxu0 0.0
    %5532 = vmatprep.subr.mxu0 0.0
    %5533 = vmatpush1.msra.mxu0 0.0
    %5534 = vmatprep.subr.mxu0 0.0
    %5535 = vmatpush1.msra.mxu0 0.0
    %5536 = vmatprep.subr.mxu0 0.0
    %5537 = vmatpush1.msra.mxu0 0.0
    %5538 = vmatprep.subr.mxu0 0.0
    %5539 = vmatpush1.msra.mxu0 0.0
    %5540 = vmatprep.subr.mxu0 0.0
    %5541 = vmatpush1.msra.mxu0 0.0
    %5542 = vmatprep.subr.mxu0 0.0
    %5543 = vmatpush1.msra.mxu0 0.0
    %5544 = vmatprep.subr.mxu0 0.0
    %5545 = vmatpush1.msra.mxu0 0.0
    %5546 = vmatprep.subr.mxu0 0.0
    %5547 = vmatpush1.msra.mxu0 0.0
    %5548 = vmatprep.subr.mxu0 0.0
    %5549 = vmatpush1.msra.mxu0 0.0
    %5550 = vmatprep.subr.mxu0 0.0
    %5551 = vmatpush1.msra.mxu0 0.0
    %5552 = vmatprep.subr.mxu0 0.0
    %5553 = vmatpush1.msra.mxu0 0.0
    %5554 = vmatprep.subr.mxu0 0.0
    %5555 = vmatpush1.msra.mxu0 0.0
    %5556 = vmatprep.subr.mxu0 0.0
    %5557 = vmatpush1.msra.mxu0 0.0
    %5558 = vmatprep.subr.mxu0 0.0
    %5559 = vmatpush1.msra.mxu0 0.0
    %5560 = vmatprep.subr.mxu0 0.0
    %5561 = vmatpush1.msra.mxu0 0.0
    %5562 = vmatprep.subr.mxu0 0.0
    %5563 = vmatpush1.msra.mxu0 0.0
    %5564 = vmatprep.mubr.f32.mxu0 0.0
    %5565 = vmatmul.mubr.f32.gmra.mrb[0].mxu0 %v5477
    %v5566 = vpop.f32.mrb[0].mxu0
    %v5567 = vadd.f32 %v4494, %v5566
    %v5568 = vpop.f32.mrb[0].mxu0
    %5569 = vmatprep.mubr.f32.mxu0 0.0
    %5570 = vmatmul.mubr.f32.gmra.mrb[0].mxu0 %v5480
    %v5571 = vpop.f32.mrb[0].mxu0
    %v5572 = vadd.f32 %v4494, %v5571
    %v5573 = vpop.f32.mrb[0].mxu0
    %5574 = vmatprep.mubr.f32.mxu0 0.0
    %5575 = vmatmul.mubr.f32.gmra.mrb[0].mxu0 %v5483
    %v5576 = vpop.f32.mrb[0].mxu0
    %v5577 = vadd.f32 %v4494, %v5576
    %v5578 = vpop.f32.mrb[0].mxu0
    %5579 = vmatprep.mubr.f32.mxu0 0.0
    %5580 = vmatmul.mubr.f32.gmra.mrb[0].mxu0 %v5486
    %v5581 = vpop.f32.mrb[0].mxu0
    %v5582 = vadd.f32 %v4494, %v5581
    %v5583 = vpop.f32.mrb[0].mxu0
    %5584 = vmatprep.mubr.f32.mxu0 0.0
    %5585 = vmatmul.mubr.f32.gmra.mrb[0].mxu0 %v5489
    %v5586 = vpop.f32.mrb[0].mxu0
    %v5587 = vadd.f32 %v4494, %v5586
    %v5588 = vpop.f32.mrb[0].mxu0
    %5589 = vmatprep.mubr.f32.mxu0 0.0
    %5590 = vmatmul.mubr.f32.gmra.mrb[0].mxu0 %v5492
    %v5591 = vpop.f32.mrb[0].mxu0
    %v5592 = vadd.f32 %v4494, %v5591
    %v5593 = vpop.f32.mrb[0].mxu0
    %5594 = vmatprep.mubr.f32.mxu0 0.0
    %5595 = vmatmul.mubr.f32.gmra.mrb[0].mxu0 %v5495
    %v5596 = vpop.f32.mrb[0].mxu0
    %v5597 = vadd.f32 %v4494, %v5596
    %v5598 = vpop.f32.mrb[0].mxu0
    %5599 = vmatprep.mubr.f32.mxu0 0.0
    %5600 = vmatmul.mubr.f32.gmra.mrb[0].mxu0 %v5498
    %v5601 = vpop.f32.mrb[0].mxu0
    %v5602 = vadd.f32 %v4494, %v5601
    %v5603 = vpop.f32.mrb[0].mxu0
    %5604 = vdwg.mxu0
    %v5605 = vadd.f32 %v4752, %v5567
    %v5606 = vadd.f32 %v4753, %v5572
    %v5607 = vadd.f32 %v4754, %v5577
    %v5608 = vadd.f32 %v4755, %v5582
    %v5609 = vadd.f32 %v4756, %v5587
    %v5610 = vadd.f32 %v4757, %v5592
    %v5611 = vadd.f32 %v4758, %v5597
    %v5612 = vadd.f32 %v4759, %v5602
    %v5613 = vsel %vm571, %v5605, 0.0
    %5614 = vadd.xlane.f32.xlu0 %v5613
    %v5615 = vpop.xlane.xlu0 %5614
    %v5616 = vsel %vm571, %v5606, 0.0
    %5617 = vadd.xlane.f32.xlu0 %v5616
    %v5618 = vpop.xlane.xlu0 %5617
    %v5619 = vsel %vm571, %v5607, 0.0
    %5620 = vadd.xlane.f32.xlu0 %v5619
    %v5621 = vpop.xlane.xlu0 %5620
    %v5622 = vsel %vm571, %v5608, 0.0
    %5623 = vadd.xlane.f32.xlu0 %v5622
    %v5624 = vpop.xlane.xlu0 %5623
    %v5625 = vsel %vm571, %v5609, 0.0
    %5626 = vadd.xlane.f32.xlu0 %v5625
    %v5627 = vpop.xlane.xlu0 %5626
    %v5628 = vsel %vm571, %v5610, 0.0
    %5629 = vadd.xlane.f32.xlu0 %v5628
    %v5630 = vpop.xlane.xlu0 %5629
    %v5631 = vsel %vm571, %v5611, 0.0
    %5632 = vadd.xlane.f32.xlu0 %v5631
    %v5633 = vpop.xlane.xlu0 %5632
    %v5634 = vsel %vm571, %v5612, 0.0
    %5635 = vadd.xlane.f32.xlu0 %v5634
    %v5636 = vpop.xlane.xlu0 %5635
    %v5637 = vmul.f32 %v5615, %v1566
    %v5638 = vmul.f32 %v5618, %v1566
    %v5639 = vmul.f32 %v5621, %v1566
    %v5640 = vmul.f32 %v5624, %v1566
    %v5641 = vmul.f32 %v5627, %v1566
    %v5642 = vmul.f32 %v5630, %v1566
    %v5643 = vmul.f32 %v5633, %v1566
    %v5644 = vmul.f32 %v5636, %v1566
    %v5645 = vsub.f32 %v5605, %v5637
    %v5646 = vsub.f32 %v5606, %v5638
    %v5647 = vsub.f32 %v5607, %v5639
    %v5648 = vsub.f32 %v5608, %v5640
    %v5649 = vsub.f32 %v5609, %v5641
    %v5650 = vsub.f32 %v5610, %v5642
    %v5651 = vsub.f32 %v5611, %v5643
    %v5652 = vsub.f32 %v5612, %v5644
    %v5653 = vmul.f32 %v5645, %v5645
    %v5654 = vmul.f32 %v5646, %v5646
    %v5655 = vmul.f32 %v5647, %v5647
    %v5656 = vmul.f32 %v5648, %v5648
    %v5657 = vmul.f32 %v5649, %v5649
    %v5658 = vmul.f32 %v5650, %v5650
    %v5659 = vmul.f32 %v5651, %v5651
    %v5660 = vmul.f32 %v5652, %v5652
    %v5661 = vsel %vm571, %v5653, 0.0
    %5662 = vadd.xlane.f32.xlu0 %v5661
    %v5663 = vpop.xlane.xlu0 %5662
    %v5664 = vsel %vm571, %v5654, 0.0
    %5665 = vadd.xlane.f32.xlu0 %v5664
    %v5666 = vpop.xlane.xlu0 %5665
    %v5667 = vsel %vm571, %v5655, 0.0
    %5668 = vadd.xlane.f32.xlu0 %v5667
    %v5669 = vpop.xlane.xlu0 %5668
    %v5670 = vsel %vm571, %v5656, 0.0
    %5671 = vadd.xlane.f32.xlu0 %v5670
    %v5672 = vpop.xlane.xlu0 %5671
    %v5673 = vsel %vm571, %v5657, 0.0
    %5674 = vadd.xlane.f32.xlu0 %v5673
    %v5675 = vpop.xlane.xlu0 %5674
    %v5676 = vsel %vm571, %v5658, 0.0
    %5677 = vadd.xlane.f32.xlu0 %v5676
    %v5678 = vpop.xlane.xlu0 %5677
    %v5679 = vsel %vm571, %v5659, 0.0
    %5680 = vadd.xlane.f32.xlu0 %v5679
    %v5681 = vpop.xlane.xlu0 %5680
    %v5682 = vsel %vm571, %v5660, 0.0
    %5683 = vadd.xlane.f32.xlu0 %v5682
    %v5684 = vpop.xlane.xlu0 %5683
    %v5685 = vmul.f32 %v5663, %v1566
    %v5686 = vmul.f32 %v5666, %v1566
    %v5687 = vmul.f32 %v5669, %v1566
    %v5688 = vmul.f32 %v5672, %v1566
    %v5689 = vmul.f32 %v5675, %v1566
    %v5690 = vmul.f32 %v5678, %v1566
    %v5691 = vmul.f32 %v5681, %v1566
    %v5692 = vmul.f32 %v5684, %v1566
    %v5693 = vadd.f32 %v5685, 1e-05
    %v5694 = vadd.f32 %v5686, 1e-05
    %v5695 = vadd.f32 %v5687, 1e-05
    %v5696 = vadd.f32 %v5688, 1e-05
    %v5697 = vadd.f32 %v5689, 1e-05
    %v5698 = vadd.f32 %v5690, 1e-05
    %v5699 = vadd.f32 %v5691, 1e-05
    %v5700 = vadd.f32 %v5692, 1e-05
    %v5701 = vrsqrt.pop %v5693
    %v5702 = vrsqrt.pop %v5694
    %v5703 = vrsqrt.pop %v5695
    %v5704 = vrsqrt.pop %v5696
    %v5705 = vrsqrt.pop %v5697
    %v5706 = vrsqrt.pop %v5698
    %v5707 = vrsqrt.pop %v5699
    %v5708 = vrsqrt.pop %v5700
    %v5709 = vmul.f32 %v5645, %v5701
    %v5710 = vmul.f32 %v5646, %v5702
    %v5711 = vmul.f32 %v5647, %v5703
    %v5712 = vmul.f32 %v5648, %v5704
    %v5713 = vmul.f32 %v5649, %v5705
    %v5714 = vmul.f32 %v5650, %v5706
    %v5715 = vmul.f32 %v5651, %v5707
    %v5716 = vmul.f32 %v5652, %v5708
    %v5717 = vmul.f32 %v5709, %v4739
    %v5718 = vmul.f32 %v5710, %v4739
    %v5719 = vmul.f32 %v5711, %v4739
    %v5720 = vmul.f32 %v5712, %v4739
    %v5721 = vmul.f32 %v5713, %v4739
    %v5722 = vmul.f32 %v5714, %v4739
    %v5723 = vmul.f32 %v5715, %v4739
    %v5724 = vmul.f32 %v5716, %v4739
    %v5725 = vadd.f32 %v5717, %v4751
    %v5726 = vadd.f32 %v5718, %v4751
    %v5727 = vadd.f32 %v5719, %v4751
    %v5728 = vadd.f32 %v5720, %v4751
    %v5729 = vadd.f32 %v5721, %v4751
    %v5730 = vadd.f32 %v5722, %v4751
    %v5731 = vadd.f32 %v5723, %v4751
    %v5732 = vadd.f32 %v5724, %v4751
    %v5734 = vlaneseq
    %v5735 = vshrl.u32 %v5734, 7
    %v5736 = vsub.s32 0, %v5735
    %v5737 = vrot.slane %v3648, %v5736
    %v5740 = vsel %vm571, %v5725, 0
    %v5743 = vsel %vm571, %v5726, 0
    %v5746 = vsel %vm571, %v5727, 0
    %v5749 = vsel %vm571, %v5728, 0
    %v5752 = vsel %vm571, %v5729, 0
    %v5755 = vsel %vm571, %v5730, 0
    %v5758 = vsel %vm571, %v5731, 0
    %v5761 = vsel %vm571, %v5732, 0
    %5763 = vmatprep.subr.mxu0 0.0
    %5764 = vmatpush1.msra.mxu0 %v3643
    %5765 = vmatprep.subr.mxu0 0.0
    %5766 = vmatpush1.msra.mxu0 %v3644
    %5767 = vmatprep.subr.mxu0 0.0
    %5768 = vmatpush1.msra.mxu0 %v3645
    %5769 = vmatprep.subr.mxu0 0.0
    %5770 = vmatpush1.msra.mxu0 %v3646
    %5771 = vmatprep.subr.mxu0 0.0
    %5772 = vmatpush1.msra.mxu0 0.0
    %5773 = vmatprep.subr.mxu0 0.0
    %5774 = vmatpush1.msra.mxu0 0.0
    %5775 = vmatprep.subr.mxu0 0.0
    %5776 = vmatpush1.msra.mxu0 0.0
    %5777 = vmatprep.subr.mxu0 0.0
    %5778 = vmatpush1.msra.mxu0 0.0
    %5779 = vmatprep.subr.mxu0 0.0
    %5780 = vmatpush1.msra.mxu0 0.0
    %5781 = vmatprep.subr.mxu0 0.0
    %5782 = vmatpush1.msra.mxu0 0.0
    %5783 = vmatprep.subr.mxu0 0.0
    %5784 = vmatpush1.msra.mxu0 0.0
    %5785 = vmatprep.subr.mxu0 0.0
    %5786 = vmatpush1.msra.mxu0 0.0
    %5787 = vmatprep.subr.mxu0 0.0
    %5788 = vmatpush1.msra.mxu0 0.0
    %5789 = vmatprep.subr.mxu0 0.0
    %5790 = vmatpush1.msra.mxu0 0.0
    %5791 = vmatprep.subr.mxu0 0.0
    %5792 = vmatpush1.msra.mxu0 0.0
    %5793 = vmatprep.subr.mxu0 0.0
    %5794 = vmatpush1.msra.mxu0 0.0
    %5795 = vmatprep.subr.mxu0 0.0
    %5796 = vmatpush1.msra.mxu0 0.0
    %5797 = vmatprep.subr.mxu0 0.0
    %5798 = vmatpush1.msra.mxu0 0.0
    %5799 = vmatprep.subr.mxu0 0.0
    %5800 = vmatpush1.msra.mxu0 0.0
    %5801 = vmatprep.subr.mxu0 0.0
    %5802 = vmatpush1.msra.mxu0 0.0
    %5803 = vmatprep.subr.mxu0 0.0
    %5804 = vmatpush1.msra.mxu0 0.0
    %5805 = vmatprep.subr.mxu0 0.0
    %5806 = vmatpush1.msra.mxu0 0.0
    %5807 = vmatprep.subr.mxu0 0.0
    %5808 = vmatpush1.msra.mxu0 0.0
    %5809 = vmatprep.subr.mxu0 0.0
    %5810 = vmatpush1.msra.mxu0 0.0
    %5811 = vmatprep.subr.mxu0 0.0
    %5812 = vmatpush1.msra.mxu0 0.0
    %5813 = vmatprep.subr.mxu0 0.0
    %5814 = vmatpush1.msra.mxu0 0.0
    %5815 = vmatprep.subr.mxu0 0.0
    %5816 = vmatpush1.msra.mxu0 0.0
    %5817 = vmatprep.subr.mxu0 0.0
    %5818 = vmatpush1.msra.mxu0 0.0
    %5819 = vmatprep.subr.mxu0 0.0
    %5820 = vmatpush1.msra.mxu0 0.0
    %5821 = vmatprep.subr.mxu0 0.0
    %5822 = vmatpush1.msra.mxu0 0.0
    %5823 = vmatprep.subr.mxu0 0.0
    %5824 = vmatpush1.msra.mxu0 0.0
    %5825 = vmatprep.subr.mxu0 0.0
    %5826 = vmatpush1.msra.mxu0 0.0
    %5827 = vmatprep.mubr.f32.mxu0 0.0
    %5828 = vmatmul.mubr.f32.gmra.mrb[0].mxu0 %v5740
    %v5829 = vpop.f32.mrb[0].mxu0
    %v5830 = vadd.f32 %v5737, %v5829
    %v5831 = vpop.f32.mrb[0].mxu0
    %5832 = vmatprep.mubr.f32.mxu0 0.0
    %5833 = vmatmul.mubr.f32.gmra.mrb[0].mxu0 %v5743
    %v5834 = vpop.f32.mrb[0].mxu0
    %v5835 = vadd.f32 %v5737, %v5834
    %v5836 = vpop.f32.mrb[0].mxu0
    %5837 = vmatprep.mubr.f32.mxu0 0.0
    %5838 = vmatmul.mubr.f32.gmra.mrb[0].mxu0 %v5746
    %v5839 = vpop.f32.mrb[0].mxu0
    %v5840 = vadd.f32 %v5737, %v5839
    %v5841 = vpop.f32.mrb[0].mxu0
    %5842 = vmatprep.mubr.f32.mxu0 0.0
    %5843 = vmatmul.mubr.f32.gmra.mrb[0].mxu0 %v5749
    %v5844 = vpop.f32.mrb[0].mxu0
    %v5845 = vadd.f32 %v5737, %v5844
    %v5846 = vpop.f32.mrb[0].mxu0
    %5847 = vmatprep.mubr.f32.mxu0 0.0
    %5848 = vmatmul.mubr.f32.gmra.mrb[0].mxu0 %v5752
    %v5849 = vpop.f32.mrb[0].mxu0
    %v5850 = vadd.f32 %v5737, %v5849
    %v5851 = vpop.f32.mrb[0].mxu0
    %5852 = vmatprep.mubr.f32.mxu0 0.0
    %5853 = vmatmul.mubr.f32.gmra.mrb[0].mxu0 %v5755
    %v5854 = vpop.f32.mrb[0].mxu0
    %v5855 = vadd.f32 %v5737, %v5854
    %v5856 = vpop.f32.mrb[0].mxu0
    %5857 = vmatprep.mubr.f32.mxu0 0.0
    %5858 = vmatmul.mubr.f32.gmra.mrb[0].mxu0 %v5758
    %v5859 = vpop.f32.mrb[0].mxu0
    %v5860 = vadd.f32 %v5737, %v5859
    %v5861 = vpop.f32.mrb[0].mxu0
    %5862 = vmatprep.mubr.f32.mxu0 0.0
    %5863 = vmatmul.mubr.f32.gmra.mrb[0].mxu0 %v5761
    %v5864 = vpop.f32.mrb[0].mxu0
    %v5865 = vadd.f32 %v5737, %v5864
    %v5866 = vpop.f32.mrb[0].mxu0
    %5867 = vdwg.mxu0
    %v5868 = vmax.f32 %v5830, 0.0
    %v5869 = vmax.f32 %v5835, 0.0
    %v5870 = vmax.f32 %v5840, 0.0
    %v5871 = vmax.f32 %v5845, 0.0
    %v5872 = vmax.f32 %v5850, 0.0
    %v5873 = vmax.f32 %v5855, 0.0
    %v5874 = vmax.f32 %v5860, 0.0
    %v5875 = vmax.f32 %v5865, 0.0
    %v5876 = vlaneseq
    %v5877 = vshrl.u32 %v5876, 7
    %v5878 = vsub.s32 4, %v5877
    %v5879 = vrot.slane %v3641, %v5878
    %v5881 = vsel %vm1818, %v5868, 0
    %v5884 = vsel %vm1818, %v5869, 0
    %v5887 = vsel %vm1818, %v5870, 0
    %v5890 = vsel %vm1818, %v5871, 0
    %v5893 = vsel %vm1818, %v5872, 0
    %v5896 = vsel %vm1818, %v5873, 0
    %v5899 = vsel %vm1818, %v5874, 0
    %v5902 = vsel %vm1818, %v5875, 0
    %5904 = vmatprep.subr.mxu0 0.0
    %5905 = vmatpush1.msra.mxu0 %v3650
    %5906 = vmatprep.subr.mxu0 0.0
    %5907 = vmatpush1.msra.mxu0 %v3651
    %5908 = vmatprep.subr.mxu0 0.0
    %5909 = vmatpush1.msra.mxu0 %v3652
    %5910 = vmatprep.subr.mxu0 0.0
    %5911 = vmatpush1.msra.mxu0 %v3653
    %5912 = vmatprep.subr.mxu0 0.0
    %5913 = vmatpush1.msra.mxu0 %v3654
    %5914 = vmatprep.subr.mxu0 0.0
    %5915 = vmatpush1.msra.mxu0 %v3655
    %5916 = vmatprep.subr.mxu0 0.0
    %5917 = vmatpush1.msra.mxu0 %v3656
    %5918 = vmatprep.subr.mxu0 0.0
    %5919 = vmatpush1.msra.mxu0 %v3657
    %5920 = vmatprep.subr.mxu0 0.0
    %5921 = vmatpush1.msra.mxu0 0.0
    %5922 = vmatprep.subr.mxu0 0.0
    %5923 = vmatpush1.msra.mxu0 0.0
    %5924 = vmatprep.subr.mxu0 0.0
    %5925 = vmatpush1.msra.mxu0 0.0
    %5926 = vmatprep.subr.mxu0 0.0
    %5927 = vmatpush1.msra.mxu0 0.0
    %5928 = vmatprep.subr.mxu0 0.0
    %5929 = vmatpush1.msra.mxu0 0.0
    %5930 = vmatprep.subr.mxu0 0.0
    %5931 = vmatpush1.msra.mxu0 0.0
    %5932 = vmatprep.subr.mxu0 0.0
    %5933 = vmatpush1.msra.mxu0 0.0
    %5934 = vmatprep.subr.mxu0 0.0
    %5935 = vmatpush1.msra.mxu0 0.0
    %5936 = vmatprep.subr.mxu0 0.0
    %5937 = vmatpush1.msra.mxu0 0.0
    %5938 = vmatprep.subr.mxu0 0.0
    %5939 = vmatpush1.msra.mxu0 0.0
    %5940 = vmatprep.subr.mxu0 0.0
    %5941 = vmatpush1.msra.mxu0 0.0
    %5942 = vmatprep.subr.mxu0 0.0
    %5943 = vmatpush1.msra.mxu0 0.0
    %5944 = vmatprep.subr.mxu0 0.0
    %5945 = vmatpush1.msra.mxu0 0.0
    %5946 = vmatprep.subr.mxu0 0.0
    %5947 = vmatpush1.msra.mxu0 0.0
    %5948 = vmatprep.subr.mxu0 0.0
    %5949 = vmatpush1.msra.mxu0 0.0
    %5950 = vmatprep.subr.mxu0 0.0
    %5951 = vmatpush1.msra.mxu0 0.0
    %5952 = vmatprep.subr.mxu0 0.0
    %5953 = vmatpush1.msra.mxu0 0.0
    %5954 = vmatprep.subr.mxu0 0.0
    %5955 = vmatpush1.msra.mxu0 0.0
    %5956 = vmatprep.subr.mxu0 0.0
    %5957 = vmatpush1.msra.mxu0 0.0
    %5958 = vmatprep.subr.mxu0 0.0
    %5959 = vmatpush1.msra.mxu0 0.0
    %5960 = vmatprep.subr.mxu0 0.0
    %5961 = vmatpush1.msra.mxu0 0.0
    %5962 = vmatprep.subr.mxu0 0.0
    %5963 = vmatpush1.msra.mxu0 0.0
    %5964 = vmatprep.subr.mxu0 0.0
    %5965 = vmatpush1.msra.mxu0 0.0
    %5966 = vmatprep.subr.mxu0 0.0
    %5967 = vmatpush1.msra.mxu0 0.0
    %5968 = vmatprep.mubr.f32.mxu0 0.0
    %5969 = vmatmul.mubr.f32.gmra.mrb[0].mxu0 %v5881
    %v5970 = vpop.f32.mrb[0].mxu0
    %v5971 = vadd.f32 %v5879, %v5970
    %v5972 = vpop.f32.mrb[0].mxu0
    %5973 = vmatprep.mubr.f32.mxu0 0.0
    %5974 = vmatmul.mubr.f32.gmra.mrb[0].mxu0 %v5884
    %v5975 = vpop.f32.mrb[0].mxu0
    %v5976 = vadd.f32 %v5879, %v5975
    %v5977 = vpop.f32.mrb[0].mxu0
    %5978 = vmatprep.mubr.f32.mxu0 0.0
    %5979 = vmatmul.mubr.f32.gmra.mrb[0].mxu0 %v5887
    %v5980 = vpop.f32.mrb[0].mxu0
    %v5981 = vadd.f32 %v5879, %v5980
    %v5982 = vpop.f32.mrb[0].mxu0
    %5983 = vmatprep.mubr.f32.mxu0 0.0
    %5984 = vmatmul.mubr.f32.gmra.mrb[0].mxu0 %v5890
    %v5985 = vpop.f32.mrb[0].mxu0
    %v5986 = vadd.f32 %v5879, %v5985
    %v5987 = vpop.f32.mrb[0].mxu0
    %5988 = vmatprep.mubr.f32.mxu0 0.0
    %5989 = vmatmul.mubr.f32.gmra.mrb[0].mxu0 %v5893
    %v5990 = vpop.f32.mrb[0].mxu0
    %v5991 = vadd.f32 %v5879, %v5990
    %v5992 = vpop.f32.mrb[0].mxu0
    %5993 = vmatprep.mubr.f32.mxu0 0.0
    %5994 = vmatmul.mubr.f32.gmra.mrb[0].mxu0 %v5896
    %v5995 = vpop.f32.mrb[0].mxu0
    %v5996 = vadd.f32 %v5879, %v5995
    %v5997 = vpop.f32.mrb[0].mxu0
    %5998 = vmatprep.mubr.f32.mxu0 0.0
    %5999 = vmatmul.mubr.f32.gmra.mrb[0].mxu0 %v5899
    %v6000 = vpop.f32.mrb[0].mxu0
    %v6001 = vadd.f32 %v5879, %v6000
    %v6002 = vpop.f32.mrb[0].mxu0
    %6003 = vmatprep.mubr.f32.mxu0 0.0
    %6004 = vmatmul.mubr.f32.gmra.mrb[0].mxu0 %v5902
    %v6005 = vpop.f32.mrb[0].mxu0
    %v6006 = vadd.f32 %v5879, %v6005
    %v6007 = vpop.f32.mrb[0].mxu0
    %6008 = vdwg.mxu0
    %v6009 = vadd.f32 %v5725, %v5971
    %v6010 = vadd.f32 %v5726, %v5976
    %v6011 = vadd.f32 %v5727, %v5981
    %v6012 = vadd.f32 %v5728, %v5986
    %v6013 = vadd.f32 %v5729, %v5991
    %v6014 = vadd.f32 %v5730, %v5996
    %v6015 = vadd.f32 %v5731, %v6001
    %v6016 = vadd.f32 %v5732, %v6006
    %v6017 = vsel %vm571, %v6009, 0.0
    %6018 = vadd.xlane.f32.xlu0 %v6017
    %v6019 = vpop.xlane.xlu0 %6018
    %v6020 = vsel %vm571, %v6010, 0.0
    %6021 = vadd.xlane.f32.xlu0 %v6020
    %v6022 = vpop.xlane.xlu0 %6021
    %v6023 = vsel %vm571, %v6011, 0.0
    %6024 = vadd.xlane.f32.xlu0 %v6023
    %v6025 = vpop.xlane.xlu0 %6024
    %v6026 = vsel %vm571, %v6012, 0.0
    %6027 = vadd.xlane.f32.xlu0 %v6026
    %v6028 = vpop.xlane.xlu0 %6027
    %v6029 = vsel %vm571, %v6013, 0.0
    %6030 = vadd.xlane.f32.xlu0 %v6029
    %v6031 = vpop.xlane.xlu0 %6030
    %v6032 = vsel %vm571, %v6014, 0.0
    %6033 = vadd.xlane.f32.xlu0 %v6032
    %v6034 = vpop.xlane.xlu0 %6033
    %v6035 = vsel %vm571, %v6015, 0.0
    %6036 = vadd.xlane.f32.xlu0 %v6035
    %v6037 = vpop.xlane.xlu0 %6036
    %v6038 = vsel %vm571, %v6016, 0.0
    %6039 = vadd.xlane.f32.xlu0 %v6038
    %v6040 = vpop.xlane.xlu0 %6039
    %v6041 = vmul.f32 %v6019, %v1566
    %v6042 = vmul.f32 %v6022, %v1566
    %v6043 = vmul.f32 %v6025, %v1566
    %v6044 = vmul.f32 %v6028, %v1566
    %v6045 = vmul.f32 %v6031, %v1566
    %v6046 = vmul.f32 %v6034, %v1566
    %v6047 = vmul.f32 %v6037, %v1566
    %v6048 = vmul.f32 %v6040, %v1566
    %v6049 = vsub.f32 %v6009, %v6041
    %v6050 = vsub.f32 %v6010, %v6042
    %v6051 = vsub.f32 %v6011, %v6043
    %v6052 = vsub.f32 %v6012, %v6044
    %v6053 = vsub.f32 %v6013, %v6045
    %v6054 = vsub.f32 %v6014, %v6046
    %v6055 = vsub.f32 %v6015, %v6047
    %v6056 = vsub.f32 %v6016, %v6048
    %v6057 = vmul.f32 %v6049, %v6049
    %v6058 = vmul.f32 %v6050, %v6050
    %v6059 = vmul.f32 %v6051, %v6051
    %v6060 = vmul.f32 %v6052, %v6052
    %v6061 = vmul.f32 %v6053, %v6053
    %v6062 = vmul.f32 %v6054, %v6054
    %v6063 = vmul.f32 %v6055, %v6055
    %v6064 = vmul.f32 %v6056, %v6056
    %v6065 = vsel %vm571, %v6057, 0.0
    %6066 = vadd.xlane.f32.xlu0 %v6065
    %v6067 = vpop.xlane.xlu0 %6066
    %v6068 = vsel %vm571, %v6058, 0.0
    %6069 = vadd.xlane.f32.xlu0 %v6068
    %v6070 = vpop.xlane.xlu0 %6069
    %v6071 = vsel %vm571, %v6059, 0.0
    %6072 = vadd.xlane.f32.xlu0 %v6071
    %v6073 = vpop.xlane.xlu0 %6072
    %v6074 = vsel %vm571, %v6060, 0.0
    %6075 = vadd.xlane.f32.xlu0 %v6074
    %v6076 = vpop.xlane.xlu0 %6075
    %v6077 = vsel %vm571, %v6061, 0.0
    %6078 = vadd.xlane.f32.xlu0 %v6077
    %v6079 = vpop.xlane.xlu0 %6078
    %v6080 = vsel %vm571, %v6062, 0.0
    %6081 = vadd.xlane.f32.xlu0 %v6080
    %v6082 = vpop.xlane.xlu0 %6081
    %v6083 = vsel %vm571, %v6063, 0.0
    %6084 = vadd.xlane.f32.xlu0 %v6083
    %v6085 = vpop.xlane.xlu0 %6084
    %v6086 = vsel %vm571, %v6064, 0.0
    %6087 = vadd.xlane.f32.xlu0 %v6086
    %v6088 = vpop.xlane.xlu0 %6087
    %v6089 = vmul.f32 %v6067, %v1566
    %v6090 = vmul.f32 %v6070, %v1566
    %v6091 = vmul.f32 %v6073, %v1566
    %v6092 = vmul.f32 %v6076, %v1566
    %v6093 = vmul.f32 %v6079, %v1566
    %v6094 = vmul.f32 %v6082, %v1566
    %v6095 = vmul.f32 %v6085, %v1566
    %v6096 = vmul.f32 %v6088, %v1566
    %v6097 = vadd.f32 %v6089, 1e-05
    %v6098 = vadd.f32 %v6090, 1e-05
    %v6099 = vadd.f32 %v6091, 1e-05
    %v6100 = vadd.f32 %v6092, 1e-05
    %v6101 = vadd.f32 %v6093, 1e-05
    %v6102 = vadd.f32 %v6094, 1e-05
    %v6103 = vadd.f32 %v6095, 1e-05
    %v6104 = vadd.f32 %v6096, 1e-05
    %v6105 = vrsqrt.pop %v6097
    %v6106 = vrsqrt.pop %v6098
    %v6107 = vrsqrt.pop %v6099
    %v6108 = vrsqrt.pop %v6100
    %v6109 = vrsqrt.pop %v6101
    %v6110 = vrsqrt.pop %v6102
    %v6111 = vrsqrt.pop %v6103
    %v6112 = vrsqrt.pop %v6104
    %v6113 = vmul.f32 %v6049, %v6105
    %v6114 = vmul.f32 %v6050, %v6106
    %v6115 = vmul.f32 %v6051, %v6107
    %v6116 = vmul.f32 %v6052, %v6108
    %v6117 = vmul.f32 %v6053, %v6109
    %v6118 = vmul.f32 %v6054, %v6110
    %v6119 = vmul.f32 %v6055, %v6111
    %v6120 = vmul.f32 %v6056, %v6112
    %v6121 = vmul.f32 %v6113, %v4739
    %v6122 = vmul.f32 %v6114, %v4739
    %v6123 = vmul.f32 %v6115, %v4739
    %v6124 = vmul.f32 %v6116, %v4739
    %v6125 = vmul.f32 %v6117, %v4739
    %v6126 = vmul.f32 %v6118, %v4739
    %v6127 = vmul.f32 %v6119, %v4739
    %v6128 = vmul.f32 %v6120, %v4739
    %v6129 = vadd.f32 %v6121, %v4751
    %v6130 = vadd.f32 %v6122, %v4751
    %v6131 = vadd.f32 %v6123, %v4751
    %v6132 = vadd.f32 %v6124, %v4751
    %v6133 = vadd.f32 %v6125, %v4751
    %v6134 = vadd.f32 %v6126, %v4751
    %v6135 = vadd.f32 %v6127, %v4751
    %v6136 = vadd.f32 %v6128, %v4751
    %s6137 = scalar_lea.vmem [#allocation8], 384
    %v6138 = vld [vmem:[%s6137] sm:$0xff]
    %v6139 = vld [vmem:[%s6137 + $0x8] sm:$0xff]
    %v6140 = vld [vmem:[%s6137 + $0x10] sm:$0xff]
    %v6141 = vld [vmem:[%s6137 + $0x18] sm:$0xff]
    %s6142 = scalar_lea.vmem [#allocation8], 416
    %v6143 = vld [vmem:[%s6142] sm:$0xff]
    %v6144 = vld [vmem:[%s6142 + $0x8] sm:$0xff]
    %v6145 = vld [vmem:[%s6142 + $0x10] sm:$0xff]
    %v6146 = vld [vmem:[%s6142 + $0x18] sm:$0xff]
    %s6147 = scalar_lea.vmem [#allocation8], 448
    %v6148 = vld [vmem:[%s6147] sm:$0xff]
    %v6149 = vld [vmem:[%s6147 + $0x8] sm:$0xff]
    %v6150 = vld [vmem:[%s6147 + $0x10] sm:$0xff]
    %v6151 = vld [vmem:[%s6147 + $0x18] sm:$0xff]
    %s6152 = scalar_lea.vmem [#allocation8], 480
    %v6153 = vld [vmem:[%s6152] sm:$0xff]
    %v6154 = vld [vmem:[%s6152 + $0x8] sm:$0xff]
    %v6155 = vld [vmem:[%s6152 + $0x10] sm:$0xff]
    %v6156 = vld [vmem:[%s6152 + $0x18] sm:$0xff]
    %s6157 = scalar_lea.vmem [#allocation11], 24
    %v6158 = vld [vmem:[%s6157] sm:$0x7f]
    %s6159 = scalar_lea.vmem %s6, 96
    %v6160 = vld [vmem:[%s6159] sm:$0xff]
    %v6161 = vld [vmem:[%s6159 + $0x8] sm:$0xff]
    %v6162 = vld [vmem:[%s6159 + $0x10] sm:$0xff]
    %v6163 = vld [vmem:[%s6159 + $0x18] sm:$0xff]
    %s6164 = scalar_lea.vmem %s9, 3
    %v6165 = vld [vmem:[%s6164] sm:$0x1]
    %s6166 = scalar_lea.vmem [#allocation10], 192
    %v6167 = vld [vmem:[%s6166] sm:$0xff]
    %v6168 = vld [vmem:[%s6166 + $0x8] sm:$0xff]
    %v6169 = vld [vmem:[%s6166 + $0x10] sm:$0xff]
    %v6170 = vld [vmem:[%s6166 + $0x18] sm:$0xff]
    %v6171 = vld [vmem:[%s6166 + $0x20] sm:$0xff]
    %v6172 = vld [vmem:[%s6166 + $0x28] sm:$0xff]
    %v6173 = vld [vmem:[%s6166 + $0x30] sm:$0xff]
    %v6174 = vld [vmem:[%s6166 + $0x38] sm:$0xff]
    %v6175 = vlaneseq
    %v6176 = vshrl.u32 %v6175, 7
    %v6177 = vsub.s32 0, %v6176
    %v6178 = vrot.slane %v6158, %v6177
    %v6180 = vsel %vm571, %v6129, 0
    %v6183 = vsel %vm571, %v6130, 0
    %v6186 = vsel %vm571, %v6131, 0
    %v6189 = vsel %vm571, %v6132, 0
    %v6192 = vsel %vm571, %v6133, 0
    %v6195 = vsel %vm571, %v6134, 0
    %v6198 = vsel %vm571, %v6135, 0
    %v6201 = vsel %vm571, %v6136, 0
    %6203 = vmatprep.subr.mxu0 0.0
    %6204 = vmatpush1.msra.mxu0 %v6138
    %6205 = vmatprep.subr.mxu0 0.0
    %6206 = vmatpush1.msra.mxu0 %v6139
    %6207 = vmatprep.subr.mxu0 0.0
    %6208 = vmatpush1.msra.mxu0 %v6140
    %6209 = vmatprep.subr.mxu0 0.0
    %6210 = vmatpush1.msra.mxu0 %v6141
    %6211 = vmatprep.subr.mxu0 0.0
    %6212 = vmatpush1.msra.mxu0 0.0
    %6213 = vmatprep.subr.mxu0 0.0
    %6214 = vmatpush1.msra.mxu0 0.0
    %6215 = vmatprep.subr.mxu0 0.0
    %6216 = vmatpush1.msra.mxu0 0.0
    %6217 = vmatprep.subr.mxu0 0.0
    %6218 = vmatpush1.msra.mxu0 0.0
    %6219 = vmatprep.subr.mxu0 0.0
    %6220 = vmatpush1.msra.mxu0 0.0
    %6221 = vmatprep.subr.mxu0 0.0
    %6222 = vmatpush1.msra.mxu0 0.0
    %6223 = vmatprep.subr.mxu0 0.0
    %6224 = vmatpush1.msra.mxu0 0.0
    %6225 = vmatprep.subr.mxu0 0.0
    %6226 = vmatpush1.msra.mxu0 0.0
    %6227 = vmatprep.subr.mxu0 0.0
    %6228 = vmatpush1.msra.mxu0 0.0
    %6229 = vmatprep.subr.mxu0 0.0
    %6230 = vmatpush1.msra.mxu0 0.0
    %6231 = vmatprep.subr.mxu0 0.0
    %6232 = vmatpush1.msra.mxu0 0.0
    %6233 = vmatprep.subr.mxu0 0.0
    %6234 = vmatpush1.msra.mxu0 0.0
    %6235 = vmatprep.subr.mxu0 0.0
    %6236 = vmatpush1.msra.mxu0 0.0
    %6237 = vmatprep.subr.mxu0 0.0
    %6238 = vmatpush1.msra.mxu0 0.0
    %6239 = vmatprep.subr.mxu0 0.0
    %6240 = vmatpush1.msra.mxu0 0.0
    %6241 = vmatprep.subr.mxu0 0.0
    %6242 = vmatpush1.msra.mxu0 0.0
    %6243 = vmatprep.subr.mxu0 0.0
    %6244 = vmatpush1.msra.mxu0 0.0
    %6245 = vmatprep.subr.mxu0 0.0
    %6246 = vmatpush1.msra.mxu0 0.0
    %6247 = vmatprep.subr.mxu0 0.0
    %6248 = vmatpush1.msra.mxu0 0.0
    %6249 = vmatprep.subr.mxu0 0.0
    %6250 = vmatpush1.msra.mxu0 0.0
    %6251 = vmatprep.subr.mxu0 0.0
    %6252 = vmatpush1.msra.mxu0 0.0
    %6253 = vmatprep.subr.mxu0 0.0
    %6254 = vmatpush1.msra.mxu0 0.0
    %6255 = vmatprep.subr.mxu0 0.0
    %6256 = vmatpush1.msra.mxu0 0.0
    %6257 = vmatprep.subr.mxu0 0.0
    %6258 = vmatpush1.msra.mxu0 0.0
    %6259 = vmatprep.subr.mxu0 0.0
    %6260 = vmatpush1.msra.mxu0 0.0
    %6261 = vmatprep.subr.mxu0 0.0
    %6262 = vmatpush1.msra.mxu0 0.0
    %6263 = vmatprep.subr.mxu0 0.0
    %6264 = vmatpush1.msra.mxu0 0.0
    %6265 = vmatprep.subr.mxu0 0.0
    %6266 = vmatpush1.msra.mxu0 0.0
    %6267 = vmatprep.mubr.f32.mxu0 0.0
    %6268 = vmatmul.mubr.f32.gmra.mrb[0].mxu0 %v6180
    %v6269 = vpop.f32.mrb[0].mxu0
    %v6270 = vadd.f32 %v6178, %v6269
    %v6271 = vpop.f32.mrb[0].mxu0
    %6272 = vmatprep.mubr.f32.mxu0 0.0
    %6273 = vmatmul.mubr.f32.gmra.mrb[0].mxu0 %v6183
    %v6274 = vpop.f32.mrb[0].mxu0
    %v6275 = vadd.f32 %v6178, %v6274
    %v6276 = vpop.f32.mrb[0].mxu0
    %6277 = vmatprep.mubr.f32.mxu0 0.0
    %6278 = vmatmul.mubr.f32.gmra.mrb[0].mxu0 %v6186
    %v6279 = vpop.f32.mrb[0].mxu0
    %v6280 = vadd.f32 %v6178, %v6279
    %v6281 = vpop.f32.mrb[0].mxu0
    %6282 = vmatprep.mubr.f32.mxu0 0.0
    %6283 = vmatmul.mubr.f32.gmra.mrb[0].mxu0 %v6189
    %v6284 = vpop.f32.mrb[0].mxu0
    %v6285 = vadd.f32 %v6178, %v6284
    %v6286 = vpop.f32.mrb[0].mxu0
    %6287 = vmatprep.mubr.f32.mxu0 0.0
    %6288 = vmatmul.mubr.f32.gmra.mrb[0].mxu0 %v6192
    %v6289 = vpop.f32.mrb[0].mxu0
    %v6290 = vadd.f32 %v6178, %v6289
    %v6291 = vpop.f32.mrb[0].mxu0
    %6292 = vmatprep.mubr.f32.mxu0 0.0
    %6293 = vmatmul.mubr.f32.gmra.mrb[0].mxu0 %v6195
    %v6294 = vpop.f32.mrb[0].mxu0
    %v6295 = vadd.f32 %v6178, %v6294
    %v6296 = vpop.f32.mrb[0].mxu0
    %6297 = vmatprep.mubr.f32.mxu0 0.0
    %6298 = vmatmul.mubr.f32.gmra.mrb[0].mxu0 %v6198
    %v6299 = vpop.f32.mrb[0].mxu0
    %v6300 = vadd.f32 %v6178, %v6299
    %v6301 = vpop.f32.mrb[0].mxu0
    %6302 = vmatprep.mubr.f32.mxu0 0.0
    %6303 = vmatmul.mubr.f32.gmra.mrb[0].mxu0 %v6201
    %v6304 = vpop.f32.mrb[0].mxu0
    %v6305 = vadd.f32 %v6178, %v6304
    %v6306 = vpop.f32.mrb[0].mxu0
    %6307 = vdwg.mxu0
    %v6308 = vlaneseq
    %v6309 = vshrl.u32 %v6308, 7
    %v6310 = vsub.s32 1, %v6309
    %v6311 = vrot.slane %v6158, %v6310
    %6312 = vmatprep.subr.mxu0 0.0
    %6313 = vmatpush1.msra.mxu0 %v6143
    %6314 = vmatprep.subr.mxu0 0.0
    %6315 = vmatpush1.msra.mxu0 %v6144
    %6316 = vmatprep.subr.mxu0 0.0
    %6317 = vmatpush1.msra.mxu0 %v6145
    %6318 = vmatprep.subr.mxu0 0.0
    %6319 = vmatpush1.msra.mxu0 %v6146
    %6320 = vmatprep.subr.mxu0 0.0
    %6321 = vmatpush1.msra.mxu0 0.0
    %6322 = vmatprep.subr.mxu0 0.0
    %6323 = vmatpush1.msra.mxu0 0.0
    %6324 = vmatprep.subr.mxu0 0.0
    %6325 = vmatpush1.msra.mxu0 0.0
    %6326 = vmatprep.subr.mxu0 0.0
    %6327 = vmatpush1.msra.mxu0 0.0
    %6328 = vmatprep.subr.mxu0 0.0
    %6329 = vmatpush1.msra.mxu0 0.0
    %6330 = vmatprep.subr.mxu0 0.0
    %6331 = vmatpush1.msra.mxu0 0.0
    %6332 = vmatprep.subr.mxu0 0.0
    %6333 = vmatpush1.msra.mxu0 0.0
    %6334 = vmatprep.subr.mxu0 0.0
    %6335 = vmatpush1.msra.mxu0 0.0
    %6336 = vmatprep.subr.mxu0 0.0
    %6337 = vmatpush1.msra.mxu0 0.0
    %6338 = vmatprep.subr.mxu0 0.0
    %6339 = vmatpush1.msra.mxu0 0.0
    %6340 = vmatprep.subr.mxu0 0.0
    %6341 = vmatpush1.msra.mxu0 0.0
    %6342 = vmatprep.subr.mxu0 0.0
    %6343 = vmatpush1.msra.mxu0 0.0
    %6344 = vmatprep.subr.mxu0 0.0
    %6345 = vmatpush1.msra.mxu0 0.0
    %6346 = vmatprep.subr.mxu0 0.0
    %6347 = vmatpush1.msra.mxu0 0.0
    %6348 = vmatprep.subr.mxu0 0.0
    %6349 = vmatpush1.msra.mxu0 0.0
    %6350 = vmatprep.subr.mxu0 0.0
    %6351 = vmatpush1.msra.mxu0 0.0
    %6352 = vmatprep.subr.mxu0 0.0
    %6353 = vmatpush1.msra.mxu0 0.0
    %6354 = vmatprep.subr.mxu0 0.0
    %6355 = vmatpush1.msra.mxu0 0.0
    %6356 = vmatprep.subr.mxu0 0.0
    %6357 = vmatpush1.msra.mxu0 0.0
    %6358 = vmatprep.subr.mxu0 0.0
    %6359 = vmatpush1.msra.mxu0 0.0
    %6360 = vmatprep.subr.mxu0 0.0
    %6361 = vmatpush1.msra.mxu0 0.0
    %6362 = vmatprep.subr.mxu0 0.0
    %6363 = vmatpush1.msra.mxu0 0.0
    %6364 = vmatprep.subr.mxu0 0.0
    %6365 = vmatpush1.msra.mxu0 0.0
    %6366 = vmatprep.subr.mxu0 0.0
    %6367 = vmatpush1.msra.mxu0 0.0
    %6368 = vmatprep.subr.mxu0 0.0
    %6369 = vmatpush1.msra.mxu0 0.0
    %6370 = vmatprep.subr.mxu0 0.0
    %6371 = vmatpush1.msra.mxu0 0.0
    %6372 = vmatprep.subr.mxu0 0.0
    %6373 = vmatpush1.msra.mxu0 0.0
    %6374 = vmatprep.subr.mxu0 0.0
    %6375 = vmatpush1.msra.mxu0 0.0
    %6376 = vmatprep.mubr.f32.mxu0 0.0
    %6377 = vmatmul.mubr.f32.gmra.mrb[0].mxu0 %v6180
    %v6378 = vpop.f32.mrb[0].mxu0
    %v6379 = vadd.f32 %v6311, %v6378
    %v6380 = vpop.f32.mrb[0].mxu0
    %6381 = vmatprep.mubr.f32.mxu0 0.0
    %6382 = vmatmul.mubr.f32.gmra.mrb[0].mxu0 %v6183
    %v6383 = vpop.f32.mrb[0].mxu0
    %v6384 = vadd.f32 %v6311, %v6383
    %v6385 = vpop.f32.mrb[0].mxu0
    %6386 = vmatprep.mubr.f32.mxu0 0.0
    %6387 = vmatmul.mubr.f32.gmra.mrb[0].mxu0 %v6186
    %v6388 = vpop.f32.mrb[0].mxu0
    %v6389 = vadd.f32 %v6311, %v6388
    %v6390 = vpop.f32.mrb[0].mxu0
    %6391 = vmatprep.mubr.f32.mxu0 0.0
    %6392 = vmatmul.mubr.f32.gmra.mrb[0].mxu0 %v6189
    %v6393 = vpop.f32.mrb[0].mxu0
    %v6394 = vadd.f32 %v6311, %v6393
    %v6395 = vpop.f32.mrb[0].mxu0
    %6396 = vmatprep.mubr.f32.mxu0 0.0
    %6397 = vmatmul.mubr.f32.gmra.mrb[0].mxu0 %v6192
    %v6398 = vpop.f32.mrb[0].mxu0
    %v6399 = vadd.f32 %v6311, %v6398
    %v6400 = vpop.f32.mrb[0].mxu0
    %6401 = vmatprep.mubr.f32.mxu0 0.0
    %6402 = vmatmul.mubr.f32.gmra.mrb[0].mxu0 %v6195
    %v6403 = vpop.f32.mrb[0].mxu0
    %v6404 = vadd.f32 %v6311, %v6403
    %v6405 = vpop.f32.mrb[0].mxu0
    %6406 = vmatprep.mubr.f32.mxu0 0.0
    %6407 = vmatmul.mubr.f32.gmra.mrb[0].mxu0 %v6198
    %v6408 = vpop.f32.mrb[0].mxu0
    %v6409 = vadd.f32 %v6311, %v6408
    %v6410 = vpop.f32.mrb[0].mxu0
    %6411 = vmatprep.mubr.f32.mxu0 0.0
    %6412 = vmatmul.mubr.f32.gmra.mrb[0].mxu0 %v6201
    %v6413 = vpop.f32.mrb[0].mxu0
    %v6414 = vadd.f32 %v6311, %v6413
    %v6415 = vpop.f32.mrb[0].mxu0
    %6416 = vdwg.mxu0
    %v6417 = vlaneseq
    %v6418 = vshrl.u32 %v6417, 7
    %v6419 = vsub.s32 2, %v6418
    %v6420 = vrot.slane %v6158, %v6419
    %6421 = vmatprep.subr.mxu0 0.0
    %6422 = vmatpush1.msra.mxu0 %v6148
    %6423 = vmatprep.subr.mxu0 0.0
    %6424 = vmatpush1.msra.mxu0 %v6149
    %6425 = vmatprep.subr.mxu0 0.0
    %6426 = vmatpush1.msra.mxu0 %v6150
    %6427 = vmatprep.subr.mxu0 0.0
    %6428 = vmatpush1.msra.mxu0 %v6151
    %6429 = vmatprep.subr.mxu0 0.0
    %6430 = vmatpush1.msra.mxu0 0.0
    %6431 = vmatprep.subr.mxu0 0.0
    %6432 = vmatpush1.msra.mxu0 0.0
    %6433 = vmatprep.subr.mxu0 0.0
    %6434 = vmatpush1.msra.mxu0 0.0
    %6435 = vmatprep.subr.mxu0 0.0
    %6436 = vmatpush1.msra.mxu0 0.0
    %6437 = vmatprep.subr.mxu0 0.0
    %6438 = vmatpush1.msra.mxu0 0.0
    %6439 = vmatprep.subr.mxu0 0.0
    %6440 = vmatpush1.msra.mxu0 0.0
    %6441 = vmatprep.subr.mxu0 0.0
    %6442 = vmatpush1.msra.mxu0 0.0
    %6443 = vmatprep.subr.mxu0 0.0
    %6444 = vmatpush1.msra.mxu0 0.0
    %6445 = vmatprep.subr.mxu0 0.0
    %6446 = vmatpush1.msra.mxu0 0.0
    %6447 = vmatprep.subr.mxu0 0.0
    %6448 = vmatpush1.msra.mxu0 0.0
    %6449 = vmatprep.subr.mxu0 0.0
    %6450 = vmatpush1.msra.mxu0 0.0
    %6451 = vmatprep.subr.mxu0 0.0
    %6452 = vmatpush1.msra.mxu0 0.0
    %6453 = vmatprep.subr.mxu0 0.0
    %6454 = vmatpush1.msra.mxu0 0.0
    %6455 = vmatprep.subr.mxu0 0.0
    %6456 = vmatpush1.msra.mxu0 0.0
    %6457 = vmatprep.subr.mxu0 0.0
    %6458 = vmatpush1.msra.mxu0 0.0
    %6459 = vmatprep.subr.mxu0 0.0
    %6460 = vmatpush1.msra.mxu0 0.0
    %6461 = vmatprep.subr.mxu0 0.0
    %6462 = vmatpush1.msra.mxu0 0.0
    %6463 = vmatprep.subr.mxu0 0.0
    %6464 = vmatpush1.msra.mxu0 0.0
    %6465 = vmatprep.subr.mxu0 0.0
    %6466 = vmatpush1.msra.mxu0 0.0
    %6467 = vmatprep.subr.mxu0 0.0
    %6468 = vmatpush1.msra.mxu0 0.0
    %6469 = vmatprep.subr.mxu0 0.0
    %6470 = vmatpush1.msra.mxu0 0.0
    %6471 = vmatprep.subr.mxu0 0.0
    %6472 = vmatpush1.msra.mxu0 0.0
    %6473 = vmatprep.subr.mxu0 0.0
    %6474 = vmatpush1.msra.mxu0 0.0
    %6475 = vmatprep.subr.mxu0 0.0
    %6476 = vmatpush1.msra.mxu0 0.0
    %6477 = vmatprep.subr.mxu0 0.0
    %6478 = vmatpush1.msra.mxu0 0.0
    %6479 = vmatprep.subr.mxu0 0.0
    %6480 = vmatpush1.msra.mxu0 0.0
    %6481 = vmatprep.subr.mxu0 0.0
    %6482 = vmatpush1.msra.mxu0 0.0
    %6483 = vmatprep.subr.mxu0 0.0
    %6484 = vmatpush1.msra.mxu0 0.0
    %6485 = vmatprep.mubr.f32.mxu0 0.0
    %6486 = vmatmul.mubr.f32.gmra.mrb[0].mxu0 %v6180
    %v6487 = vpop.f32.mrb[0].mxu0
    %v6488 = vadd.f32 %v6420, %v6487
    %v6489 = vpop.f32.mrb[0].mxu0
    %6490 = vmatprep.mubr.f32.mxu0 0.0
    %6491 = vmatmul.mubr.f32.gmra.mrb[0].mxu0 %v6183
    %v6492 = vpop.f32.mrb[0].mxu0
    %v6493 = vadd.f32 %v6420, %v6492
    %v6494 = vpop.f32.mrb[0].mxu0
    %6495 = vmatprep.mubr.f32.mxu0 0.0
    %6496 = vmatmul.mubr.f32.gmra.mrb[0].mxu0 %v6186
    %v6497 = vpop.f32.mrb[0].mxu0
    %v6498 = vadd.f32 %v6420, %v6497
    %v6499 = vpop.f32.mrb[0].mxu0
    %6500 = vmatprep.mubr.f32.mxu0 0.0
    %6501 = vmatmul.mubr.f32.gmra.mrb[0].mxu0 %v6189
    %v6502 = vpop.f32.mrb[0].mxu0
    %v6503 = vadd.f32 %v6420, %v6502
    %v6504 = vpop.f32.mrb[0].mxu0
    %6505 = vmatprep.mubr.f32.mxu0 0.0
    %6506 = vmatmul.mubr.f32.gmra.mrb[0].mxu0 %v6192
    %v6507 = vpop.f32.mrb[0].mxu0
    %v6508 = vadd.f32 %v6420, %v6507
    %v6509 = vpop.f32.mrb[0].mxu0
    %6510 = vmatprep.mubr.f32.mxu0 0.0
    %6511 = vmatmul.mubr.f32.gmra.mrb[0].mxu0 %v6195
    %v6512 = vpop.f32.mrb[0].mxu0
    %v6513 = vadd.f32 %v6420, %v6512
    %v6514 = vpop.f32.mrb[0].mxu0
    %6515 = vmatprep.mubr.f32.mxu0 0.0
    %6516 = vmatmul.mubr.f32.gmra.mrb[0].mxu0 %v6198
    %v6517 = vpop.f32.mrb[0].mxu0
    %v6518 = vadd.f32 %v6420, %v6517
    %v6519 = vpop.f32.mrb[0].mxu0
    %6520 = vmatprep.mubr.f32.mxu0 0.0
    %6521 = vmatmul.mubr.f32.gmra.mrb[0].mxu0 %v6201
    %v6522 = vpop.f32.mrb[0].mxu0
    %v6523 = vadd.f32 %v6420, %v6522
    %v6524 = vpop.f32.mrb[0].mxu0
    %6525 = vdwg.mxu0
    %v6527 = vsel %vm571, %v6379, 0
    %v6530 = vsel %vm571, %v6384, 0
    %v6533 = vsel %vm571, %v6389, 0
    %v6536 = vsel %vm571, %v6394, 0
    %6538 = vmatprep.subr.mxu0 0.0
    %6539 = vmatpush1.msra.mxu0 %v6270
    %6540 = vmatprep.subr.mxu0 0.0
    %6541 = vmatpush1.msra.mxu0 %v6275
    %6542 = vmatprep.subr.mxu0 0.0
    %6543 = vmatpush1.msra.mxu0 %v6280
    %6544 = vmatprep.subr.mxu0 0.0
    %6545 = vmatpush1.msra.mxu0 %v6285
    %6546 = vmatprep.subr.mxu0 0.0
    %6547 = vmatpush1.msra.mxu0 0.0
    %6548 = vmatprep.subr.mxu0 0.0
    %6549 = vmatpush1.msra.mxu0 0.0
    %6550 = vmatprep.subr.mxu0 0.0
    %6551 = vmatpush1.msra.mxu0 0.0
    %6552 = vmatprep.subr.mxu0 0.0
    %6553 = vmatpush1.msra.mxu0 0.0
    %6554 = vmatprep.subr.mxu0 0.0
    %6555 = vmatpush1.msra.mxu0 0.0
    %6556 = vmatprep.subr.mxu0 0.0
    %6557 = vmatpush1.msra.mxu0 0.0
    %6558 = vmatprep.subr.mxu0 0.0
    %6559 = vmatpush1.msra.mxu0 0.0
    %6560 = vmatprep.subr.mxu0 0.0
    %6561 = vmatpush1.msra.mxu0 0.0
    %6562 = vmatprep.subr.mxu0 0.0
    %6563 = vmatpush1.msra.mxu0 0.0
    %6564 = vmatprep.subr.mxu0 0.0
    %6565 = vmatpush1.msra.mxu0 0.0
    %6566 = vmatprep.subr.mxu0 0.0
    %6567 = vmatpush1.msra.mxu0 0.0
    %6568 = vmatprep.subr.mxu0 0.0
    %6569 = vmatpush1.msra.mxu0 0.0
    %6570 = vmatprep.subr.mxu0 0.0
    %6571 = vmatpush1.msra.mxu0 0.0
    %6572 = vmatprep.subr.mxu0 0.0
    %6573 = vmatpush1.msra.mxu0 0.0
    %6574 = vmatprep.subr.mxu0 0.0
    %6575 = vmatpush1.msra.mxu0 0.0
    %6576 = vmatprep.subr.mxu0 0.0
    %6577 = vmatpush1.msra.mxu0 0.0
    %6578 = vmatprep.subr.mxu0 0.0
    %6579 = vmatpush1.msra.mxu0 0.0
    %6580 = vmatprep.subr.mxu0 0.0
    %6581 = vmatpush1.msra.mxu0 0.0
    %6582 = vmatprep.subr.mxu0 0.0
    %6583 = vmatpush1.msra.mxu0 0.0
    %6584 = vmatprep.subr.mxu0 0.0
    %6585 = vmatpush1.msra.mxu0 0.0
    %6586 = vmatprep.subr.mxu0 0.0
    %6587 = vmatpush1.msra.mxu0 0.0
    %6588 = vmatprep.subr.mxu0 0.0
    %6589 = vmatpush1.msra.mxu0 0.0
    %6590 = vmatprep.subr.mxu0 0.0
    %6591 = vmatpush1.msra.mxu0 0.0
    %6592 = vmatprep.subr.mxu0 0.0
    %6593 = vmatpush1.msra.mxu0 0.0
    %6594 = vmatprep.subr.mxu0 0.0
    %6595 = vmatpush1.msra.mxu0 0.0
    %6596 = vmatprep.subr.mxu0 0.0
    %6597 = vmatpush1.msra.mxu0 0.0
    %6598 = vmatprep.subr.mxu0 0.0
    %6599 = vmatpush1.msra.mxu0 0.0
    %6600 = vmatprep.subr.mxu0 0.0
    %6601 = vmatpush1.msra.mxu0 0.0
    %6602 = vmatprep.mubr.f32.mxu0 0.0
    %6603 = vmatmul.mubr.f32.gmra.mrb[0].mxu0 %v6527
    %v6604 = vpop.f32.mrb[0].mxu0
    %v6605 = vadd.f32 0.0, %v6604
    %v6606 = vpop.f32.mrb[0].mxu0
    %6607 = vmatprep.mubr.f32.mxu0 0.0
    %6608 = vmatmul.mubr.f32.gmra.mrb[0].mxu0 %v6530
    %v6609 = vpop.f32.mrb[0].mxu0
    %v6610 = vadd.f32 0.0, %v6609
    %v6611 = vpop.f32.mrb[0].mxu0
    %6612 = vmatprep.mubr.f32.mxu0 0.0
    %6613 = vmatmul.mubr.f32.gmra.mrb[0].mxu0 %v6533
    %v6614 = vpop.f32.mrb[0].mxu0
    %v6615 = vadd.f32 0.0, %v6614
    %v6616 = vpop.f32.mrb[0].mxu0
    %6617 = vmatprep.mubr.f32.mxu0 0.0
    %6618 = vmatmul.mubr.f32.gmra.mrb[0].mxu0 %v6536
    %v6619 = vpop.f32.mrb[0].mxu0
    %v6620 = vadd.f32 0.0, %v6619
    %v6621 = vpop.f32.mrb[0].mxu0
    %6622 = vdwg.mxu0
    %v6624 = vsel %vm571, %v6399, 0
    %v6627 = vsel %vm571, %v6404, 0
    %v6630 = vsel %vm571, %v6409, 0
    %v6633 = vsel %vm571, %v6414, 0
    %6635 = vmatprep.subr.mxu0 0.0
    %6636 = vmatpush1.msra.mxu0 %v6290
    %6637 = vmatprep.subr.mxu0 0.0
    %6638 = vmatpush1.msra.mxu0 %v6295
    %6639 = vmatprep.subr.mxu0 0.0
    %6640 = vmatpush1.msra.mxu0 %v6300
    %6641 = vmatprep.subr.mxu0 0.0
    %6642 = vmatpush1.msra.mxu0 %v6305
    %6643 = vmatprep.subr.mxu0 0.0
    %6644 = vmatpush1.msra.mxu0 0.0
    %6645 = vmatprep.subr.mxu0 0.0
    %6646 = vmatpush1.msra.mxu0 0.0
    %6647 = vmatprep.subr.mxu0 0.0
    %6648 = vmatpush1.msra.mxu0 0.0
    %6649 = vmatprep.subr.mxu0 0.0
    %6650 = vmatpush1.msra.mxu0 0.0
    %6651 = vmatprep.subr.mxu0 0.0
    %6652 = vmatpush1.msra.mxu0 0.0
    %6653 = vmatprep.subr.mxu0 0.0
    %6654 = vmatpush1.msra.mxu0 0.0
    %6655 = vmatprep.subr.mxu0 0.0
    %6656 = vmatpush1.msra.mxu0 0.0
    %6657 = vmatprep.subr.mxu0 0.0
    %6658 = vmatpush1.msra.mxu0 0.0
    %6659 = vmatprep.subr.mxu0 0.0
    %6660 = vmatpush1.msra.mxu0 0.0
    %6661 = vmatprep.subr.mxu0 0.0
    %6662 = vmatpush1.msra.mxu0 0.0
    %6663 = vmatprep.subr.mxu0 0.0
    %6664 = vmatpush1.msra.mxu0 0.0
    %6665 = vmatprep.subr.mxu0 0.0
    %6666 = vmatpush1.msra.mxu0 0.0
    %6667 = vmatprep.subr.mxu0 0.0
    %6668 = vmatpush1.msra.mxu0 0.0
    %6669 = vmatprep.subr.mxu0 0.0
    %6670 = vmatpush1.msra.mxu0 0.0
    %6671 = vmatprep.subr.mxu0 0.0
    %6672 = vmatpush1.msra.mxu0 0.0
    %6673 = vmatprep.subr.mxu0 0.0
    %6674 = vmatpush1.msra.mxu0 0.0
    %6675 = vmatprep.subr.mxu0 0.0
    %6676 = vmatpush1.msra.mxu0 0.0
    %6677 = vmatprep.subr.mxu0 0.0
    %6678 = vmatpush1.msra.mxu0 0.0
    %6679 = vmatprep.subr.mxu0 0.0
    %6680 = vmatpush1.msra.mxu0 0.0
    %6681 = vmatprep.subr.mxu0 0.0
    %6682 = vmatpush1.msra.mxu0 0.0
    %6683 = vmatprep.subr.mxu0 0.0
    %6684 = vmatpush1.msra.mxu0 0.0
    %6685 = vmatprep.subr.mxu0 0.0
    %6686 = vmatpush1.msra.mxu0 0.0
    %6687 = vmatprep.subr.mxu0 0.0
    %6688 = vmatpush1.msra.mxu0 0.0
    %6689 = vmatprep.subr.mxu0 0.0
    %6690 = vmatpush1.msra.mxu0 0.0
    %6691 = vmatprep.subr.mxu0 0.0
    %6692 = vmatpush1.msra.mxu0 0.0
    %6693 = vmatprep.subr.mxu0 0.0
    %6694 = vmatpush1.msra.mxu0 0.0
    %6695 = vmatprep.subr.mxu0 0.0
    %6696 = vmatpush1.msra.mxu0 0.0
    %6697 = vmatprep.subr.mxu0 0.0
    %6698 = vmatpush1.msra.mxu0 0.0
    %6699 = vmatprep.mubr.f32.mxu0 0.0
    %6700 = vmatmul.mubr.f32.gmra.mrb[0].mxu0 %v6624
    %v6701 = vpop.f32.mrb[0].mxu0
    %v6702 = vadd.f32 0.0, %v6701
    %v6703 = vpop.f32.mrb[0].mxu0
    %6704 = vmatprep.mubr.f32.mxu0 0.0
    %6705 = vmatmul.mubr.f32.gmra.mrb[0].mxu0 %v6627
    %v6706 = vpop.f32.mrb[0].mxu0
    %v6707 = vadd.f32 0.0, %v6706
    %v6708 = vpop.f32.mrb[0].mxu0
    %6709 = vmatprep.mubr.f32.mxu0 0.0
    %6710 = vmatmul.mubr.f32.gmra.mrb[0].mxu0 %v6630
    %v6711 = vpop.f32.mrb[0].mxu0
    %v6712 = vadd.f32 0.0, %v6711
    %v6713 = vpop.f32.mrb[0].mxu0
    %6714 = vmatprep.mubr.f32.mxu0 0.0
    %6715 = vmatmul.mubr.f32.gmra.mrb[0].mxu0 %v6633
    %v6716 = vpop.f32.mrb[0].mxu0
    %v6717 = vadd.f32 0.0, %v6716
    %v6718 = vpop.f32.mrb[0].mxu0
    %6719 = vdwg.mxu0
    %v6720 = vmul.f32 %v6605, 0.5
    %v6721 = vmul.f32 %v6610, 0.5
    %v6722 = vmul.f32 %v6615, 0.5
    %v6723 = vmul.f32 %v6620, 0.5
    %v6724 = vmul.f32 %v6702, 0.5
    %v6725 = vmul.f32 %v6707, 0.5
    %v6726 = vmul.f32 %v6712, 0.5
    %v6727 = vmul.f32 %v6717, 0.5
    %v6728 = vsel %vm571, %v6720, -inf
    %v6729 = vsel %vm571, %v6721, -inf
    %v6730 = vsel %vm571, %v6722, -inf
    %v6731 = vmax.f32 %v6728, %v6730
    %v6732 = vsel %vm571, %v6723, -inf
    %v6733 = vmax.f32 %v6729, %v6732
    %v6734 = vmax.f32 %v6731, %v6733
    %v6735 = vrot.slane %v6734, 4
    %v6736 = vmax.f32 %v6734, %v6735
    %v6737 = vrot.slane %v6736, 2
    %v6738 = vmax.f32 %v6736, %v6737
    %v6739 = vrot.slane %v6738, 1
    %v6740 = vmax.f32 %v6738, %v6739
    %v6741 = vsel %vm571, %v6724, -inf
    %v6742 = vsel %vm571, %v6725, -inf
    %v6743 = vsel %vm571, %v6726, -inf
    %v6744 = vmax.f32 %v6741, %v6743
    %v6745 = vsel %vm571, %v6727, -inf
    %v6746 = vmax.f32 %v6742, %v6745
    %v6747 = vmax.f32 %v6744, %v6746
    %v6748 = vrot.slane %v6747, 4
    %v6749 = vmax.f32 %v6747, %v6748
    %v6750 = vrot.slane %v6749, 2
    %v6751 = vmax.f32 %v6749, %v6750
    %v6752 = vrot.slane %v6751, 1
    %v6753 = vmax.f32 %v6751, %v6752
    %v6754 = vsub.f32 %v6720, %v6740
    %v6755 = vsub.f32 %v6721, %v6740
    %v6756 = vsub.f32 %v6722, %v6740
    %v6757 = vsub.f32 %v6723, %v6740
    %v6758 = vsub.f32 %v6724, %v6753
    %v6759 = vsub.f32 %v6725, %v6753
    %v6760 = vsub.f32 %v6726, %v6753
    %v6761 = vsub.f32 %v6727, %v6753
    %v6762 = vmul.f32 %v6754, 1.442695
    %v6763 = vpow.pop %v6762
    %v6764 = vmul.f32 %v6755, 1.442695
    %v6765 = vpow.pop %v6764
    %v6766 = vmul.f32 %v6756, 1.442695
    %v6767 = vpow.pop %v6766
    %v6768 = vmul.f32 %v6757, 1.442695
    %v6769 = vpow.pop %v6768
    %v6770 = vmul.f32 %v6758, 1.442695
    %v6771 = vpow.pop %v6770
    %v6772 = vmul.f32 %v6759, 1.442695
    %v6773 = vpow.pop %v6772
    %v6774 = vmul.f32 %v6760, 1.442695
    %v6775 = vpow.pop %v6774
    %v6776 = vmul.f32 %v6761, 1.442695
    %v6777 = vpow.pop %v6776
    %v6778 = vsel %vm571, %v6763, 0.0
    %v6779 = vsel %vm571, %v6765, 0.0
    %v6780 = vadd.f32 %v6778, %v6779
    %v6781 = vsel %vm571, %v6767, 0.0
    %v6782 = vadd.f32 %v6780, %v6781
    %v6783 = vsel %vm571, %v6769, 0.0
    %v6784 = vadd.f32 %v6782, %v6783
    %v6785 = vrot.slane %v6784, 4
    %v6786 = vadd.f32 %v6784, %v6785
    %v6787 = vrot.slane %v6786, 2
    %v6788 = vadd.f32 %v6786, %v6787
    %v6789 = vrot.slane %v6788, 1
    %v6790 = vadd.f32 %v6788, %v6789
    %v6791 = vsel %vm571, %v6771, 0.0
    %v6792 = vsel %vm571, %v6773, 0.0
    %v6793 = vadd.f32 %v6791, %v6792
    %v6794 = vsel %vm571, %v6775, 0.0
    %v6795 = vadd.f32 %v6793, %v6794
    %v6796 = vsel %vm571, %v6777, 0.0
    %v6797 = vadd.f32 %v6795, %v6796
    %v6798 = vrot.slane %v6797, 4
    %v6799 = vadd.f32 %v6797, %v6798
    %v6800 = vrot.slane %v6799, 2
    %v6801 = vadd.f32 %v6799, %v6800
    %v6802 = vrot.slane %v6801, 1
    %v6803 = vadd.f32 %v6801, %v6802
    %v6804 = vrcp.pop %v6790
    %v6805 = vrcp.pop %v6803
    %v6806 = vmul.f32 %v6763, %v6804
    %v6807 = vmul.f32 %v6765, %v6804
    %v6808 = vmul.f32 %v6767, %v6804
    %v6809 = vmul.f32 %v6769, %v6804
    %v6810 = vmul.f32 %v6771, %v6805
    %v6811 = vmul.f32 %v6773, %v6805
    %v6812 = vmul.f32 %v6775, %v6805
    %v6813 = vmul.f32 %v6777, %v6805
    %v6815 = vsel %vm571, %v6806, 0
    %v6818 = vsel %vm571, %v6807, 0
    %v6821 = vsel %vm571, %v6808, 0
    %v6824 = vsel %vm571, %v6809, 0
    %6826 = vmatprep.subr.mxu0 0.0
    %6827 = vmatpush1.msra.mxu0 %v6488
    %6828 = vmatprep.subr.mxu0 0.0
    %6829 = vmatpush1.msra.mxu0 %v6493
    %6830 = vmatprep.subr.mxu0 0.0
    %6831 = vmatpush1.msra.mxu0 %v6498
    %6832 = vmatprep.subr.mxu0 0.0
    %6833 = vmatpush1.msra.mxu0 %v6503
    %6834 = vmatprep.subr.mxu0 0.0
    %6835 = vmatpush1.msra.mxu0 0.0
    %6836 = vmatprep.subr.mxu0 0.0
    %6837 = vmatpush1.msra.mxu0 0.0
    %6838 = vmatprep.subr.mxu0 0.0
    %6839 = vmatpush1.msra.mxu0 0.0
    %6840 = vmatprep.subr.mxu0 0.0
    %6841 = vmatpush1.msra.mxu0 0.0
    %6842 = vmatprep.subr.mxu0 0.0
    %6843 = vmatpush1.msra.mxu0 0.0
    %6844 = vmatprep.subr.mxu0 0.0
    %6845 = vmatpush1.msra.mxu0 0.0
    %6846 = vmatprep.subr.mxu0 0.0
    %6847 = vmatpush1.msra.mxu0 0.0
    %6848 = vmatprep.subr.mxu0 0.0
    %6849 = vmatpush1.msra.mxu0 0.0
    %6850 = vmatprep.subr.mxu0 0.0
    %6851 = vmatpush1.msra.mxu0 0.0
    %6852 = vmatprep.subr.mxu0 0.0
    %6853 = vmatpush1.msra.mxu0 0.0
    %6854 = vmatprep.subr.mxu0 0.0
    %6855 = vmatpush1.msra.mxu0 0.0
    %6856 = vmatprep.subr.mxu0 0.0
    %6857 = vmatpush1.msra.mxu0 0.0
    %6858 = vmatprep.subr.mxu0 0.0
    %6859 = vmatpush1.msra.mxu0 0.0
    %6860 = vmatprep.subr.mxu0 0.0
    %6861 = vmatpush1.msra.mxu0 0.0
    %6862 = vmatprep.subr.mxu0 0.0
    %6863 = vmatpush1.msra.mxu0 0.0
    %6864 = vmatprep.subr.mxu0 0.0
    %6865 = vmatpush1.msra.mxu0 0.0
    %6866 = vmatprep.subr.mxu0 0.0
    %6867 = vmatpush1.msra.mxu0 0.0
    %6868 = vmatprep.subr.mxu0 0.0
    %6869 = vmatpush1.msra.mxu0 0.0
    %6870 = vmatprep.subr.mxu0 0.0
    %6871 = vmatpush1.msra.mxu0 0.0
    %6872 = vmatprep.subr.mxu0 0.0
    %6873 = vmatpush1.msra.mxu0 0.0
    %6874 = vmatprep.subr.mxu0 0.0
    %6875 = vmatpush1.msra.mxu0 0.0
    %6876 = vmatprep.subr.mxu0 0.0
    %6877 = vmatpush1.msra.mxu0 0.0
    %6878 = vmatprep.subr.mxu0 0.0
    %6879 = vmatpush1.msra.mxu0 0.0
    %6880 = vmatprep.subr.mxu0 0.0
    %6881 = vmatpush1.msra.mxu0 0.0
    %6882 = vmatprep.subr.mxu0 0.0
    %6883 = vmatpush1.msra.mxu0 0.0
    %6884 = vmatprep.subr.mxu0 0.0
    %6885 = vmatpush1.msra.mxu0 0.0
    %6886 = vmatprep.subr.mxu0 0.0
    %6887 = vmatpush1.msra.mxu0 0.0
    %6888 = vmatprep.subr.mxu0 0.0
    %6889 = vmatpush1.msra.mxu0 0.0
    %6890 = vmatprep.mubr.f32.mxu0 0.0
    %6891 = vmatmul.mubr.f32.gmra.mrb[0].mxu0 %v6815
    %v6892 = vpop.f32.mrb[0].mxu0
    %v6893 = vadd.f32 0.0, %v6892
    %v6894 = vpop.f32.mrb[0].mxu0
    %6895 = vmatprep.mubr.f32.mxu0 0.0
    %6896 = vmatmul.mubr.f32.gmra.mrb[0].mxu0 %v6818
    %v6897 = vpop.f32.mrb[0].mxu0
    %v6898 = vadd.f32 0.0, %v6897
    %v6899 = vpop.f32.mrb[0].mxu0
    %6900 = vmatprep.mubr.f32.mxu0 0.0
    %6901 = vmatmul.mubr.f32.gmra.mrb[0].mxu0 %v6821
    %v6902 = vpop.f32.mrb[0].mxu0
    %v6903 = vadd.f32 0.0, %v6902
    %v6904 = vpop.f32.mrb[0].mxu0
    %6905 = vmatprep.mubr.f32.mxu0 0.0
    %6906 = vmatmul.mubr.f32.gmra.mrb[0].mxu0 %v6824
    %v6907 = vpop.f32.mrb[0].mxu0
    %v6908 = vadd.f32 0.0, %v6907
    %v6909 = vpop.f32.mrb[0].mxu0
    %6910 = vdwg.mxu0
    %v6912 = vsel %vm571, %v6810, 0
    %v6915 = vsel %vm571, %v6811, 0
    %v6918 = vsel %vm571, %v6812, 0
    %v6921 = vsel %vm571, %v6813, 0
    %6923 = vmatprep.subr.mxu0 0.0
    %6924 = vmatpush1.msra.mxu0 %v6508
    %6925 = vmatprep.subr.mxu0 0.0
    %6926 = vmatpush1.msra.mxu0 %v6513
    %6927 = vmatprep.subr.mxu0 0.0
    %6928 = vmatpush1.msra.mxu0 %v6518
    %6929 = vmatprep.subr.mxu0 0.0
    %6930 = vmatpush1.msra.mxu0 %v6523
    %6931 = vmatprep.subr.mxu0 0.0
    %6932 = vmatpush1.msra.mxu0 0.0
    %6933 = vmatprep.subr.mxu0 0.0
    %6934 = vmatpush1.msra.mxu0 0.0
    %6935 = vmatprep.subr.mxu0 0.0
    %6936 = vmatpush1.msra.mxu0 0.0
    %6937 = vmatprep.subr.mxu0 0.0
    %6938 = vmatpush1.msra.mxu0 0.0
    %6939 = vmatprep.subr.mxu0 0.0
    %6940 = vmatpush1.msra.mxu0 0.0
    %6941 = vmatprep.subr.mxu0 0.0
    %6942 = vmatpush1.msra.mxu0 0.0
    %6943 = vmatprep.subr.mxu0 0.0
    %6944 = vmatpush1.msra.mxu0 0.0
    %6945 = vmatprep.subr.mxu0 0.0
    %6946 = vmatpush1.msra.mxu0 0.0
    %6947 = vmatprep.subr.mxu0 0.0
    %6948 = vmatpush1.msra.mxu0 0.0
    %6949 = vmatprep.subr.mxu0 0.0
    %6950 = vmatpush1.msra.mxu0 0.0
    %6951 = vmatprep.subr.mxu0 0.0
    %6952 = vmatpush1.msra.mxu0 0.0
    %6953 = vmatprep.subr.mxu0 0.0
    %6954 = vmatpush1.msra.mxu0 0.0
    %6955 = vmatprep.subr.mxu0 0.0
    %6956 = vmatpush1.msra.mxu0 0.0
    %6957 = vmatprep.subr.mxu0 0.0
    %6958 = vmatpush1.msra.mxu0 0.0
    %6959 = vmatprep.subr.mxu0 0.0
    %6960 = vmatpush1.msra.mxu0 0.0
    %6961 = vmatprep.subr.mxu0 0.0
    %6962 = vmatpush1.msra.mxu0 0.0
    %6963 = vmatprep.subr.mxu0 0.0
    %6964 = vmatpush1.msra.mxu0 0.0
    %6965 = vmatprep.subr.mxu0 0.0
    %6966 = vmatpush1.msra.mxu0 0.0
    %6967 = vmatprep.subr.mxu0 0.0
    %6968 = vmatpush1.msra.mxu0 0.0
    %6969 = vmatprep.subr.mxu0 0.0
    %6970 = vmatpush1.msra.mxu0 0.0
    %6971 = vmatprep.subr.mxu0 0.0
    %6972 = vmatpush1.msra.mxu0 0.0
    %6973 = vmatprep.subr.mxu0 0.0
    %6974 = vmatpush1.msra.mxu0 0.0
    %6975 = vmatprep.subr.mxu0 0.0
    %6976 = vmatpush1.msra.mxu0 0.0
    %6977 = vmatprep.subr.mxu0 0.0
    %6978 = vmatpush1.msra.mxu0 0.0
    %6979 = vmatprep.subr.mxu0 0.0
    %6980 = vmatpush1.msra.mxu0 0.0
    %6981 = vmatprep.subr.mxu0 0.0
    %6982 = vmatpush1.msra.mxu0 0.0
    %6983 = vmatprep.subr.mxu0 0.0
    %6984 = vmatpush1.msra.mxu0 0.0
    %6985 = vmatprep.subr.mxu0 0.0
    %6986 = vmatpush1.msra.mxu0 0.0
    %6987 = vmatprep.mubr.f32.mxu0 0.0
    %6988 = vmatmul.mubr.f32.gmra.mrb[0].mxu0 %v6912
    %v6989 = vpop.f32.mrb[0].mxu0
    %v6990 = vadd.f32 0.0, %v6989
    %v6991 = vpop.f32.mrb[0].mxu0
    %6992 = vmatprep.mubr.f32.mxu0 0.0
    %6993 = vmatmul.mubr.f32.gmra.mrb[0].mxu0 %v6915
    %v6994 = vpop.f32.mrb[0].mxu0
    %v6995 = vadd.f32 0.0, %v6994
    %v6996 = vpop.f32.mrb[0].mxu0
    %6997 = vmatprep.mubr.f32.mxu0 0.0
    %6998 = vmatmul.mubr.f32.gmra.mrb[0].mxu0 %v6918
    %v6999 = vpop.f32.mrb[0].mxu0
    %v7000 = vadd.f32 0.0, %v6999
    %v7001 = vpop.f32.mrb[0].mxu0
    %7002 = vmatprep.mubr.f32.mxu0 0.0
    %7003 = vmatmul.mubr.f32.gmra.mrb[0].mxu0 %v6921
    %v7004 = vpop.f32.mrb[0].mxu0
    %v7005 = vadd.f32 0.0, %v7004
    %v7006 = vpop.f32.mrb[0].mxu0
    %7007 = vdwg.mxu0
    %v7008 = vlaneseq
    %v7009 = vshrl.u32 %v7008, 7
    %v7010 = vsub.s32 3, %v7009
    %v7011 = vrot.slane %v6158, %v7010
    %v7013 = vsel %vm571, %v6893, 0
    %v7016 = vsel %vm571, %v6898, 0
    %v7019 = vsel %vm571, %v6903, 0
    %v7022 = vsel %vm571, %v6908, 0
    %v7025 = vsel %vm571, %v6990, 0
    %v7028 = vsel %vm571, %v6995, 0
    %v7031 = vsel %vm571, %v7000, 0
    %v7034 = vsel %vm571, %v7005, 0
    %7036 = vmatprep.subr.mxu0 0.0
    %7037 = vmatpush1.msra.mxu0 %v6153
    %7038 = vmatprep.subr.mxu0 0.0
    %7039 = vmatpush1.msra.mxu0 %v6154
    %7040 = vmatprep.subr.mxu0 0.0
    %7041 = vmatpush1.msra.mxu0 %v6155
    %7042 = vmatprep.subr.mxu0 0.0
    %7043 = vmatpush1.msra.mxu0 %v6156
    %7044 = vmatprep.subr.mxu0 0.0
    %7045 = vmatpush1.msra.mxu0 0.0
    %7046 = vmatprep.subr.mxu0 0.0
    %7047 = vmatpush1.msra.mxu0 0.0
    %7048 = vmatprep.subr.mxu0 0.0
    %7049 = vmatpush1.msra.mxu0 0.0
    %7050 = vmatprep.subr.mxu0 0.0
    %7051 = vmatpush1.msra.mxu0 0.0
    %7052 = vmatprep.subr.mxu0 0.0
    %7053 = vmatpush1.msra.mxu0 0.0
    %7054 = vmatprep.subr.mxu0 0.0
    %7055 = vmatpush1.msra.mxu0 0.0
    %7056 = vmatprep.subr.mxu0 0.0
    %7057 = vmatpush1.msra.mxu0 0.0
    %7058 = vmatprep.subr.mxu0 0.0
    %7059 = vmatpush1.msra.mxu0 0.0
    %7060 = vmatprep.subr.mxu0 0.0
    %7061 = vmatpush1.msra.mxu0 0.0
    %7062 = vmatprep.subr.mxu0 0.0
    %7063 = vmatpush1.msra.mxu0 0.0
    %7064 = vmatprep.subr.mxu0 0.0
    %7065 = vmatpush1.msra.mxu0 0.0
    %7066 = vmatprep.subr.mxu0 0.0
    %7067 = vmatpush1.msra.mxu0 0.0
    %7068 = vmatprep.subr.mxu0 0.0
    %7069 = vmatpush1.msra.mxu0 0.0
    %7070 = vmatprep.subr.mxu0 0.0
    %7071 = vmatpush1.msra.mxu0 0.0
    %7072 = vmatprep.subr.mxu0 0.0
    %7073 = vmatpush1.msra.mxu0 0.0
    %7074 = vmatprep.subr.mxu0 0.0
    %7075 = vmatpush1.msra.mxu0 0.0
    %7076 = vmatprep.subr.mxu0 0.0
    %7077 = vmatpush1.msra.mxu0 0.0
    %7078 = vmatprep.subr.mxu0 0.0
    %7079 = vmatpush1.msra.mxu0 0.0
    %7080 = vmatprep.subr.mxu0 0.0
    %7081 = vmatpush1.msra.mxu0 0.0
    %7082 = vmatprep.subr.mxu0 0.0
    %7083 = vmatpush1.msra.mxu0 0.0
    %7084 = vmatprep.subr.mxu0 0.0
    %7085 = vmatpush1.msra.mxu0 0.0
    %7086 = vmatprep.subr.mxu0 0.0
    %7087 = vmatpush1.msra.mxu0 0.0
    %7088 = vmatprep.subr.mxu0 0.0
    %7089 = vmatpush1.msra.mxu0 0.0
    %7090 = vmatprep.subr.mxu0 0.0
    %7091 = vmatpush1.msra.mxu0 0.0
    %7092 = vmatprep.subr.mxu0 0.0
    %7093 = vmatpush1.msra.mxu0 0.0
    %7094 = vmatprep.subr.mxu0 0.0
    %7095 = vmatpush1.msra.mxu0 0.0
    %7096 = vmatprep.subr.mxu0 0.0
    %7097 = vmatpush1.msra.mxu0 0.0
    %7098 = vmatprep.subr.mxu0 0.0
    %7099 = vmatpush1.msra.mxu0 0.0
    %7100 = vmatprep.mubr.f32.mxu0 0.0
    %7101 = vmatmul.mubr.f32.gmra.mrb[0].mxu0 %v7013
    %v7102 = vpop.f32.mrb[0].mxu0
    %v7103 = vadd.f32 %v7011, %v7102
    %v7104 = vpop.f32.mrb[0].mxu0
    %7105 = vmatprep.mubr.f32.mxu0 0.0
    %7106 = vmatmul.mubr.f32.gmra.mrb[0].mxu0 %v7016
    %v7107 = vpop.f32.mrb[0].mxu0
    %v7108 = vadd.f32 %v7011, %v7107
    %v7109 = vpop.f32.mrb[0].mxu0
    %7110 = vmatprep.mubr.f32.mxu0 0.0
    %7111 = vmatmul.mubr.f32.gmra.mrb[0].mxu0 %v7019
    %v7112 = vpop.f32.mrb[0].mxu0
    %v7113 = vadd.f32 %v7011, %v7112
    %v7114 = vpop.f32.mrb[0].mxu0
    %7115 = vmatprep.mubr.f32.mxu0 0.0
    %7116 = vmatmul.mubr.f32.gmra.mrb[0].mxu0 %v7022
    %v7117 = vpop.f32.mrb[0].mxu0
    %v7118 = vadd.f32 %v7011, %v7117
    %v7119 = vpop.f32.mrb[0].mxu0
    %7120 = vmatprep.mubr.f32.mxu0 0.0
    %7121 = vmatmul.mubr.f32.gmra.mrb[0].mxu0 %v7025
    %v7122 = vpop.f32.mrb[0].mxu0
    %v7123 = vadd.f32 %v7011, %v7122
    %v7124 = vpop.f32.mrb[0].mxu0
    %7125 = vmatprep.mubr.f32.mxu0 0.0
    %7126 = vmatmul.mubr.f32.gmra.mrb[0].mxu0 %v7028
    %v7127 = vpop.f32.mrb[0].mxu0
    %v7128 = vadd.f32 %v7011, %v7127
    %v7129 = vpop.f32.mrb[0].mxu0
    %7130 = vmatprep.mubr.f32.mxu0 0.0
    %7131 = vmatmul.mubr.f32.gmra.mrb[0].mxu0 %v7031
    %v7132 = vpop.f32.mrb[0].mxu0
    %v7133 = vadd.f32 %v7011, %v7132
    %v7134 = vpop.f32.mrb[0].mxu0
    %7135 = vmatprep.mubr.f32.mxu0 0.0
    %7136 = vmatmul.mubr.f32.gmra.mrb[0].mxu0 %v7034
    %v7137 = vpop.f32.mrb[0].mxu0
    %v7138 = vadd.f32 %v7011, %v7137
    %v7139 = vpop.f32.mrb[0].mxu0
    %7140 = vdwg.mxu0
    %v7141 = vadd.f32 %v6129, %v7103
    %v7142 = vadd.f32 %v6130, %v7108
    %v7143 = vadd.f32 %v6131, %v7113
    %v7144 = vadd.f32 %v6132, %v7118
    %v7145 = vadd.f32 %v6133, %v7123
    %v7146 = vadd.f32 %v6134, %v7128
    %v7147 = vadd.f32 %v6135, %v7133
    %v7148 = vadd.f32 %v6136, %v7138
    %v7149 = vsel %vm571, %v7141, 0.0
    %7150 = vadd.xlane.f32.xlu0 %v7149
    %v7151 = vpop.xlane.xlu0 %7150
    %v7152 = vsel %vm571, %v7142, 0.0
    %7153 = vadd.xlane.f32.xlu0 %v7152
    %v7154 = vpop.xlane.xlu0 %7153
    %v7155 = vsel %vm571, %v7143, 0.0
    %7156 = vadd.xlane.f32.xlu0 %v7155
    %v7157 = vpop.xlane.xlu0 %7156
    %v7158 = vsel %vm571, %v7144, 0.0
    %7159 = vadd.xlane.f32.xlu0 %v7158
    %v7160 = vpop.xlane.xlu0 %7159
    %v7161 = vsel %vm571, %v7145, 0.0
    %7162 = vadd.xlane.f32.xlu0 %v7161
    %v7163 = vpop.xlane.xlu0 %7162
    %v7164 = vsel %vm571, %v7146, 0.0
    %7165 = vadd.xlane.f32.xlu0 %v7164
    %v7166 = vpop.xlane.xlu0 %7165
    %v7167 = vsel %vm571, %v7147, 0.0
    %7168 = vadd.xlane.f32.xlu0 %v7167
    %v7169 = vpop.xlane.xlu0 %7168
    %v7170 = vsel %vm571, %v7148, 0.0
    %7171 = vadd.xlane.f32.xlu0 %v7170
    %v7172 = vpop.xlane.xlu0 %7171
    %v7173 = vmul.f32 %v7151, %v1566
    %v7174 = vmul.f32 %v7154, %v1566
    %v7175 = vmul.f32 %v7157, %v1566
    %v7176 = vmul.f32 %v7160, %v1566
    %v7177 = vmul.f32 %v7163, %v1566
    %v7178 = vmul.f32 %v7166, %v1566
    %v7179 = vmul.f32 %v7169, %v1566
    %v7180 = vmul.f32 %v7172, %v1566
    %v7181 = vsub.f32 %v7141, %v7173
    %v7182 = vsub.f32 %v7142, %v7174
    %v7183 = vsub.f32 %v7143, %v7175
    %v7184 = vsub.f32 %v7144, %v7176
    %v7185 = vsub.f32 %v7145, %v7177
    %v7186 = vsub.f32 %v7146, %v7178
    %v7187 = vsub.f32 %v7147, %v7179
    %v7188 = vsub.f32 %v7148, %v7180
    %v7189 = vmul.f32 %v7181, %v7181
    %v7190 = vmul.f32 %v7182, %v7182
    %v7191 = vmul.f32 %v7183, %v7183
    %v7192 = vmul.f32 %v7184, %v7184
    %v7193 = vmul.f32 %v7185, %v7185
    %v7194 = vmul.f32 %v7186, %v7186
    %v7195 = vmul.f32 %v7187, %v7187
    %v7196 = vmul.f32 %v7188, %v7188
    %v7197 = vsel %vm571, %v7189, 0.0
    %7198 = vadd.xlane.f32.xlu0 %v7197
    %v7199 = vpop.xlane.xlu0 %7198
    %v7200 = vsel %vm571, %v7190, 0.0
    %7201 = vadd.xlane.f32.xlu0 %v7200
    %v7202 = vpop.xlane.xlu0 %7201
    %v7203 = vsel %vm571, %v7191, 0.0
    %7204 = vadd.xlane.f32.xlu0 %v7203
    %v7205 = vpop.xlane.xlu0 %7204
    %v7206 = vsel %vm571, %v7192, 0.0
    %7207 = vadd.xlane.f32.xlu0 %v7206
    %v7208 = vpop.xlane.xlu0 %7207
    %v7209 = vsel %vm571, %v7193, 0.0
    %7210 = vadd.xlane.f32.xlu0 %v7209
    %v7211 = vpop.xlane.xlu0 %7210
    %v7212 = vsel %vm571, %v7194, 0.0
    %7213 = vadd.xlane.f32.xlu0 %v7212
    %v7214 = vpop.xlane.xlu0 %7213
    %v7215 = vsel %vm571, %v7195, 0.0
    %7216 = vadd.xlane.f32.xlu0 %v7215
    %v7217 = vpop.xlane.xlu0 %7216
    %v7218 = vsel %vm571, %v7196, 0.0
    %7219 = vadd.xlane.f32.xlu0 %v7218
    %v7220 = vpop.xlane.xlu0 %7219
    %v7221 = vmul.f32 %v7199, %v1566
    %v7222 = vmul.f32 %v7202, %v1566
    %v7223 = vmul.f32 %v7205, %v1566
    %v7224 = vmul.f32 %v7208, %v1566
    %v7225 = vmul.f32 %v7211, %v1566
    %v7226 = vmul.f32 %v7214, %v1566
    %v7227 = vmul.f32 %v7217, %v1566
    %v7228 = vmul.f32 %v7220, %v1566
    %v7229 = vadd.f32 %v7221, 1e-05
    %v7230 = vadd.f32 %v7222, 1e-05
    %v7231 = vadd.f32 %v7223, 1e-05
    %v7232 = vadd.f32 %v7224, 1e-05
    %v7233 = vadd.f32 %v7225, 1e-05
    %v7234 = vadd.f32 %v7226, 1e-05
    %v7235 = vadd.f32 %v7227, 1e-05
    %v7236 = vadd.f32 %v7228, 1e-05
    %v7237 = vrsqrt.pop %v7229
    %v7238 = vrsqrt.pop %v7230
    %v7239 = vrsqrt.pop %v7231
    %v7240 = vrsqrt.pop %v7232
    %v7241 = vrsqrt.pop %v7233
    %v7242 = vrsqrt.pop %v7234
    %v7243 = vrsqrt.pop %v7235
    %v7244 = vrsqrt.pop %v7236
    %v7245 = vmul.f32 %v7181, %v7237
    %v7246 = vmul.f32 %v7182, %v7238
    %v7247 = vmul.f32 %v7183, %v7239
    %v7248 = vmul.f32 %v7184, %v7240
    %v7249 = vmul.f32 %v7185, %v7241
    %v7250 = vmul.f32 %v7186, %v7242
    %v7251 = vmul.f32 %v7187, %v7243
    %v7252 = vmul.f32 %v7188, %v7244
    %v7253 = vlaneseq
    %v7254 = vshrl.u32 %v7253, 7
    %v7255 = vsub.s32 5, %v7254
    %v7256 = vrot.slane %v6158, %v7255
    %v7257 = vmul.f32 %v7245, %v7256
    %v7258 = vmul.f32 %v7246, %v7256
    %v7259 = vmul.f32 %v7247, %v7256
    %v7260 = vmul.f32 %v7248, %v7256
    %v7261 = vmul.f32 %v7249, %v7256
    %v7262 = vmul.f32 %v7250, %v7256
    %v7263 = vmul.f32 %v7251, %v7256
    %v7264 = vmul.f32 %v7252, %v7256
    %v7265 = vlaneseq
    %v7266 = vshrl.u32 %v7265, 7
    %v7267 = vsub.s32 6, %v7266
    %v7268 = vrot.slane %v6158, %v7267
    %v7269 = vadd.f32 %v7257, %v7268
    %v7270 = vadd.f32 %v7258, %v7268
    %v7271 = vadd.f32 %v7259, %v7268
    %v7272 = vadd.f32 %v7260, %v7268
    %v7273 = vadd.f32 %v7261, %v7268
    %v7274 = vadd.f32 %v7262, %v7268
    %v7275 = vadd.f32 %v7263, %v7268
    %v7276 = vadd.f32 %v7264, %v7268
    %7277 = vmatprep.subr.mxu0 0.0
    %7278 = vmatpush1.msra.mxu0 %v6143
    %7279 = vmatprep.subr.mxu0 0.0
    %7280 = vmatpush1.msra.mxu0 %v6144
    %7281 = vmatprep.subr.mxu0 0.0
    %7282 = vmatpush1.msra.mxu0 %v6145
    %7283 = vmatprep.subr.mxu0 0.0
    %7284 = vmatpush1.msra.mxu0 %v6146
    %7285 = vmatprep.subr.mxu0 0.0
    %7286 = vmatpush1.msra.mxu0 0.0
    %7287 = vmatprep.subr.mxu0 0.0
    %7288 = vmatpush1.msra.mxu0 0.0
    %7289 = vmatprep.subr.mxu0 0.0
    %7290 = vmatpush1.msra.mxu0 0.0
    %7291 = vmatprep.subr.mxu0 0.0
    %7292 = vmatpush1.msra.mxu0 0.0
    %7293 = vmatprep.subr.mxu0 0.0
    %7294 = vmatpush1.msra.mxu0 0.0
    %7295 = vmatprep.subr.mxu0 0.0
    %7296 = vmatpush1.msra.mxu0 0.0
    %7297 = vmatprep.subr.mxu0 0.0
    %7298 = vmatpush1.msra.mxu0 0.0
    %7299 = vmatprep.subr.mxu0 0.0
    %7300 = vmatpush1.msra.mxu0 0.0
    %7301 = vmatprep.subr.mxu0 0.0
    %7302 = vmatpush1.msra.mxu0 0.0
    %7303 = vmatprep.subr.mxu0 0.0
    %7304 = vmatpush1.msra.mxu0 0.0
    %7305 = vmatprep.subr.mxu0 0.0
    %7306 = vmatpush1.msra.mxu0 0.0
    %7307 = vmatprep.subr.mxu0 0.0
    %7308 = vmatpush1.msra.mxu0 0.0
    %7309 = vmatprep.subr.mxu0 0.0
    %7310 = vmatpush1.msra.mxu0 0.0
    %7311 = vmatprep.subr.mxu0 0.0
    %7312 = vmatpush1.msra.mxu0 0.0
    %7313 = vmatprep.subr.mxu0 0.0
    %7314 = vmatpush1.msra.mxu0 0.0
    %7315 = vmatprep.subr.mxu0 0.0
    %7316 = vmatpush1.msra.mxu0 0.0
    %7317 = vmatprep.subr.mxu0 0.0
    %7318 = vmatpush1.msra.mxu0 0.0
    %7319 = vmatprep.subr.mxu0 0.0
    %7320 = vmatpush1.msra.mxu0 0.0
    %7321 = vmatprep.subr.mxu0 0.0
    %7322 = vmatpush1.msra.mxu0 0.0
    %7323 = vmatprep.subr.mxu0 0.0
    %7324 = vmatpush1.msra.mxu0 0.0
    %7325 = vmatprep.subr.mxu0 0.0
    %7326 = vmatpush1.msra.mxu0 0.0
    %7327 = vmatprep.subr.mxu0 0.0
    %7328 = vmatpush1.msra.mxu0 0.0
    %7329 = vmatprep.subr.mxu0 0.0
    %7330 = vmatpush1.msra.mxu0 0.0
    %7331 = vmatprep.subr.mxu0 0.0
    %7332 = vmatpush1.msra.mxu0 0.0
    %7333 = vmatprep.subr.mxu0 0.0
    %7334 = vmatpush1.msra.mxu0 0.0
    %7335 = vmatprep.subr.mxu0 0.0
    %7336 = vmatpush1.msra.mxu0 0.0
    %7337 = vmatprep.subr.mxu0 0.0
    %7338 = vmatpush1.msra.mxu0 0.0
    %7339 = vmatprep.subr.mxu0 0.0
    %7340 = vmatpush1.msra.mxu0 0.0
    %7341 = vmatprep.mubr.f32.mxu0 0.0
    %7342 = vmatmul.mubr.f32.gmra.mrb[0].mxu0 %v4761
    %v7343 = vpop.f32.mrb[0].mxu0
    %v7344 = vadd.f32 %v6311, %v7343
    %v7345 = vpop.f32.mrb[0].mxu0
    %7346 = vmatprep.mubr.f32.mxu0 0.0
    %7347 = vmatmul.mubr.f32.gmra.mrb[0].mxu0 %v4764
    %v7348 = vpop.f32.mrb[0].mxu0
    %v7349 = vadd.f32 %v6311, %v7348
    %v7350 = vpop.f32.mrb[0].mxu0
    %7351 = vmatprep.mubr.f32.mxu0 0.0
    %7352 = vmatmul.mubr.f32.gmra.mrb[0].mxu0 %v4767
    %v7353 = vpop.f32.mrb[0].mxu0
    %v7354 = vadd.f32 %v6311, %v7353
    %v7355 = vpop.f32.mrb[0].mxu0
    %7356 = vmatprep.mubr.f32.mxu0 0.0
    %7357 = vmatmul.mubr.f32.gmra.mrb[0].mxu0 %v4770
    %v7358 = vpop.f32.mrb[0].mxu0
    %v7359 = vadd.f32 %v6311, %v7358
    %v7360 = vpop.f32.mrb[0].mxu0
    %7361 = vmatprep.mubr.f32.mxu0 0.0
    %7362 = vmatmul.mubr.f32.gmra.mrb[0].mxu0 %v4773
    %v7363 = vpop.f32.mrb[0].mxu0
    %v7364 = vadd.f32 %v6311, %v7363
    %v7365 = vpop.f32.mrb[0].mxu0
    %7366 = vmatprep.mubr.f32.mxu0 0.0
    %7367 = vmatmul.mubr.f32.gmra.mrb[0].mxu0 %v4776
    %v7368 = vpop.f32.mrb[0].mxu0
    %v7369 = vadd.f32 %v6311, %v7368
    %v7370 = vpop.f32.mrb[0].mxu0
    %7371 = vmatprep.mubr.f32.mxu0 0.0
    %7372 = vmatmul.mubr.f32.gmra.mrb[0].mxu0 %v4779
    %v7373 = vpop.f32.mrb[0].mxu0
    %v7374 = vadd.f32 %v6311, %v7373
    %v7375 = vpop.f32.mrb[0].mxu0
    %7376 = vmatprep.mubr.f32.mxu0 0.0
    %7377 = vmatmul.mubr.f32.gmra.mrb[0].mxu0 %v4782
    %v7378 = vpop.f32.mrb[0].mxu0
    %v7379 = vadd.f32 %v6311, %v7378
    %v7380 = vpop.f32.mrb[0].mxu0
    %7381 = vdwg.mxu0
    %7382 = vmatprep.subr.mxu0 0.0
    %7383 = vmatpush1.msra.mxu0 %v6148
    %7384 = vmatprep.subr.mxu0 0.0
    %7385 = vmatpush1.msra.mxu0 %v6149
    %7386 = vmatprep.subr.mxu0 0.0
    %7387 = vmatpush1.msra.mxu0 %v6150
    %7388 = vmatprep.subr.mxu0 0.0
    %7389 = vmatpush1.msra.mxu0 %v6151
    %7390 = vmatprep.subr.mxu0 0.0
    %7391 = vmatpush1.msra.mxu0 0.0
    %7392 = vmatprep.subr.mxu0 0.0
    %7393 = vmatpush1.msra.mxu0 0.0
    %7394 = vmatprep.subr.mxu0 0.0
    %7395 = vmatpush1.msra.mxu0 0.0
    %7396 = vmatprep.subr.mxu0 0.0
    %7397 = vmatpush1.msra.mxu0 0.0
    %7398 = vmatprep.subr.mxu0 0.0
    %7399 = vmatpush1.msra.mxu0 0.0
    %7400 = vmatprep.subr.mxu0 0.0
    %7401 = vmatpush1.msra.mxu0 0.0
    %7402 = vmatprep.subr.mxu0 0.0
    %7403 = vmatpush1.msra.mxu0 0.0
    %7404 = vmatprep.subr.mxu0 0.0
    %7405 = vmatpush1.msra.mxu0 0.0
    %7406 = vmatprep.subr.mxu0 0.0
    %7407 = vmatpush1.msra.mxu0 0.0
    %7408 = vmatprep.subr.mxu0 0.0
    %7409 = vmatpush1.msra.mxu0 0.0
    %7410 = vmatprep.subr.mxu0 0.0
    %7411 = vmatpush1.msra.mxu0 0.0
    %7412 = vmatprep.subr.mxu0 0.0
    %7413 = vmatpush1.msra.mxu0 0.0
    %7414 = vmatprep.subr.mxu0 0.0
    %7415 = vmatpush1.msra.mxu0 0.0
    %7416 = vmatprep.subr.mxu0 0.0
    %7417 = vmatpush1.msra.mxu0 0.0
    %7418 = vmatprep.subr.mxu0 0.0
    %7419 = vmatpush1.msra.mxu0 0.0
    %7420 = vmatprep.subr.mxu0 0.0
    %7421 = vmatpush1.msra.mxu0 0.0
    %7422 = vmatprep.subr.mxu0 0.0
    %7423 = vmatpush1.msra.mxu0 0.0
    %7424 = vmatprep.subr.mxu0 0.0
    %7425 = vmatpush1.msra.mxu0 0.0
    %7426 = vmatprep.subr.mxu0 0.0
    %7427 = vmatpush1.msra.mxu0 0.0
    %7428 = vmatprep.subr.mxu0 0.0
    %7429 = vmatpush1.msra.mxu0 0.0
    %7430 = vmatprep.subr.mxu0 0.0
    %7431 = vmatpush1.msra.mxu0 0.0
    %7432 = vmatprep.subr.mxu0 0.0
    %7433 = vmatpush1.msra.mxu0 0.0
    %7434 = vmatprep.subr.mxu0 0.0
    %7435 = vmatpush1.msra.mxu0 0.0
    %7436 = vmatprep.subr.mxu0 0.0
    %7437 = vmatpush1.msra.mxu0 0.0
    %7438 = vmatprep.subr.mxu0 0.0
    %7439 = vmatpush1.msra.mxu0 0.0
    %7440 = vmatprep.subr.mxu0 0.0
    %7441 = vmatpush1.msra.mxu0 0.0
    %7442 = vmatprep.subr.mxu0 0.0
    %7443 = vmatpush1.msra.mxu0 0.0
    %7444 = vmatprep.subr.mxu0 0.0
    %7445 = vmatpush1.msra.mxu0 0.0
    %7446 = vmatprep.mubr.f32.mxu0 0.0
    %7447 = vmatmul.mubr.f32.gmra.mrb[0].mxu0 %v4761
    %v7448 = vpop.f32.mrb[0].mxu0
    %v7449 = vadd.f32 %v6420, %v7448
    %v7450 = vpop.f32.mrb[0].mxu0
    %7451 = vmatprep.mubr.f32.mxu0 0.0
    %7452 = vmatmul.mubr.f32.gmra.mrb[0].mxu0 %v4764
    %v7453 = vpop.f32.mrb[0].mxu0
    %v7454 = vadd.f32 %v6420, %v7453
    %v7455 = vpop.f32.mrb[0].mxu0
    %7456 = vmatprep.mubr.f32.mxu0 0.0
    %7457 = vmatmul.mubr.f32.gmra.mrb[0].mxu0 %v4767
    %v7458 = vpop.f32.mrb[0].mxu0
    %v7459 = vadd.f32 %v6420, %v7458
    %v7460 = vpop.f32.mrb[0].mxu0
    %7461 = vmatprep.mubr.f32.mxu0 0.0
    %7462 = vmatmul.mubr.f32.gmra.mrb[0].mxu0 %v4770
    %v7463 = vpop.f32.mrb[0].mxu0
    %v7464 = vadd.f32 %v6420, %v7463
    %v7465 = vpop.f32.mrb[0].mxu0
    %7466 = vmatprep.mubr.f32.mxu0 0.0
    %7467 = vmatmul.mubr.f32.gmra.mrb[0].mxu0 %v4773
    %v7468 = vpop.f32.mrb[0].mxu0
    %v7469 = vadd.f32 %v6420, %v7468
    %v7470 = vpop.f32.mrb[0].mxu0
    %7471 = vmatprep.mubr.f32.mxu0 0.0
    %7472 = vmatmul.mubr.f32.gmra.mrb[0].mxu0 %v4776
    %v7473 = vpop.f32.mrb[0].mxu0
    %v7474 = vadd.f32 %v6420, %v7473
    %v7475 = vpop.f32.mrb[0].mxu0
    %7476 = vmatprep.mubr.f32.mxu0 0.0
    %7477 = vmatmul.mubr.f32.gmra.mrb[0].mxu0 %v4779
    %v7478 = vpop.f32.mrb[0].mxu0
    %v7479 = vadd.f32 %v6420, %v7478
    %v7480 = vpop.f32.mrb[0].mxu0
    %7481 = vmatprep.mubr.f32.mxu0 0.0
    %7482 = vmatmul.mubr.f32.gmra.mrb[0].mxu0 %v4782
    %v7483 = vpop.f32.mrb[0].mxu0
    %v7484 = vadd.f32 %v6420, %v7483
    %v7485 = vpop.f32.mrb[0].mxu0
    %7486 = vdwg.mxu0
    %v7488 = vsel %vm571, %v7344, 0
    %v7491 = vsel %vm571, %v7349, 0
    %v7494 = vsel %vm571, %v7354, 0
    %v7497 = vsel %vm571, %v7359, 0
    %7499 = vmatprep.subr.mxu0 0.0
    %7500 = vmatpush1.msra.mxu0 %v6270
    %7501 = vmatprep.subr.mxu0 0.0
    %7502 = vmatpush1.msra.mxu0 %v6275
    %7503 = vmatprep.subr.mxu0 0.0
    %7504 = vmatpush1.msra.mxu0 %v6280
    %7505 = vmatprep.subr.mxu0 0.0
    %7506 = vmatpush1.msra.mxu0 %v6285
    %7507 = vmatprep.subr.mxu0 0.0
    %7508 = vmatpush1.msra.mxu0 0.0
    %7509 = vmatprep.subr.mxu0 0.0
    %7510 = vmatpush1.msra.mxu0 0.0
    %7511 = vmatprep.subr.mxu0 0.0
    %7512 = vmatpush1.msra.mxu0 0.0
    %7513 = vmatprep.subr.mxu0 0.0
    %7514 = vmatpush1.msra.mxu0 0.0
    %7515 = vmatprep.subr.mxu0 0.0
    %7516 = vmatpush1.msra.mxu0 0.0
    %7517 = vmatprep.subr.mxu0 0.0
    %7518 = vmatpush1.msra.mxu0 0.0
    %7519 = vmatprep.subr.mxu0 0.0
    %7520 = vmatpush1.msra.mxu0 0.0
    %7521 = vmatprep.subr.mxu0 0.0
    %7522 = vmatpush1.msra.mxu0 0.0
    %7523 = vmatprep.subr.mxu0 0.0
    %7524 = vmatpush1.msra.mxu0 0.0
    %7525 = vmatprep.subr.mxu0 0.0
    %7526 = vmatpush1.msra.mxu0 0.0
    %7527 = vmatprep.subr.mxu0 0.0
    %7528 = vmatpush1.msra.mxu0 0.0
    %7529 = vmatprep.subr.mxu0 0.0
    %7530 = vmatpush1.msra.mxu0 0.0
    %7531 = vmatprep.subr.mxu0 0.0
    %7532 = vmatpush1.msra.mxu0 0.0
    %7533 = vmatprep.subr.mxu0 0.0
    %7534 = vmatpush1.msra.mxu0 0.0
    %7535 = vmatprep.subr.mxu0 0.0
    %7536 = vmatpush1.msra.mxu0 0.0
    %7537 = vmatprep.subr.mxu0 0.0
    %7538 = vmatpush1.msra.mxu0 0.0
    %7539 = vmatprep.subr.mxu0 0.0
    %7540 = vmatpush1.msra.mxu0 0.0
    %7541 = vmatprep.subr.mxu0 0.0
    %7542 = vmatpush1.msra.mxu0 0.0
    %7543 = vmatprep.subr.mxu0 0.0
    %7544 = vmatpush1.msra.mxu0 0.0
    %7545 = vmatprep.subr.mxu0 0.0
    %7546 = vmatpush1.msra.mxu0 0.0
    %7547 = vmatprep.subr.mxu0 0.0
    %7548 = vmatpush1.msra.mxu0 0.0
    %7549 = vmatprep.subr.mxu0 0.0
    %7550 = vmatpush1.msra.mxu0 0.0
    %7551 = vmatprep.subr.mxu0 0.0
    %7552 = vmatpush1.msra.mxu0 0.0
    %7553 = vmatprep.subr.mxu0 0.0
    %7554 = vmatpush1.msra.mxu0 0.0
    %7555 = vmatprep.subr.mxu0 0.0
    %7556 = vmatpush1.msra.mxu0 0.0
    %7557 = vmatprep.subr.mxu0 0.0
    %7558 = vmatpush1.msra.mxu0 0.0
    %7559 = vmatprep.subr.mxu0 0.0
    %7560 = vmatpush1.msra.mxu0 0.0
    %7561 = vmatprep.subr.mxu0 0.0
    %7562 = vmatpush1.msra.mxu0 0.0
    %7563 = vmatprep.mubr.f32.mxu0 0.0
    %7564 = vmatmul.mubr.f32.gmra.mrb[0].mxu0 %v7488
    %v7565 = vpop.f32.mrb[0].mxu0
    %v7566 = vadd.f32 0.0, %v7565
    %v7567 = vpop.f32.mrb[0].mxu0
    %7568 = vmatprep.mubr.f32.mxu0 0.0
    %7569 = vmatmul.mubr.f32.gmra.mrb[0].mxu0 %v7491
    %v7570 = vpop.f32.mrb[0].mxu0
    %v7571 = vadd.f32 0.0, %v7570
    %v7572 = vpop.f32.mrb[0].mxu0
    %7573 = vmatprep.mubr.f32.mxu0 0.0
    %7574 = vmatmul.mubr.f32.gmra.mrb[0].mxu0 %v7494
    %v7575 = vpop.f32.mrb[0].mxu0
    %v7576 = vadd.f32 0.0, %v7575
    %v7577 = vpop.f32.mrb[0].mxu0
    %7578 = vmatprep.mubr.f32.mxu0 0.0
    %7579 = vmatmul.mubr.f32.gmra.mrb[0].mxu0 %v7497
    %v7580 = vpop.f32.mrb[0].mxu0
    %v7581 = vadd.f32 0.0, %v7580
    %v7582 = vpop.f32.mrb[0].mxu0
    %7583 = vdwg.mxu0
    %v7585 = vsel %vm571, %v7364, 0
    %v7588 = vsel %vm571, %v7369, 0
    %v7591 = vsel %vm571, %v7374, 0
    %v7594 = vsel %vm571, %v7379, 0
    %7596 = vmatprep.subr.mxu0 0.0
    %7597 = vmatpush1.msra.mxu0 %v6290
    %7598 = vmatprep.subr.mxu0 0.0
    %7599 = vmatpush1.msra.mxu0 %v6295
    %7600 = vmatprep.subr.mxu0 0.0
    %7601 = vmatpush1.msra.mxu0 %v6300
    %7602 = vmatprep.subr.mxu0 0.0
    %7603 = vmatpush1.msra.mxu0 %v6305
    %7604 = vmatprep.subr.mxu0 0.0
    %7605 = vmatpush1.msra.mxu0 0.0
    %7606 = vmatprep.subr.mxu0 0.0
    %7607 = vmatpush1.msra.mxu0 0.0
    %7608 = vmatprep.subr.mxu0 0.0
    %7609 = vmatpush1.msra.mxu0 0.0
    %7610 = vmatprep.subr.mxu0 0.0
    %7611 = vmatpush1.msra.mxu0 0.0
    %7612 = vmatprep.subr.mxu0 0.0
    %7613 = vmatpush1.msra.mxu0 0.0
    %7614 = vmatprep.subr.mxu0 0.0
    %7615 = vmatpush1.msra.mxu0 0.0
    %7616 = vmatprep.subr.mxu0 0.0
    %7617 = vmatpush1.msra.mxu0 0.0
    %7618 = vmatprep.subr.mxu0 0.0
    %7619 = vmatpush1.msra.mxu0 0.0
    %7620 = vmatprep.subr.mxu0 0.0
    %7621 = vmatpush1.msra.mxu0 0.0
    %7622 = vmatprep.subr.mxu0 0.0
    %7623 = vmatpush1.msra.mxu0 0.0
    %7624 = vmatprep.subr.mxu0 0.0
    %7625 = vmatpush1.msra.mxu0 0.0
    %7626 = vmatprep.subr.mxu0 0.0
    %7627 = vmatpush1.msra.mxu0 0.0
    %7628 = vmatprep.subr.mxu0 0.0
    %7629 = vmatpush1.msra.mxu0 0.0
    %7630 = vmatprep.subr.mxu0 0.0
    %7631 = vmatpush1.msra.mxu0 0.0
    %7632 = vmatprep.subr.mxu0 0.0
    %7633 = vmatpush1.msra.mxu0 0.0
    %7634 = vmatprep.subr.mxu0 0.0
    %7635 = vmatpush1.msra.mxu0 0.0
    %7636 = vmatprep.subr.mxu0 0.0
    %7637 = vmatpush1.msra.mxu0 0.0
    %7638 = vmatprep.subr.mxu0 0.0
    %7639 = vmatpush1.msra.mxu0 0.0
    %7640 = vmatprep.subr.mxu0 0.0
    %7641 = vmatpush1.msra.mxu0 0.0
    %7642 = vmatprep.subr.mxu0 0.0
    %7643 = vmatpush1.msra.mxu0 0.0
    %7644 = vmatprep.subr.mxu0 0.0
    %7645 = vmatpush1.msra.mxu0 0.0
    %7646 = vmatprep.subr.mxu0 0.0
    %7647 = vmatpush1.msra.mxu0 0.0
    %7648 = vmatprep.subr.mxu0 0.0
    %7649 = vmatpush1.msra.mxu0 0.0
    %7650 = vmatprep.subr.mxu0 0.0
    %7651 = vmatpush1.msra.mxu0 0.0
    %7652 = vmatprep.subr.mxu0 0.0
    %7653 = vmatpush1.msra.mxu0 0.0
    %7654 = vmatprep.subr.mxu0 0.0
    %7655 = vmatpush1.msra.mxu0 0.0
    %7656 = vmatprep.subr.mxu0 0.0
    %7657 = vmatpush1.msra.mxu0 0.0
    %7658 = vmatprep.subr.mxu0 0.0
    %7659 = vmatpush1.msra.mxu0 0.0
    %7660 = vmatprep.mubr.f32.mxu0 0.0
    %7661 = vmatmul.mubr.f32.gmra.mrb[0].mxu0 %v7585
    %v7662 = vpop.f32.mrb[0].mxu0
    %v7663 = vadd.f32 0.0, %v7662
    %v7664 = vpop.f32.mrb[0].mxu0
    %7665 = vmatprep.mubr.f32.mxu0 0.0
    %7666 = vmatmul.mubr.f32.gmra.mrb[0].mxu0 %v7588
    %v7667 = vpop.f32.mrb[0].mxu0
    %v7668 = vadd.f32 0.0, %v7667
    %v7669 = vpop.f32.mrb[0].mxu0
    %7670 = vmatprep.mubr.f32.mxu0 0.0
    %7671 = vmatmul.mubr.f32.gmra.mrb[0].mxu0 %v7591
    %v7672 = vpop.f32.mrb[0].mxu0
    %v7673 = vadd.f32 0.0, %v7672
    %v7674 = vpop.f32.mrb[0].mxu0
    %7675 = vmatprep.mubr.f32.mxu0 0.0
    %7676 = vmatmul.mubr.f32.gmra.mrb[0].mxu0 %v7594
    %v7677 = vpop.f32.mrb[0].mxu0
    %v7678 = vadd.f32 0.0, %v7677
    %v7679 = vpop.f32.mrb[0].mxu0
    %7680 = vdwg.mxu0
    %v7681 = vmul.f32 %v7566, 0.5
    %v7682 = vmul.f32 %v7571, 0.5
    %v7683 = vmul.f32 %v7576, 0.5
    %v7684 = vmul.f32 %v7581, 0.5
    %v7685 = vmul.f32 %v7663, 0.5
    %v7686 = vmul.f32 %v7668, 0.5
    %v7687 = vmul.f32 %v7673, 0.5
    %v7688 = vmul.f32 %v7678, 0.5
    %v7689 = vsel %vm571, %v7681, -inf
    %v7690 = vsel %vm571, %v7682, -inf
    %v7691 = vsel %vm571, %v7683, -inf
    %v7692 = vmax.f32 %v7689, %v7691
    %v7693 = vsel %vm571, %v7684, -inf
    %v7694 = vmax.f32 %v7690, %v7693
    %v7695 = vmax.f32 %v7692, %v7694
    %v7696 = vrot.slane %v7695, 4
    %v7697 = vmax.f32 %v7695, %v7696
    %v7698 = vrot.slane %v7697, 2
    %v7699 = vmax.f32 %v7697, %v7698
    %v7700 = vrot.slane %v7699, 1
    %v7701 = vmax.f32 %v7699, %v7700
    %v7702 = vsel %vm571, %v7685, -inf
    %v7703 = vsel %vm571, %v7686, -inf
    %v7704 = vsel %vm571, %v7687, -inf
    %v7705 = vmax.f32 %v7702, %v7704
    %v7706 = vsel %vm571, %v7688, -inf
    %v7707 = vmax.f32 %v7703, %v7706
    %v7708 = vmax.f32 %v7705, %v7707
    %v7709 = vrot.slane %v7708, 4
    %v7710 = vmax.f32 %v7708, %v7709
    %v7711 = vrot.slane %v7710, 2
    %v7712 = vmax.f32 %v7710, %v7711
    %v7713 = vrot.slane %v7712, 1
    %v7714 = vmax.f32 %v7712, %v7713
    %v7715 = vsub.f32 %v7681, %v7701
    %v7716 = vsub.f32 %v7682, %v7701
    %v7717 = vsub.f32 %v7683, %v7701
    %v7718 = vsub.f32 %v7684, %v7701
    %v7719 = vsub.f32 %v7685, %v7714
    %v7720 = vsub.f32 %v7686, %v7714
    %v7721 = vsub.f32 %v7687, %v7714
    %v7722 = vsub.f32 %v7688, %v7714
    %v7723 = vmul.f32 %v7715, 1.442695
    %v7724 = vpow.pop %v7723
    %v7725 = vmul.f32 %v7716, 1.442695
    %v7726 = vpow.pop %v7725
    %v7727 = vmul.f32 %v7717, 1.442695
    %v7728 = vpow.pop %v7727
    %v7729 = vmul.f32 %v7718, 1.442695
    %v7730 = vpow.pop %v7729
    %v7731 = vmul.f32 %v7719, 1.442695
    %v7732 = vpow.pop %v7731
    %v7733 = vmul.f32 %v7720, 1.442695
    %v7734 = vpow.pop %v7733
    %v7735 = vmul.f32 %v7721, 1.442695
    %v7736 = vpow.pop %v7735
    %v7737 = vmul.f32 %v7722, 1.442695
    %v7738 = vpow.pop %v7737
    %v7739 = vsel %vm571, %v7724, 0.0
    %v7740 = vsel %vm571, %v7726, 0.0
    %v7741 = vadd.f32 %v7739, %v7740
    %v7742 = vsel %vm571, %v7728, 0.0
    %v7743 = vadd.f32 %v7741, %v7742
    %v7744 = vsel %vm571, %v7730, 0.0
    %v7745 = vadd.f32 %v7743, %v7744
    %v7746 = vrot.slane %v7745, 4
    %v7747 = vadd.f32 %v7745, %v7746
    %v7748 = vrot.slane %v7747, 2
    %v7749 = vadd.f32 %v7747, %v7748
    %v7750 = vrot.slane %v7749, 1
    %v7751 = vadd.f32 %v7749, %v7750
    %v7752 = vsel %vm571, %v7732, 0.0
    %v7753 = vsel %vm571, %v7734, 0.0
    %v7754 = vadd.f32 %v7752, %v7753
    %v7755 = vsel %vm571, %v7736, 0.0
    %v7756 = vadd.f32 %v7754, %v7755
    %v7757 = vsel %vm571, %v7738, 0.0
    %v7758 = vadd.f32 %v7756, %v7757
    %v7759 = vrot.slane %v7758, 4
    %v7760 = vadd.f32 %v7758, %v7759
    %v7761 = vrot.slane %v7760, 2
    %v7762 = vadd.f32 %v7760, %v7761
    %v7763 = vrot.slane %v7762, 1
    %v7764 = vadd.f32 %v7762, %v7763
    %v7765 = vrcp.pop %v7751
    %v7766 = vrcp.pop %v7764
    %v7767 = vmul.f32 %v7724, %v7765
    %v7768 = vmul.f32 %v7726, %v7765
    %v7769 = vmul.f32 %v7728, %v7765
    %v7770 = vmul.f32 %v7730, %v7765
    %v7771 = vmul.f32 %v7732, %v7766
    %v7772 = vmul.f32 %v7734, %v7766
    %v7773 = vmul.f32 %v7736, %v7766
    %v7774 = vmul.f32 %v7738, %v7766
    %v7776 = vsel %vm571, %v7767, 0
    %v7779 = vsel %vm571, %v7768, 0
    %v7782 = vsel %vm571, %v7769, 0
    %v7785 = vsel %vm571, %v7770, 0
    %7787 = vmatprep.subr.mxu0 0.0
    %7788 = vmatpush1.msra.mxu0 %v7449
    %7789 = vmatprep.subr.mxu0 0.0
    %7790 = vmatpush1.msra.mxu0 %v7454
    %7791 = vmatprep.subr.mxu0 0.0
    %7792 = vmatpush1.msra.mxu0 %v7459
    %7793 = vmatprep.subr.mxu0 0.0
    %7794 = vmatpush1.msra.mxu0 %v7464
    %7795 = vmatprep.subr.mxu0 0.0
    %7796 = vmatpush1.msra.mxu0 0.0
    %7797 = vmatprep.subr.mxu0 0.0
    %7798 = vmatpush1.msra.mxu0 0.0
    %7799 = vmatprep.subr.mxu0 0.0
    %7800 = vmatpush1.msra.mxu0 0.0
    %7801 = vmatprep.subr.mxu0 0.0
    %7802 = vmatpush1.msra.mxu0 0.0
    %7803 = vmatprep.subr.mxu0 0.0
    %7804 = vmatpush1.msra.mxu0 0.0
    %7805 = vmatprep.subr.mxu0 0.0
    %7806 = vmatpush1.msra.mxu0 0.0
    %7807 = vmatprep.subr.mxu0 0.0
    %7808 = vmatpush1.msra.mxu0 0.0
    %7809 = vmatprep.subr.mxu0 0.0
    %7810 = vmatpush1.msra.mxu0 0.0
    %7811 = vmatprep.subr.mxu0 0.0
    %7812 = vmatpush1.msra.mxu0 0.0
    %7813 = vmatprep.subr.mxu0 0.0
    %7814 = vmatpush1.msra.mxu0 0.0
    %7815 = vmatprep.subr.mxu0 0.0
    %7816 = vmatpush1.msra.mxu0 0.0
    %7817 = vmatprep.subr.mxu0 0.0
    %7818 = vmatpush1.msra.mxu0 0.0
    %7819 = vmatprep.subr.mxu0 0.0
    %7820 = vmatpush1.msra.mxu0 0.0
    %7821 = vmatprep.subr.mxu0 0.0
    %7822 = vmatpush1.msra.mxu0 0.0
    %7823 = vmatprep.subr.mxu0 0.0
    %7824 = vmatpush1.msra.mxu0 0.0
    %7825 = vmatprep.subr.mxu0 0.0
    %7826 = vmatpush1.msra.mxu0 0.0
    %7827 = vmatprep.subr.mxu0 0.0
    %7828 = vmatpush1.msra.mxu0 0.0
    %7829 = vmatprep.subr.mxu0 0.0
    %7830 = vmatpush1.msra.mxu0 0.0
    %7831 = vmatprep.subr.mxu0 0.0
    %7832 = vmatpush1.msra.mxu0 0.0
    %7833 = vmatprep.subr.mxu0 0.0
    %7834 = vmatpush1.msra.mxu0 0.0
    %7835 = vmatprep.subr.mxu0 0.0
    %7836 = vmatpush1.msra.mxu0 0.0
    %7837 = vmatprep.subr.mxu0 0.0
    %7838 = vmatpush1.msra.mxu0 0.0
    %7839 = vmatprep.subr.mxu0 0.0
    %7840 = vmatpush1.msra.mxu0 0.0
    %7841 = vmatprep.subr.mxu0 0.0
    %7842 = vmatpush1.msra.mxu0 0.0
    %7843 = vmatprep.subr.mxu0 0.0
    %7844 = vmatpush1.msra.mxu0 0.0
    %7845 = vmatprep.subr.mxu0 0.0
    %7846 = vmatpush1.msra.mxu0 0.0
    %7847 = vmatprep.subr.mxu0 0.0
    %7848 = vmatpush1.msra.mxu0 0.0
    %7849 = vmatprep.subr.mxu0 0.0
    %7850 = vmatpush1.msra.mxu0 0.0
    %7851 = vmatprep.mubr.f32.mxu0 0.0
    %7852 = vmatmul.mubr.f32.gmra.mrb[0].mxu0 %v7776
    %v7853 = vpop.f32.mrb[0].mxu0
    %v7854 = vadd.f32 0.0, %v7853
    %v7855 = vpop.f32.mrb[0].mxu0
    %7856 = vmatprep.mubr.f32.mxu0 0.0
    %7857 = vmatmul.mubr.f32.gmra.mrb[0].mxu0 %v7779
    %v7858 = vpop.f32.mrb[0].mxu0
    %v7859 = vadd.f32 0.0, %v7858
    %v7860 = vpop.f32.mrb[0].mxu0
    %7861 = vmatprep.mubr.f32.mxu0 0.0
    %7862 = vmatmul.mubr.f32.gmra.mrb[0].mxu0 %v7782
    %v7863 = vpop.f32.mrb[0].mxu0
    %v7864 = vadd.f32 0.0, %v7863
    %v7865 = vpop.f32.mrb[0].mxu0
    %7866 = vmatprep.mubr.f32.mxu0 0.0
    %7867 = vmatmul.mubr.f32.gmra.mrb[0].mxu0 %v7785
    %v7868 = vpop.f32.mrb[0].mxu0
    %v7869 = vadd.f32 0.0, %v7868
    %v7870 = vpop.f32.mrb[0].mxu0
    %7871 = vdwg.mxu0
    %v7873 = vsel %vm571, %v7771, 0
    %v7876 = vsel %vm571, %v7772, 0
    %v7879 = vsel %vm571, %v7773, 0
    %v7882 = vsel %vm571, %v7774, 0
    %7884 = vmatprep.subr.mxu0 0.0
    %7885 = vmatpush1.msra.mxu0 %v7469
    %7886 = vmatprep.subr.mxu0 0.0
    %7887 = vmatpush1.msra.mxu0 %v7474
    %7888 = vmatprep.subr.mxu0 0.0
    %7889 = vmatpush1.msra.mxu0 %v7479
    %7890 = vmatprep.subr.mxu0 0.0
    %7891 = vmatpush1.msra.mxu0 %v7484
    %7892 = vmatprep.subr.mxu0 0.0
    %7893 = vmatpush1.msra.mxu0 0.0
    %7894 = vmatprep.subr.mxu0 0.0
    %7895 = vmatpush1.msra.mxu0 0.0
    %7896 = vmatprep.subr.mxu0 0.0
    %7897 = vmatpush1.msra.mxu0 0.0
    %7898 = vmatprep.subr.mxu0 0.0
    %7899 = vmatpush1.msra.mxu0 0.0
    %7900 = vmatprep.subr.mxu0 0.0
    %7901 = vmatpush1.msra.mxu0 0.0
    %7902 = vmatprep.subr.mxu0 0.0
    %7903 = vmatpush1.msra.mxu0 0.0
    %7904 = vmatprep.subr.mxu0 0.0
    %7905 = vmatpush1.msra.mxu0 0.0
    %7906 = vmatprep.subr.mxu0 0.0
    %7907 = vmatpush1.msra.mxu0 0.0
    %7908 = vmatprep.subr.mxu0 0.0
    %7909 = vmatpush1.msra.mxu0 0.0
    %7910 = vmatprep.subr.mxu0 0.0
    %7911 = vmatpush1.msra.mxu0 0.0
    %7912 = vmatprep.subr.mxu0 0.0
    %7913 = vmatpush1.msra.mxu0 0.0
    %7914 = vmatprep.subr.mxu0 0.0
    %7915 = vmatpush1.msra.mxu0 0.0
    %7916 = vmatprep.subr.mxu0 0.0
    %7917 = vmatpush1.msra.mxu0 0.0
    %7918 = vmatprep.subr.mxu0 0.0
    %7919 = vmatpush1.msra.mxu0 0.0
    %7920 = vmatprep.subr.mxu0 0.0
    %7921 = vmatpush1.msra.mxu0 0.0
    %7922 = vmatprep.subr.mxu0 0.0
    %7923 = vmatpush1.msra.mxu0 0.0
    %7924 = vmatprep.subr.mxu0 0.0
    %7925 = vmatpush1.msra.mxu0 0.0
    %7926 = vmatprep.subr.mxu0 0.0
    %7927 = vmatpush1.msra.mxu0 0.0
    %7928 = vmatprep.subr.mxu0 0.0
    %7929 = vmatpush1.msra.mxu0 0.0
    %7930 = vmatprep.subr.mxu0 0.0
    %7931 = vmatpush1.msra.mxu0 0.0
    %7932 = vmatprep.subr.mxu0 0.0
    %7933 = vmatpush1.msra.mxu0 0.0
    %7934 = vmatprep.subr.mxu0 0.0
    %7935 = vmatpush1.msra.mxu0 0.0
    %7936 = vmatprep.subr.mxu0 0.0
    %7937 = vmatpush1.msra.mxu0 0.0
    %7938 = vmatprep.subr.mxu0 0.0
    %7939 = vmatpush1.msra.mxu0 0.0
    %7940 = vmatprep.subr.mxu0 0.0
    %7941 = vmatpush1.msra.mxu0 0.0
    %7942 = vmatprep.subr.mxu0 0.0
    %7943 = vmatpush1.msra.mxu0 0.0
    %7944 = vmatprep.subr.mxu0 0.0
    %7945 = vmatpush1.msra.mxu0 0.0
    %7946 = vmatprep.subr.mxu0 0.0
    %7947 = vmatpush1.msra.mxu0 0.0
    %7948 = vmatprep.mubr.f32.mxu0 0.0
    %7949 = vmatmul.mubr.f32.gmra.mrb[0].mxu0 %v7873
    %v7950 = vpop.f32.mrb[0].mxu0
    %v7951 = vadd.f32 0.0, %v7950
    %v7952 = vpop.f32.mrb[0].mxu0
    %7953 = vmatprep.mubr.f32.mxu0 0.0
    %7954 = vmatmul.mubr.f32.gmra.mrb[0].mxu0 %v7876
    %v7955 = vpop.f32.mrb[0].mxu0
    %v7956 = vadd.f32 0.0, %v7955
    %v7957 = vpop.f32.mrb[0].mxu0
    %7958 = vmatprep.mubr.f32.mxu0 0.0
    %7959 = vmatmul.mubr.f32.gmra.mrb[0].mxu0 %v7879
    %v7960 = vpop.f32.mrb[0].mxu0
    %v7961 = vadd.f32 0.0, %v7960
    %v7962 = vpop.f32.mrb[0].mxu0
    %7963 = vmatprep.mubr.f32.mxu0 0.0
    %7964 = vmatmul.mubr.f32.gmra.mrb[0].mxu0 %v7882
    %v7965 = vpop.f32.mrb[0].mxu0
    %v7966 = vadd.f32 0.0, %v7965
    %v7967 = vpop.f32.mrb[0].mxu0
    %7968 = vdwg.mxu0
    %v7970 = vsel %vm571, %v7854, 0
    %v7973 = vsel %vm571, %v7859, 0
    %v7976 = vsel %vm571, %v7864, 0
    %v7979 = vsel %vm571, %v7869, 0
    %v7982 = vsel %vm571, %v7951, 0
    %v7985 = vsel %vm571, %v7956, 0
    %v7988 = vsel %vm571, %v7961, 0
    %v7991 = vsel %vm571, %v7966, 0
    %7993 = vmatprep.subr.mxu0 0.0
    %7994 = vmatpush1.msra.mxu0 %v6153
    %7995 = vmatprep.subr.mxu0 0.0
    %7996 = vmatpush1.msra.mxu0 %v6154
    %7997 = vmatprep.subr.mxu0 0.0
    %7998 = vmatpush1.msra.mxu0 %v6155
    %7999 = vmatprep.subr.mxu0 0.0
    %8000 = vmatpush1.msra.mxu0 %v6156
    %8001 = vmatprep.subr.mxu0 0.0
    %8002 = vmatpush1.msra.mxu0 0.0
    %8003 = vmatprep.subr.mxu0 0.0
    %8004 = vmatpush1.msra.mxu0 0.0
    %8005 = vmatprep.subr.mxu0 0.0
    %8006 = vmatpush1.msra.mxu0 0.0
    %8007 = vmatprep.subr.mxu0 0.0
    %8008 = vmatpush1.msra.mxu0 0.0
    %8009 = vmatprep.subr.mxu0 0.0
    %8010 = vmatpush1.msra.mxu0 0.0
    %8011 = vmatprep.subr.mxu0 0.0
    %8012 = vmatpush1.msra.mxu0 0.0
    %8013 = vmatprep.subr.mxu0 0.0
    %8014 = vmatpush1.msra.mxu0 0.0
    %8015 = vmatprep.subr.mxu0 0.0
    %8016 = vmatpush1.msra.mxu0 0.0
    %8017 = vmatprep.subr.mxu0 0.0
    %8018 = vmatpush1.msra.mxu0 0.0
    %8019 = vmatprep.subr.mxu0 0.0
    %8020 = vmatpush1.msra.mxu0 0.0
    %8021 = vmatprep.subr.mxu0 0.0
    %8022 = vmatpush1.msra.mxu0 0.0
    %8023 = vmatprep.subr.mxu0 0.0
    %8024 = vmatpush1.msra.mxu0 0.0
    %8025 = vmatprep.subr.mxu0 0.0
    %8026 = vmatpush1.msra.mxu0 0.0
    %8027 = vmatprep.subr.mxu0 0.0
    %8028 = vmatpush1.msra.mxu0 0.0
    %8029 = vmatprep.subr.mxu0 0.0
    %8030 = vmatpush1.msra.mxu0 0.0
    %8031 = vmatprep.subr.mxu0 0.0
    %8032 = vmatpush1.msra.mxu0 0.0
    %8033 = vmatprep.subr.mxu0 0.0
    %8034 = vmatpush1.msra.mxu0 0.0
    %8035 = vmatprep.subr.mxu0 0.0
    %8036 = vmatpush1.msra.mxu0 0.0
    %8037 = vmatprep.subr.mxu0 0.0
    %8038 = vmatpush1.msra.mxu0 0.0
    %8039 = vmatprep.subr.mxu0 0.0
    %8040 = vmatpush1.msra.mxu0 0.0
    %8041 = vmatprep.subr.mxu0 0.0
    %8042 = vmatpush1.msra.mxu0 0.0
    %8043 = vmatprep.subr.mxu0 0.0
    %8044 = vmatpush1.msra.mxu0 0.0
    %8045 = vmatprep.subr.mxu0 0.0
    %8046 = vmatpush1.msra.mxu0 0.0
    %8047 = vmatprep.subr.mxu0 0.0
    %8048 = vmatpush1.msra.mxu0 0.0
    %8049 = vmatprep.subr.mxu0 0.0
    %8050 = vmatpush1.msra.mxu0 0.0
    %8051 = vmatprep.subr.mxu0 0.0
    %8052 = vmatpush1.msra.mxu0 0.0
    %8053 = vmatprep.subr.mxu0 0.0
    %8054 = vmatpush1.msra.mxu0 0.0
    %8055 = vmatprep.subr.mxu0 0.0
    %8056 = vmatpush1.msra.mxu0 0.0
    %8057 = vmatprep.mubr.f32.mxu0 0.0
    %8058 = vmatmul.mubr.f32.gmra.mrb[0].mxu0 %v7970
    %v8059 = vpop.f32.mrb[0].mxu0
    %v8060 = vadd.f32 %v7011, %v8059
    %v8061 = vpop.f32.mrb[0].mxu0
    %8062 = vmatprep.mubr.f32.mxu0 0.0
    %8063 = vmatmul.mubr.f32.gmra.mrb[0].mxu0 %v7973
    %v8064 = vpop.f32.mrb[0].mxu0
    %v8065 = vadd.f32 %v7011, %v8064
    %v8066 = vpop.f32.mrb[0].mxu0
    %8067 = vmatprep.mubr.f32.mxu0 0.0
    %8068 = vmatmul.mubr.f32.gmra.mrb[0].mxu0 %v7976
    %v8069 = vpop.f32.mrb[0].mxu0
    %v8070 = vadd.f32 %v7011, %v8069
    %v8071 = vpop.f32.mrb[0].mxu0
    %8072 = vmatprep.mubr.f32.mxu0 0.0
    %8073 = vmatmul.mubr.f32.gmra.mrb[0].mxu0 %v7979
    %v8074 = vpop.f32.mrb[0].mxu0
    %v8075 = vadd.f32 %v7011, %v8074
    %v8076 = vpop.f32.mrb[0].mxu0
    %8077 = vmatprep.mubr.f32.mxu0 0.0
    %8078 = vmatmul.mubr.f32.gmra.mrb[0].mxu0 %v7982
    %v8079 = vpop.f32.mrb[0].mxu0
    %v8080 = vadd.f32 %v7011, %v8079
    %v8081 = vpop.f32.mrb[0].mxu0
    %8082 = vmatprep.mubr.f32.mxu0 0.0
    %8083 = vmatmul.mubr.f32.gmra.mrb[0].mxu0 %v7985
    %v8084 = vpop.f32.mrb[0].mxu0
    %v8085 = vadd.f32 %v7011, %v8084
    %v8086 = vpop.f32.mrb[0].mxu0
    %8087 = vmatprep.mubr.f32.mxu0 0.0
    %8088 = vmatmul.mubr.f32.gmra.mrb[0].mxu0 %v7988
    %v8089 = vpop.f32.mrb[0].mxu0
    %v8090 = vadd.f32 %v7011, %v8089
    %v8091 = vpop.f32.mrb[0].mxu0
    %8092 = vmatprep.mubr.f32.mxu0 0.0
    %8093 = vmatmul.mubr.f32.gmra.mrb[0].mxu0 %v7991
    %v8094 = vpop.f32.mrb[0].mxu0
    %v8095 = vadd.f32 %v7011, %v8094
    %v8096 = vpop.f32.mrb[0].mxu0
    %8097 = vdwg.mxu0
    %v8098 = vadd.f32 %v7269, %v8060
    %v8099 = vadd.f32 %v7270, %v8065
    %v8100 = vadd.f32 %v7271, %v8070
    %v8101 = vadd.f32 %v7272, %v8075
    %v8102 = vadd.f32 %v7273, %v8080
    %v8103 = vadd.f32 %v7274, %v8085
    %v8104 = vadd.f32 %v7275, %v8090
    %v8105 = vadd.f32 %v7276, %v8095
    %v8106 = vsel %vm571, %v8098, 0.0
    %8107 = vadd.xlane.f32.xlu0 %v8106
    %v8108 = vpop.xlane.xlu0 %8107
    %v8109 = vsel %vm571, %v8099, 0.0
    %8110 = vadd.xlane.f32.xlu0 %v8109
    %v8111 = vpop.xlane.xlu0 %8110
    %v8112 = vsel %vm571, %v8100, 0.0
    %8113 = vadd.xlane.f32.xlu0 %v8112
    %v8114 = vpop.xlane.xlu0 %8113
    %v8115 = vsel %vm571, %v8101, 0.0
    %8116 = vadd.xlane.f32.xlu0 %v8115
    %v8117 = vpop.xlane.xlu0 %8116
    %v8118 = vsel %vm571, %v8102, 0.0
    %8119 = vadd.xlane.f32.xlu0 %v8118
    %v8120 = vpop.xlane.xlu0 %8119
    %v8121 = vsel %vm571, %v8103, 0.0
    %8122 = vadd.xlane.f32.xlu0 %v8121
    %v8123 = vpop.xlane.xlu0 %8122
    %v8124 = vsel %vm571, %v8104, 0.0
    %8125 = vadd.xlane.f32.xlu0 %v8124
    %v8126 = vpop.xlane.xlu0 %8125
    %v8127 = vsel %vm571, %v8105, 0.0
    %8128 = vadd.xlane.f32.xlu0 %v8127
    %v8129 = vpop.xlane.xlu0 %8128
    %v8130 = vmul.f32 %v8108, %v1566
    %v8131 = vmul.f32 %v8111, %v1566
    %v8132 = vmul.f32 %v8114, %v1566
    %v8133 = vmul.f32 %v8117, %v1566
    %v8134 = vmul.f32 %v8120, %v1566
    %v8135 = vmul.f32 %v8123, %v1566
    %v8136 = vmul.f32 %v8126, %v1566
    %v8137 = vmul.f32 %v8129, %v1566
    %v8138 = vsub.f32 %v8098, %v8130
    %v8139 = vsub.f32 %v8099, %v8131
    %v8140 = vsub.f32 %v8100, %v8132
    %v8141 = vsub.f32 %v8101, %v8133
    %v8142 = vsub.f32 %v8102, %v8134
    %v8143 = vsub.f32 %v8103, %v8135
    %v8144 = vsub.f32 %v8104, %v8136
    %v8145 = vsub.f32 %v8105, %v8137
    %v8146 = vmul.f32 %v8138, %v8138
    %v8147 = vmul.f32 %v8139, %v8139
    %v8148 = vmul.f32 %v8140, %v8140
    %v8149 = vmul.f32 %v8141, %v8141
    %v8150 = vmul.f32 %v8142, %v8142
    %v8151 = vmul.f32 %v8143, %v8143
    %v8152 = vmul.f32 %v8144, %v8144
    %v8153 = vmul.f32 %v8145, %v8145
    %v8154 = vsel %vm571, %v8146, 0.0
    %8155 = vadd.xlane.f32.xlu0 %v8154
    %v8156 = vpop.xlane.xlu0 %8155
    %v8157 = vsel %vm571, %v8147, 0.0
    %8158 = vadd.xlane.f32.xlu0 %v8157
    %v8159 = vpop.xlane.xlu0 %8158
    %v8160 = vsel %vm571, %v8148, 0.0
    %8161 = vadd.xlane.f32.xlu0 %v8160
    %v8162 = vpop.xlane.xlu0 %8161
    %v8163 = vsel %vm571, %v8149, 0.0
    %8164 = vadd.xlane.f32.xlu0 %v8163
    %v8165 = vpop.xlane.xlu0 %8164
    %v8166 = vsel %vm571, %v8150, 0.0
    %8167 = vadd.xlane.f32.xlu0 %v8166
    %v8168 = vpop.xlane.xlu0 %8167
    %v8169 = vsel %vm571, %v8151, 0.0
    %8170 = vadd.xlane.f32.xlu0 %v8169
    %v8171 = vpop.xlane.xlu0 %8170
    %v8172 = vsel %vm571, %v8152, 0.0
    %8173 = vadd.xlane.f32.xlu0 %v8172
    %v8174 = vpop.xlane.xlu0 %8173
    %v8175 = vsel %vm571, %v8153, 0.0
    %8176 = vadd.xlane.f32.xlu0 %v8175
    %v8177 = vpop.xlane.xlu0 %8176
    %v8178 = vmul.f32 %v8156, %v1566
    %v8179 = vmul.f32 %v8159, %v1566
    %v8180 = vmul.f32 %v8162, %v1566
    %v8181 = vmul.f32 %v8165, %v1566
    %v8182 = vmul.f32 %v8168, %v1566
    %v8183 = vmul.f32 %v8171, %v1566
    %v8184 = vmul.f32 %v8174, %v1566
    %v8185 = vmul.f32 %v8177, %v1566
    %v8186 = vadd.f32 %v8178, 1e-05
    %v8187 = vadd.f32 %v8179, 1e-05
    %v8188 = vadd.f32 %v8180, 1e-05
    %v8189 = vadd.f32 %v8181, 1e-05
    %v8190 = vadd.f32 %v8182, 1e-05
    %v8191 = vadd.f32 %v8183, 1e-05
    %v8192 = vadd.f32 %v8184, 1e-05
    %v8193 = vadd.f32 %v8185, 1e-05
    %v8194 = vrsqrt.pop %v8186
    %v8195 = vrsqrt.pop %v8187
    %v8196 = vrsqrt.pop %v8188
    %v8197 = vrsqrt.pop %v8189
    %v8198 = vrsqrt.pop %v8190
    %v8199 = vrsqrt.pop %v8191
    %v8200 = vrsqrt.pop %v8192
    %v8201 = vrsqrt.pop %v8193
    %v8202 = vmul.f32 %v8138, %v8194
    %v8203 = vmul.f32 %v8139, %v8195
    %v8204 = vmul.f32 %v8140, %v8196
    %v8205 = vmul.f32 %v8141, %v8197
    %v8206 = vmul.f32 %v8142, %v8198
    %v8207 = vmul.f32 %v8143, %v8199
    %v8208 = vmul.f32 %v8144, %v8200
    %v8209 = vmul.f32 %v8145, %v8201
    %v8210 = vmul.f32 %v8202, %v7256
    %v8211 = vmul.f32 %v8203, %v7256
    %v8212 = vmul.f32 %v8204, %v7256
    %v8213 = vmul.f32 %v8205, %v7256
    %v8214 = vmul.f32 %v8206, %v7256
    %v8215 = vmul.f32 %v8207, %v7256
    %v8216 = vmul.f32 %v8208, %v7256
    %v8217 = vmul.f32 %v8209, %v7256
    %v8218 = vadd.f32 %v8210, %v7268
    %v8219 = vadd.f32 %v8211, %v7268
    %v8220 = vadd.f32 %v8212, %v7268
    %v8221 = vadd.f32 %v8213, %v7268
    %v8222 = vadd.f32 %v8214, %v7268
    %v8223 = vadd.f32 %v8215, %v7268
    %v8224 = vadd.f32 %v8216, %v7268
    %v8225 = vadd.f32 %v8217, %v7268
    %v8227 = vlaneseq
    %v8228 = vshrl.u32 %v8227, 7
    %v8229 = vsub.s32 0, %v8228
    %v8230 = vrot.slane %v6165, %v8229
    %v8233 = vsel %vm571, %v8218, 0
    %v8236 = vsel %vm571, %v8219, 0
    %v8239 = vsel %vm571, %v8220, 0
    %v8242 = vsel %vm571, %v8221, 0
    %v8245 = vsel %vm571, %v8222, 0
    %v8248 = vsel %vm571, %v8223, 0
    %v8251 = vsel %vm571, %v8224, 0
    %v8254 = vsel %vm571, %v8225, 0
    %8256 = vmatprep.subr.mxu0 0.0
    %8257 = vmatpush1.msra.mxu0 %v6160
    %8258 = vmatprep.subr.mxu0 0.0
    %8259 = vmatpush1.msra.mxu0 %v6161
    %8260 = vmatprep.subr.mxu0 0.0
    %8261 = vmatpush1.msra.mxu0 %v6162
    %8262 = vmatprep.subr.mxu0 0.0
    %8263 = vmatpush1.msra.mxu0 %v6163
    %8264 = vmatprep.subr.mxu0 0.0
    %8265 = vmatpush1.msra.mxu0 0.0
    %8266 = vmatprep.subr.mxu0 0.0
    %8267 = vmatpush1.msra.mxu0 0.0
    %8268 = vmatprep.subr.mxu0 0.0
    %8269 = vmatpush1.msra.mxu0 0.0
    %8270 = vmatprep.subr.mxu0 0.0
    %8271 = vmatpush1.msra.mxu0 0.0
    %8272 = vmatprep.subr.mxu0 0.0
    %8273 = vmatpush1.msra.mxu0 0.0
    %8274 = vmatprep.subr.mxu0 0.0
    %8275 = vmatpush1.msra.mxu0 0.0
    %8276 = vmatprep.subr.mxu0 0.0
    %8277 = vmatpush1.msra.mxu0 0.0
    %8278 = vmatprep.subr.mxu0 0.0
    %8279 = vmatpush1.msra.mxu0 0.0
    %8280 = vmatprep.subr.mxu0 0.0
    %8281 = vmatpush1.msra.mxu0 0.0
    %8282 = vmatprep.subr.mxu0 0.0
    %8283 = vmatpush1.msra.mxu0 0.0
    %8284 = vmatprep.subr.mxu0 0.0
    %8285 = vmatpush1.msra.mxu0 0.0
    %8286 = vmatprep.subr.mxu0 0.0
    %8287 = vmatpush1.msra.mxu0 0.0
    %8288 = vmatprep.subr.mxu0 0.0
    %8289 = vmatpush1.msra.mxu0 0.0
    %8290 = vmatprep.subr.mxu0 0.0
    %8291 = vmatpush1.msra.mxu0 0.0
    %8292 = vmatprep.subr.mxu0 0.0
    %8293 = vmatpush1.msra.mxu0 0.0
    %8294 = vmatprep.subr.mxu0 0.0
    %8295 = vmatpush1.msra.mxu0 0.0
    %8296 = vmatprep.subr.mxu0 0.0
    %8297 = vmatpush1.msra.mxu0 0.0
    %8298 = vmatprep.subr.mxu0 0.0
    %8299 = vmatpush1.msra.mxu0 0.0
    %8300 = vmatprep.subr.mxu0 0.0
    %8301 = vmatpush1.msra.mxu0 0.0
    %8302 = vmatprep.subr.mxu0 0.0
    %8303 = vmatpush1.msra.mxu0 0.0
    %8304 = vmatprep.subr.mxu0 0.0
    %8305 = vmatpush1.msra.mxu0 0.0
    %8306 = vmatprep.subr.mxu0 0.0
    %8307 = vmatpush1.msra.mxu0 0.0
    %8308 = vmatprep.subr.mxu0 0.0
    %8309 = vmatpush1.msra.mxu0 0.0
    %8310 = vmatprep.subr.mxu0 0.0
    %8311 = vmatpush1.msra.mxu0 0.0
    %8312 = vmatprep.subr.mxu0 0.0
    %8313 = vmatpush1.msra.mxu0 0.0
    %8314 = vmatprep.subr.mxu0 0.0
    %8315 = vmatpush1.msra.mxu0 0.0
    %8316 = vmatprep.subr.mxu0 0.0
    %8317 = vmatpush1.msra.mxu0 0.0
    %8318 = vmatprep.subr.mxu0 0.0
    %8319 = vmatpush1.msra.mxu0 0.0
    %8320 = vmatprep.mubr.f32.mxu0 0.0
    %8321 = vmatmul.mubr.f32.gmra.mrb[0].mxu0 %v8233
    %v8322 = vpop.f32.mrb[0].mxu0
    %v8323 = vadd.f32 %v8230, %v8322
    %v8324 = vpop.f32.mrb[0].mxu0
    %8325 = vmatprep.mubr.f32.mxu0 0.0
    %8326 = vmatmul.mubr.f32.gmra.mrb[0].mxu0 %v8236
    %v8327 = vpop.f32.mrb[0].mxu0
    %v8328 = vadd.f32 %v8230, %v8327
    %v8329 = vpop.f32.mrb[0].mxu0
    %8330 = vmatprep.mubr.f32.mxu0 0.0
    %8331 = vmatmul.mubr.f32.gmra.mrb[0].mxu0 %v8239
    %v8332 = vpop.f32.mrb[0].mxu0
    %v8333 = vadd.f32 %v8230, %v8332
    %v8334 = vpop.f32.mrb[0].mxu0
    %8335 = vmatprep.mubr.f32.mxu0 0.0
    %8336 = vmatmul.mubr.f32.gmra.mrb[0].mxu0 %v8242
    %v8337 = vpop.f32.mrb[0].mxu0
    %v8338 = vadd.f32 %v8230, %v8337
    %v8339 = vpop.f32.mrb[0].mxu0
    %8340 = vmatprep.mubr.f32.mxu0 0.0
    %8341 = vmatmul.mubr.f32.gmra.mrb[0].mxu0 %v8245
    %v8342 = vpop.f32.mrb[0].mxu0
    %v8343 = vadd.f32 %v8230, %v8342
    %v8344 = vpop.f32.mrb[0].mxu0
    %8345 = vmatprep.mubr.f32.mxu0 0.0
    %8346 = vmatmul.mubr.f32.gmra.mrb[0].mxu0 %v8248
    %v8347 = vpop.f32.mrb[0].mxu0
    %v8348 = vadd.f32 %v8230, %v8347
    %v8349 = vpop.f32.mrb[0].mxu0
    %8350 = vmatprep.mubr.f32.mxu0 0.0
    %8351 = vmatmul.mubr.f32.gmra.mrb[0].mxu0 %v8251
    %v8352 = vpop.f32.mrb[0].mxu0
    %v8353 = vadd.f32 %v8230, %v8352
    %v8354 = vpop.f32.mrb[0].mxu0
    %8355 = vmatprep.mubr.f32.mxu0 0.0
    %8356 = vmatmul.mubr.f32.gmra.mrb[0].mxu0 %v8254
    %v8357 = vpop.f32.mrb[0].mxu0
    %v8358 = vadd.f32 %v8230, %v8357
    %v8359 = vpop.f32.mrb[0].mxu0
    %8360 = vdwg.mxu0
    %v8361 = vmax.f32 %v8323, 0.0
    %v8362 = vmax.f32 %v8328, 0.0
    %v8363 = vmax.f32 %v8333, 0.0
    %v8364 = vmax.f32 %v8338, 0.0
    %v8365 = vmax.f32 %v8343, 0.0
    %v8366 = vmax.f32 %v8348, 0.0
    %v8367 = vmax.f32 %v8353, 0.0
    %v8368 = vmax.f32 %v8358, 0.0
    %v8369 = vlaneseq
    %v8370 = vshrl.u32 %v8369, 7
    %v8371 = vsub.s32 4, %v8370
    %v8372 = vrot.slane %v6158, %v8371
    %v8374 = vsel %vm1818, %v8361, 0
    %v8377 = vsel %vm1818, %v8362, 0
    %v8380 = vsel %vm1818, %v8363, 0
    %v8383 = vsel %vm1818, %v8364, 0
    %v8386 = vsel %vm1818, %v8365, 0
    %v8389 = vsel %vm1818, %v8366, 0
    %v8392 = vsel %vm1818, %v8367, 0
    %v8395 = vsel %vm1818, %v8368, 0
    %8397 = vmatprep.subr.mxu0 0.0
    %8398 = vmatpush1.msra.mxu0 %v6167
    %8399 = vmatprep.subr.mxu0 0.0
    %8400 = vmatpush1.msra.mxu0 %v6168
    %8401 = vmatprep.subr.mxu0 0.0
    %8402 = vmatpush1.msra.mxu0 %v6169
    %8403 = vmatprep.subr.mxu0 0.0
    %8404 = vmatpush1.msra.mxu0 %v6170
    %8405 = vmatprep.subr.mxu0 0.0
    %8406 = vmatpush1.msra.mxu0 %v6171
    %8407 = vmatprep.subr.mxu0 0.0
    %8408 = vmatpush1.msra.mxu0 %v6172
    %8409 = vmatprep.subr.mxu0 0.0
    %8410 = vmatpush1.msra.mxu0 %v6173
    %8411 = vmatprep.subr.mxu0 0.0
    %8412 = vmatpush1.msra.mxu0 %v6174
    %8413 = vmatprep.subr.mxu0 0.0
    %8414 = vmatpush1.msra.mxu0 0.0
    %8415 = vmatprep.subr.mxu0 0.0
    %8416 = vmatpush1.msra.mxu0 0.0
    %8417 = vmatprep.subr.mxu0 0.0
    %8418 = vmatpush1.msra.mxu0 0.0
    %8419 = vmatprep.subr.mxu0 0.0
    %8420 = vmatpush1.msra.mxu0 0.0
    %8421 = vmatprep.subr.mxu0 0.0
    %8422 = vmatpush1.msra.mxu0 0.0
    %8423 = vmatprep.subr.mxu0 0.0
    %8424 = vmatpush1.msra.mxu0 0.0
    %8425 = vmatprep.subr.mxu0 0.0
    %8426 = vmatpush1.msra.mxu0 0.0
    %8427 = vmatprep.subr.mxu0 0.0
    %8428 = vmatpush1.msra.mxu0 0.0
    %8429 = vmatprep.subr.mxu0 0.0
    %8430 = vmatpush1.msra.mxu0 0.0
    %8431 = vmatprep.subr.mxu0 0.0
    %8432 = vmatpush1.msra.mxu0 0.0
    %8433 = vmatprep.subr.mxu0 0.0
    %8434 = vmatpush1.msra.mxu0 0.0
    %8435 = vmatprep.subr.mxu0 0.0
    %8436 = vmatpush1.msra.mxu0 0.0
    %8437 = vmatprep.subr.mxu0 0.0
    %8438 = vmatpush1.msra.mxu0 0.0
    %8439 = vmatprep.subr.mxu0 0.0
    %8440 = vmatpush1.msra.mxu0 0.0
    %8441 = vmatprep.subr.mxu0 0.0
    %8442 = vmatpush1.msra.mxu0 0.0
    %8443 = vmatprep.subr.mxu0 0.0
    %8444 = vmatpush1.msra.mxu0 0.0
    %8445 = vmatprep.subr.mxu0 0.0
    %8446 = vmatpush1.msra.mxu0 0.0
    %8447 = vmatprep.subr.mxu0 0.0
    %8448 = vmatpush1.msra.mxu0 0.0
    %8449 = vmatprep.subr.mxu0 0.0
    %8450 = vmatpush1.msra.mxu0 0.0
    %8451 = vmatprep.subr.mxu0 0.0
    %8452 = vmatpush1.msra.mxu0 0.0
    %8453 = vmatprep.subr.mxu0 0.0
    %8454 = vmatpush1.msra.mxu0 0.0
    %8455 = vmatprep.subr.mxu0 0.0
    %8456 = vmatpush1.msra.mxu0 0.0
    %8457 = vmatprep.subr.mxu0 0.0
    %8458 = vmatpush1.msra.mxu0 0.0
    %8459 = vmatprep.subr.mxu0 0.0
    %8460 = vmatpush1.msra.mxu0 0.0
    %8461 = vmatprep.mubr.f32.mxu0 0.0
    %8462 = vmatmul.mubr.f32.gmra.mrb[0].mxu0 %v8374
    %v8463 = vpop.f32.mrb[0].mxu0
    %v8464 = vadd.f32 %v8372, %v8463
    %v8465 = vpop.f32.mrb[0].mxu0
    %8466 = vmatprep.mubr.f32.mxu0 0.0
    %8467 = vmatmul.mubr.f32.gmra.mrb[0].mxu0 %v8377
    %v8468 = vpop.f32.mrb[0].mxu0
    %v8469 = vadd.f32 %v8372, %v8468
    %v8470 = vpop.f32.mrb[0].mxu0
    %8471 = vmatprep.mubr.f32.mxu0 0.0
    %8472 = vmatmul.mubr.f32.gmra.mrb[0].mxu0 %v8380
    %v8473 = vpop.f32.mrb[0].mxu0
    %v8474 = vadd.f32 %v8372, %v8473
    %v8475 = vpop.f32.mrb[0].mxu0
    %8476 = vmatprep.mubr.f32.mxu0 0.0
    %8477 = vmatmul.mubr.f32.gmra.mrb[0].mxu0 %v8383
    %v8478 = vpop.f32.mrb[0].mxu0
    %v8479 = vadd.f32 %v8372, %v8478
    %v8480 = vpop.f32.mrb[0].mxu0
    %8481 = vmatprep.mubr.f32.mxu0 0.0
    %8482 = vmatmul.mubr.f32.gmra.mrb[0].mxu0 %v8386
    %v8483 = vpop.f32.mrb[0].mxu0
    %v8484 = vadd.f32 %v8372, %v8483
    %v8485 = vpop.f32.mrb[0].mxu0
    %8486 = vmatprep.mubr.f32.mxu0 0.0
    %8487 = vmatmul.mubr.f32.gmra.mrb[0].mxu0 %v8389
    %v8488 = vpop.f32.mrb[0].mxu0
    %v8489 = vadd.f32 %v8372, %v8488
    %v8490 = vpop.f32.mrb[0].mxu0
    %8491 = vmatprep.mubr.f32.mxu0 0.0
    %8492 = vmatmul.mubr.f32.gmra.mrb[0].mxu0 %v8392
    %v8493 = vpop.f32.mrb[0].mxu0
    %v8494 = vadd.f32 %v8372, %v8493
    %v8495 = vpop.f32.mrb[0].mxu0
    %8496 = vmatprep.mubr.f32.mxu0 0.0
    %8497 = vmatmul.mubr.f32.gmra.mrb[0].mxu0 %v8395
    %v8498 = vpop.f32.mrb[0].mxu0
    %v8499 = vadd.f32 %v8372, %v8498
    %v8500 = vpop.f32.mrb[0].mxu0
    %8501 = vdwg.mxu0
    %v8502 = vadd.f32 %v8218, %v8464
    %v8503 = vadd.f32 %v8219, %v8469
    %v8504 = vadd.f32 %v8220, %v8474
    %v8505 = vadd.f32 %v8221, %v8479
    %v8506 = vadd.f32 %v8222, %v8484
    %v8507 = vadd.f32 %v8223, %v8489
    %v8508 = vadd.f32 %v8224, %v8494
    %v8509 = vadd.f32 %v8225, %v8499
    %v8510 = vsel %vm571, %v8502, 0.0
    %8511 = vadd.xlane.f32.xlu0 %v8510
    %v8512 = vpop.xlane.xlu0 %8511
    %v8513 = vsel %vm571, %v8503, 0.0
    %8514 = vadd.xlane.f32.xlu0 %v8513
    %v8515 = vpop.xlane.xlu0 %8514
    %v8516 = vsel %vm571, %v8504, 0.0
    %8517 = vadd.xlane.f32.xlu0 %v8516
    %v8518 = vpop.xlane.xlu0 %8517
    %v8519 = vsel %vm571, %v8505, 0.0
    %8520 = vadd.xlane.f32.xlu0 %v8519
    %v8521 = vpop.xlane.xlu0 %8520
    %v8522 = vsel %vm571, %v8506, 0.0
    %8523 = vadd.xlane.f32.xlu0 %v8522
    %v8524 = vpop.xlane.xlu0 %8523
    %v8525 = vsel %vm571, %v8507, 0.0
    %8526 = vadd.xlane.f32.xlu0 %v8525
    %v8527 = vpop.xlane.xlu0 %8526
    %v8528 = vsel %vm571, %v8508, 0.0
    %8529 = vadd.xlane.f32.xlu0 %v8528
    %v8530 = vpop.xlane.xlu0 %8529
    %v8531 = vsel %vm571, %v8509, 0.0
    %8532 = vadd.xlane.f32.xlu0 %v8531
    %v8533 = vpop.xlane.xlu0 %8532
    %v8534 = vmul.f32 %v8512, %v1566
    %v8535 = vmul.f32 %v8515, %v1566
    %v8536 = vmul.f32 %v8518, %v1566
    %v8537 = vmul.f32 %v8521, %v1566
    %v8538 = vmul.f32 %v8524, %v1566
    %v8539 = vmul.f32 %v8527, %v1566
    %v8540 = vmul.f32 %v8530, %v1566
    %v8541 = vmul.f32 %v8533, %v1566
    %v8542 = vsub.f32 %v8502, %v8534
    %v8543 = vsub.f32 %v8503, %v8535
    %v8544 = vsub.f32 %v8504, %v8536
    %v8545 = vsub.f32 %v8505, %v8537
    %v8546 = vsub.f32 %v8506, %v8538
    %v8547 = vsub.f32 %v8507, %v8539
    %v8548 = vsub.f32 %v8508, %v8540
    %v8549 = vsub.f32 %v8509, %v8541
    %v8550 = vmul.f32 %v8542, %v8542
    %v8551 = vmul.f32 %v8543, %v8543
    %v8552 = vmul.f32 %v8544, %v8544
    %v8553 = vmul.f32 %v8545, %v8545
    %v8554 = vmul.f32 %v8546, %v8546
    %v8555 = vmul.f32 %v8547, %v8547
    %v8556 = vmul.f32 %v8548, %v8548
    %v8557 = vmul.f32 %v8549, %v8549
    %v8558 = vsel %vm571, %v8550, 0.0
    %8559 = vadd.xlane.f32.xlu0 %v8558
    %v8560 = vpop.xlane.xlu0 %8559
    %v8561 = vsel %vm571, %v8551, 0.0
    %8562 = vadd.xlane.f32.xlu0 %v8561
    %v8563 = vpop.xlane.xlu0 %8562
    %v8564 = vsel %vm571, %v8552, 0.0
    %8565 = vadd.xlane.f32.xlu0 %v8564
    %v8566 = vpop.xlane.xlu0 %8565
    %v8567 = vsel %vm571, %v8553, 0.0
    %8568 = vadd.xlane.f32.xlu0 %v8567
    %v8569 = vpop.xlane.xlu0 %8568
    %v8570 = vsel %vm571, %v8554, 0.0
    %8571 = vadd.xlane.f32.xlu0 %v8570
    %v8572 = vpop.xlane.xlu0 %8571
    %v8573 = vsel %vm571, %v8555, 0.0
    %8574 = vadd.xlane.f32.xlu0 %v8573
    %v8575 = vpop.xlane.xlu0 %8574
    %v8576 = vsel %vm571, %v8556, 0.0
    %8577 = vadd.xlane.f32.xlu0 %v8576
    %v8578 = vpop.xlane.xlu0 %8577
    %v8579 = vsel %vm571, %v8557, 0.0
    %8580 = vadd.xlane.f32.xlu0 %v8579
    %v8581 = vpop.xlane.xlu0 %8580
    %v8582 = vmul.f32 %v8560, %v1566
    %v8583 = vmul.f32 %v8563, %v1566
    %v8584 = vmul.f32 %v8566, %v1566
    %v8585 = vmul.f32 %v8569, %v1566
    %v8586 = vmul.f32 %v8572, %v1566
    %v8587 = vmul.f32 %v8575, %v1566
    %v8588 = vmul.f32 %v8578, %v1566
    %v8589 = vmul.f32 %v8581, %v1566
    %v8590 = vadd.f32 %v8582, 1e-05
    %v8591 = vadd.f32 %v8583, 1e-05
    %v8592 = vadd.f32 %v8584, 1e-05
    %v8593 = vadd.f32 %v8585, 1e-05
    %v8594 = vadd.f32 %v8586, 1e-05
    %v8595 = vadd.f32 %v8587, 1e-05
    %v8596 = vadd.f32 %v8588, 1e-05
    %v8597 = vadd.f32 %v8589, 1e-05
    %v8598 = vrsqrt.pop %v8590
    %v8599 = vrsqrt.pop %v8591
    %v8600 = vrsqrt.pop %v8592
    %v8601 = vrsqrt.pop %v8593
    %v8602 = vrsqrt.pop %v8594
    %v8603 = vrsqrt.pop %v8595
    %v8604 = vrsqrt.pop %v8596
    %v8605 = vrsqrt.pop %v8597
    %v8606 = vmul.f32 %v8542, %v8598
    %v8607 = vmul.f32 %v8543, %v8599
    %v8608 = vmul.f32 %v8544, %v8600
    %v8609 = vmul.f32 %v8545, %v8601
    %v8610 = vmul.f32 %v8546, %v8602
    %v8611 = vmul.f32 %v8547, %v8603
    %v8612 = vmul.f32 %v8548, %v8604
    %v8613 = vmul.f32 %v8549, %v8605
    %v8614 = vmul.f32 %v8606, %v7256
    %v8615 = vmul.f32 %v8607, %v7256
    %v8616 = vmul.f32 %v8608, %v7256
    %v8617 = vmul.f32 %v8609, %v7256
    %v8618 = vmul.f32 %v8610, %v7256
    %v8619 = vmul.f32 %v8611, %v7256
    %v8620 = vmul.f32 %v8612, %v7256
    %v8621 = vmul.f32 %v8613, %v7256
    %v8622 = vadd.f32 %v8614, %v7268
    %v8623 = vadd.f32 %v8615, %v7268
    %v8624 = vadd.f32 %v8616, %v7268
    %v8625 = vadd.f32 %v8617, %v7268
    %v8626 = vadd.f32 %v8618, %v7268
    %v8627 = vadd.f32 %v8619, %v7268
    %v8628 = vadd.f32 %v8620, %v7268
    %v8629 = vadd.f32 %v8621, %v7268
    %v8630 = vld [vmem:[%s10] sm:$0xff]
    %v8631 = vld [vmem:[%s10 + $0x8] sm:$0xff]
    %v8632 = vld [vmem:[%s10 + $0x10] sm:$0xff]
    %v8633 = vld [vmem:[%s10 + $0x18] sm:$0xff]
    %v8634 = vld [vmem:[%s11] sm:$0x1]
    %v8636 = vlaneseq
    %v8637 = vshrl.u32 %v8636, 7
    %v8638 = vsub.s32 0, %v8637
    %v8639 = vrot.slane %v8634, %v8638
    %v8642 = vsel %vm571, %v8622, 0
    %v8645 = vsel %vm571, %v8623, 0
    %v8648 = vsel %vm571, %v8624, 0
    %v8651 = vsel %vm571, %v8625, 0
    %v8654 = vsel %vm571, %v8626, 0
    %v8657 = vsel %vm571, %v8627, 0
    %v8660 = vsel %vm571, %v8628, 0
    %v8663 = vsel %vm571, %v8629, 0
    %8665 = vmatprep.subr.mxu0 0.0
    %8666 = vmatpush1.msra.mxu0 %v8630
    %8667 = vmatprep.subr.mxu0 0.0
    %8668 = vmatpush1.msra.mxu0 %v8631
    %8669 = vmatprep.subr.mxu0 0.0
    %8670 = vmatpush1.msra.mxu0 %v8632
    %8671 = vmatprep.subr.mxu0 0.0
    %8672 = vmatpush1.msra.mxu0 %v8633
    %8673 = vmatprep.subr.mxu0 0.0
    %8674 = vmatpush1.msra.mxu0 0.0
    %8675 = vmatprep.subr.mxu0 0.0
    %8676 = vmatpush1.msra.mxu0 0.0
    %8677 = vmatprep.subr.mxu0 0.0
    %8678 = vmatpush1.msra.mxu0 0.0
    %8679 = vmatprep.subr.mxu0 0.0
    %8680 = vmatpush1.msra.mxu0 0.0
    %8681 = vmatprep.subr.mxu0 0.0
    %8682 = vmatpush1.msra.mxu0 0.0
    %8683 = vmatprep.subr.mxu0 0.0
    %8684 = vmatpush1.msra.mxu0 0.0
    %8685 = vmatprep.subr.mxu0 0.0
    %8686 = vmatpush1.msra.mxu0 0.0
    %8687 = vmatprep.subr.mxu0 0.0
    %8688 = vmatpush1.msra.mxu0 0.0
    %8689 = vmatprep.subr.mxu0 0.0
    %8690 = vmatpush1.msra.mxu0 0.0
    %8691 = vmatprep.subr.mxu0 0.0
    %8692 = vmatpush1.msra.mxu0 0.0
    %8693 = vmatprep.subr.mxu0 0.0
    %8694 = vmatpush1.msra.mxu0 0.0
    %8695 = vmatprep.subr.mxu0 0.0
    %8696 = vmatpush1.msra.mxu0 0.0
    %8697 = vmatprep.subr.mxu0 0.0
    %8698 = vmatpush1.msra.mxu0 0.0
    %8699 = vmatprep.subr.mxu0 0.0
    %8700 = vmatpush1.msra.mxu0 0.0
    %8701 = vmatprep.subr.mxu0 0.0
    %8702 = vmatpush1.msra.mxu0 0.0
    %8703 = vmatprep.subr.mxu0 0.0
    %8704 = vmatpush1.msra.mxu0 0.0
    %8705 = vmatprep.subr.mxu0 0.0
    %8706 = vmatpush1.msra.mxu0 0.0
    %8707 = vmatprep.subr.mxu0 0.0
    %8708 = vmatpush1.msra.mxu0 0.0
    %8709 = vmatprep.subr.mxu0 0.0
    %8710 = vmatpush1.msra.mxu0 0.0
    %8711 = vmatprep.subr.mxu0 0.0
    %8712 = vmatpush1.msra.mxu0 0.0
    %8713 = vmatprep.subr.mxu0 0.0
    %8714 = vmatpush1.msra.mxu0 0.0
    %8715 = vmatprep.subr.mxu0 0.0
    %8716 = vmatpush1.msra.mxu0 0.0
    %8717 = vmatprep.subr.mxu0 0.0
    %8718 = vmatpush1.msra.mxu0 0.0
    %8719 = vmatprep.subr.mxu0 0.0
    %8720 = vmatpush1.msra.mxu0 0.0
    %8721 = vmatprep.subr.mxu0 0.0
    %8722 = vmatpush1.msra.mxu0 0.0
    %8723 = vmatprep.subr.mxu0 0.0
    %8724 = vmatpush1.msra.mxu0 0.0
    %8725 = vmatprep.subr.mxu0 0.0
    %8726 = vmatpush1.msra.mxu0 0.0
    %8727 = vmatprep.subr.mxu0 0.0
    %8728 = vmatpush1.msra.mxu0 0.0
    %8729 = vmatprep.mubr.f32.mxu0 0.0
    %8730 = vmatmul.mubr.f32.gmra.mrb[0].mxu0 %v8642
    %v8731 = vpop.f32.mrb[0].mxu0
    %v8732 = vadd.f32 %v8639, %v8731
    %v8733 = vpop.f32.mrb[0].mxu0
    %8734 = vmatprep.mubr.f32.mxu0 0.0
    %8735 = vmatmul.mubr.f32.gmra.mrb[0].mxu0 %v8645
    %v8736 = vpop.f32.mrb[0].mxu0
    %v8737 = vadd.f32 %v8639, %v8736
    %v8738 = vpop.f32.mrb[0].mxu0
    %8739 = vmatprep.mubr.f32.mxu0 0.0
    %8740 = vmatmul.mubr.f32.gmra.mrb[0].mxu0 %v8648
    %v8741 = vpop.f32.mrb[0].mxu0
    %v8742 = vadd.f32 %v8639, %v8741
    %v8743 = vpop.f32.mrb[0].mxu0
    %8744 = vmatprep.mubr.f32.mxu0 0.0
    %8745 = vmatmul.mubr.f32.gmra.mrb[0].mxu0 %v8651
    %v8746 = vpop.f32.mrb[0].mxu0
    %v8747 = vadd.f32 %v8639, %v8746
    %v8748 = vpop.f32.mrb[0].mxu0
    %8749 = vmatprep.mubr.f32.mxu0 0.0
    %8750 = vmatmul.mubr.f32.gmra.mrb[0].mxu0 %v8654
    %v8751 = vpop.f32.mrb[0].mxu0
    %v8752 = vadd.f32 %v8639, %v8751
    %v8753 = vpop.f32.mrb[0].mxu0
    %8754 = vmatprep.mubr.f32.mxu0 0.0
    %8755 = vmatmul.mubr.f32.gmra.mrb[0].mxu0 %v8657
    %v8756 = vpop.f32.mrb[0].mxu0
    %v8757 = vadd.f32 %v8639, %v8756
    %v8758 = vpop.f32.mrb[0].mxu0
    %8759 = vmatprep.mubr.f32.mxu0 0.0
    %8760 = vmatmul.mubr.f32.gmra.mrb[0].mxu0 %v8660
    %v8761 = vpop.f32.mrb[0].mxu0
    %v8762 = vadd.f32 %v8639, %v8761
    %v8763 = vpop.f32.mrb[0].mxu0
    %8764 = vmatprep.mubr.f32.mxu0 0.0
    %8765 = vmatmul.mubr.f32.gmra.mrb[0].mxu0 %v8663
    %v8766 = vpop.f32.mrb[0].mxu0
    %v8767 = vadd.f32 %v8639, %v8766
    %v8768 = vpop.f32.mrb[0].mxu0
    %8769 = vdwg.mxu0
    %v8770 = vsel %vm571, %v8732, -inf
    %v8771 = vsel %vm571, %v8737, -inf
    %v8772 = vsel %vm571, %v8742, -inf
    %v8773 = vmax.f32 %v8770, %v8772
    %v8774 = vsel %vm571, %v8747, -inf
    %v8775 = vmax.f32 %v8771, %v8774
    %v8776 = vmax.f32 %v8773, %v8775
    %v8777 = vrot.slane %v8776, 4
    %v8778 = vmax.f32 %v8776, %v8777
    %v8779 = vrot.slane %v8778, 2
    %v8780 = vmax.f32 %v8778, %v8779
    %v8781 = vrot.slane %v8780, 1
    %v8782 = vmax.f32 %v8780, %v8781
    %v8783 = vsel %vm571, %v8752, -inf
    %v8784 = vsel %vm571, %v8757, -inf
    %v8785 = vsel %vm571, %v8762, -inf
    %v8786 = vmax.f32 %v8783, %v8785
    %v8787 = vsel %vm571, %v8767, -inf
    %v8788 = vmax.f32 %v8784, %v8787
    %v8789 = vmax.f32 %v8786, %v8788
    %v8790 = vrot.slane %v8789, 4
    %v8791 = vmax.f32 %v8789, %v8790
    %v8792 = vrot.slane %v8791, 2
    %v8793 = vmax.f32 %v8791, %v8792
    %v8794 = vrot.slane %v8793, 1
    %v8795 = vmax.f32 %v8793, %v8794
    %v8796 = vsub.f32 %v8732, %v8782
    %v8797 = vsub.f32 %v8737, %v8782
    %v8798 = vsub.f32 %v8742, %v8782
    %v8799 = vsub.f32 %v8747, %v8782
    %v8800 = vsub.f32 %v8752, %v8795
    %v8801 = vsub.f32 %v8757, %v8795
    %v8802 = vsub.f32 %v8762, %v8795
    %v8803 = vsub.f32 %v8767, %v8795
    %v8804 = vmul.f32 %v8796, 1.442695
    %v8805 = vpow.pop %v8804
    %v8806 = vmul.f32 %v8797, 1.442695
    %v8807 = vpow.pop %v8806
    %v8808 = vmul.f32 %v8798, 1.442695
    %v8809 = vpow.pop %v8808
    %v8810 = vmul.f32 %v8799, 1.442695
    %v8811 = vpow.pop %v8810
    %v8812 = vmul.f32 %v8800, 1.442695
    %v8813 = vpow.pop %v8812
    %v8814 = vmul.f32 %v8801, 1.442695
    %v8815 = vpow.pop %v8814
    %v8816 = vmul.f32 %v8802, 1.442695
    %v8817 = vpow.pop %v8816
    %v8818 = vmul.f32 %v8803, 1.442695
    %v8819 = vpow.pop %v8818
    %v8820 = vsel %vm571, %v8805, 0.0
    %v8821 = vsel %vm571, %v8807, 0.0
    %v8822 = vadd.f32 %v8820, %v8821
    %v8823 = vsel %vm571, %v8809, 0.0
    %v8824 = vadd.f32 %v8822, %v8823
    %v8825 = vsel %vm571, %v8811, 0.0
    %v8826 = vadd.f32 %v8824, %v8825
    %v8827 = vrot.slane %v8826, 4
    %v8828 = vadd.f32 %v8826, %v8827
    %v8829 = vrot.slane %v8828, 2
    %v8830 = vadd.f32 %v8828, %v8829
    %v8831 = vrot.slane %v8830, 1
    %v8832 = vadd.f32 %v8830, %v8831
    %v8833 = vsel %vm571, %v8813, 0.0
    %v8834 = vsel %vm571, %v8815, 0.0
    %v8835 = vadd.f32 %v8833, %v8834
    %v8836 = vsel %vm571, %v8817, 0.0
    %v8837 = vadd.f32 %v8835, %v8836
    %v8838 = vsel %vm571, %v8819, 0.0
    %v8839 = vadd.f32 %v8837, %v8838
    %v8840 = vrot.slane %v8839, 4
    %v8841 = vadd.f32 %v8839, %v8840
    %v8842 = vrot.slane %v8841, 2
    %v8843 = vadd.f32 %v8841, %v8842
    %v8844 = vrot.slane %v8843, 1
    %v8845 = vadd.f32 %v8843, %v8844
    %v8846 = vrcp.pop %v8832
    %v8847 = vmul.f32 %v8805, %v8846
    %v8848 = vmul.f32 %v8807, %v8846
    %v8849 = vmul.f32 %v8809, %v8846
    %v8850 = vmul.f32 %v8811, %v8846
    %v8851 = vrcp.pop %v8845
    %v8852 = vmul.f32 %v8813, %v8851
    %v8853 = vmul.f32 %v8815, %v8851
    %v8854 = vmul.f32 %v8817, %v8851
    %v8855 = vmul.f32 %v8819, %v8851
    %8856 = vst.msk [vmem:[#allocation13] sm:$0xff] %vm571, %v8847
    %8857 = vst.msk [vmem:[#allocation13 + $0x8] sm:$0xff] %vm571, %v8848
    %8858 = vst.msk [vmem:[#allocation13 + $0x10] sm:$0xff] %vm571, %v8849
    %8859 = vst.msk [vmem:[#allocation13 + $0x18] sm:$0xff] %vm571, %v8850
    %8860 = vst.msk [vmem:[#allocation13 + $0x20] sm:$0xff] %vm571, %v8852
    %8861 = vst.msk [vmem:[#allocation13 + $0x28] sm:$0xff] %vm571, %v8853
    %8862 = vst.msk [vmem:[#allocation13 + $0x30] sm:$0xff] %vm571, %v8854
    %8863 = vst.msk [vmem:[#allocation13 + $0x38] sm:$0xff] %vm571, %v8855
    // Predicated region
    $region74: #{_lambda_.1} parent=1 // pred_check
      _
    $region75: #{_lambda_.1} parent=1 // pred_check_branch
      %8865 = sbr.rel (0) target = $region77
    $region76: #{_lambda_.1} parent=1 // pred_region
      %s8867 = ssub.s32 1024, 1024
      %8868 = vsyncadd [#allocation4], %s8867
      %s8869 = sshll.u32 [#allocation13], 4
      %s8870 = int_to_ptr.vmem [resolvable:$true] %s8869
      %8875 = dma.vmem_to_hbm [thread:$0]  %s8870, 1024, %s12, [#allocation4], 128, 128, 8
    $region77: #{_lambda_.1} parent=1 // pred_fallthru
      _
    // Predicated region
    $region78: #{_lambda_.1} parent=1 // pred_check
      _
    $region79: #{_lambda_.1} parent=1 // pred_check_branch
      %8877 = sbr.rel (0) target = $region81
    $region80: #{_lambda_.1} parent=1 // pred_region
      %8878 = dma.done [#allocation4], 1024
    $region81: #{_lambda_.1} parent=1 // pred_fallthru
      _
    %8879 = vsyncpa [#allocation3], 1
    %8880 = vsyncpa [#allocation6], 1
    %8881 = vsyncpa [#allocation9], 1
    %8882 = vsyncpa [#allocation12], 1
    %8883 = vsyncpa [#allocation4], 1

</llo_original>
